<compile_context>
chip_gen: v7x
topology: tpu7x:2x2x1
jax: 0.10.0
libtpu: 0.0.40
codegen_flags: <defaults>
</compile_context>

<pallas_src>
import functools
import math

import jax
import jax.numpy as jnp
from jax.experimental import pallas as pl
from jax.experimental.pallas import tpu as pltpu

_NEG_INF = -1e30


def _round_up(x, m):
    return ((x + m - 1) // m) * m


@functools.lru_cache(maxsize=1)
def _vmem_limit():
    """Generation-aware scoped-VMEM limit (3/4 of capacity, safe fallback)."""
    try:
        cap = pltpu.get_tpu_info().vmem_capacity_bytes
        return int(min(cap * 3 // 4, 112 * 1024 * 1024))
    except Exception:
        return 48 * 1024 * 1024  # conservative: fits v7x's 64 MiB per TC


# --------------------------------------------------------------------------
# Tiled linear:  out = x @ W + b   (M, N, K tiled; f32 scratch accumulator)
# --------------------------------------------------------------------------
def _linear_kernel(x_ref, w_ref, b_ref, o_ref, acc_ref):
    @pl.when(pl.program_id(2) == 0)
    def _():
        acc_ref[...] = jnp.zeros_like(acc_ref)

    # Operands stay in storage dtype (bf16); accumulate in f32 on the MXU.
    acc_ref[...] += jnp.dot(x_ref[...], w_ref[...],
                            preferred_element_type=jnp.float32)

    @pl.when(pl.program_id(2) == pl.num_programs(2) - 1)
    def _():
        o_ref[...] = (acc_ref[...] + b_ref[...]).astype(o_ref.dtype)


def _linear(x2, w, b, *, out_dtype=None, tm_max=512, tn_max=512, tk_max=512):
    """x2: [M, K], w: [K, N], b: [N] (f32) -> [M, N]."""
    M, K = x2.shape
    K2, N = w.shape
    assert K == K2
    out_dtype = out_dtype if out_dtype is not None else x2.dtype

    tm = min(tm_max, _round_up(M, 8))
    tk = min(tk_max, _round_up(K, 128))
    tn = min(tn_max, _round_up(N, 128))
    M_pad, K_pad, N_pad = _round_up(M, tm), _round_up(K, tk), _round_up(N, tn)

    if (M_pad, K_pad) != (M, K):
        x2 = jnp.pad(x2, ((0, M_pad - M), (0, K_pad - K)))
    if (K_pad, N_pad) != (K, N):
        w = jnp.pad(w, ((0, K_pad - K), (0, N_pad - N)))
    b2 = b.astype(jnp.float32).reshape(1, N)
    if N_pad != N:
        b2 = jnp.pad(b2, ((0, 0), (0, N_pad - N)))

    out = pl.pallas_call(
        _linear_kernel,
        out_shape=jax.ShapeDtypeStruct((M_pad, N_pad), out_dtype),
        grid_spec=pltpu.PrefetchScalarGridSpec(
            num_scalar_prefetch=0,
            grid=(M_pad // tm, N_pad // tn, K_pad // tk),
            in_specs=[
                pl.BlockSpec((tm, tk), lambda i, j, k: (i, k)),   # x tile
                pl.BlockSpec((tk, tn), lambda i, j, k: (k, j)),   # W tile
                pl.BlockSpec((1, tn), lambda i, j, k: (0, j)),    # bias tile
            ],
            out_specs=pl.BlockSpec((tm, tn), lambda i, j, k: (i, j)),
            scratch_shapes=[pltpu.VMEM((tm, tn), jnp.float32)],
        ),
        compiler_params=pltpu.CompilerParams(
            dimension_semantics=("parallel", "parallel", "arbitrary"),
            vmem_limit_bytes=_vmem_limit()),
    )(x2, w, b2)
    return out[:M, :N]


# --------------------------------------------------------------------------
# Causal attention (flash-style online softmax), Hb heads per grid step
# --------------------------------------------------------------------------
def _attn_kernel(q_ref, k_ref, v_ref, o_ref, m_sc, l_sc, acc_sc, *, scale):
    # q_ref/k_ref/v_ref/o_ref: (Hb, tile, D); scratch: (Hb,tile,1)x2 + (Hb,tile,D) f32
    qi = pl.program_id(1)
    ki = pl.program_id(2)

    @pl.when(ki == 0)
    def _():
        m_sc[...] = jnp.full_like(m_sc, _NEG_INF)
        l_sc[...] = jnp.zeros_like(l_sc)
        acc_sc[...] = jnp.zeros_like(acc_sc)

    def process(apply_causal_mask):
        # Scale q (Hb x tile x D) instead of s (Hb x tile x tile): fewer VPU mults.
        q = q_ref[...] * jnp.asarray(scale, dtype=q_ref.dtype)
        k = k_ref[...]
        # Batched per-head q @ k^T, f32 accumulation on the MXU.
        s = jnp.einsum("hqd,hkd->hqk", q, k,
                       preferred_element_type=jnp.float32)
        if apply_causal_mask:
            # Diagonal block only (q_start == k_start): local lower-triangular
            # mask.  Padded kv columns (col >= T) always sit strictly above the
            # diagonal for valid rows, so no extra seq-length mask is needed.
            tq, tk = q_ref.shape[1], k_ref.shape[1]
            row = jax.lax.broadcasted_iota(jnp.int32, (tq, tk), 0)
            col = jax.lax.broadcasted_iota(jnp.int32, (tq, tk), 1)
            s = jnp.where((col <= row)[None], s, _NEG_INF)

        m_prev = m_sc[...]
        m_new = jnp.maximum(m_prev, s.max(axis=-1, keepdims=True))
        alpha = jnp.exp(m_prev - m_new)
        p = jnp.exp(s - m_new)
        l_sc[...] = alpha * l_sc[...] + p.sum(axis=-1, keepdims=True)
        acc_sc[...] = alpha * acc_sc[...] + jnp.einsum(
            "hqk,hkd->hqd", p.astype(v_ref.dtype), v_ref[...],
            preferred_element_type=jnp.float32)
        m_sc[...] = m_new

    # Blocks strictly below the diagonal: no mask at all.
    @pl.when(ki < qi)
    def _():
        process(False)

    # Diagonal block: mask, then finalize (it is the last contributing block
    # for this q tile; remaining ki > qi grid steps are pure no-ops and, with
    # the clamped K/V index maps, issue no DMA either).
    @pl.when(ki == qi)
    def _():
        process(True)
        inv_l = pl.reciprocal(l_sc[...], approx=True)
        o_ref[...] = (acc_sc[...] * inv_l).astype(o_ref.dtype)


def _causal_attention(q, k, v, *, tile_max=256):
    """q, k, v: [BG, Hb, T, D] -> [BG, Hb, T, D] with per-head causal attention."""
    BG, Hb, T, D = q.shape
    tile = min(tile_max, _round_up(T, 8))
    T_pad = _round_up(T, tile)
    if T_pad != T:
        pad = ((0, 0), (0, 0), (0, T_pad - T), (0, 0))
        q, k, v = jnp.pad(q, pad), jnp.pad(k, pad), jnp.pad(v, pad)

    nt = T_pad // tile
    scale = 1.0 / math.sqrt(D)
    kernel = functools.partial(_attn_kernel, scale=scale)

    out = pl.pallas_call(
        kernel,
        out_shape=jax.ShapeDtypeStruct((BG, Hb, T_pad, D), q.dtype),
        grid_spec=pltpu.PrefetchScalarGridSpec(
            num_scalar_prefetch=0,
            grid=(BG, nt, nt),
            in_specs=[
                pl.BlockSpec((None, Hb, tile, D),
                             lambda g, qi, ki: (g, 0, qi, 0)),
                # Clamp ki -> min(ki, qi): steps above the diagonal re-use the
                # previous K/V block (no new HBM traffic).
                pl.BlockSpec((None, Hb, tile, D),
                             lambda g, qi, ki: (g, 0, jnp.minimum(ki, qi), 0)),
                pl.BlockSpec((None, Hb, tile, D),
                             lambda g, qi, ki: (g, 0, jnp.minimum(ki, qi), 0)),
            ],
            out_specs=pl.BlockSpec((None, Hb, tile, D),
                                   lambda g, qi, ki: (g, 0, qi, 0)),
            scratch_shapes=[
                pltpu.VMEM((Hb, tile, 1), jnp.float32),   # running max m
                pltpu.VMEM((Hb, tile, 1), jnp.float32),   # running sum l
                pltpu.VMEM((Hb, tile, D), jnp.float32),   # output accumulator
            ],
        ),
        compiler_params=pltpu.CompilerParams(
            dimension_semantics=("parallel", "parallel", "arbitrary"),
            vmem_limit_bytes=_vmem_limit()),
    )(q, k, v)
    return out[:, :, :T, :]


# --------------------------------------------------------------------------
# Full CausalSelfAttention forward
# --------------------------------------------------------------------------
@functools.partial(jax.jit, static_argnames=("n_head", "attn_tile"))
def causal_self_attention(x, w_attn, b_attn, w_proj, b_proj,
                          *, n_head, attn_tile=256):
    """x: [B,T,C]; w_attn: [C,3C]; b_attn: [3C]; w_proj: [C,C]; b_proj: [C]."""
    B, T, C = x.shape
    H = n_head
    D = C // H
    M = B * T
    cdt = jnp.bfloat16  # MXU compute/storage dtype (f32 accumulation in-kernel)

    # 1) QKV projection (bf16 operands, f32 accumulate).
    x_b = x.reshape(M, C).astype(cdt)
    qkv = _linear(x_b, w_attn.astype(cdt), b_attn, out_dtype=cdt)   # (M, 3C)

    # Heads per attention block: pack so Hb*D >= 128 lanes when possible.
    Hb = math.gcd(H, max(1, 128 // max(D, 1)))
    G = H // Hb

    # Head split (layout plumbing in XLA).
    # TODO(synk): index q/k/v head-group blocks straight out of the (M, 3C) qkv
    # matrix via BlockSpec column offsets (and write y back in (M, C) layout) to
    # eliminate these HBM-round-trip transposes entirely.
    qkv = qkv.reshape(B, T, 3, H, D)
    q = qkv[:, :, 0].transpose(0, 2, 1, 3).reshape(B * G, Hb, T, D)
    k = qkv[:, :, 1].transpose(0, 2, 1, 3).reshape(B * G, Hb, T, D)
    v = qkv[:, :, 2].transpose(0, 2, 1, 3).reshape(B * G, Hb, T, D)

    # 2) Causal attention, Hb heads per grid step.
    y = _causal_attention(q, k, v, tile_max=attn_tile)             # (B*G,Hb,T,D)
    y = y.reshape(B, H, T, D).transpose(0, 2, 1, 3).reshape(M, C)

    # 3) Output projection (f32 result).
    out = _linear(y, w_proj.astype(cdt), b_proj, out_dtype=jnp.float32)
    return out.reshape(B, T, C)


# --------------------------------------------------------------------------
# Pure-JAX reference (mirrors the PyTorch module, f32 throughout)
# --------------------------------------------------------------------------
def reference_attention(x, w_attn, b_attn, w_proj, b_proj, n_head):
    B, T, C = x.shape
    D = C // n_head
    qkv = jnp.einsum("btc,cd->btd", x, w_attn) + b_attn
    q, k, v = jnp.split(qkv, 3, axis=-1)
    q = q.reshape(B, T, n_head, D).transpose(0, 2, 1, 3)
    k = k.reshape(B, T, n_head, D).transpose(0, 2, 1, 3)
    v = v.reshape(B, T, n_head, D).transpose(0, 2, 1, 3)
    att = jnp.einsum("bhqd,bhkd->bhqk", q, k) * (1.0 / math.sqrt(D))
    mask = jnp.tril(jnp.ones((T, T), dtype=bool))
    att = jnp.where(mask[None, None], att, -jnp.inf)
    att = jax.nn.softmax(att, axis=-1)
    y = jnp.einsum("bhqk,bhkd->bhqd", att, v)
    y = y.transpose(0, 2, 1, 3).reshape(B, T, C)
    return jnp.einsum("btc,cd->btd", y, w_proj) + b_proj


if __name__ == "__main__":
    # Small config consistent with the module (C divisible by n_head, lane-dense).
    B, T, C, n_head = 2, 64, 128, 4

    key = jax.random.PRNGKey(0)
    kx, kwa, kba, kwp, kbp = jax.random.split(key, 5)

    x = jax.random.normal(kx, (B, T, C), dtype=jnp.float32)
    # nn.Linear(C, 3C).weight is (3C, C); we store its transpose (C, 3C).
    w_attn = jax.random.normal(kwa, (C, 3 * C), dtype=jnp.float32) * 0.02
    b_attn = jax.random.normal(kba, (3 * C,), dtype=jnp.float32) * 0.02
    # nn.Linear(C, C).weight is (C, C); stored transposed (C, C).
    w_proj = jax.random.normal(kwp, (C, C), dtype=jnp.float32) * 0.02
    b_proj = jax.random.normal(kbp, (C,), dtype=jnp.float32) * 0.02

    y = causal_self_attention(x, w_attn, b_attn, w_proj, b_proj, n_head=n_head)
    y = jax.block_until_ready(y)

    y_ref = reference_attention(x, w_attn, b_attn, w_proj, b_proj, n_head)
    assert y.shape == (B, T, C)
    max_err = float(jnp.max(jnp.abs(y - y_ref)))
    # bf16 operands (f32 accumulation) vs f32 reference: expect ~1e-3 error.
    assert max_err < 2e-2, max_err
    print("KERNEL_OK")
</pallas_src>

<mosaic_0001>
module attributes {stable_mosaic.version = 11 : i64} {
  func.func @_linear_kernel(%arg0: i32, %arg1: i32, %arg2: i32, %arg3: memref<128x128xbf16, #tpu.memory_space<vmem>>, %arg4: memref<128x384xbf16, #tpu.memory_space<vmem>>, %arg5: memref<1x384xf32, #tpu.memory_space<vmem>>, %arg6: memref<128x384xbf16, #tpu.memory_space<vmem>>, %arg7: memref<128x384xf32, #tpu.memory_space<vmem>>) attributes {dimension_semantics = [#tpu.dimension_semantics<parallel>, #tpu.dimension_semantics<parallel>, #tpu.dimension_semantics<arbitrary>], iteration_bounds = array<i64: 1, 1, 1>, scalar_prefetch = 0 : i64, scratch_operands = 1 : i64, tpu.core_type = #tpu.core_type<tc>, window_params = [{transform_indices = @transform_0, window_bounds = array<i64: 128, 128>}, {transform_indices = @transform_1, window_bounds = array<i64: 128, 384>}, {transform_indices = @transform_2, window_bounds = array<i64: 1, 384>}, {transform_indices = @transform_3, window_bounds = array<i64: 128, 384>}]} {
    %c0_i32 = arith.constant 0 : i32
    %0 = arith.cmpi eq, %arg2, %c0_i32 : i32
    %1 = arith.extui %0 : i1 to i32
    %c0_i32_0 = arith.constant 0 : i32
    %2 = arith.cmpi ne, %1, %c0_i32_0 : i32
    scf.if %2 {
      %cst_10 = arith.constant 0.000000e+00 : f32
      %12 = vector.broadcast %cst_10 : f32 to vector<128x384xf32>
      %c0_11 = arith.constant 0 : index
      %c0_12 = arith.constant 0 : index
      %13 = vector.load %arg7[%c0_11, %c0_12] : memref<128x384xf32, #tpu.memory_space<vmem>>, vector<128x384xf32>
      tpu.vector_store %arg7[%c0_11, %c0_12], %12 {strides = array<i32>} : memref<128x384xf32, #tpu.memory_space<vmem>>, vector<128x384xf32>,
    } else {
    }
    %c0 = arith.constant 0 : index
    %c0_1 = arith.constant 0 : index
    %3 = vector.load %arg7[%c0, %c0_1] : memref<128x384xf32, #tpu.memory_space<vmem>>, vector<128x384xf32>
    %c0_2 = arith.constant 0 : index
    %c0_3 = arith.constant 0 : index
    %4 = vector.load %arg3[%c0_2, %c0_3] : memref<128x128xbf16, #tpu.memory_space<vmem>>, vector<128x128xbf16>
    %c0_4 = arith.constant 0 : index
    %c0_5 = arith.constant 0 : index
    %5 = vector.load %arg4[%c0_4, %c0_5] : memref<128x384xbf16, #tpu.memory_space<vmem>>, vector<128x384xbf16>
    %cst = arith.constant dense<0.000000e+00> : vector<128x384xf32>
    %6 = tpu.matmul %4, %5, %cst {dimension_numbers = #tpu.dot_dimension_numbers<[1], [0], [0], [1], [0, 0, 1, 1], [], []>} : vector<128x128xbf16>, vector<128x384xbf16>, vector<128x384xf32> -> vector<128x384xf32>
    %7 = arith.addf %3, %6 : vector<128x384xf32>
    %c0_6 = arith.constant 0 : index
    %c0_7 = arith.constant 0 : index
    %8 = vector.load %arg7[%c0_6, %c0_7] : memref<128x384xf32, #tpu.memory_space<vmem>>, vector<128x384xf32>
    tpu.vector_store %arg7[%c0_6, %c0_7], %7 {strides = array<i32>} : memref<128x384xf32, #tpu.memory_space<vmem>>, vector<128x384xf32>,
    %c0_i32_8 = arith.constant 0 : i32
    %9 = arith.cmpi eq, %arg2, %c0_i32_8 : i32
    %10 = arith.extui %9 : i1 to i32
    %c0_i32_9 = arith.constant 0 : i32
    %11 = arith.cmpi ne, %10, %c0_i32_9 : i32
    scf.if %11 {
      %c0_10 = arith.constant 0 : index
      %c0_11 = arith.constant 0 : index
      %12 = vector.load %arg7[%c0_10, %c0_11] : memref<128x384xf32, #tpu.memory_space<vmem>>, vector<128x384xf32>
      %c0_12 = arith.constant 0 : index
      %c0_13 = arith.constant 0 : index
      %13 = vector.load %arg5[%c0_12, %c0_13] : memref<1x384xf32, #tpu.memory_space<vmem>>, vector<1x384xf32>
      %14 = vector.broadcast %13 : vector<1x384xf32> to vector<128x384xf32>
      %15 = arith.addf %12, %14 : vector<128x384xf32>
      %16 = arith.truncf %15 : vector<128x384xf32> to vector<128x384xbf16>
      %c0_14 = arith.constant 0 : index
      %c0_15 = arith.constant 0 : index
      %17 = vector.load %arg6[%c0_14, %c0_15] : memref<128x384xbf16, #tpu.memory_space<vmem>>, vector<128x384xbf16>
      tpu.vector_store %arg6[%c0_14, %c0_15], %16 {strides = array<i32>} : memref<128x384xbf16, #tpu.memory_space<vmem>>, vector<128x384xbf16>,
    } else {
    }
    return
  }
  func.func @transform_0(%arg0: i32, %arg1: i32, %arg2: i32) -> (i32, i32) {
    %c0_i32 = arith.constant 0 : i32
    return %arg0, %arg2 : i32, i32
  }
  func.func @transform_1(%arg0: i32, %arg1: i32, %arg2: i32) -> (i32, i32) {
    %c0_i32 = arith.constant 0 : i32
    return %arg2, %arg1 : i32, i32
  }
  func.func @transform_2(%arg0: i32, %arg1: i32, %arg2: i32) -> (i32, i32) {
    %c0_i32 = arith.constant 0 : i32
    %c0_i32_0 = arith.constant 0 : i32
    return %c0_i32, %arg1 : i32, i32
  }
  func.func @transform_3(%arg0: i32, %arg1: i32, %arg2: i32) -> (i32, i32) {
    %c0_i32 = arith.constant 0 : i32
    return %arg0, %arg1 : i32, i32
  }
}

module attributes {stable_mosaic.version = 11 : i64} {
  func.func @_attn_kernel(%arg0: i32, %arg1: i32, %arg2: i32, %arg3: memref<1x4x64x32xbf16, #tpu.memory_space<vmem>>, %arg4: memref<1x4x64x32xbf16, #tpu.memory_space<vmem>>, %arg5: memref<1x4x64x32xbf16, #tpu.memory_space<vmem>>, %arg6: memref<1x4x64x32xbf16, #tpu.memory_space<vmem>>, %arg7: memref<4x64x1xf32, #tpu.memory_space<vmem>>, %arg8: memref<4x64x1xf32, #tpu.memory_space<vmem>>, %arg9: memref<4x64x32xf32, #tpu.memory_space<vmem>>) attributes {dimension_semantics = [#tpu.dimension_semantics<parallel>, #tpu.dimension_semantics<parallel>, #tpu.dimension_semantics<arbitrary>], iteration_bounds = array<i64: 2, 1, 1>, scalar_prefetch = 0 : i64, scratch_operands = 3 : i64, tpu.core_type = #tpu.core_type<tc>, window_params = [{transform_indices = @transform_0, window_bounds = array<i64: 1, 4, 64, 32>}, {transform_indices = @transform_1, window_bounds = array<i64: 1, 4, 64, 32>}, {transform_indices = @transform_2, window_bounds = array<i64: 1, 4, 64, 32>}, {transform_indices = @transform_3, window_bounds = array<i64: 1, 4, 64, 32>}]} {
    %c0_i32 = arith.constant 0 : i32
    %0 = arith.cmpi eq, %arg2, %c0_i32 : i32
    %1 = arith.extui %0 : i1 to i32
    %c0_i32_0 = arith.constant 0 : i32
    %2 = arith.cmpi ne, %1, %c0_i32_0 : i32
    scf.if %2 {
      %cst = arith.constant -1.000000e+30 : f32
      %9 = vector.broadcast %cst : f32 to vector<4x64x1xf32>
      %c0 = arith.constant 0 : index
      %c0_3 = arith.constant 0 : index
      %c0_4 = arith.constant 0 : index
      %10 = vector.load %arg7[%c0, %c0_3, %c0_4] : memref<4x64x1xf32, #tpu.memory_space<vmem>>, vector<4x64x1xf32>
      tpu.vector_store %arg7[%c0, %c0_3, %c0_4], %9 {strides = array<i32>} : memref<4x64x1xf32, #tpu.memory_space<vmem>>, vector<4x64x1xf32>,
      %cst_5 = arith.constant 0.000000e+00 : f32
      %11 = vector.broadcast %cst_5 : f32 to vector<4x64x1xf32>
      %c0_6 = arith.constant 0 : index
      %c0_7 = arith.constant 0 : index
      %c0_8 = arith.constant 0 : index
      %12 = vector.load %arg8[%c0_6, %c0_7, %c0_8] : memref<4x64x1xf32, #tpu.memory_space<vmem>>, vector<4x64x1xf32>
      tpu.vector_store %arg8[%c0_6, %c0_7, %c0_8], %11 {strides = array<i32>} : memref<4x64x1xf32, #tpu.memory_space<vmem>>, vector<4x64x1xf32>,
      %cst_9 = arith.constant 0.000000e+00 : f32
      %13 = vector.broadcast %cst_9 : f32 to vector<4x64x32xf32>
      %c0_10 = arith.constant 0 : index
      %c0_11 = arith.constant 0 : index
      %c0_12 = arith.constant 0 : index
      %14 = vector.load %arg9[%c0_10, %c0_11, %c0_12] : memref<4x64x32xf32, #tpu.memory_space<vmem>>, vector<4x64x32xf32>
      tpu.vector_store %arg9[%c0_10, %c0_11, %c0_12], %13 {strides = array<i32>} : memref<4x64x32xf32, #tpu.memory_space<vmem>>, vector<4x64x32xf32>,
    } else {
    }
    %3 = arith.cmpi slt, %arg2, %arg1 : i32
    %4 = arith.extui %3 : i1 to i32
    %c0_i32_1 = arith.constant 0 : i32
    %5 = arith.cmpi ne, %4, %c0_i32_1 : i32
    scf.if %5 {
      %c0 = arith.constant 0 : index
      %c0_3 = arith.constant 0 : index
      %c0_4 = arith.constant 0 : index
      %c0_5 = arith.constant 0 : index
      %9 = vector.load %arg3[%c0, %c0_3, %c0_4, %c0_5] : memref<1x4x64x32xbf16, #tpu.memory_space<vmem>>, vector<1x4x64x32xbf16>
      %10 = vector.shape_cast %9 : vector<1x4x64x32xbf16> to vector<4x64x32xbf16>
      %cst = arith.constant 1.767580e-01 : bf16
      %11 = vector.broadcast %cst : bf16 to vector<4x64x32xbf16>
      %12 = arith.mulf %10, %11 : vector<4x64x32xbf16>
      %c0_6 = arith.constant 0 : index
      %c0_7 = arith.constant 0 : index
      %c0_8 = arith.constant 0 : index
      %c0_9 = arith.constant 0 : index
      %13 = vector.load %arg4[%c0_6, %c0_7, %c0_8, %c0_9] : memref<1x4x64x32xbf16, #tpu.memory_space<vmem>>, vector<1x4x64x32xbf16>
      %14 = vector.shape_cast %13 : vector<1x4x64x32xbf16> to vector<4x64x32xbf16>
      "tpu.trace_start"() <{level = 10 : i32, message = "hqd,hkd->hqk"}> : () -> ()
      %cst_10 = arith.constant dense<0.000000e+00> : vector<4x64x64xf32>
      %15 = tpu.matmul %12, %14, %cst_10 {dimension_numbers = #tpu.dot_dimension_numbers<[2], [2], [1], [1], [0, 0, 0, 1, 1, 1], [0], [0]>} : vector<4x64x32xbf16>, vector<4x64x32xbf16>, vector<4x64x64xf32> -> vector<4x64x64xf32>
      "tpu.trace_stop"() : () -> ()
      %c0_11 = arith.constant 0 : index
      %c0_12 = arith.constant 0 : index
      %c0_13 = arith.constant 0 : index
      %16 = vector.load %arg7[%c0_11, %c0_12, %c0_13] : memref<4x64x1xf32, #tpu.memory_space<vmem>>, vector<4x64x1xf32>
      %cst_14 = arith.constant dense<0xFF800000> : vector<4x64xf32>
      %17 = vector.multi_reduction <maximumf>, %15, %cst_14 [2] : vector<4x64x64xf32> to vector<4x64xf32>
      %18 = vector.shape_cast %17 : vector<4x64xf32> to vector<4x64x1xf32>
      %19 = arith.maximumf %16, %18 : vector<4x64x1xf32>
      %20 = arith.subf %16, %19 : vector<4x64x1xf32>
      %21 = math.exp %20 : vector<4x64x1xf32>
      %22 = vector.broadcast %19 : vector<4x64x1xf32> to vector<4x64x64xf32>
      %23 = arith.subf %15, %22 : vector<4x64x64xf32>
      %24 = math.exp %23 : vector<4x64x64xf32>
      %c0_15 = arith.constant 0 : index
      %c0_16 = arith.constant 0 : index
      %c0_17 = arith.constant 0 : index
      %25 = vector.load %arg8[%c0_15, %c0_16, %c0_17] : memref<4x64x1xf32, #tpu.memory_space<vmem>>, vector<4x64x1xf32>
      %26 = arith.mulf %21, %25 : vector<4x64x1xf32>
      %cst_18 = arith.constant dense<0.000000e+00> : vector<4x64xf32>
      %27 = vector.multi_reduction <add>, %24, %cst_18 [2] : vector<4x64x64xf32> to vector<4x64xf32>
      %28 = vector.shape_cast %27 : vector<4x64xf32> to vector<4x64x1xf32>
      %29 = arith.addf %26, %28 : vector<4x64x1xf32>
      %c0_19 = arith.constant 0 : index
      %c0_20 = arith.constant 0 : index
      %c0_21 = arith.constant 0 : index
      %30 = vector.load %arg8[%c0_19, %c0_20, %c0_21] : memref<4x64x1xf32, #tpu.memory_space<vmem>>, vector<4x64x1xf32>
      tpu.vector_store %arg8[%c0_19, %c0_20, %c0_21], %29 {strides = array<i32>} : memref<4x64x1xf32, #tpu.memory_space<vmem>>, vector<4x64x1xf32>,
      %c0_22 = arith.constant 0 : index
      %c0_23 = arith.constant 0 : index
      %c0_24 = arith.constant 0 : index
      %31 = vector.load %arg9[%c0_22, %c0_23, %c0_24] : memref<4x64x32xf32, #tpu.memory_space<vmem>>, vector<4x64x32xf32>
      %32 = vector.broadcast %21 : vector<4x64x1xf32> to vector<4x64x32xf32>
      %33 = arith.mulf %32, %31 : vector<4x64x32xf32>
      %34 = arith.truncf %24 : vector<4x64x64xf32> to vector<4x64x64xbf16>
      %c0_25 = arith.constant 0 : index
      %c0_26 = arith.constant 0 : index
      %c0_27 = arith.constant 0 : index
      %c0_28 = arith.constant 0 : index
      %35 = vector.load %arg5[%c0_25, %c0_26, %c0_27, %c0_28] : memref<1x4x64x32xbf16, #tpu.memory_space<vmem>>, vector<1x4x64x32xbf16>
      %36 = vector.shape_cast %35 : vector<1x4x64x32xbf16> to vector<4x64x32xbf16>
      "tpu.trace_start"() <{level = 10 : i32, message = "hqk,hkd->hqd"}> : () -> ()
      %cst_29 = arith.constant dense<0.000000e+00> : vector<4x64x32xf32>
      %37 = tpu.matmul %34, %36, %cst_29 {dimension_numbers = #tpu.dot_dimension_numbers<[2], [1], [1], [2], [0, 0, 0, 1, 1, 2], [0], [0]>} : vector<4x64x64xbf16>, vector<4x64x32xbf16>, vector<4x64x32xf32> -> vector<4x64x32xf32>
      "tpu.trace_stop"() : () -> ()
      %38 = arith.addf %33, %37 : vector<4x64x32xf32>
      %c0_30 = arith.constant 0 : index
      %c0_31 = arith.constant 0 : index
      %c0_32 = arith.constant 0 : index
      %39 = vector.load %arg9[%c0_30, %c0_31, %c0_32] : memref<4x64x32xf32, #tpu.memory_space<vmem>>, vector<4x64x32xf32>
      tpu.vector_store %arg9[%c0_30, %c0_31, %c0_32], %38 {strides = array<i32>} : memref<4x64x32xf32, #tpu.memory_space<vmem>>, vector<4x64x32xf32>,
      %c0_33 = arith.constant 0 : index
      %c0_34 = arith.constant 0 : index
      %c0_35 = arith.constant 0 : index
      %40 = vector.load %arg7[%c0_33, %c0_34, %c0_35] : memref<4x64x1xf32, #tpu.memory_space<vmem>>, vector<4x64x1xf32>
      tpu.vector_store %arg7[%c0_33, %c0_34, %c0_35], %19 {strides = array<i32>} : memref<4x64x1xf32, #tpu.memory_space<vmem>>, vector<4x64x1xf32>,
    } else {
    }
    %6 = arith.cmpi eq, %arg2, %arg1 : i32
    %7 = arith.extui %6 : i1 to i32
    %c0_i32_2 = arith.constant 0 : i32
    %8 = arith.cmpi ne, %7, %c0_i32_2 : i32
    scf.if %8 {
      %c0 = arith.constant 0 : index
      %c0_3 = arith.constant 0 : index
      %c0_4 = arith.constant 0 : index
      %c0_5 = arith.constant 0 : index
      %9 = vector.load %arg3[%c0, %c0_3, %c0_4, %c0_5] : memref<1x4x64x32xbf16, #tpu.memory_space<vmem>>, vector<1x4x64x32xbf16>
      %10 = vector.shape_cast %9 : vector<1x4x64x32xbf16> to vector<4x64x32xbf16>
      %cst = arith.constant 1.767580e-01 : bf16
      %11 = vector.broadcast %cst : bf16 to vector<4x64x32xbf16>
      %12 = arith.mulf %10, %11 : vector<4x64x32xbf16>
      %c0_6 = arith.constant 0 : index
      %c0_7 = arith.constant 0 : index
      %c0_8 = arith.constant 0 : index
      %c0_9 = arith.constant 0 : index
      %13 = vector.load %arg4[%c0_6, %c0_7, %c0_8, %c0_9] : memref<1x4x64x32xbf16, #tpu.memory_space<vmem>>, vector<1x4x64x32xbf16>
      %14 = vector.shape_cast %13 : vector<1x4x64x32xbf16> to vector<4x64x32xbf16>
      "tpu.trace_start"() <{level = 10 : i32, message = "hqd,hkd->hqk"}> : () -> ()
      %cst_10 = arith.constant dense<0.000000e+00> : vector<4x64x64xf32>
      %15 = tpu.matmul %12, %14, %cst_10 {dimension_numbers = #tpu.dot_dimension_numbers<[2], [2], [1], [1], [0, 0, 0, 1, 1, 1], [0], [0]>} : vector<4x64x32xbf16>, vector<4x64x32xbf16>, vector<4x64x64xf32> -> vector<4x64x64xf32>
      "tpu.trace_stop"() : () -> ()
      %16 = tpu.iota {dimensions = array<i32: 0>} : vector<64x64xi32>
      %17 = tpu.iota {dimensions = array<i32: 1>} : vector<64x64xi32>
      %18 = arith.cmpi sle, %17, %16 : vector<64x64xi32>
      %19 = vector.shape_cast %18 : vector<64x64xi1> to vector<1x64x64xi1>
      %cst_11 = arith.constant -1.000000e+30 : f32
      %20 = vector.shape_cast %19 : vector<1x64x64xi1> to vector<1x64x64xi1>
      %21 = vector.broadcast %20 : vector<1x64x64xi1> to vector<4x64x64xi1>
      %22 = vector.broadcast %cst_11 : f32 to vector<4x64x64xf32>
      %23 = arith.select %21, %15, %22 : vector<4x64x64xi1>, vector<4x64x64xf32>
      %c0_12 = arith.constant 0 : index
      %c0_13 = arith.constant 0 : index
      %c0_14 = arith.constant 0 : index
      %24 = vector.load %arg7[%c0_12, %c0_13, %c0_14] : memref<4x64x1xf32, #tpu.memory_space<vmem>>, vector<4x64x1xf32>
      %cst_15 = arith.constant dense<0xFF800000> : vector<4x64xf32>
      %25 = vector.multi_reduction <maximumf>, %23, %cst_15 [2] : vector<4x64x64xf32> to vector<4x64xf32>
      %26 = vector.shape_cast %25 : vector<4x64xf32> to vector<4x64x1xf32>
      %27 = arith.maximumf %24, %26 : vector<4x64x1xf32>
      %28 = arith.subf %24, %27 : vector<4x64x1xf32>
      %29 = math.exp %28 : vector<4x64x1xf32>
      %30 = vector.broadcast %27 : vector<4x64x1xf32> to vector<4x64x64xf32>
      %31 = arith.subf %23, %30 : vector<4x64x64xf32>
      %32 = math.exp %31 : vector<4x64x64xf32>
      %c0_16 = arith.constant 0 : index
      %c0_17 = arith.constant 0 : index
      %c0_18 = arith.constant 0 : index
      %33 = vector.load %arg8[%c0_16, %c0_17, %c0_18] : memref<4x64x1xf32, #tpu.memory_space<vmem>>, vector<4x64x1xf32>
      %34 = arith.mulf %29, %33 : vector<4x64x1xf32>
      %cst_19 = arith.constant dense<0.000000e+00> : vector<4x64xf32>
      %35 = vector.multi_reduction <add>, %32, %cst_19 [2] : vector<4x64x64xf32> to vector<4x64xf32>
      %36 = vector.shape_cast %35 : vector<4x64xf32> to vector<4x64x1xf32>
      %37 = arith.addf %34, %36 : vector<4x64x1xf32>
      %c0_20 = arith.constant 0 : index
      %c0_21 = arith.constant 0 : index
      %c0_22 = arith.constant 0 : index
      %38 = vector.load %arg8[%c0_20, %c0_21, %c0_22] : memref<4x64x1xf32, #tpu.memory_space<vmem>>, vector<4x64x1xf32>
      tpu.vector_store %arg8[%c0_20, %c0_21, %c0_22], %37 {strides = array<i32>} : memref<4x64x1xf32, #tpu.memory_space<vmem>>, vector<4x64x1xf32>,
      %c0_23 = arith.constant 0 : index
      %c0_24 = arith.constant 0 : index
      %c0_25 = arith.constant 0 : index
      %39 = vector.load %arg9[%c0_23, %c0_24, %c0_25] : memref<4x64x32xf32, #tpu.memory_space<vmem>>, vector<4x64x32xf32>
      %40 = vector.broadcast %29 : vector<4x64x1xf32> to vector<4x64x32xf32>
      %41 = arith.mulf %40, %39 : vector<4x64x32xf32>
      %42 = arith.truncf %32 : vector<4x64x64xf32> to vector<4x64x64xbf16>
      %c0_26 = arith.constant 0 : index
      %c0_27 = arith.constant 0 : index
      %c0_28 = arith.constant 0 : index
      %c0_29 = arith.constant 0 : index
      %43 = vector.load %arg5[%c0_26, %c0_27, %c0_28, %c0_29] : memref<1x4x64x32xbf16, #tpu.memory_space<vmem>>, vector<1x4x64x32xbf16>
      %44 = vector.shape_cast %43 : vector<1x4x64x32xbf16> to vector<4x64x32xbf16>
      "tpu.trace_start"() <{level = 10 : i32, message = "hqk,hkd->hqd"}> : () -> ()
      %cst_30 = arith.constant dense<0.000000e+00> : vector<4x64x32xf32>
      %45 = tpu.matmul %42, %44, %cst_30 {dimension_numbers = #tpu.dot_dimension_numbers<[2], [1], [1], [2], [0, 0, 0, 1, 1, 2], [0], [0]>} : vector<4x64x64xbf16>, vector<4x64x32xbf16>, vector<4x64x32xf32> -> vector<4x64x32xf32>
      "tpu.trace_stop"() : () -> ()
      %46 = arith.addf %41, %45 : vector<4x64x32xf32>
      %c0_31 = arith.constant 0 : index
      %c0_32 = arith.constant 0 : index
      %c0_33 = arith.constant 0 : index
      %47 = vector.load %arg9[%c0_31, %c0_32, %c0_33] : memref<4x64x32xf32, #tpu.memory_space<vmem>>, vector<4x64x32xf32>
      tpu.vector_store %arg9[%c0_31, %c0_32, %c0_33], %46 {strides = array<i32>} : memref<4x64x32xf32, #tpu.memory_space<vmem>>, vector<4x64x32xf32>,
      %c0_34 = arith.constant 0 : index
      %c0_35 = arith.constant 0 : index
      %c0_36 = arith.constant 0 : index
      %48 = vector.load %arg7[%c0_34, %c0_35, %c0_36] : memref<4x64x1xf32, #tpu.memory_space<vmem>>, vector<4x64x1xf32>
      tpu.vector_store %arg7[%c0_34, %c0_35, %c0_36], %27 {strides = array<i32>} : memref<4x64x1xf32, #tpu.memory_space<vmem>>, vector<4x64x1xf32>,
      %c0_37 = arith.constant 0 : index
      %c0_38 = arith.constant 0 : index
      %c0_39 = arith.constant 0 : index
      %49 = vector.load %arg8[%c0_37, %c0_38, %c0_39] : memref<4x64x1xf32, #tpu.memory_space<vmem>>, vector<4x64x1xf32>
      %50 = tpu.reciprocal %49 {approx = true} : vector<4x64x1xf32> -> vector<4x64x1xf32>
      %c0_40 = arith.constant 0 : index
      %c0_41 = arith.constant 0 : index
      %c0_42 = arith.constant 0 : index
      %51 = vector.load %arg9[%c0_40, %c0_41, %c0_42] : memref<4x64x32xf32, #tpu.memory_space<vmem>>, vector<4x64x32xf32>
      %52 = vector.broadcast %50 : vector<4x64x1xf32> to vector<4x64x32xf32>
      %53 = arith.mulf %51, %52 : vector<4x64x32xf32>
      %54 = arith.truncf %53 : vector<4x64x32xf32> to vector<4x64x32xbf16>
      %c0_43 = arith.constant 0 : index
      %c0_44 = arith.constant 0 : index
      %c0_45 = arith.constant 0 : index
      %c0_46 = arith.constant 0 : index
      %55 = vector.load %arg6[%c0_43, %c0_44, %c0_45, %c0_46] : memref<1x4x64x32xbf16, #tpu.memory_space<vmem>>, vector<1x4x64x32xbf16>
      %56 = vector.shape_cast %55 : vector<1x4x64x32xbf16> to vector<4x64x32xbf16>
      %57 = vector.shape_cast %54 : vector<4x64x32xbf16> to vector<1x4x64x32xbf16>
      tpu.vector_store %arg6[%c0_43, %c0_44, %c0_45, %c0_46], %57 {strides = array<i32>} : memref<1x4x64x32xbf16, #tpu.memory_space<vmem>>, vector<1x4x64x32xbf16>,
    } else {
    }
    return
  }
  func.func @transform_0(%arg0: i32, %arg1: i32, %arg2: i32) -> (i32, i32, i32, i32) {
    %c0_i32 = arith.constant 0 : i32
    %c0_i32_0 = arith.constant 0 : i32
    %c0_i32_1 = arith.constant 0 : i32
    return %arg0, %c0_i32, %arg1, %c0_i32_0 : i32, i32, i32, i32
  }
  func.func @transform_1(%arg0: i32, %arg1: i32, %arg2: i32) -> (i32, i32, i32, i32) {
    %0 = arith.minsi %arg2, %arg1 : i32
    %c0_i32 = arith.constant 0 : i32
    %c0_i32_0 = arith.constant 0 : i32
    %c0_i32_1 = arith.constant 0 : i32
    return %arg0, %c0_i32, %0, %c0_i32_0 : i32, i32, i32, i32
  }
  func.func @transform_2(%arg0: i32, %arg1: i32, %arg2: i32) -> (i32, i32, i32, i32) {
    %0 = arith.minsi %arg2, %arg1 : i32
    %c0_i32 = arith.constant 0 : i32
    %c0_i32_0 = arith.constant 0 : i32
    %c0_i32_1 = arith.constant 0 : i32
    return %arg0, %c0_i32, %0, %c0_i32_0 : i32, i32, i32, i32
  }
  func.func @transform_3(%arg0: i32, %arg1: i32, %arg2: i32) -> (i32, i32, i32, i32) {
    %c0_i32 = arith.constant 0 : i32
    %c0_i32_0 = arith.constant 0 : i32
    %c0_i32_1 = arith.constant 0 : i32
    return %arg0, %c0_i32, %arg1, %c0_i32_0 : i32, i32, i32, i32
  }
}

module attributes {stable_mosaic.version = 11 : i64} {
  func.func @_linear_kernel(%arg0: i32, %arg1: i32, %arg2: i32, %arg3: memref<128x128xbf16, #tpu.memory_space<vmem>>, %arg4: memref<128x128xbf16, #tpu.memory_space<vmem>>, %arg5: memref<1x128xf32, #tpu.memory_space<vmem>>, %arg6: memref<128x128xf32, #tpu.memory_space<vmem>>, %arg7: memref<128x128xf32, #tpu.memory_space<vmem>>) attributes {dimension_semantics = [#tpu.dimension_semantics<parallel>, #tpu.dimension_semantics<parallel>, #tpu.dimension_semantics<arbitrary>], iteration_bounds = array<i64: 1, 1, 1>, scalar_prefetch = 0 : i64, scratch_operands = 1 : i64, tpu.core_type = #tpu.core_type<tc>, window_params = [{transform_indices = @transform_0, window_bounds = array<i64: 128, 128>}, {transform_indices = @transform_1, window_bounds = array<i64: 128, 128>}, {transform_indices = @transform_2, window_bounds = array<i64: 1, 128>}, {transform_indices = @transform_3, window_bounds = array<i64: 128, 128>}]} {
    %c0_i32 = arith.constant 0 : i32
    %0 = arith.cmpi eq, %arg2, %c0_i32 : i32
    %1 = arith.extui %0 : i1 to i32
    %c0_i32_0 = arith.constant 0 : i32
    %2 = arith.cmpi ne, %1, %c0_i32_0 : i32
    scf.if %2 {
      %cst_10 = arith.constant 0.000000e+00 : f32
      %12 = vector.broadcast %cst_10 : f32 to vector<128x128xf32>
      %c0_11 = arith.constant 0 : index
      %c0_12 = arith.constant 0 : index
      %13 = vector.load %arg7[%c0_11, %c0_12] : memref<128x128xf32, #tpu.memory_space<vmem>>, vector<128x128xf32>
      tpu.vector_store %arg7[%c0_11, %c0_12], %12 {strides = array<i32>} : memref<128x128xf32, #tpu.memory_space<vmem>>, vector<128x128xf32>,
    } else {
    }
    %c0 = arith.constant 0 : index
    %c0_1 = arith.constant 0 : index
    %3 = vector.load %arg7[%c0, %c0_1] : memref<128x128xf32, #tpu.memory_space<vmem>>, vector<128x128xf32>
    %c0_2 = arith.constant 0 : index
    %c0_3 = arith.constant 0 : index
    %4 = vector.load %arg3[%c0_2, %c0_3] : memref<128x128xbf16, #tpu.memory_space<vmem>>, vector<128x128xbf16>
    %c0_4 = arith.constant 0 : index
    %c0_5 = arith.constant 0 : index
    %5 = vector.load %arg4[%c0_4, %c0_5] : memref<128x128xbf16, #tpu.memory_space<vmem>>, vector<128x128xbf16>
    %cst = arith.constant dense<0.000000e+00> : vector<128x128xf32>
    %6 = tpu.matmul %4, %5, %cst {dimension_numbers = #tpu.dot_dimension_numbers<[1], [0], [0], [1], [0, 0, 1, 1], [], []>} : vector<128x128xbf16>, vector<128x128xbf16>, vector<128x128xf32> -> vector<128x128xf32>
    %7 = arith.addf %3, %6 : vector<128x128xf32>
    %c0_6 = arith.constant 0 : index
    %c0_7 = arith.constant 0 : index
    %8 = vector.load %arg7[%c0_6, %c0_7] : memref<128x128xf32, #tpu.memory_space<vmem>>, vector<128x128xf32>
    tpu.vector_store %arg7[%c0_6, %c0_7], %7 {strides = array<i32>} : memref<128x128xf32, #tpu.memory_space<vmem>>, vector<128x128xf32>,
    %c0_i32_8 = arith.constant 0 : i32
    %9 = arith.cmpi eq, %arg2, %c0_i32_8 : i32
    %10 = arith.extui %9 : i1 to i32
    %c0_i32_9 = arith.constant 0 : i32
    %11 = arith.cmpi ne, %10, %c0_i32_9 : i32
    scf.if %11 {
      %c0_10 = arith.constant 0 : index
      %c0_11 = arith.constant 0 : index
      %12 = vector.load %arg7[%c0_10, %c0_11] : memref<128x128xf32, #tpu.memory_space<vmem>>, vector<128x128xf32>
      %c0_12 = arith.constant 0 : index
      %c0_13 = arith.constant 0 : index
      %13 = vector.load %arg5[%c0_12, %c0_13] : memref<1x128xf32, #tpu.memory_space<vmem>>, vector<1x128xf32>
      %14 = vector.broadcast %13 : vector<1x128xf32> to vector<128x128xf32>
      %15 = arith.addf %12, %14 : vector<128x128xf32>
      %c0_14 = arith.constant 0 : index
      %c0_15 = arith.constant 0 : index
      %16 = vector.load %arg6[%c0_14, %c0_15] : memref<128x128xf32, #tpu.memory_space<vmem>>, vector<128x128xf32>
      tpu.vector_store %arg6[%c0_14, %c0_15], %15 {strides = array<i32>} : memref<128x128xf32, #tpu.memory_space<vmem>>, vector<128x128xf32>,
    } else {
    }
    return
  }
  func.func @transform_0(%arg0: i32, %arg1: i32, %arg2: i32) -> (i32, i32) {
    %c0_i32 = arith.constant 0 : i32
    return %arg0, %arg2 : i32, i32
  }
  func.func @transform_1(%arg0: i32, %arg1: i32, %arg2: i32) -> (i32, i32) {
    %c0_i32 = arith.constant 0 : i32
    return %arg2, %arg1 : i32, i32
  }
  func.func @transform_2(%arg0: i32, %arg1: i32, %arg2: i32) -> (i32, i32) {
    %c0_i32 = arith.constant 0 : i32
    %c0_i32_0 = arith.constant 0 : i32
    return %c0_i32, %arg1 : i32, i32
  }
  func.func @transform_3(%arg0: i32, %arg1: i32, %arg2: i32) -> (i32, i32) {
    %c0_i32 = arith.constant 0 : i32
    return %arg0, %arg1 : i32, i32
  }
}

</mosaic_0001>

<llo_original>
// kernel: causal_self_attention.3
$region0: #{causal_self_attention.3}
  #allocation0 [shape = 'u32[]', space=smem, size = 0x4, offset = 0x4, fixed_abs, tag = 'smem constant byte address 0x4 - core index']
  #allocation1 [shape = 'u32[144,128]{1,0:T(1,128)}', space=vmem, size = 0x12000, scoped, tag = 'internal scratch']
  #allocation2 [shape = 'f32[128,384]{1,0:T(8,128)}', space=vmem, size = 0x30000, scoped, tag = 'scratch operand']
  %s0 = inlined_call_operand.vmem [shape: bf16[128,128], index: 0, kind: input, shape index: {}]
  %s1 = inlined_call_operand.vmem [shape: bf16[128,384], index: 1, kind: input, shape index: {}]
  %s2 = inlined_call_operand.vmem [shape: f32[1,384], index: 2, kind: input, shape index: {}]
  %s3 = inlined_call_operand.vmem [shape: bf16[128,384], index: 3, kind: output, shape index: {}]
  %s4 = sld [smem:[#allocation0]]
  $region30: #{causal_self_attention.3} parent=0
    _
  %s6 = ssub.s32 1, %s4
  %s7 = scalar_select 0, %s6, %s4
  // Predicated region
  $region2: #{causal_self_attention.3} parent=0 // pred_check
    _
  $region3: #{causal_self_attention.3} parent=0 // pred_check_branch
    %9 = sbr.rel (0) target = $region5
  $region4: #{causal_self_attention.3} parent=0 // pred_region
    _
  $region5: #{causal_self_attention.3} parent=0 // pred_fallthru
    _
  // Predicated region
  $region6: #{causal_self_attention.3} parent=0 // pred_check
    _
  $region7: #{causal_self_attention.3} parent=0 // pred_check_branch
    %11 = sbr.rel (0) target = $region9
  $region8: #{causal_self_attention.3} parent=0 // pred_region
    _
  $region9: #{causal_self_attention.3} parent=0 // pred_fallthru
    _
  // Predicated region
  $region10: #{causal_self_attention.3} parent=0 // pred_check
    _
  $region11: #{causal_self_attention.3} parent=0 // pred_check_branch
    %13 = sbr.rel (0) target = $region13
  $region12: #{causal_self_attention.3} parent=0 // pred_region
    _
  $region13: #{causal_self_attention.3} parent=0 // pred_fallthru
    _
  %p15 = scmp.eq.s32.totalorder 0, 0
  // Predicated region
  $region14: #{causal_self_attention.3} parent=0 // pred_check
    %p16 = pneg %p15
  $region15: #{causal_self_attention.3} parent=0 // pred_check_branch
    %18 = sbr.rel (%p16) target = $region17
  $region16: #{causal_self_attention.3} parent=0 // pred_region
    %19 = vst [vmem:[#allocation2] sm:$0xff] 0.0
    %20 = vst [vmem:[#allocation2 + $0x8] sm:$0xff] 0.0
    %21 = vst [vmem:[#allocation2 + $0x10] sm:$0xff] 0.0
    %22 = vst [vmem:[#allocation2 + $0x18] sm:$0xff] 0.0
    %23 = vst [vmem:[#allocation2 + $0x20] sm:$0xff] 0.0
    %24 = vst [vmem:[#allocation2 + $0x28] sm:$0xff] 0.0
    %25 = vst [vmem:[#allocation2 + $0x30] sm:$0xff] 0.0
    %26 = vst [vmem:[#allocation2 + $0x38] sm:$0xff] 0.0
    %27 = vst [vmem:[#allocation2 + $0x40] sm:$0xff] 0.0
    %28 = vst [vmem:[#allocation2 + $0x48] sm:$0xff] 0.0
    %29 = vst [vmem:[#allocation2 + $0x50] sm:$0xff] 0.0
    %30 = vst [vmem:[#allocation2 + $0x58] sm:$0xff] 0.0
    %31 = vst [vmem:[#allocation2 + $0x60] sm:$0xff] 0.0
    %32 = vst [vmem:[#allocation2 + $0x68] sm:$0xff] 0.0
    %33 = vst [vmem:[#allocation2 + $0x70] sm:$0xff] 0.0
    %34 = vst [vmem:[#allocation2 + $0x78] sm:$0xff] 0.0
    %35 = vst [vmem:[#allocation2 + $0x80] sm:$0xff] 0.0
    %36 = vst [vmem:[#allocation2 + $0x88] sm:$0xff] 0.0
    %37 = vst [vmem:[#allocation2 + $0x90] sm:$0xff] 0.0
    %38 = vst [vmem:[#allocation2 + $0x98] sm:$0xff] 0.0
    %39 = vst [vmem:[#allocation2 + $0xa0] sm:$0xff] 0.0
    %40 = vst [vmem:[#allocation2 + $0xa8] sm:$0xff] 0.0
    %41 = vst [vmem:[#allocation2 + $0xb0] sm:$0xff] 0.0
    %42 = vst [vmem:[#allocation2 + $0xb8] sm:$0xff] 0.0
    %43 = vst [vmem:[#allocation2 + $0xc0] sm:$0xff] 0.0
    %44 = vst [vmem:[#allocation2 + $0xc8] sm:$0xff] 0.0
    %45 = vst [vmem:[#allocation2 + $0xd0] sm:$0xff] 0.0
    %46 = vst [vmem:[#allocation2 + $0xd8] sm:$0xff] 0.0
    %47 = vst [vmem:[#allocation2 + $0xe0] sm:$0xff] 0.0
    %48 = vst [vmem:[#allocation2 + $0xe8] sm:$0xff] 0.0
    %49 = vst [vmem:[#allocation2 + $0xf0] sm:$0xff] 0.0
    %50 = vst [vmem:[#allocation2 + $0xf8] sm:$0xff] 0.0
    %51 = vst [vmem:[#allocation2 + $0x100] sm:$0xff] 0.0
    %52 = vst [vmem:[#allocation2 + $0x108] sm:$0xff] 0.0
    %53 = vst [vmem:[#allocation2 + $0x110] sm:$0xff] 0.0
    %54 = vst [vmem:[#allocation2 + $0x118] sm:$0xff] 0.0
    %55 = vst [vmem:[#allocation2 + $0x120] sm:$0xff] 0.0
    %56 = vst [vmem:[#allocation2 + $0x128] sm:$0xff] 0.0
    %57 = vst [vmem:[#allocation2 + $0x130] sm:$0xff] 0.0
    %58 = vst [vmem:[#allocation2 + $0x138] sm:$0xff] 0.0
    %59 = vst [vmem:[#allocation2 + $0x140] sm:$0xff] 0.0
    %60 = vst [vmem:[#allocation2 + $0x148] sm:$0xff] 0.0
    %61 = vst [vmem:[#allocation2 + $0x150] sm:$0xff] 0.0
    %62 = vst [vmem:[#allocation2 + $0x158] sm:$0xff] 0.0
    %63 = vst [vmem:[#allocation2 + $0x160] sm:$0xff] 0.0
    %64 = vst [vmem:[#allocation2 + $0x168] sm:$0xff] 0.0
    %65 = vst [vmem:[#allocation2 + $0x170] sm:$0xff] 0.0
    %66 = vst [vmem:[#allocation2 + $0x178] sm:$0xff] 0.0
  $region17: #{causal_self_attention.3} parent=0 // pred_fallthru
    _
  %v67 = vld [vmem:[#allocation2] sm:$0xff]
  %v68 = vld [vmem:[#allocation2 + $0x8] sm:$0xff]
  %v69 = vld [vmem:[#allocation2 + $0x10] sm:$0xff]
  %v70 = vld [vmem:[#allocation2 + $0x18] sm:$0xff]
  %v71 = vld [vmem:[#allocation2 + $0x20] sm:$0xff]
  %v72 = vld [vmem:[#allocation2 + $0x28] sm:$0xff]
  %v73 = vld [vmem:[#allocation2 + $0x30] sm:$0xff]
  %v74 = vld [vmem:[#allocation2 + $0x38] sm:$0xff]
  %v75 = vld [vmem:[#allocation2 + $0x40] sm:$0xff]
  %v76 = vld [vmem:[#allocation2 + $0x48] sm:$0xff]
  %v77 = vld [vmem:[#allocation2 + $0x50] sm:$0xff]
  %v78 = vld [vmem:[#allocation2 + $0x58] sm:$0xff]
  %v79 = vld [vmem:[#allocation2 + $0x60] sm:$0xff]
  %v80 = vld [vmem:[#allocation2 + $0x68] sm:$0xff]
  %v81 = vld [vmem:[#allocation2 + $0x70] sm:$0xff]
  %v82 = vld [vmem:[#allocation2 + $0x78] sm:$0xff]
  %v83 = vld [vmem:[#allocation2 + $0x80] sm:$0xff]
  %v84 = vld [vmem:[#allocation2 + $0x88] sm:$0xff]
  %v85 = vld [vmem:[#allocation2 + $0x90] sm:$0xff]
  %v86 = vld [vmem:[#allocation2 + $0x98] sm:$0xff]
  %v87 = vld [vmem:[#allocation2 + $0xa0] sm:$0xff]
  %v88 = vld [vmem:[#allocation2 + $0xa8] sm:$0xff]
  %v89 = vld [vmem:[#allocation2 + $0xb0] sm:$0xff]
  %v90 = vld [vmem:[#allocation2 + $0xb8] sm:$0xff]
  %v91 = vld [vmem:[#allocation2 + $0xc0] sm:$0xff]
  %v92 = vld [vmem:[#allocation2 + $0xc8] sm:$0xff]
  %v93 = vld [vmem:[#allocation2 + $0xd0] sm:$0xff]
  %v94 = vld [vmem:[#allocation2 + $0xd8] sm:$0xff]
  %v95 = vld [vmem:[#allocation2 + $0xe0] sm:$0xff]
  %v96 = vld [vmem:[#allocation2 + $0xe8] sm:$0xff]
  %v97 = vld [vmem:[#allocation2 + $0xf0] sm:$0xff]
  %v98 = vld [vmem:[#allocation2 + $0xf8] sm:$0xff]
  %v99 = vld [vmem:[#allocation2 + $0x100] sm:$0xff]
  %v100 = vld [vmem:[#allocation2 + $0x108] sm:$0xff]
  %v101 = vld [vmem:[#allocation2 + $0x110] sm:$0xff]
  %v102 = vld [vmem:[#allocation2 + $0x118] sm:$0xff]
  %v103 = vld [vmem:[#allocation2 + $0x120] sm:$0xff]
  %v104 = vld [vmem:[#allocation2 + $0x128] sm:$0xff]
  %v105 = vld [vmem:[#allocation2 + $0x130] sm:$0xff]
  %v106 = vld [vmem:[#allocation2 + $0x138] sm:$0xff]
  %v107 = vld [vmem:[#allocation2 + $0x140] sm:$0xff]
  %v108 = vld [vmem:[#allocation2 + $0x148] sm:$0xff]
  %v109 = vld [vmem:[#allocation2 + $0x150] sm:$0xff]
  %v110 = vld [vmem:[#allocation2 + $0x158] sm:$0xff]
  %v111 = vld [vmem:[#allocation2 + $0x160] sm:$0xff]
  %v112 = vld [vmem:[#allocation2 + $0x168] sm:$0xff]
  %v113 = vld [vmem:[#allocation2 + $0x170] sm:$0xff]
  %v114 = vld [vmem:[#allocation2 + $0x178] sm:$0xff]
  %v115 = vld [vmem:[%s0] sm:$0xf]
  %v116 = vld [vmem:[%s0 + $0x4] sm:$0xf]
  %v117 = vld [vmem:[%s0 + $0x8] sm:$0xf]
  %v118 = vld [vmem:[%s0 + $0xc] sm:$0xf]
  %v119 = vld [vmem:[%s0 + $0x10] sm:$0xf]
  %v120 = vld [vmem:[%s0 + $0x14] sm:$0xf]
  %v121 = vld [vmem:[%s0 + $0x18] sm:$0xf]
  %v122 = vld [vmem:[%s0 + $0x1c] sm:$0xf]
  %v123 = vld [vmem:[%s0 + $0x20] sm:$0xf]
  %v124 = vld [vmem:[%s0 + $0x24] sm:$0xf]
  %v125 = vld [vmem:[%s0 + $0x28] sm:$0xf]
  %v126 = vld [vmem:[%s0 + $0x2c] sm:$0xf]
  %v127 = vld [vmem:[%s0 + $0x30] sm:$0xf]
  %v128 = vld [vmem:[%s0 + $0x34] sm:$0xf]
  %v129 = vld [vmem:[%s0 + $0x38] sm:$0xf]
  %v130 = vld [vmem:[%s0 + $0x3c] sm:$0xf]
  %v131 = vld [vmem:[%s1] sm:$0xff]
  %v132 = vld [vmem:[%s1 + $0x8] sm:$0xf]
  %v133 = vld [vmem:[%s1 + $0xc] sm:$0xff]
  %v134 = vld [vmem:[%s1 + $0x14] sm:$0xf]
  %v135 = vld [vmem:[%s1 + $0x18] sm:$0xff]
  %v136 = vld [vmem:[%s1 + $0x20] sm:$0xf]
  %v137 = vld [vmem:[%s1 + $0x24] sm:$0xff]
  %v138 = vld [vmem:[%s1 + $0x2c] sm:$0xf]
  %v139 = vld [vmem:[%s1 + $0x30] sm:$0xff]
  %v140 = vld [vmem:[%s1 + $0x38] sm:$0xf]
  %v141 = vld [vmem:[%s1 + $0x3c] sm:$0xff]
  %v142 = vld [vmem:[%s1 + $0x44] sm:$0xf]
  %v143 = vld [vmem:[%s1 + $0x48] sm:$0xff]
  %v144 = vld [vmem:[%s1 + $0x50] sm:$0xf]
  %v145 = vld [vmem:[%s1 + $0x54] sm:$0xff]
  %v146 = vld [vmem:[%s1 + $0x5c] sm:$0xf]
  %v147 = vld [vmem:[%s1 + $0x60] sm:$0xff]
  %v148 = vld [vmem:[%s1 + $0x68] sm:$0xf]
  %v149 = vld [vmem:[%s1 + $0x6c] sm:$0xff]
  %v150 = vld [vmem:[%s1 + $0x74] sm:$0xf]
  %v151 = vld [vmem:[%s1 + $0x78] sm:$0xff]
  %v152 = vld [vmem:[%s1 + $0x80] sm:$0xf]
  %v153 = vld [vmem:[%s1 + $0x84] sm:$0xff]
  %v154 = vld [vmem:[%s1 + $0x8c] sm:$0xf]
  %v155 = vld [vmem:[%s1 + $0x90] sm:$0xff]
  %v156 = vld [vmem:[%s1 + $0x98] sm:$0xf]
  %v157 = vld [vmem:[%s1 + $0x9c] sm:$0xff]
  %v158 = vld [vmem:[%s1 + $0xa4] sm:$0xf]
  %v159 = vld [vmem:[%s1 + $0xa8] sm:$0xff]
  %v160 = vld [vmem:[%s1 + $0xb0] sm:$0xf]
  %v161 = vld [vmem:[%s1 + $0xb4] sm:$0xff]
  %v162 = vld [vmem:[%s1 + $0xbc] sm:$0xf]
  %v179 = vunpack.c.l.b16 %v115
  %v180 = vunpack.c.l.b16 %v116
  %v181 = vunpack.c.l.b16 %v117
  %v182 = vunpack.c.l.b16 %v118
  %v183 = vunpack.c.l.b16 %v119
  %v184 = vunpack.c.l.b16 %v120
  %v185 = vunpack.c.l.b16 %v121
  %v186 = vunpack.c.l.b16 %v122
  %v187 = vunpack.c.l.b16 %v123
  %v188 = vunpack.c.l.b16 %v124
  %v189 = vunpack.c.l.b16 %v125
  %v190 = vunpack.c.l.b16 %v126
  %v191 = vunpack.c.l.b16 %v127
  %v192 = vunpack.c.l.b16 %v128
  %v193 = vunpack.c.l.b16 %v129
  %v194 = vunpack.c.l.b16 %v130
  %v195 = vpack.c.b16 %v180, %v179
  %v196 = vpack.c.b16 %v182, %v181
  %v197 = vpack.c.b16 %v184, %v183
  %v198 = vpack.c.b16 %v186, %v185
  %v199 = vpack.c.b16 %v188, %v187
  %v200 = vpack.c.b16 %v190, %v189
  %v201 = vpack.c.b16 %v192, %v191
  %v202 = vpack.c.b16 %v194, %v193
  %v243 = vunpack.c.l.b16 %v131
  %v244 = vunpack.c.h.b16 %v131
  %v245 = vunpack.c.l.b16 %v132
  %v246 = vunpack.c.l.b16 %v133
  %v247 = vunpack.c.h.b16 %v133
  %v248 = vunpack.c.l.b16 %v134
  %v249 = vunpack.c.l.b16 %v135
  %v250 = vunpack.c.h.b16 %v135
  %v251 = vunpack.c.l.b16 %v136
  %v252 = vunpack.c.l.b16 %v137
  %v253 = vunpack.c.h.b16 %v137
  %v254 = vunpack.c.l.b16 %v138
  %v255 = vunpack.c.l.b16 %v139
  %v256 = vunpack.c.h.b16 %v139
  %v257 = vunpack.c.l.b16 %v140
  %v258 = vunpack.c.l.b16 %v141
  %v259 = vunpack.c.h.b16 %v141
  %v260 = vunpack.c.l.b16 %v142
  %v261 = vunpack.c.l.b16 %v143
  %v262 = vunpack.c.h.b16 %v143
  %v263 = vunpack.c.l.b16 %v144
  %v264 = vunpack.c.l.b16 %v145
  %v265 = vunpack.c.h.b16 %v145
  %v266 = vunpack.c.l.b16 %v146
  %v267 = vunpack.c.l.b16 %v147
  %v268 = vunpack.c.h.b16 %v147
  %v269 = vunpack.c.l.b16 %v148
  %v270 = vunpack.c.l.b16 %v149
  %v271 = vunpack.c.h.b16 %v149
  %v272 = vunpack.c.l.b16 %v150
  %v273 = vunpack.c.l.b16 %v151
  %v274 = vunpack.c.h.b16 %v151
  %v275 = vunpack.c.l.b16 %v152
  %v276 = vunpack.c.l.b16 %v153
  %v277 = vunpack.c.h.b16 %v153
  %v278 = vunpack.c.l.b16 %v154
  %v279 = vunpack.c.l.b16 %v155
  %v280 = vunpack.c.h.b16 %v155
  %v281 = vunpack.c.l.b16 %v156
  %v282 = vunpack.c.l.b16 %v157
  %v283 = vunpack.c.h.b16 %v157
  %v284 = vunpack.c.l.b16 %v158
  %v285 = vunpack.c.l.b16 %v159
  %v286 = vunpack.c.h.b16 %v159
  %v287 = vunpack.c.l.b16 %v160
  %v288 = vunpack.c.l.b16 %v161
  %v289 = vunpack.c.h.b16 %v161
  %v290 = vunpack.c.l.b16 %v162
  %v291 = vpack.c.b16 %v246, %v243
  %v292 = vpack.c.b16 %v247, %v244
  %v293 = vpack.c.b16 %v248, %v245
  %v294 = vpack.c.b16 %v252, %v249
  %v295 = vpack.c.b16 %v253, %v250
  %v296 = vpack.c.b16 %v254, %v251
  %v297 = vpack.c.b16 %v258, %v255
  %v298 = vpack.c.b16 %v259, %v256
  %v299 = vpack.c.b16 %v260, %v257
  %v300 = vpack.c.b16 %v264, %v261
  %v301 = vpack.c.b16 %v265, %v262
  %v302 = vpack.c.b16 %v266, %v263
  %v303 = vpack.c.b16 %v270, %v267
  %v304 = vpack.c.b16 %v271, %v268
  %v305 = vpack.c.b16 %v272, %v269
  %v306 = vpack.c.b16 %v276, %v273
  %v307 = vpack.c.b16 %v277, %v274
  %v308 = vpack.c.b16 %v278, %v275
  %v309 = vpack.c.b16 %v282, %v279
  %v310 = vpack.c.b16 %v283, %v280
  %v311 = vpack.c.b16 %v284, %v281
  %v312 = vpack.c.b16 %v288, %v285
  %v313 = vpack.c.b16 %v289, %v286
  %v314 = vpack.c.b16 %v290, %v287
  %339 = vmatprep.subr.bf16.mxu0 %v292
  %340 = vmatpush1.bf16.msra.mxu0 %v291
  %341 = vmatprep.subr.bf16.mxu0 %v295
  %342 = vmatpush1.bf16.msra.mxu0 %v294
  %343 = vmatprep.subr.bf16.mxu0 %v298
  %344 = vmatpush1.bf16.msra.mxu0 %v297
  %345 = vmatprep.subr.bf16.mxu0 %v301
  %346 = vmatpush1.bf16.msra.mxu0 %v300
  %347 = vmatprep.subr.bf16.mxu0 %v304
  %348 = vmatpush1.bf16.msra.mxu0 %v303
  %349 = vmatprep.subr.bf16.mxu0 %v307
  %350 = vmatpush1.bf16.msra.mxu0 %v306
  %351 = vmatprep.subr.bf16.mxu0 %v310
  %352 = vmatpush1.bf16.msra.mxu0 %v309
  %353 = vmatprep.subr.bf16.mxu0 %v313
  %354 = vmatpush1.bf16.msra.mxu0 %v312
  %355 = vmatprep.subr.bf16.mxu0 0
  %356 = vmatpush1.bf16.msra.mxu0 0
  %357 = vmatprep.subr.bf16.mxu0 0
  %358 = vmatpush1.bf16.msra.mxu0 0
  %359 = vmatprep.subr.bf16.mxu0 0
  %360 = vmatpush1.bf16.msra.mxu0 0
  %361 = vmatprep.subr.bf16.mxu0 0
  %362 = vmatpush1.bf16.msra.mxu0 0
  %363 = vmatprep.subr.bf16.mxu0 0
  %364 = vmatpush1.bf16.msra.mxu0 0
  %365 = vmatprep.subr.bf16.mxu0 0
  %366 = vmatpush1.bf16.msra.mxu0 0
  %367 = vmatprep.subr.bf16.mxu0 0
  %368 = vmatpush1.bf16.msra.mxu0 0
  %369 = vmatprep.subr.bf16.mxu0 0
  %370 = vmatpush1.bf16.msra.mxu0 0
  %371 = vmatprep.mubr.bf16.mxu0 0
  %372 = vmatmul.mubr.bf16.gmra.mrb[0].mxu0 %v195
  %v373 = vpop.f32.mrb[0].mxu0
  %v374 = vadd.f32 0.0, %v373
  %v375 = vpop.f32.mrb[0].mxu0
  %v376 = vadd.f32 0.0, %v375
  %v377 = vpop.f32.mrb[0].mxu0
  %v378 = vadd.f32 0.0, %v377
  %v379 = vpop.f32.mrb[0].mxu0
  %v380 = vadd.f32 0.0, %v379
  %381 = vmatprep.mubr.bf16.mxu0 0
  %382 = vmatmul.mubr.bf16.gmra.mrb[0].mxu0 %v196
  %v383 = vpop.f32.mrb[0].mxu0
  %v384 = vadd.f32 0.0, %v383
  %v385 = vpop.f32.mrb[0].mxu0
  %v386 = vadd.f32 0.0, %v385
  %v387 = vpop.f32.mrb[0].mxu0
  %v388 = vadd.f32 0.0, %v387
  %v389 = vpop.f32.mrb[0].mxu0
  %v390 = vadd.f32 0.0, %v389
  %391 = vmatprep.mubr.bf16.mxu0 0
  %392 = vmatmul.mubr.bf16.gmra.mrb[0].mxu0 %v197
  %v393 = vpop.f32.mrb[0].mxu0
  %v394 = vadd.f32 0.0, %v393
  %v395 = vpop.f32.mrb[0].mxu0
  %v396 = vadd.f32 0.0, %v395
  %v397 = vpop.f32.mrb[0].mxu0
  %v398 = vadd.f32 0.0, %v397
  %v399 = vpop.f32.mrb[0].mxu0
  %v400 = vadd.f32 0.0, %v399
  %401 = vmatprep.mubr.bf16.mxu0 0
  %402 = vmatmul.mubr.bf16.gmra.mrb[0].mxu0 %v198
  %v403 = vpop.f32.mrb[0].mxu0
  %v404 = vadd.f32 0.0, %v403
  %v405 = vpop.f32.mrb[0].mxu0
  %v406 = vadd.f32 0.0, %v405
  %v407 = vpop.f32.mrb[0].mxu0
  %v408 = vadd.f32 0.0, %v407
  %v409 = vpop.f32.mrb[0].mxu0
  %v410 = vadd.f32 0.0, %v409
  %411 = vmatprep.mubr.bf16.mxu0 0
  %412 = vmatmul.mubr.bf16.gmra.mrb[0].mxu0 %v199
  %v413 = vpop.f32.mrb[0].mxu0
  %v414 = vadd.f32 0.0, %v413
  %v415 = vpop.f32.mrb[0].mxu0
  %v416 = vadd.f32 0.0, %v415
  %v417 = vpop.f32.mrb[0].mxu0
  %v418 = vadd.f32 0.0, %v417
  %v419 = vpop.f32.mrb[0].mxu0
  %v420 = vadd.f32 0.0, %v419
  %421 = vmatprep.mubr.bf16.mxu0 0
  %422 = vmatmul.mubr.bf16.gmra.mrb[0].mxu0 %v200
  %v423 = vpop.f32.mrb[0].mxu0
  %v424 = vadd.f32 0.0, %v423
  %v425 = vpop.f32.mrb[0].mxu0
  %v426 = vadd.f32 0.0, %v425
  %v427 = vpop.f32.mrb[0].mxu0
  %v428 = vadd.f32 0.0, %v427
  %v429 = vpop.f32.mrb[0].mxu0
  %v430 = vadd.f32 0.0, %v429
  %431 = vmatprep.mubr.bf16.mxu0 0
  %432 = vmatmul.mubr.bf16.gmra.mrb[0].mxu0 %v201
  %v433 = vpop.f32.mrb[0].mxu0
  %v434 = vadd.f32 0.0, %v433
  %v435 = vpop.f32.mrb[0].mxu0
  %v436 = vadd.f32 0.0, %v435
  %v437 = vpop.f32.mrb[0].mxu0
  %v438 = vadd.f32 0.0, %v437
  %v439 = vpop.f32.mrb[0].mxu0
  %v440 = vadd.f32 0.0, %v439
  %441 = vmatprep.mubr.bf16.mxu0 0
  %442 = vmatmul.mubr.bf16.gmra.mrb[0].mxu0 %v202
  %v443 = vpop.f32.mrb[0].mxu0
  %v444 = vadd.f32 0.0, %v443
  %v445 = vpop.f32.mrb[0].mxu0
  %v446 = vadd.f32 0.0, %v445
  %v447 = vpop.f32.mrb[0].mxu0
  %v448 = vadd.f32 0.0, %v447
  %v449 = vpop.f32.mrb[0].mxu0
  %v450 = vadd.f32 0.0, %v449
  %451 = vdwg.mxu0
  %452 = vmatprep.subr.bf16.mxu0 0
  %453 = vmatpush1.bf16.msra.mxu0 %v293
  %454 = vmatprep.subr.bf16.mxu0 0
  %455 = vmatpush1.bf16.msra.mxu0 %v296
  %456 = vmatprep.subr.bf16.mxu0 0
  %457 = vmatpush1.bf16.msra.mxu0 %v299
  %458 = vmatprep.subr.bf16.mxu0 0
  %459 = vmatpush1.bf16.msra.mxu0 %v302
  %460 = vmatprep.subr.bf16.mxu0 0
  %461 = vmatpush1.bf16.msra.mxu0 %v305
  %462 = vmatprep.subr.bf16.mxu0 0
  %463 = vmatpush1.bf16.msra.mxu0 %v308
  %464 = vmatprep.subr.bf16.mxu0 0
  %465 = vmatpush1.bf16.msra.mxu0 %v311
  %466 = vmatprep.subr.bf16.mxu0 0
  %467 = vmatpush1.bf16.msra.mxu0 %v314
  %468 = vmatprep.subr.bf16.mxu0 0
  %469 = vmatpush1.bf16.msra.mxu0 0
  %470 = vmatprep.subr.bf16.mxu0 0
  %471 = vmatpush1.bf16.msra.mxu0 0
  %472 = vmatprep.subr.bf16.mxu0 0
  %473 = vmatpush1.bf16.msra.mxu0 0
  %474 = vmatprep.subr.bf16.mxu0 0
  %475 = vmatpush1.bf16.msra.mxu0 0
  %476 = vmatprep.subr.bf16.mxu0 0
  %477 = vmatpush1.bf16.msra.mxu0 0
  %478 = vmatprep.subr.bf16.mxu0 0
  %479 = vmatpush1.bf16.msra.mxu0 0
  %480 = vmatprep.subr.bf16.mxu0 0
  %481 = vmatpush1.bf16.msra.mxu0 0
  %482 = vmatprep.subr.bf16.mxu0 0
  %483 = vmatpush1.bf16.msra.mxu0 0
  %484 = vmatprep.mubr.bf16.mxu0 0
  %485 = vmatmul.mubr.bf16.gmra.mrb[0].mxu0 %v195
  %v486 = vpop.f32.mrb[0].mxu0
  %v487 = vadd.f32 0.0, %v486
  %v488 = vpop.f32.mrb[0].mxu0
  %v489 = vpop.f32.mrb[0].mxu0
  %v490 = vadd.f32 0.0, %v489
  %v491 = vpop.f32.mrb[0].mxu0
  %492 = vmatprep.mubr.bf16.mxu0 0
  %493 = vmatmul.mubr.bf16.gmra.mrb[0].mxu0 %v196
  %v494 = vpop.f32.mrb[0].mxu0
  %v495 = vadd.f32 0.0, %v494
  %v496 = vpop.f32.mrb[0].mxu0
  %v497 = vpop.f32.mrb[0].mxu0
  %v498 = vadd.f32 0.0, %v497
  %v499 = vpop.f32.mrb[0].mxu0
  %500 = vmatprep.mubr.bf16.mxu0 0
  %501 = vmatmul.mubr.bf16.gmra.mrb[0].mxu0 %v197
  %v502 = vpop.f32.mrb[0].mxu0
  %v503 = vadd.f32 0.0, %v502
  %v504 = vpop.f32.mrb[0].mxu0
  %v505 = vpop.f32.mrb[0].mxu0
  %v506 = vadd.f32 0.0, %v505
  %v507 = vpop.f32.mrb[0].mxu0
  %508 = vmatprep.mubr.bf16.mxu0 0
  %509 = vmatmul.mubr.bf16.gmra.mrb[0].mxu0 %v198
  %v510 = vpop.f32.mrb[0].mxu0
  %v511 = vadd.f32 0.0, %v510
  %v512 = vpop.f32.mrb[0].mxu0
  %v513 = vpop.f32.mrb[0].mxu0
  %v514 = vadd.f32 0.0, %v513
  %v515 = vpop.f32.mrb[0].mxu0
  %516 = vmatprep.mubr.bf16.mxu0 0
  %517 = vmatmul.mubr.bf16.gmra.mrb[0].mxu0 %v199
  %v518 = vpop.f32.mrb[0].mxu0
  %v519 = vadd.f32 0.0, %v518
  %v520 = vpop.f32.mrb[0].mxu0
  %v521 = vpop.f32.mrb[0].mxu0
  %v522 = vadd.f32 0.0, %v521
  %v523 = vpop.f32.mrb[0].mxu0
  %524 = vmatprep.mubr.bf16.mxu0 0
  %525 = vmatmul.mubr.bf16.gmra.mrb[0].mxu0 %v200
  %v526 = vpop.f32.mrb[0].mxu0
  %v527 = vadd.f32 0.0, %v526
  %v528 = vpop.f32.mrb[0].mxu0
  %v529 = vpop.f32.mrb[0].mxu0
  %v530 = vadd.f32 0.0, %v529
  %v531 = vpop.f32.mrb[0].mxu0
  %532 = vmatprep.mubr.bf16.mxu0 0
  %533 = vmatmul.mubr.bf16.gmra.mrb[0].mxu0 %v201
  %v534 = vpop.f32.mrb[0].mxu0
  %v535 = vadd.f32 0.0, %v534
  %v536 = vpop.f32.mrb[0].mxu0
  %v537 = vpop.f32.mrb[0].mxu0
  %v538 = vadd.f32 0.0, %v537
  %v539 = vpop.f32.mrb[0].mxu0
  %540 = vmatprep.mubr.bf16.mxu0 0
  %541 = vmatmul.mubr.bf16.gmra.mrb[0].mxu0 %v202
  %v542 = vpop.f32.mrb[0].mxu0
  %v543 = vadd.f32 0.0, %v542
  %v544 = vpop.f32.mrb[0].mxu0
  %v545 = vpop.f32.mrb[0].mxu0
  %v546 = vadd.f32 0.0, %v545
  %v547 = vpop.f32.mrb[0].mxu0
  %548 = vdwg.mxu0
  %v549 = vadd.f32 %v67, %v374
  %v550 = vadd.f32 %v68, %v376
  %v551 = vadd.f32 %v69, %v487
  %v552 = vadd.f32 %v70, %v378
  %v553 = vadd.f32 %v71, %v380
  %v554 = vadd.f32 %v72, %v490
  %v555 = vadd.f32 %v73, %v384
  %v556 = vadd.f32 %v74, %v386
  %v557 = vadd.f32 %v75, %v495
  %v558 = vadd.f32 %v76, %v388
  %v559 = vadd.f32 %v77, %v390
  %v560 = vadd.f32 %v78, %v498
  %v561 = vadd.f32 %v79, %v394
  %v562 = vadd.f32 %v80, %v396
  %v563 = vadd.f32 %v81, %v503
  %v564 = vadd.f32 %v82, %v398
  %v565 = vadd.f32 %v83, %v400
  %v566 = vadd.f32 %v84, %v506
  %v567 = vadd.f32 %v85, %v404
  %v568 = vadd.f32 %v86, %v406
  %v569 = vadd.f32 %v87, %v511
  %v570 = vadd.f32 %v88, %v408
  %v571 = vadd.f32 %v89, %v410
  %v572 = vadd.f32 %v90, %v514
  %v573 = vadd.f32 %v91, %v414
  %v574 = vadd.f32 %v92, %v416
  %v575 = vadd.f32 %v93, %v519
  %v576 = vadd.f32 %v94, %v418
  %v577 = vadd.f32 %v95, %v420
  %v578 = vadd.f32 %v96, %v522
  %v579 = vadd.f32 %v97, %v424
  %v580 = vadd.f32 %v98, %v426
  %v581 = vadd.f32 %v99, %v527
  %v582 = vadd.f32 %v100, %v428
  %v583 = vadd.f32 %v101, %v430
  %v584 = vadd.f32 %v102, %v530
  %v585 = vadd.f32 %v103, %v434
  %v586 = vadd.f32 %v104, %v436
  %v587 = vadd.f32 %v105, %v535
  %v588 = vadd.f32 %v106, %v438
  %v589 = vadd.f32 %v107, %v440
  %v590 = vadd.f32 %v108, %v538
  %v591 = vadd.f32 %v109, %v444
  %v592 = vadd.f32 %v110, %v446
  %v593 = vadd.f32 %v111, %v543
  %v594 = vadd.f32 %v112, %v448
  %v595 = vadd.f32 %v113, %v450
  %v596 = vadd.f32 %v114, %v546
  %597 = vst [vmem:[#allocation2] sm:$0xff] %v549
  %598 = vst [vmem:[#allocation2 + $0x8] sm:$0xff] %v550
  %599 = vst [vmem:[#allocation2 + $0x10] sm:$0xff] %v551
  %600 = vst [vmem:[#allocation2 + $0x18] sm:$0xff] %v552
  %601 = vst [vmem:[#allocation2 + $0x20] sm:$0xff] %v553
  %602 = vst [vmem:[#allocation2 + $0x28] sm:$0xff] %v554
  %603 = vst [vmem:[#allocation2 + $0x30] sm:$0xff] %v555
  %604 = vst [vmem:[#allocation2 + $0x38] sm:$0xff] %v556
  %605 = vst [vmem:[#allocation2 + $0x40] sm:$0xff] %v557
  %606 = vst [vmem:[#allocation2 + $0x48] sm:$0xff] %v558
  %607 = vst [vmem:[#allocation2 + $0x50] sm:$0xff] %v559
  %608 = vst [vmem:[#allocation2 + $0x58] sm:$0xff] %v560
  %609 = vst [vmem:[#allocation2 + $0x60] sm:$0xff] %v561
  %610 = vst [vmem:[#allocation2 + $0x68] sm:$0xff] %v562
  %611 = vst [vmem:[#allocation2 + $0x70] sm:$0xff] %v563
  %612 = vst [vmem:[#allocation2 + $0x78] sm:$0xff] %v564
  %613 = vst [vmem:[#allocation2 + $0x80] sm:$0xff] %v565
  %614 = vst [vmem:[#allocation2 + $0x88] sm:$0xff] %v566
  %615 = vst [vmem:[#allocation2 + $0x90] sm:$0xff] %v567
  %616 = vst [vmem:[#allocation2 + $0x98] sm:$0xff] %v568
  %617 = vst [vmem:[#allocation2 + $0xa0] sm:$0xff] %v569
  %618 = vst [vmem:[#allocation2 + $0xa8] sm:$0xff] %v570
  %619 = vst [vmem:[#allocation2 + $0xb0] sm:$0xff] %v571
  %620 = vst [vmem:[#allocation2 + $0xb8] sm:$0xff] %v572
  %621 = vst [vmem:[#allocation2 + $0xc0] sm:$0xff] %v573
  %622 = vst [vmem:[#allocation2 + $0xc8] sm:$0xff] %v574
  %623 = vst [vmem:[#allocation2 + $0xd0] sm:$0xff] %v575
  %624 = vst [vmem:[#allocation2 + $0xd8] sm:$0xff] %v576
  %625 = vst [vmem:[#allocation2 + $0xe0] sm:$0xff] %v577
  %626 = vst [vmem:[#allocation2 + $0xe8] sm:$0xff] %v578
  %627 = vst [vmem:[#allocation2 + $0xf0] sm:$0xff] %v579
  %628 = vst [vmem:[#allocation2 + $0xf8] sm:$0xff] %v580
  %629 = vst [vmem:[#allocation2 + $0x100] sm:$0xff] %v581
  %630 = vst [vmem:[#allocation2 + $0x108] sm:$0xff] %v582
  %631 = vst [vmem:[#allocation2 + $0x110] sm:$0xff] %v583
  %632 = vst [vmem:[#allocation2 + $0x118] sm:$0xff] %v584
  %633 = vst [vmem:[#allocation2 + $0x120] sm:$0xff] %v585
  %634 = vst [vmem:[#allocation2 + $0x128] sm:$0xff] %v586
  %635 = vst [vmem:[#allocation2 + $0x130] sm:$0xff] %v587
  %636 = vst [vmem:[#allocation2 + $0x138] sm:$0xff] %v588
  %637 = vst [vmem:[#allocation2 + $0x140] sm:$0xff] %v589
  %638 = vst [vmem:[#allocation2 + $0x148] sm:$0xff] %v590
  %639 = vst [vmem:[#allocation2 + $0x150] sm:$0xff] %v591
  %640 = vst [vmem:[#allocation2 + $0x158] sm:$0xff] %v592
  %641 = vst [vmem:[#allocation2 + $0x160] sm:$0xff] %v593
  %642 = vst [vmem:[#allocation2 + $0x168] sm:$0xff] %v594
  %643 = vst [vmem:[#allocation2 + $0x170] sm:$0xff] %v595
  %644 = vst [vmem:[#allocation2 + $0x178] sm:$0xff] %v596
  // Predicated region
  $region18: #{causal_self_attention.3} parent=0 // pred_check
    %p645 = pneg %p15
  $region19: #{causal_self_attention.3} parent=0 // pred_check_branch
    %647 = sbr.rel (%p645) target = $region21
  $region20: #{causal_self_attention.3} parent=0 // pred_region
    %v648 = vld [vmem:[#allocation2] sm:$0xff]
    %v649 = vld [vmem:[#allocation2 + $0x8] sm:$0xff]
    %v650 = vld [vmem:[#allocation2 + $0x10] sm:$0xff]
    %v651 = vld [vmem:[#allocation2 + $0x18] sm:$0xff]
    %v652 = vld [vmem:[#allocation2 + $0x20] sm:$0xff]
    %v653 = vld [vmem:[#allocation2 + $0x28] sm:$0xff]
    %v654 = vld [vmem:[#allocation2 + $0x30] sm:$0xff]
    %v655 = vld [vmem:[#allocation2 + $0x38] sm:$0xff]
    %v656 = vld [vmem:[#allocation2 + $0x40] sm:$0xff]
    %v657 = vld [vmem:[#allocation2 + $0x48] sm:$0xff]
    %v658 = vld [vmem:[#allocation2 + $0x50] sm:$0xff]
    %v659 = vld [vmem:[#allocation2 + $0x58] sm:$0xff]
    %v660 = vld [vmem:[#allocation2 + $0x60] sm:$0xff]
    %v661 = vld [vmem:[#allocation2 + $0x68] sm:$0xff]
    %v662 = vld [vmem:[#allocation2 + $0x70] sm:$0xff]
    %v663 = vld [vmem:[#allocation2 + $0x78] sm:$0xff]
    %v664 = vld [vmem:[#allocation2 + $0x80] sm:$0xff]
    %v665 = vld [vmem:[#allocation2 + $0x88] sm:$0xff]
    %v666 = vld [vmem:[#allocation2 + $0x90] sm:$0xff]
    %v667 = vld [vmem:[#allocation2 + $0x98] sm:$0xff]
    %v668 = vld [vmem:[#allocation2 + $0xa0] sm:$0xff]
    %v669 = vld [vmem:[#allocation2 + $0xa8] sm:$0xff]
    %v670 = vld [vmem:[#allocation2 + $0xb0] sm:$0xff]
    %v671 = vld [vmem:[#allocation2 + $0xb8] sm:$0xff]
    %v672 = vld [vmem:[#allocation2 + $0xc0] sm:$0xff]
    %v673 = vld [vmem:[#allocation2 + $0xc8] sm:$0xff]
    %v674 = vld [vmem:[#allocation2 + $0xd0] sm:$0xff]
    %v675 = vld [vmem:[#allocation2 + $0xd8] sm:$0xff]
    %v676 = vld [vmem:[#allocation2 + $0xe0] sm:$0xff]
    %v677 = vld [vmem:[#allocation2 + $0xe8] sm:$0xff]
    %v678 = vld [vmem:[#allocation2 + $0xf0] sm:$0xff]
    %v679 = vld [vmem:[#allocation2 + $0xf8] sm:$0xff]
    %v680 = vld [vmem:[#allocation2 + $0x100] sm:$0xff]
    %v681 = vld [vmem:[#allocation2 + $0x108] sm:$0xff]
    %v682 = vld [vmem:[#allocation2 + $0x110] sm:$0xff]
    %v683 = vld [vmem:[#allocation2 + $0x118] sm:$0xff]
    %v684 = vld [vmem:[#allocation2 + $0x120] sm:$0xff]
    %v685 = vld [vmem:[#allocation2 + $0x128] sm:$0xff]
    %v686 = vld [vmem:[#allocation2 + $0x130] sm:$0xff]
    %v687 = vld [vmem:[#allocation2 + $0x138] sm:$0xff]
    %v688 = vld [vmem:[#allocation2 + $0x140] sm:$0xff]
    %v689 = vld [vmem:[#allocation2 + $0x148] sm:$0xff]
    %v690 = vld [vmem:[#allocation2 + $0x150] sm:$0xff]
    %v691 = vld [vmem:[#allocation2 + $0x158] sm:$0xff]
    %v692 = vld [vmem:[#allocation2 + $0x160] sm:$0xff]
    %v693 = vld [vmem:[#allocation2 + $0x168] sm:$0xff]
    %v694 = vld [vmem:[#allocation2 + $0x170] sm:$0xff]
    %v695 = vld [vmem:[#allocation2 + $0x178] sm:$0xff]
    %v696 = vld [vmem:[%s2] sm:$0x7]
    %v698 = vlaneseq
    %v699 = vshrl.u32 %v698, 7
    %v700 = vsub.s32 0, %v699
    %v701 = vrot.slane %v696, %v700
    %v702 = vlaneseq
    %v703 = vshrl.u32 %v702, 7
    %v704 = vsub.s32 1, %v703
    %v705 = vrot.slane %v696, %v704
    %v706 = vlaneseq
    %v707 = vshrl.u32 %v706, 7
    %v708 = vsub.s32 2, %v707
    %v709 = vrot.slane %v696, %v708
    %v713 = vadd.f32 %v648, %v701
    %v714 = vadd.f32 %v649, %v705
    %v715 = vadd.f32 %v650, %v709
    %v716 = vadd.f32 %v651, %v701
    %v717 = vadd.f32 %v652, %v705
    %v718 = vadd.f32 %v653, %v709
    %v719 = vadd.f32 %v654, %v701
    %v720 = vadd.f32 %v655, %v705
    %v721 = vadd.f32 %v656, %v709
    %v722 = vadd.f32 %v657, %v701
    %v723 = vadd.f32 %v658, %v705
    %v724 = vadd.f32 %v659, %v709
    %v725 = vadd.f32 %v660, %v701
    %v726 = vadd.f32 %v661, %v705
    %v727 = vadd.f32 %v662, %v709
    %v728 = vadd.f32 %v663, %v701
    %v729 = vadd.f32 %v664, %v705
    %v730 = vadd.f32 %v665, %v709
    %v731 = vadd.f32 %v666, %v701
    %v732 = vadd.f32 %v667, %v705
    %v733 = vadd.f32 %v668, %v709
    %v734 = vadd.f32 %v669, %v701
    %v735 = vadd.f32 %v670, %v705
    %v736 = vadd.f32 %v671, %v709
    %v737 = vadd.f32 %v672, %v701
    %v738 = vadd.f32 %v673, %v705
    %v739 = vadd.f32 %v674, %v709
    %v740 = vadd.f32 %v675, %v701
    %v741 = vadd.f32 %v676, %v705
    %v742 = vadd.f32 %v677, %v709
    %v743 = vadd.f32 %v678, %v701
    %v744 = vadd.f32 %v679, %v705
    %v745 = vadd.f32 %v680, %v709
    %v746 = vadd.f32 %v681, %v701
    %v747 = vadd.f32 %v682, %v705
    %v748 = vadd.f32 %v683, %v709
    %v749 = vadd.f32 %v684, %v701
    %v750 = vadd.f32 %v685, %v705
    %v751 = vadd.f32 %v686, %v709
    %v752 = vadd.f32 %v687, %v701
    %v753 = vadd.f32 %v688, %v705
    %v754 = vadd.f32 %v689, %v709
    %v755 = vadd.f32 %v690, %v701
    %v756 = vadd.f32 %v691, %v705
    %v757 = vadd.f32 %v692, %v709
    %v758 = vadd.f32 %v693, %v701
    %v759 = vadd.f32 %v694, %v705
    %v760 = vadd.f32 %v695, %v709
    %v761 = vpack.c.bf16 %v716, %v713
    %v762 = vpack.c.bf16 %v717, %v714
    %v763 = vpack.c.bf16 %v718, %v715
    %v764 = vpack.c.bf16 %v722, %v719
    %v765 = vpack.c.bf16 %v723, %v720
    %v766 = vpack.c.bf16 %v724, %v721
    %v767 = vpack.c.bf16 %v728, %v725
    %v768 = vpack.c.bf16 %v729, %v726
    %v769 = vpack.c.bf16 %v730, %v727
    %v770 = vpack.c.bf16 %v734, %v731
    %v771 = vpack.c.bf16 %v735, %v732
    %v772 = vpack.c.bf16 %v736, %v733
    %v773 = vpack.c.bf16 %v740, %v737
    %v774 = vpack.c.bf16 %v741, %v738
    %v775 = vpack.c.bf16 %v742, %v739
    %v776 = vpack.c.bf16 %v746, %v743
    %v777 = vpack.c.bf16 %v747, %v744
    %v778 = vpack.c.bf16 %v748, %v745
    %v779 = vpack.c.bf16 %v752, %v749
    %v780 = vpack.c.bf16 %v753, %v750
    %v781 = vpack.c.bf16 %v754, %v751
    %v782 = vpack.c.bf16 %v758, %v755
    %v783 = vpack.c.bf16 %v759, %v756
    %v784 = vpack.c.bf16 %v760, %v757
    %v809 = vunpack.c.l.b16 %v761
    %v810 = vunpack.c.l.b16 %v762
    %v811 = vunpack.c.l.b16 %v763
    %v812 = vunpack.c.h.b16 %v761
    %v813 = vunpack.c.h.b16 %v762
    %v814 = vunpack.c.h.b16 %v763
    %v815 = vunpack.c.l.b16 %v764
    %v816 = vunpack.c.l.b16 %v765
    %v817 = vunpack.c.l.b16 %v766
    %v818 = vunpack.c.h.b16 %v764
    %v819 = vunpack.c.h.b16 %v765
    %v820 = vunpack.c.h.b16 %v766
    %v821 = vunpack.c.l.b16 %v767
    %v822 = vunpack.c.l.b16 %v768
    %v823 = vunpack.c.l.b16 %v769
    %v824 = vunpack.c.h.b16 %v767
    %v825 = vunpack.c.h.b16 %v768
    %v826 = vunpack.c.h.b16 %v769
    %v827 = vunpack.c.l.b16 %v770
    %v828 = vunpack.c.l.b16 %v771
    %v829 = vunpack.c.l.b16 %v772
    %v830 = vunpack.c.h.b16 %v770
    %v831 = vunpack.c.h.b16 %v771
    %v832 = vunpack.c.h.b16 %v772
    %v833 = vunpack.c.l.b16 %v773
    %v834 = vunpack.c.l.b16 %v774
    %v835 = vunpack.c.l.b16 %v775
    %v836 = vunpack.c.h.b16 %v773
    %v837 = vunpack.c.h.b16 %v774
    %v838 = vunpack.c.h.b16 %v775
    %v839 = vunpack.c.l.b16 %v776
    %v840 = vunpack.c.l.b16 %v777
    %v841 = vunpack.c.l.b16 %v778
    %v842 = vunpack.c.h.b16 %v776
    %v843 = vunpack.c.h.b16 %v777
    %v844 = vunpack.c.h.b16 %v778
    %v845 = vunpack.c.l.b16 %v779
    %v846 = vunpack.c.l.b16 %v780
    %v847 = vunpack.c.l.b16 %v781
    %v848 = vunpack.c.h.b16 %v779
    %v849 = vunpack.c.h.b16 %v780
    %v850 = vunpack.c.h.b16 %v781
    %v851 = vunpack.c.l.b16 %v782
    %v852 = vunpack.c.l.b16 %v783
    %v853 = vunpack.c.l.b16 %v784
    %v854 = vunpack.c.h.b16 %v782
    %v855 = vunpack.c.h.b16 %v783
    %v856 = vunpack.c.h.b16 %v784
    %v857 = vpack.c.b16 %v810, %v809
    %v858 = vpack.c.b16 %v811, %v811
    %v859 = vpack.c.b16 %v813, %v812
    %v860 = vpack.c.b16 %v814, %v814
    %v861 = vpack.c.b16 %v816, %v815
    %v862 = vpack.c.b16 %v817, %v817
    %v863 = vpack.c.b16 %v819, %v818
    %v864 = vpack.c.b16 %v820, %v820
    %v865 = vpack.c.b16 %v822, %v821
    %v866 = vpack.c.b16 %v823, %v823
    %v867 = vpack.c.b16 %v825, %v824
    %v868 = vpack.c.b16 %v826, %v826
    %v869 = vpack.c.b16 %v828, %v827
    %v870 = vpack.c.b16 %v829, %v829
    %v871 = vpack.c.b16 %v831, %v830
    %v872 = vpack.c.b16 %v832, %v832
    %v873 = vpack.c.b16 %v834, %v833
    %v874 = vpack.c.b16 %v835, %v835
    %v875 = vpack.c.b16 %v837, %v836
    %v876 = vpack.c.b16 %v838, %v838
    %v877 = vpack.c.b16 %v840, %v839
    %v878 = vpack.c.b16 %v841, %v841
    %v879 = vpack.c.b16 %v843, %v842
    %v880 = vpack.c.b16 %v844, %v844
    %v881 = vpack.c.b16 %v846, %v845
    %v882 = vpack.c.b16 %v847, %v847
    %v883 = vpack.c.b16 %v849, %v848
    %v884 = vpack.c.b16 %v850, %v850
    %v885 = vpack.c.b16 %v852, %v851
    %v886 = vpack.c.b16 %v853, %v853
    %v887 = vpack.c.b16 %v855, %v854
    %v888 = vpack.c.b16 %v856, %v856
    %921 = vst [vmem:[%s3] sm:$0xff] %v857
    %922 = vst [vmem:[%s3 + $0x8] sm:$0xf] %v858
    %923 = vst [vmem:[%s3 + $0xc] sm:$0xff] %v859
    %924 = vst [vmem:[%s3 + $0x14] sm:$0xf] %v860
    %925 = vst [vmem:[%s3 + $0x18] sm:$0xff] %v861
    %926 = vst [vmem:[%s3 + $0x20] sm:$0xf] %v862
    %927 = vst [vmem:[%s3 + $0x24] sm:$0xff] %v863
    %928 = vst [vmem:[%s3 + $0x2c] sm:$0xf] %v864
    %929 = vst [vmem:[%s3 + $0x30] sm:$0xff] %v865
    %930 = vst [vmem:[%s3 + $0x38] sm:$0xf] %v866
    %931 = vst [vmem:[%s3 + $0x3c] sm:$0xff] %v867
    %932 = vst [vmem:[%s3 + $0x44] sm:$0xf] %v868
    %933 = vst [vmem:[%s3 + $0x48] sm:$0xff] %v869
    %934 = vst [vmem:[%s3 + $0x50] sm:$0xf] %v870
    %935 = vst [vmem:[%s3 + $0x54] sm:$0xff] %v871
    %936 = vst [vmem:[%s3 + $0x5c] sm:$0xf] %v872
    %937 = vst [vmem:[%s3 + $0x60] sm:$0xff] %v873
    %938 = vst [vmem:[%s3 + $0x68] sm:$0xf] %v874
    %939 = vst [vmem:[%s3 + $0x6c] sm:$0xff] %v875
    %940 = vst [vmem:[%s3 + $0x74] sm:$0xf] %v876
    %941 = vst [vmem:[%s3 + $0x78] sm:$0xff] %v877
    %942 = vst [vmem:[%s3 + $0x80] sm:$0xf] %v878
    %943 = vst [vmem:[%s3 + $0x84] sm:$0xff] %v879
    %944 = vst [vmem:[%s3 + $0x8c] sm:$0xf] %v880
    %945 = vst [vmem:[%s3 + $0x90] sm:$0xff] %v881
    %946 = vst [vmem:[%s3 + $0x98] sm:$0xf] %v882
    %947 = vst [vmem:[%s3 + $0x9c] sm:$0xff] %v883
    %948 = vst [vmem:[%s3 + $0xa4] sm:$0xf] %v884
    %949 = vst [vmem:[%s3 + $0xa8] sm:$0xff] %v885
    %950 = vst [vmem:[%s3 + $0xb0] sm:$0xf] %v886
    %951 = vst [vmem:[%s3 + $0xb4] sm:$0xff] %v887
    %952 = vst [vmem:[%s3 + $0xbc] sm:$0xf] %v888
  $region21: #{causal_self_attention.3} parent=0 // pred_fallthru
    _
  // Predicated region
  $region22: #{causal_self_attention.3} parent=0 // pred_check
    _
  $region23: #{causal_self_attention.3} parent=0 // pred_check_branch
    %954 = sbr.rel (0) target = $region25
  $region24: #{causal_self_attention.3} parent=0 // pred_region
    _
  $region25: #{causal_self_attention.3} parent=0 // pred_fallthru
    _
  // Predicated region
  $region26: #{causal_self_attention.3} parent=0 // pred_check
    _
  $region27: #{causal_self_attention.3} parent=0 // pred_check_branch
    %956 = sbr.rel (0) target = $region29
  $region28: #{causal_self_attention.3} parent=0 // pred_region
    _
  $region29: #{causal_self_attention.3} parent=0 // pred_fallthru
    _

// kernel: causal_self_attention.5
$region0: #{causal_self_attention.5}
  #allocation0 [shape = 'u32[]', space=smem, size = 0x4, offset = 0x4, fixed_abs, tag = 'smem constant byte address 0x4 - core index']
  #allocation1 [shape = 'u32[144,128]{1,0:T(1,128)}', space=vmem, size = 0x12000, scoped, tag = 'internal scratch']
  #allocation2 [shape = 'f32[128,128]{1,0:T(8,128)}', space=vmem, size = 0x10000, scoped, tag = 'scratch operand']
  %s0 = inlined_call_operand.vmem [shape: bf16[128,128], index: 0, kind: input, shape index: {}]
  %s1 = inlined_call_operand.vmem [shape: bf16[128,128], index: 1, kind: input, shape index: {}]
  %s2 = inlined_call_operand.vmem [shape: f32[1,128], index: 2, kind: input, shape index: {}]
  %s3 = inlined_call_operand.hbm [shape: f32[128,128], index: 3, kind: output, shape index: {}]
  %s4 = sld [smem:[#allocation0]]
  $region30: #{causal_self_attention.5} parent=0
    _
  %s6 = ssub.s32 1, %s4
  %s7 = scalar_select 0, %s6, %s4
  $region1: #{causal_self_attention.5} parent=0
    #allocation3 [shape = 'u8[65536]{0}', space=vmem, size = 0x10000, scoped, tag = 'output window, operand 0, single buffered']
    #allocation4 [shape = 's32[1]{0}', space=sflag, size = 0x4, scoped, tag = 'scoped memory for causal_self_attention.5']
    %8 = vsyncpa [#allocation4], 0
    // Predicated region
    $region2: #{causal_self_attention.5} parent=1 // pred_check
      _
    $region3: #{causal_self_attention.5} parent=1 // pred_check_branch
      %10 = sbr.rel (0) target = $region5
    $region4: #{causal_self_attention.5} parent=1 // pred_region
      _
    $region5: #{causal_self_attention.5} parent=1 // pred_fallthru
      _
    // Predicated region
    $region6: #{causal_self_attention.5} parent=1 // pred_check
      _
    $region7: #{causal_self_attention.5} parent=1 // pred_check_branch
      %12 = sbr.rel (0) target = $region9
    $region8: #{causal_self_attention.5} parent=1 // pred_region
      _
    $region9: #{causal_self_attention.5} parent=1 // pred_fallthru
      _
    // Predicated region
    $region10: #{causal_self_attention.5} parent=1 // pred_check
      _
    $region11: #{causal_self_attention.5} parent=1 // pred_check_branch
      %14 = sbr.rel (0) target = $region13
    $region12: #{causal_self_attention.5} parent=1 // pred_region
      _
    $region13: #{causal_self_attention.5} parent=1 // pred_fallthru
      _
    %p16 = scmp.eq.s32.totalorder 0, 0
    // Predicated region
    $region14: #{causal_self_attention.5} parent=1 // pred_check
      %p17 = pneg %p16
    $region15: #{causal_self_attention.5} parent=1 // pred_check_branch
      %19 = sbr.rel (%p17) target = $region17
    $region16: #{causal_self_attention.5} parent=1 // pred_region
      %20 = vst [vmem:[#allocation2] sm:$0xff] 0.0
      %21 = vst [vmem:[#allocation2 + $0x8] sm:$0xff] 0.0
      %22 = vst [vmem:[#allocation2 + $0x10] sm:$0xff] 0.0
      %23 = vst [vmem:[#allocation2 + $0x18] sm:$0xff] 0.0
      %24 = vst [vmem:[#allocation2 + $0x20] sm:$0xff] 0.0
      %25 = vst [vmem:[#allocation2 + $0x28] sm:$0xff] 0.0
      %26 = vst [vmem:[#allocation2 + $0x30] sm:$0xff] 0.0
      %27 = vst [vmem:[#allocation2 + $0x38] sm:$0xff] 0.0
      %28 = vst [vmem:[#allocation2 + $0x40] sm:$0xff] 0.0
      %29 = vst [vmem:[#allocation2 + $0x48] sm:$0xff] 0.0
      %30 = vst [vmem:[#allocation2 + $0x50] sm:$0xff] 0.0
      %31 = vst [vmem:[#allocation2 + $0x58] sm:$0xff] 0.0
      %32 = vst [vmem:[#allocation2 + $0x60] sm:$0xff] 0.0
      %33 = vst [vmem:[#allocation2 + $0x68] sm:$0xff] 0.0
      %34 = vst [vmem:[#allocation2 + $0x70] sm:$0xff] 0.0
      %35 = vst [vmem:[#allocation2 + $0x78] sm:$0xff] 0.0
    $region17: #{causal_self_attention.5} parent=1 // pred_fallthru
      _
    %v36 = vld [vmem:[#allocation2] sm:$0xff]
    %v37 = vld [vmem:[#allocation2 + $0x8] sm:$0xff]
    %v38 = vld [vmem:[#allocation2 + $0x10] sm:$0xff]
    %v39 = vld [vmem:[#allocation2 + $0x18] sm:$0xff]
    %v40 = vld [vmem:[#allocation2 + $0x20] sm:$0xff]
    %v41 = vld [vmem:[#allocation2 + $0x28] sm:$0xff]
    %v42 = vld [vmem:[#allocation2 + $0x30] sm:$0xff]
    %v43 = vld [vmem:[#allocation2 + $0x38] sm:$0xff]
    %v44 = vld [vmem:[#allocation2 + $0x40] sm:$0xff]
    %v45 = vld [vmem:[#allocation2 + $0x48] sm:$0xff]
    %v46 = vld [vmem:[#allocation2 + $0x50] sm:$0xff]
    %v47 = vld [vmem:[#allocation2 + $0x58] sm:$0xff]
    %v48 = vld [vmem:[#allocation2 + $0x60] sm:$0xff]
    %v49 = vld [vmem:[#allocation2 + $0x68] sm:$0xff]
    %v50 = vld [vmem:[#allocation2 + $0x70] sm:$0xff]
    %v51 = vld [vmem:[#allocation2 + $0x78] sm:$0xff]
    %v52 = vld [vmem:[%s0] sm:$0xf]
    %v53 = vld [vmem:[%s0 + $0x4] sm:$0xf]
    %v54 = vld [vmem:[%s0 + $0x8] sm:$0xf]
    %v55 = vld [vmem:[%s0 + $0xc] sm:$0xf]
    %v56 = vld [vmem:[%s0 + $0x10] sm:$0xf]
    %v57 = vld [vmem:[%s0 + $0x14] sm:$0xf]
    %v58 = vld [vmem:[%s0 + $0x18] sm:$0xf]
    %v59 = vld [vmem:[%s0 + $0x1c] sm:$0xf]
    %v60 = vld [vmem:[%s0 + $0x20] sm:$0xf]
    %v61 = vld [vmem:[%s0 + $0x24] sm:$0xf]
    %v62 = vld [vmem:[%s0 + $0x28] sm:$0xf]
    %v63 = vld [vmem:[%s0 + $0x2c] sm:$0xf]
    %v64 = vld [vmem:[%s0 + $0x30] sm:$0xf]
    %v65 = vld [vmem:[%s0 + $0x34] sm:$0xf]
    %v66 = vld [vmem:[%s0 + $0x38] sm:$0xf]
    %v67 = vld [vmem:[%s0 + $0x3c] sm:$0xf]
    %v68 = vld [vmem:[%s1] sm:$0xf]
    %v69 = vld [vmem:[%s1 + $0x4] sm:$0xf]
    %v70 = vld [vmem:[%s1 + $0x8] sm:$0xf]
    %v71 = vld [vmem:[%s1 + $0xc] sm:$0xf]
    %v72 = vld [vmem:[%s1 + $0x10] sm:$0xf]
    %v73 = vld [vmem:[%s1 + $0x14] sm:$0xf]
    %v74 = vld [vmem:[%s1 + $0x18] sm:$0xf]
    %v75 = vld [vmem:[%s1 + $0x1c] sm:$0xf]
    %v76 = vld [vmem:[%s1 + $0x20] sm:$0xf]
    %v77 = vld [vmem:[%s1 + $0x24] sm:$0xf]
    %v78 = vld [vmem:[%s1 + $0x28] sm:$0xf]
    %v79 = vld [vmem:[%s1 + $0x2c] sm:$0xf]
    %v80 = vld [vmem:[%s1 + $0x30] sm:$0xf]
    %v81 = vld [vmem:[%s1 + $0x34] sm:$0xf]
    %v82 = vld [vmem:[%s1 + $0x38] sm:$0xf]
    %v83 = vld [vmem:[%s1 + $0x3c] sm:$0xf]
    %v100 = vunpack.c.l.b16 %v52
    %v101 = vunpack.c.l.b16 %v53
    %v102 = vunpack.c.l.b16 %v54
    %v103 = vunpack.c.l.b16 %v55
    %v104 = vunpack.c.l.b16 %v56
    %v105 = vunpack.c.l.b16 %v57
    %v106 = vunpack.c.l.b16 %v58
    %v107 = vunpack.c.l.b16 %v59
    %v108 = vunpack.c.l.b16 %v60
    %v109 = vunpack.c.l.b16 %v61
    %v110 = vunpack.c.l.b16 %v62
    %v111 = vunpack.c.l.b16 %v63
    %v112 = vunpack.c.l.b16 %v64
    %v113 = vunpack.c.l.b16 %v65
    %v114 = vunpack.c.l.b16 %v66
    %v115 = vunpack.c.l.b16 %v67
    %v116 = vpack.c.b16 %v101, %v100
    %v117 = vpack.c.b16 %v103, %v102
    %v118 = vpack.c.b16 %v105, %v104
    %v119 = vpack.c.b16 %v107, %v106
    %v120 = vpack.c.b16 %v109, %v108
    %v121 = vpack.c.b16 %v111, %v110
    %v122 = vpack.c.b16 %v113, %v112
    %v123 = vpack.c.b16 %v115, %v114
    %v148 = vunpack.c.l.b16 %v68
    %v149 = vunpack.c.l.b16 %v69
    %v150 = vunpack.c.l.b16 %v70
    %v151 = vunpack.c.l.b16 %v71
    %v152 = vunpack.c.l.b16 %v72
    %v153 = vunpack.c.l.b16 %v73
    %v154 = vunpack.c.l.b16 %v74
    %v155 = vunpack.c.l.b16 %v75
    %v156 = vunpack.c.l.b16 %v76
    %v157 = vunpack.c.l.b16 %v77
    %v158 = vunpack.c.l.b16 %v78
    %v159 = vunpack.c.l.b16 %v79
    %v160 = vunpack.c.l.b16 %v80
    %v161 = vunpack.c.l.b16 %v81
    %v162 = vunpack.c.l.b16 %v82
    %v163 = vunpack.c.l.b16 %v83
    %v164 = vpack.c.b16 %v149, %v148
    %v165 = vpack.c.b16 %v151, %v150
    %v166 = vpack.c.b16 %v153, %v152
    %v167 = vpack.c.b16 %v155, %v154
    %v168 = vpack.c.b16 %v157, %v156
    %v169 = vpack.c.b16 %v159, %v158
    %v170 = vpack.c.b16 %v161, %v160
    %v171 = vpack.c.b16 %v163, %v162
    %180 = vmatprep.subr.bf16.mxu0 0
    %181 = vmatpush1.bf16.msra.mxu0 %v164
    %182 = vmatprep.subr.bf16.mxu0 0
    %183 = vmatpush1.bf16.msra.mxu0 %v165
    %184 = vmatprep.subr.bf16.mxu0 0
    %185 = vmatpush1.bf16.msra.mxu0 %v166
    %186 = vmatprep.subr.bf16.mxu0 0
    %187 = vmatpush1.bf16.msra.mxu0 %v167
    %188 = vmatprep.subr.bf16.mxu0 0
    %189 = vmatpush1.bf16.msra.mxu0 %v168
    %190 = vmatprep.subr.bf16.mxu0 0
    %191 = vmatpush1.bf16.msra.mxu0 %v169
    %192 = vmatprep.subr.bf16.mxu0 0
    %193 = vmatpush1.bf16.msra.mxu0 %v170
    %194 = vmatprep.subr.bf16.mxu0 0
    %195 = vmatpush1.bf16.msra.mxu0 %v171
    %196 = vmatprep.subr.bf16.mxu0 0
    %197 = vmatpush1.bf16.msra.mxu0 0
    %198 = vmatprep.subr.bf16.mxu0 0
    %199 = vmatpush1.bf16.msra.mxu0 0
    %200 = vmatprep.subr.bf16.mxu0 0
    %201 = vmatpush1.bf16.msra.mxu0 0
    %202 = vmatprep.subr.bf16.mxu0 0
    %203 = vmatpush1.bf16.msra.mxu0 0
    %204 = vmatprep.subr.bf16.mxu0 0
    %205 = vmatpush1.bf16.msra.mxu0 0
    %206 = vmatprep.subr.bf16.mxu0 0
    %207 = vmatpush1.bf16.msra.mxu0 0
    %208 = vmatprep.subr.bf16.mxu0 0
    %209 = vmatpush1.bf16.msra.mxu0 0
    %210 = vmatprep.subr.bf16.mxu0 0
    %211 = vmatpush1.bf16.msra.mxu0 0
    %212 = vmatprep.mubr.bf16.mxu0 0
    %213 = vmatmul.mubr.bf16.gmra.mrb[0].mxu0 %v116
    %v214 = vpop.f32.mrb[0].mxu0
    %v215 = vadd.f32 0.0, %v214
    %v216 = vpop.f32.mrb[0].mxu0
    %v217 = vpop.f32.mrb[0].mxu0
    %v218 = vadd.f32 0.0, %v217
    %v219 = vpop.f32.mrb[0].mxu0
    %220 = vmatprep.mubr.bf16.mxu0 0
    %221 = vmatmul.mubr.bf16.gmra.mrb[0].mxu0 %v117
    %v222 = vpop.f32.mrb[0].mxu0
    %v223 = vadd.f32 0.0, %v222
    %v224 = vpop.f32.mrb[0].mxu0
    %v225 = vpop.f32.mrb[0].mxu0
    %v226 = vadd.f32 0.0, %v225
    %v227 = vpop.f32.mrb[0].mxu0
    %228 = vmatprep.mubr.bf16.mxu0 0
    %229 = vmatmul.mubr.bf16.gmra.mrb[0].mxu0 %v118
    %v230 = vpop.f32.mrb[0].mxu0
    %v231 = vadd.f32 0.0, %v230
    %v232 = vpop.f32.mrb[0].mxu0
    %v233 = vpop.f32.mrb[0].mxu0
    %v234 = vadd.f32 0.0, %v233
    %v235 = vpop.f32.mrb[0].mxu0
    %236 = vmatprep.mubr.bf16.mxu0 0
    %237 = vmatmul.mubr.bf16.gmra.mrb[0].mxu0 %v119
    %v238 = vpop.f32.mrb[0].mxu0
    %v239 = vadd.f32 0.0, %v238
    %v240 = vpop.f32.mrb[0].mxu0
    %v241 = vpop.f32.mrb[0].mxu0
    %v242 = vadd.f32 0.0, %v241
    %v243 = vpop.f32.mrb[0].mxu0
    %244 = vmatprep.mubr.bf16.mxu0 0
    %245 = vmatmul.mubr.bf16.gmra.mrb[0].mxu0 %v120
    %v246 = vpop.f32.mrb[0].mxu0
    %v247 = vadd.f32 0.0, %v246
    %v248 = vpop.f32.mrb[0].mxu0
    %v249 = vpop.f32.mrb[0].mxu0
    %v250 = vadd.f32 0.0, %v249
    %v251 = vpop.f32.mrb[0].mxu0
    %252 = vmatprep.mubr.bf16.mxu0 0
    %253 = vmatmul.mubr.bf16.gmra.mrb[0].mxu0 %v121
    %v254 = vpop.f32.mrb[0].mxu0
    %v255 = vadd.f32 0.0, %v254
    %v256 = vpop.f32.mrb[0].mxu0
    %v257 = vpop.f32.mrb[0].mxu0
    %v258 = vadd.f32 0.0, %v257
    %v259 = vpop.f32.mrb[0].mxu0
    %260 = vmatprep.mubr.bf16.mxu0 0
    %261 = vmatmul.mubr.bf16.gmra.mrb[0].mxu0 %v122
    %v262 = vpop.f32.mrb[0].mxu0
    %v263 = vadd.f32 0.0, %v262
    %v264 = vpop.f32.mrb[0].mxu0
    %v265 = vpop.f32.mrb[0].mxu0
    %v266 = vadd.f32 0.0, %v265
    %v267 = vpop.f32.mrb[0].mxu0
    %268 = vmatprep.mubr.bf16.mxu0 0
    %269 = vmatmul.mubr.bf16.gmra.mrb[0].mxu0 %v123
    %v270 = vpop.f32.mrb[0].mxu0
    %v271 = vadd.f32 0.0, %v270
    %v272 = vpop.f32.mrb[0].mxu0
    %v273 = vpop.f32.mrb[0].mxu0
    %v274 = vadd.f32 0.0, %v273
    %v275 = vpop.f32.mrb[0].mxu0
    %276 = vdwg.mxu0
    %v277 = vadd.f32 %v36, %v215
    %v278 = vadd.f32 %v37, %v218
    %v279 = vadd.f32 %v38, %v223
    %v280 = vadd.f32 %v39, %v226
    %v281 = vadd.f32 %v40, %v231
    %v282 = vadd.f32 %v41, %v234
    %v283 = vadd.f32 %v42, %v239
    %v284 = vadd.f32 %v43, %v242
    %v285 = vadd.f32 %v44, %v247
    %v286 = vadd.f32 %v45, %v250
    %v287 = vadd.f32 %v46, %v255
    %v288 = vadd.f32 %v47, %v258
    %v289 = vadd.f32 %v48, %v263
    %v290 = vadd.f32 %v49, %v266
    %v291 = vadd.f32 %v50, %v271
    %v292 = vadd.f32 %v51, %v274
    %293 = vst [vmem:[#allocation2] sm:$0xff] %v277
    %294 = vst [vmem:[#allocation2 + $0x8] sm:$0xff] %v278
    %295 = vst [vmem:[#allocation2 + $0x10] sm:$0xff] %v279
    %296 = vst [vmem:[#allocation2 + $0x18] sm:$0xff] %v280
    %297 = vst [vmem:[#allocation2 + $0x20] sm:$0xff] %v281
    %298 = vst [vmem:[#allocation2 + $0x28] sm:$0xff] %v282
    %299 = vst [vmem:[#allocation2 + $0x30] sm:$0xff] %v283
    %300 = vst [vmem:[#allocation2 + $0x38] sm:$0xff] %v284
    %301 = vst [vmem:[#allocation2 + $0x40] sm:$0xff] %v285
    %302 = vst [vmem:[#allocation2 + $0x48] sm:$0xff] %v286
    %303 = vst [vmem:[#allocation2 + $0x50] sm:$0xff] %v287
    %304 = vst [vmem:[#allocation2 + $0x58] sm:$0xff] %v288
    %305 = vst [vmem:[#allocation2 + $0x60] sm:$0xff] %v289
    %306 = vst [vmem:[#allocation2 + $0x68] sm:$0xff] %v290
    %307 = vst [vmem:[#allocation2 + $0x70] sm:$0xff] %v291
    %308 = vst [vmem:[#allocation2 + $0x78] sm:$0xff] %v292
    // Predicated region
    $region18: #{causal_self_attention.5} parent=1 // pred_check
      %p309 = pneg %p16
    $region19: #{causal_self_attention.5} parent=1 // pred_check_branch
      %311 = sbr.rel (%p309) target = $region21
    $region20: #{causal_self_attention.5} parent=1 // pred_region
      %v312 = vld [vmem:[#allocation2] sm:$0xff]
      %v313 = vld [vmem:[#allocation2 + $0x8] sm:$0xff]
      %v314 = vld [vmem:[#allocation2 + $0x10] sm:$0xff]
      %v315 = vld [vmem:[#allocation2 + $0x18] sm:$0xff]
      %v316 = vld [vmem:[#allocation2 + $0x20] sm:$0xff]
      %v317 = vld [vmem:[#allocation2 + $0x28] sm:$0xff]
      %v318 = vld [vmem:[#allocation2 + $0x30] sm:$0xff]
      %v319 = vld [vmem:[#allocation2 + $0x38] sm:$0xff]
      %v320 = vld [vmem:[#allocation2 + $0x40] sm:$0xff]
      %v321 = vld [vmem:[#allocation2 + $0x48] sm:$0xff]
      %v322 = vld [vmem:[#allocation2 + $0x50] sm:$0xff]
      %v323 = vld [vmem:[#allocation2 + $0x58] sm:$0xff]
      %v324 = vld [vmem:[#allocation2 + $0x60] sm:$0xff]
      %v325 = vld [vmem:[#allocation2 + $0x68] sm:$0xff]
      %v326 = vld [vmem:[#allocation2 + $0x70] sm:$0xff]
      %v327 = vld [vmem:[#allocation2 + $0x78] sm:$0xff]
      %v328 = vld [vmem:[%s2] sm:$0x1]
      %v330 = vlaneseq
      %v331 = vshrl.u32 %v330, 7
      %v332 = vsub.s32 0, %v331
      %v333 = vrot.slane %v328, %v332
      %v335 = vadd.f32 %v312, %v333
      %v336 = vadd.f32 %v313, %v333
      %v337 = vadd.f32 %v314, %v333
      %v338 = vadd.f32 %v315, %v333
      %v339 = vadd.f32 %v316, %v333
      %v340 = vadd.f32 %v317, %v333
      %v341 = vadd.f32 %v318, %v333
      %v342 = vadd.f32 %v319, %v333
      %v343 = vadd.f32 %v320, %v333
      %v344 = vadd.f32 %v321, %v333
      %v345 = vadd.f32 %v322, %v333
      %v346 = vadd.f32 %v323, %v333
      %v347 = vadd.f32 %v324, %v333
      %v348 = vadd.f32 %v325, %v333
      %v349 = vadd.f32 %v326, %v333
      %v350 = vadd.f32 %v327, %v333
      %351 = vst [vmem:[#allocation3] sm:$0xff] %v335
      %352 = vst [vmem:[#allocation3 + $0x8] sm:$0xff] %v336
      %353 = vst [vmem:[#allocation3 + $0x10] sm:$0xff] %v337
      %354 = vst [vmem:[#allocation3 + $0x18] sm:$0xff] %v338
      %355 = vst [vmem:[#allocation3 + $0x20] sm:$0xff] %v339
      %356 = vst [vmem:[#allocation3 + $0x28] sm:$0xff] %v340
      %357 = vst [vmem:[#allocation3 + $0x30] sm:$0xff] %v341
      %358 = vst [vmem:[#allocation3 + $0x38] sm:$0xff] %v342
      %359 = vst [vmem:[#allocation3 + $0x40] sm:$0xff] %v343
      %360 = vst [vmem:[#allocation3 + $0x48] sm:$0xff] %v344
      %361 = vst [vmem:[#allocation3 + $0x50] sm:$0xff] %v345
      %362 = vst [vmem:[#allocation3 + $0x58] sm:$0xff] %v346
      %363 = vst [vmem:[#allocation3 + $0x60] sm:$0xff] %v347
      %364 = vst [vmem:[#allocation3 + $0x68] sm:$0xff] %v348
      %365 = vst [vmem:[#allocation3 + $0x70] sm:$0xff] %v349
      %366 = vst [vmem:[#allocation3 + $0x78] sm:$0xff] %v350
    $region21: #{causal_self_attention.5} parent=1 // pred_fallthru
      _
    // Predicated region
    $region22: #{causal_self_attention.5} parent=1 // pred_check
      _
    $region23: #{causal_self_attention.5} parent=1 // pred_check_branch
      %368 = sbr.rel (0) target = $region25
    $region24: #{causal_self_attention.5} parent=1 // pred_region
      %s370 = ssub.s32 2048, 2048
      %371 = vsyncadd [#allocation4], %s370
      %s372 = sshll.u32 [#allocation3], 4
      %s373 = int_to_ptr.vmem [resolvable:$true] %s372
      %378 = dma.vmem_to_hbm [thread:$0]  %s373, 2048, %s3, [#allocation4], 128, 128, 8
    $region25: #{causal_self_attention.5} parent=1 // pred_fallthru
      _
    // Predicated region
    $region26: #{causal_self_attention.5} parent=1 // pred_check
      _
    $region27: #{causal_self_attention.5} parent=1 // pred_check_branch
      %380 = sbr.rel (0) target = $region29
    $region28: #{causal_self_attention.5} parent=1 // pred_region
      %381 = dma.done [#allocation4], 2048
    $region29: #{causal_self_attention.5} parent=1 // pred_fallthru
      _
    %382 = vsyncpa [#allocation4], 1

// kernel: causal_self_attention.4
$region0: #{causal_self_attention.4}
  #allocation0 [shape = 'u32[]', space=smem, size = 0x4, offset = 0x4, fixed_abs, tag = 'smem constant byte address 0x4 - core index']
  #allocation1 [shape = 'u32[144,128]{1,0:T(1,128)}', space=vmem, size = 0x12000, scoped, tag = 'internal scratch']
  #allocation2 [shape = 'f32[4,64,1]{2,1,0:T(8,128)}', space=vmem, size = 0x20000, scoped, tag = 'scratch operand']
  #allocation3 [shape = 'f32[4,64,1]{2,1,0:T(8,128)}', space=vmem, size = 0x20000, scoped, tag = 'scratch operand']
  #allocation4 [shape = 'f32[4,64,32]{2,1,0:T(8,128)}', space=vmem, size = 0x20000, scoped, tag = 'scratch operand']
  %s0 = inlined_call_operand.vmem [shape: bf16[2,4,64,32], index: 0, kind: input, shape index: {}]
  %s1 = inlined_call_operand.vmem [shape: bf16[2,4,64,32], index: 1, kind: input, shape index: {}]
  %s2 = inlined_call_operand.vmem [shape: bf16[2,4,64,32], index: 2, kind: input, shape index: {}]
  %s3 = inlined_call_operand.vmem [shape: bf16[2,4,64,32], index: 3, kind: output, shape index: {}]
  %s4 = sld [smem:[#allocation0]]
  $region57: #{causal_self_attention.4} parent=0
    _
  %s6 = ssub.s32 1, %s4
  %s7 = scalar_select 0, %s6, %s4
  loop: start=0, step=1, limit=4
  $region2: #{causal_self_attention.4} parent=0 // loop_pre_header
    _
  $region3: #{causal_self_attention.4} parent=0 // loop_header
    %s9 = sphi 0, %s13
    %p10 = scmp.ge.s32.totalorder %s9, 4
    %s16 = sphi 0, %s35
    %s17 = sphi 0, %s31
    %s18 = sphi 0, %s27
    %s19 = sphi 0, %s16
    %s20 = sphi 0, %s17
    %s21 = sphi 0, %s18
    %s22 = sphi 0, %s19
    %s23 = sphi 0, %s20
    %s24 = sphi 0, %s21
    %s40 = sphi 0, %s42
    %s43 = sphi 0, %s40
    %s44 = sphi 0, %s43
    %s60 = sphi 0, %s44
    %s72 = sphi 0, %s74
    %s75 = sphi 0, %s72
    %s76 = sphi 0, %s75
    %s92 = sphi 0, %s76
    %s104 = sphi 0, %s106
    %s107 = sphi 0, %s104
    %s108 = sphi 0, %s107
    %s124 = sphi 0, %s108
    %s132 = sphi 0, %s134
    %s135 = sphi 0, %s132
    %s136 = sphi 0, %s135
    %s152 = sphi 0, %s136
  $region4: #{causal_self_attention.4} parent=0 // loop_header_branch
    %12 = sbr.rel (%p10) target = $region8
  $region5: #{causal_self_attention.4} parent=0 // loop_body
    %s14 = ssub.s32 %s9, 1
    %s15 = ssub.s32 %s9, 2
    %s25 = sadd.s32 1, %s18
    %p26 = scmp.ge.s32.totalorder %s25, 1
    %s27 = scalar_select %p26, 0, %s25
    %s28 = sadd.s32 1, %s17
    %s29 = scalar_select %p26, %s28, %s17
    %p30 = scmp.ge.s32.totalorder %s29, 1
    %s31 = scalar_select %p30, 0, %s29
    %s32 = sadd.s32 1, %s16
    %s33 = scalar_select %p30, %s32, %s16
    %p34 = scmp.ge.s32.totalorder %s33, 2
    %s35 = scalar_select %p34, 0, %s33
    %s36 = ssub.s32 %s16, %s35
    %s37 = ssub.s32 %s17, %s31
    %s38 = sor.u32 %s36, %s37
    %p39 = scmp.eq.s32.totalorder %s38, 0
    %s41 = sadd.s32 %s40, 1
    %s42 = scalar_select %p39, %s40, %s41
    %p45 = pneg %p39
    %p46 = scmp.eq.s32.totalorder %s9, 1
    %p47 = por %p45, %p46
    %p48 = scmp.ne.s32.totalorder %s40, %s43
    %p49 = scmp.eq.s32.totalorder %s9, 0
    %p50 = por %p48, %p49
    %p51 = scmp.ne.s32.totalorder %s40, %s43
    %p52 = scmp.eq.s32.totalorder %s14, 1
    %p53 = por %p51, %p52
    %p54 = scmp.ne.s32.totalorder %s43, %s44
    %p55 = scmp.eq.s32.totalorder %s14, 0
    %p56 = por %p54, %p55
    %p57 = scmp.ne.s32.totalorder %s43, %s44
    %p58 = scmp.eq.s32.totalorder %s15, 1
    %p59 = por %p57, %p58
    %p61 = scmp.ne.s32.totalorder %s44, %s60
    %p62 = scmp.eq.s32.totalorder %s15, 0
    %p63 = por %p61, %p62
    %p64 = scmp.lt.s32.totalorder %s18, %s17
    %s65 = scalar_select %p64, %s18, %s17
    %p66 = scmp.lt.s32.totalorder %s27, %s31
    %s67 = scalar_select %p66, %s27, %s31
    %s68 = ssub.s32 %s16, %s35
    %s69 = ssub.s32 %s65, %s67
    %s70 = sor.u32 %s68, %s69
    %p71 = scmp.eq.s32.totalorder %s70, 0
    %s73 = sadd.s32 %s72, 1
    %s74 = scalar_select %p71, %s72, %s73
    %p77 = pneg %p71
    %p78 = scmp.eq.s32.totalorder %s9, 1
    %p79 = por %p77, %p78
    %p80 = scmp.ne.s32.totalorder %s72, %s75
    %p81 = scmp.eq.s32.totalorder %s9, 0
    %p82 = por %p80, %p81
    %p83 = scmp.ne.s32.totalorder %s72, %s75
    %p84 = scmp.eq.s32.totalorder %s14, 1
    %p85 = por %p83, %p84
    %p86 = scmp.ne.s32.totalorder %s75, %s76
    %p87 = scmp.eq.s32.totalorder %s14, 0
    %p88 = por %p86, %p87
    %p89 = scmp.ne.s32.totalorder %s75, %s76
    %p90 = scmp.eq.s32.totalorder %s15, 1
    %p91 = por %p89, %p90
    %p93 = scmp.ne.s32.totalorder %s76, %s92
    %p94 = scmp.eq.s32.totalorder %s15, 0
    %p95 = por %p93, %p94
    %p96 = scmp.lt.s32.totalorder %s18, %s17
    %s97 = scalar_select %p96, %s18, %s17
    %p98 = scmp.lt.s32.totalorder %s27, %s31
    %s99 = scalar_select %p98, %s27, %s31
    %s100 = ssub.s32 %s16, %s35
    %s101 = ssub.s32 %s97, %s99
    %s102 = sor.u32 %s100, %s101
    %p103 = scmp.eq.s32.totalorder %s102, 0
    %s105 = sadd.s32 %s104, 1
    %s106 = scalar_select %p103, %s104, %s105
    %p109 = pneg %p103
    %p110 = scmp.eq.s32.totalorder %s9, 1
    %p111 = por %p109, %p110
    %p112 = scmp.ne.s32.totalorder %s104, %s107
    %p113 = scmp.eq.s32.totalorder %s9, 0
    %p114 = por %p112, %p113
    %p115 = scmp.ne.s32.totalorder %s104, %s107
    %p116 = scmp.eq.s32.totalorder %s14, 1
    %p117 = por %p115, %p116
    %p118 = scmp.ne.s32.totalorder %s107, %s108
    %p119 = scmp.eq.s32.totalorder %s14, 0
    %p120 = por %p118, %p119
    %p121 = scmp.ne.s32.totalorder %s107, %s108
    %p122 = scmp.eq.s32.totalorder %s15, 1
    %p123 = por %p121, %p122
    %p125 = scmp.ne.s32.totalorder %s108, %s124
    %p126 = scmp.eq.s32.totalorder %s15, 0
    %p127 = por %p125, %p126
    %s128 = ssub.s32 %s16, %s35
    %s129 = ssub.s32 %s17, %s31
    %s130 = sor.u32 %s128, %s129
    %p131 = scmp.eq.s32.totalorder %s130, 0
    %s133 = sadd.s32 %s132, 1
    %s134 = scalar_select %p131, %s132, %s133
    %p137 = pneg %p131
    %p138 = scmp.eq.s32.totalorder %s9, 1
    %p139 = por %p137, %p138
    %p140 = scmp.ne.s32.totalorder %s132, %s135
    %p141 = scmp.eq.s32.totalorder %s9, 0
    %p142 = por %p140, %p141
    %p143 = scmp.ne.s32.totalorder %s132, %s135
    %p144 = scmp.eq.s32.totalorder %s14, 1
    %p145 = por %p143, %p144
    %p146 = scmp.ne.s32.totalorder %s135, %s136
    %p147 = scmp.eq.s32.totalorder %s14, 0
    %p148 = por %p146, %p147
    %p149 = scmp.ne.s32.totalorder %s135, %s136
    %p150 = scmp.eq.s32.totalorder %s15, 1
    %p151 = por %p149, %p150
    %p153 = scmp.ne.s32.totalorder %s136, %s152
    %p154 = scmp.eq.s32.totalorder %s15, 0
    %p155 = por %p153, %p154
    %p156 = scmp.le.s32.totalorder 1, %s9
    %p157 = scmp.lt.s32.totalorder %s9, 3
    %p158 = pnand %p156, %p157
    %p159 = pneg %p158
    // Predicated region
    $region9: #{causal_self_attention.4} parent=5 // pred_check
      _
    $region10: #{causal_self_attention.4} parent=5 // pred_check_branch
      %161 = sbr.rel (%p158) target = $region12
    $region11: #{causal_self_attention.4} parent=5 // pred_region
      %s162 = ssub.s32 %s9, 1
    $region12: #{causal_self_attention.4} parent=5 // pred_fallthru
      _
    %p163 = scmp.lt.s32.totalorder %s9, 2
    // Predicated region
    $region13: #{causal_self_attention.4} parent=5 // pred_check
      %p164 = pneg %p163
    $region14: #{causal_self_attention.4} parent=5 // pred_check_branch
      %166 = sbr.rel (%p164) target = $region16
    $region15: #{causal_self_attention.4} parent=5 // pred_region
      // Predicated region
      $region17: #{causal_self_attention.4} parent=15 // pred_check
        %p167 = pneg %p50
      $region18: #{causal_self_attention.4} parent=15 // pred_check_branch
        %169 = sbr.rel (%p167) target = $region20
      $region19: #{causal_self_attention.4} parent=15 // pred_region
        %s170 = smul.u32 8, %s17
        %p171 = scmp.lt.s32.totalorder %s16, 1
        %s172 = scalar_select %p171, %s16, 1
        %p173 = scmp.lt.s32.totalorder %s170, 7
        %s174 = scalar_select %p173, %s170, 7
        %s175 = smul.addr %s172, 32
        %s176 = sadd.s32 %s174, %s175
        %s177 = smul.addr %s176, 4
        %s178 = scalar_lea.vmem %s0, %s177
        %s179 = smul.u32 8, %s17
      $region20: #{causal_self_attention.4} parent=15 // pred_fallthru
        _
      // Predicated region
      $region21: #{causal_self_attention.4} parent=15 // pred_check
        %p180 = pneg %p82
      $region22: #{causal_self_attention.4} parent=15 // pred_check_branch
        %182 = sbr.rel (%p180) target = $region24
      $region23: #{causal_self_attention.4} parent=15 // pred_region
        %p183 = scmp.lt.s32.totalorder %s18, %s17
        %s184 = scalar_select %p183, %s18, %s17
        %s185 = smul.u32 8, %s184
        %p186 = scmp.lt.s32.totalorder %s16, 1
        %s187 = scalar_select %p186, %s16, 1
        %p188 = scmp.lt.s32.totalorder %s185, 7
        %s189 = scalar_select %p188, %s185, 7
        %s190 = smul.addr %s187, 32
        %s191 = sadd.s32 %s189, %s190
        %s192 = smul.addr %s191, 4
        %s193 = scalar_lea.vmem %s1, %s192
        %p194 = scmp.lt.s32.totalorder %s18, %s17
        %s195 = scalar_select %p194, %s18, %s17
        %s196 = smul.u32 8, %s195
      $region24: #{causal_self_attention.4} parent=15 // pred_fallthru
        _
      // Predicated region
      $region25: #{causal_self_attention.4} parent=15 // pred_check
        %p197 = pneg %p114
      $region26: #{causal_self_attention.4} parent=15 // pred_check_branch
        %199 = sbr.rel (%p197) target = $region28
      $region27: #{causal_self_attention.4} parent=15 // pred_region
        %p200 = scmp.lt.s32.totalorder %s18, %s17
        %s201 = scalar_select %p200, %s18, %s17
        %s202 = smul.u32 8, %s201
        %p203 = scmp.lt.s32.totalorder %s16, 1
        %s204 = scalar_select %p203, %s16, 1
        %p205 = scmp.lt.s32.totalorder %s202, 7
        %s206 = scalar_select %p205, %s202, 7
        %s207 = smul.addr %s204, 32
        %s208 = sadd.s32 %s206, %s207
        %s209 = smul.addr %s208, 4
        %s210 = scalar_lea.vmem %s2, %s209
        %p211 = scmp.lt.s32.totalorder %s18, %s17
        %s212 = scalar_select %p211, %s18, %s17
        %s213 = smul.u32 8, %s212
      $region28: #{causal_self_attention.4} parent=15 // pred_fallthru
        _
    $region16: #{causal_self_attention.4} parent=5 // pred_fallthru
      _
    %p214 = scmp.le.s32.totalorder 1, %s9
    %p215 = scmp.lt.s32.totalorder %s9, 3
    %p216 = pnand %p214, %p215
    %p217 = pneg %p216
    // Predicated region
    $region29: #{causal_self_attention.4} parent=5 // pred_check
      _
    $region30: #{causal_self_attention.4} parent=5 // pred_check_branch
      %219 = sbr.rel (%p216) target = $region32
    $region31: #{causal_self_attention.4} parent=5 // pred_region
      %s220 = ssub.s32 %s9, 1
      %s221 = smul.u32 8, %s20
      %p222 = scmp.lt.s32.totalorder %s19, 1
      %s223 = scalar_select %p222, %s19, 1
      %p224 = scmp.lt.s32.totalorder %s221, 7
      %s225 = scalar_select %p224, %s221, 7
      %s226 = smul.addr %s223, 32
      %s227 = sadd.s32 %s225, %s226
      %s228 = smul.addr %s227, 4
      %s229 = scalar_lea.vmem %s0, %s228
      %p230 = pneg %p56
      %p231 = pneg %p53
      %p232 = scmp.lt.s32.totalorder %s21, %s20
      %s233 = scalar_select %p232, %s21, %s20
      %s234 = smul.u32 8, %s233
      %p235 = scmp.lt.s32.totalorder %s19, 1
      %s236 = scalar_select %p235, %s19, 1
      %p237 = scmp.lt.s32.totalorder %s234, 7
      %s238 = scalar_select %p237, %s234, 7
      %s239 = smul.addr %s236, 32
      %s240 = sadd.s32 %s238, %s239
      %s241 = smul.addr %s240, 4
      %s242 = scalar_lea.vmem %s1, %s241
      %p243 = pneg %p88
      %p244 = pneg %p85
      %p245 = scmp.lt.s32.totalorder %s21, %s20
      %s246 = scalar_select %p245, %s21, %s20
      %s247 = smul.u32 8, %s246
      %p248 = scmp.lt.s32.totalorder %s19, 1
      %s249 = scalar_select %p248, %s19, 1
      %p250 = scmp.lt.s32.totalorder %s247, 7
      %s251 = scalar_select %p250, %s247, 7
      %s252 = smul.addr %s249, 32
      %s253 = sadd.s32 %s251, %s252
      %s254 = smul.addr %s253, 4
      %s255 = scalar_lea.vmem %s2, %s254
      %p256 = pneg %p120
      %p257 = pneg %p117
      %p258 = pneg %p148
      %p259 = pneg %p145
      %s260 = smul.u32 8, %s20
      %p261 = scmp.lt.s32.totalorder %s19, 1
      %s262 = scalar_select %p261, %s19, 1
      %p263 = scmp.lt.s32.totalorder %s260, 7
      %s264 = scalar_select %p263, %s260, 7
      %s265 = smul.addr %s262, 32
      %s266 = sadd.s32 %s264, %s265
      %s267 = smul.addr %s266, 4
      %s268 = scalar_lea.vmem %s3, %s267
      %s269 = smul.u32 8, %s20
      %p270 = scmp.lt.s32.totalorder %s19, 1
      %s271 = scalar_select %p270, %s19, 1
      %p272 = scmp.lt.s32.totalorder %s269, 7
      %s273 = scalar_select %p272, %s269, 7
      %s274 = smul.addr %s271, 32
      %s275 = sadd.s32 %s273, %s274
      %s276 = smul.addr %s275, 4
      %s277 = scalar_lea.vmem %s0, %s276
      %s278 = smul.u32 8, %s20
      %p279 = scmp.lt.s32.totalorder %s21, %s20
      %s280 = scalar_select %p279, %s21, %s20
      %s281 = smul.u32 8, %s280
      %p282 = scmp.lt.s32.totalorder %s19, 1
      %s283 = scalar_select %p282, %s19, 1
      %p284 = scmp.lt.s32.totalorder %s281, 7
      %s285 = scalar_select %p284, %s281, 7
      %s286 = smul.addr %s283, 32
      %s287 = sadd.s32 %s285, %s286
      %s288 = smul.addr %s287, 4
      %s289 = scalar_lea.vmem %s1, %s288
      %p290 = scmp.lt.s32.totalorder %s21, %s20
      %s291 = scalar_select %p290, %s21, %s20
      %s292 = smul.u32 8, %s291
      %p293 = scmp.lt.s32.totalorder %s21, %s20
      %s294 = scalar_select %p293, %s21, %s20
      %s295 = smul.u32 8, %s294
      %p296 = scmp.lt.s32.totalorder %s19, 1
      %s297 = scalar_select %p296, %s19, 1
      %p298 = scmp.lt.s32.totalorder %s295, 7
      %s299 = scalar_select %p298, %s295, 7
      %s300 = smul.addr %s297, 32
      %s301 = sadd.s32 %s299, %s300
      %s302 = smul.addr %s301, 4
      %s303 = scalar_lea.vmem %s2, %s302
      %p304 = scmp.lt.s32.totalorder %s21, %s20
      %s305 = scalar_select %p304, %s21, %s20
      %s306 = smul.u32 8, %s305
      %s307 = smul.u32 8, %s20
      %p308 = scmp.lt.s32.totalorder %s19, 1
      %s309 = scalar_select %p308, %s19, 1
      %p310 = scmp.lt.s32.totalorder %s307, 7
      %s311 = scalar_select %p310, %s307, 7
      %s312 = smul.addr %s309, 32
      %s313 = sadd.s32 %s311, %s312
      %s314 = smul.addr %s313, 4
      %s315 = scalar_lea.vmem %s3, %s314
      %s316 = smul.u32 8, %s20
      %p319 = scmp.eq.s32.totalorder %s21, 0
      // Predicated region
      $region33: #{causal_self_attention.4} parent=31 // pred_check
        %p320 = pneg %p319
      $region34: #{causal_self_attention.4} parent=31 // pred_check_branch
        %322 = sbr.rel (%p320) target = $region36
      $region35: #{causal_self_attention.4} parent=31 // pred_region
        %vm323 = vcmask 7168
        %324 = vst.msk [vmem:[#allocation2] sm:$0xff] %vm323, -1e+30
        %325 = vst.msk [vmem:[#allocation2 + $0x8] sm:$0xff] %vm323, -1e+30
        %326 = vst.msk [vmem:[#allocation2 + $0x10] sm:$0xff] %vm323, -1e+30
        %327 = vst.msk [vmem:[#allocation2 + $0x18] sm:$0xff] %vm323, -1e+30
        %328 = vst.msk [vmem:[#allocation2 + $0x20] sm:$0xff] %vm323, -1e+30
        %329 = vst.msk [vmem:[#allocation2 + $0x28] sm:$0xff] %vm323, -1e+30
        %330 = vst.msk [vmem:[#allocation2 + $0x30] sm:$0xff] %vm323, -1e+30
        %331 = vst.msk [vmem:[#allocation2 + $0x38] sm:$0xff] %vm323, -1e+30
        %332 = vst.msk [vmem:[#allocation2 + $0x40] sm:$0xff] %vm323, -1e+30
        %333 = vst.msk [vmem:[#allocation2 + $0x48] sm:$0xff] %vm323, -1e+30
        %334 = vst.msk [vmem:[#allocation2 + $0x50] sm:$0xff] %vm323, -1e+30
        %335 = vst.msk [vmem:[#allocation2 + $0x58] sm:$0xff] %vm323, -1e+30
        %336 = vst.msk [vmem:[#allocation2 + $0x60] sm:$0xff] %vm323, -1e+30
        %337 = vst.msk [vmem:[#allocation2 + $0x68] sm:$0xff] %vm323, -1e+30
        %338 = vst.msk [vmem:[#allocation2 + $0x70] sm:$0xff] %vm323, -1e+30
        %339 = vst.msk [vmem:[#allocation2 + $0x78] sm:$0xff] %vm323, -1e+30
        %340 = vst.msk [vmem:[#allocation2 + $0x80] sm:$0xff] %vm323, -1e+30
        %341 = vst.msk [vmem:[#allocation2 + $0x88] sm:$0xff] %vm323, -1e+30
        %342 = vst.msk [vmem:[#allocation2 + $0x90] sm:$0xff] %vm323, -1e+30
        %343 = vst.msk [vmem:[#allocation2 + $0x98] sm:$0xff] %vm323, -1e+30
        %344 = vst.msk [vmem:[#allocation2 + $0xa0] sm:$0xff] %vm323, -1e+30
        %345 = vst.msk [vmem:[#allocation2 + $0xa8] sm:$0xff] %vm323, -1e+30
        %346 = vst.msk [vmem:[#allocation2 + $0xb0] sm:$0xff] %vm323, -1e+30
        %347 = vst.msk [vmem:[#allocation2 + $0xb8] sm:$0xff] %vm323, -1e+30
        %348 = vst.msk [vmem:[#allocation2 + $0xc0] sm:$0xff] %vm323, -1e+30
        %349 = vst.msk [vmem:[#allocation2 + $0xc8] sm:$0xff] %vm323, -1e+30
        %350 = vst.msk [vmem:[#allocation2 + $0xd0] sm:$0xff] %vm323, -1e+30
        %351 = vst.msk [vmem:[#allocation2 + $0xd8] sm:$0xff] %vm323, -1e+30
        %352 = vst.msk [vmem:[#allocation2 + $0xe0] sm:$0xff] %vm323, -1e+30
        %353 = vst.msk [vmem:[#allocation2 + $0xe8] sm:$0xff] %vm323, -1e+30
        %354 = vst.msk [vmem:[#allocation2 + $0xf0] sm:$0xff] %vm323, -1e+30
        %355 = vst.msk [vmem:[#allocation2 + $0xf8] sm:$0xff] %vm323, -1e+30
        %356 = vst.msk [vmem:[#allocation3] sm:$0xff] %vm323, 0.0
        %357 = vst.msk [vmem:[#allocation3 + $0x8] sm:$0xff] %vm323, 0.0
        %358 = vst.msk [vmem:[#allocation3 + $0x10] sm:$0xff] %vm323, 0.0
        %359 = vst.msk [vmem:[#allocation3 + $0x18] sm:$0xff] %vm323, 0.0
        %360 = vst.msk [vmem:[#allocation3 + $0x20] sm:$0xff] %vm323, 0.0
        %361 = vst.msk [vmem:[#allocation3 + $0x28] sm:$0xff] %vm323, 0.0
        %362 = vst.msk [vmem:[#allocation3 + $0x30] sm:$0xff] %vm323, 0.0
        %363 = vst.msk [vmem:[#allocation3 + $0x38] sm:$0xff] %vm323, 0.0
        %364 = vst.msk [vmem:[#allocation3 + $0x40] sm:$0xff] %vm323, 0.0
        %365 = vst.msk [vmem:[#allocation3 + $0x48] sm:$0xff] %vm323, 0.0
        %366 = vst.msk [vmem:[#allocation3 + $0x50] sm:$0xff] %vm323, 0.0
        %367 = vst.msk [vmem:[#allocation3 + $0x58] sm:$0xff] %vm323, 0.0
        %368 = vst.msk [vmem:[#allocation3 + $0x60] sm:$0xff] %vm323, 0.0
        %369 = vst.msk [vmem:[#allocation3 + $0x68] sm:$0xff] %vm323, 0.0
        %370 = vst.msk [vmem:[#allocation3 + $0x70] sm:$0xff] %vm323, 0.0
        %371 = vst.msk [vmem:[#allocation3 + $0x78] sm:$0xff] %vm323, 0.0
        %372 = vst.msk [vmem:[#allocation3 + $0x80] sm:$0xff] %vm323, 0.0
        %373 = vst.msk [vmem:[#allocation3 + $0x88] sm:$0xff] %vm323, 0.0
        %374 = vst.msk [vmem:[#allocation3 + $0x90] sm:$0xff] %vm323, 0.0
        %375 = vst.msk [vmem:[#allocation3 + $0x98] sm:$0xff] %vm323, 0.0
        %376 = vst.msk [vmem:[#allocation3 + $0xa0] sm:$0xff] %vm323, 0.0
        %377 = vst.msk [vmem:[#allocation3 + $0xa8] sm:$0xff] %vm323, 0.0
        %378 = vst.msk [vmem:[#allocation3 + $0xb0] sm:$0xff] %vm323, 0.0
        %379 = vst.msk [vmem:[#allocation3 + $0xb8] sm:$0xff] %vm323, 0.0
        %380 = vst.msk [vmem:[#allocation3 + $0xc0] sm:$0xff] %vm323, 0.0
        %381 = vst.msk [vmem:[#allocation3 + $0xc8] sm:$0xff] %vm323, 0.0
        %382 = vst.msk [vmem:[#allocation3 + $0xd0] sm:$0xff] %vm323, 0.0
        %383 = vst.msk [vmem:[#allocation3 + $0xd8] sm:$0xff] %vm323, 0.0
        %384 = vst.msk [vmem:[#allocation3 + $0xe0] sm:$0xff] %vm323, 0.0
        %385 = vst.msk [vmem:[#allocation3 + $0xe8] sm:$0xff] %vm323, 0.0
        %386 = vst.msk [vmem:[#allocation3 + $0xf0] sm:$0xff] %vm323, 0.0
        %387 = vst.msk [vmem:[#allocation3 + $0xf8] sm:$0xff] %vm323, 0.0
        %vm388 = vcmask 261120
        %389 = vst.msk [vmem:[#allocation4] sm:$0xff] %vm388, 0.0
        %390 = vst.msk [vmem:[#allocation4 + $0x8] sm:$0xff] %vm388, 0.0
        %391 = vst.msk [vmem:[#allocation4 + $0x10] sm:$0xff] %vm388, 0.0
        %392 = vst.msk [vmem:[#allocation4 + $0x18] sm:$0xff] %vm388, 0.0
        %393 = vst.msk [vmem:[#allocation4 + $0x20] sm:$0xff] %vm388, 0.0
        %394 = vst.msk [vmem:[#allocation4 + $0x28] sm:$0xff] %vm388, 0.0
        %395 = vst.msk [vmem:[#allocation4 + $0x30] sm:$0xff] %vm388, 0.0
        %396 = vst.msk [vmem:[#allocation4 + $0x38] sm:$0xff] %vm388, 0.0
        %397 = vst.msk [vmem:[#allocation4 + $0x40] sm:$0xff] %vm388, 0.0
        %398 = vst.msk [vmem:[#allocation4 + $0x48] sm:$0xff] %vm388, 0.0
        %399 = vst.msk [vmem:[#allocation4 + $0x50] sm:$0xff] %vm388, 0.0
        %400 = vst.msk [vmem:[#allocation4 + $0x58] sm:$0xff] %vm388, 0.0
        %401 = vst.msk [vmem:[#allocation4 + $0x60] sm:$0xff] %vm388, 0.0
        %402 = vst.msk [vmem:[#allocation4 + $0x68] sm:$0xff] %vm388, 0.0
        %403 = vst.msk [vmem:[#allocation4 + $0x70] sm:$0xff] %vm388, 0.0
        %404 = vst.msk [vmem:[#allocation4 + $0x78] sm:$0xff] %vm388, 0.0
        %405 = vst.msk [vmem:[#allocation4 + $0x80] sm:$0xff] %vm388, 0.0
        %406 = vst.msk [vmem:[#allocation4 + $0x88] sm:$0xff] %vm388, 0.0
        %407 = vst.msk [vmem:[#allocation4 + $0x90] sm:$0xff] %vm388, 0.0
        %408 = vst.msk [vmem:[#allocation4 + $0x98] sm:$0xff] %vm388, 0.0
        %409 = vst.msk [vmem:[#allocation4 + $0xa0] sm:$0xff] %vm388, 0.0
        %410 = vst.msk [vmem:[#allocation4 + $0xa8] sm:$0xff] %vm388, 0.0
        %411 = vst.msk [vmem:[#allocation4 + $0xb0] sm:$0xff] %vm388, 0.0
        %412 = vst.msk [vmem:[#allocation4 + $0xb8] sm:$0xff] %vm388, 0.0
        %413 = vst.msk [vmem:[#allocation4 + $0xc0] sm:$0xff] %vm388, 0.0
        %414 = vst.msk [vmem:[#allocation4 + $0xc8] sm:$0xff] %vm388, 0.0
        %415 = vst.msk [vmem:[#allocation4 + $0xd0] sm:$0xff] %vm388, 0.0
        %416 = vst.msk [vmem:[#allocation4 + $0xd8] sm:$0xff] %vm388, 0.0
        %417 = vst.msk [vmem:[#allocation4 + $0xe0] sm:$0xff] %vm388, 0.0
        %418 = vst.msk [vmem:[#allocation4 + $0xe8] sm:$0xff] %vm388, 0.0
        %419 = vst.msk [vmem:[#allocation4 + $0xf0] sm:$0xff] %vm388, 0.0
        %420 = vst.msk [vmem:[#allocation4 + $0xf8] sm:$0xff] %vm388, 0.0
      $region36: #{causal_self_attention.4} parent=31 // pred_fallthru
        _
      %p421 = scmp.lt.s32.totalorder %s21, %s20
      // Predicated region
      $region37: #{causal_self_attention.4} parent=31 // pred_check
        %p422 = pneg %p421
      $region38: #{causal_self_attention.4} parent=31 // pred_check_branch
        %424 = sbr.rel (%p422) target = $region40
      $region39: #{causal_self_attention.4} parent=31 // pred_region
        %v425 = vld [vmem:[%s277] sm:$0xf]
        %v426 = vld [vmem:[%s277 + $0x4] sm:$0xf]
        %v427 = vld [vmem:[%s277 + $0x8] sm:$0xf]
        %v428 = vld [vmem:[%s277 + $0xc] sm:$0xf]
        %v429 = vld [vmem:[%s277 + $0x10] sm:$0xf]
        %v430 = vld [vmem:[%s277 + $0x14] sm:$0xf]
        %v431 = vld [vmem:[%s277 + $0x18] sm:$0xf]
        %v432 = vld [vmem:[%s277 + $0x1c] sm:$0xf]
        %v433 = vld [vmem:[%s277 + $0x20] sm:$0xf]
        %v434 = vld [vmem:[%s277 + $0x24] sm:$0xf]
        %v435 = vld [vmem:[%s277 + $0x28] sm:$0xf]
        %v436 = vld [vmem:[%s277 + $0x2c] sm:$0xf]
        %v437 = vld [vmem:[%s277 + $0x30] sm:$0xf]
        %v438 = vld [vmem:[%s277 + $0x34] sm:$0xf]
        %v439 = vld [vmem:[%s277 + $0x38] sm:$0xf]
        %v440 = vld [vmem:[%s277 + $0x3c] sm:$0xf]
        %v441 = vld [vmem:[%s277 + $0x40] sm:$0xf]
        %v442 = vld [vmem:[%s277 + $0x44] sm:$0xf]
        %v443 = vld [vmem:[%s277 + $0x48] sm:$0xf]
        %v444 = vld [vmem:[%s277 + $0x4c] sm:$0xf]
        %v445 = vld [vmem:[%s277 + $0x50] sm:$0xf]
        %v446 = vld [vmem:[%s277 + $0x54] sm:$0xf]
        %v447 = vld [vmem:[%s277 + $0x58] sm:$0xf]
        %v448 = vld [vmem:[%s277 + $0x5c] sm:$0xf]
        %v449 = vld [vmem:[%s277 + $0x60] sm:$0xf]
        %v450 = vld [vmem:[%s277 + $0x64] sm:$0xf]
        %v451 = vld [vmem:[%s277 + $0x68] sm:$0xf]
        %v452 = vld [vmem:[%s277 + $0x6c] sm:$0xf]
        %v453 = vld [vmem:[%s277 + $0x70] sm:$0xf]
        %v454 = vld [vmem:[%s277 + $0x74] sm:$0xf]
        %v455 = vld [vmem:[%s277 + $0x78] sm:$0xf]
        %v456 = vld [vmem:[%s277 + $0x7c] sm:$0xf]
        %v457 = vmul.bf16 %v425, 1043676725
        %v458 = vmul.bf16 %v426, 1043676725
        %v459 = vmul.bf16 %v427, 1043676725
        %v460 = vmul.bf16 %v428, 1043676725
        %v461 = vmul.bf16 %v429, 1043676725
        %v462 = vmul.bf16 %v430, 1043676725
        %v463 = vmul.bf16 %v431, 1043676725
        %v464 = vmul.bf16 %v432, 1043676725
        %v465 = vmul.bf16 %v433, 1043676725
        %v466 = vmul.bf16 %v434, 1043676725
        %v467 = vmul.bf16 %v435, 1043676725
        %v468 = vmul.bf16 %v436, 1043676725
        %v469 = vmul.bf16 %v437, 1043676725
        %v470 = vmul.bf16 %v438, 1043676725
        %v471 = vmul.bf16 %v439, 1043676725
        %v472 = vmul.bf16 %v440, 1043676725
        %v473 = vmul.bf16 %v441, 1043676725
        %v474 = vmul.bf16 %v442, 1043676725
        %v475 = vmul.bf16 %v443, 1043676725
        %v476 = vmul.bf16 %v444, 1043676725
        %v477 = vmul.bf16 %v445, 1043676725
        %v478 = vmul.bf16 %v446, 1043676725
        %v479 = vmul.bf16 %v447, 1043676725
        %v480 = vmul.bf16 %v448, 1043676725
        %v481 = vmul.bf16 %v449, 1043676725
        %v482 = vmul.bf16 %v450, 1043676725
        %v483 = vmul.bf16 %v451, 1043676725
        %v484 = vmul.bf16 %v452, 1043676725
        %v485 = vmul.bf16 %v453, 1043676725
        %v486 = vmul.bf16 %v454, 1043676725
        %v487 = vmul.bf16 %v455, 1043676725
        %v488 = vmul.bf16 %v456, 1043676725
        %v489 = vld [vmem:[%s289] sm:$0xf]
        %v490 = vld [vmem:[%s289 + $0x4] sm:$0xf]
        %v491 = vld [vmem:[%s289 + $0x8] sm:$0xf]
        %v492 = vld [vmem:[%s289 + $0xc] sm:$0xf]
        %v493 = vld [vmem:[%s289 + $0x10] sm:$0xf]
        %v494 = vld [vmem:[%s289 + $0x14] sm:$0xf]
        %v495 = vld [vmem:[%s289 + $0x18] sm:$0xf]
        %v496 = vld [vmem:[%s289 + $0x1c] sm:$0xf]
        %v497 = vld [vmem:[%s289 + $0x20] sm:$0xf]
        %v498 = vld [vmem:[%s289 + $0x24] sm:$0xf]
        %v499 = vld [vmem:[%s289 + $0x28] sm:$0xf]
        %v500 = vld [vmem:[%s289 + $0x2c] sm:$0xf]
        %v501 = vld [vmem:[%s289 + $0x30] sm:$0xf]
        %v502 = vld [vmem:[%s289 + $0x34] sm:$0xf]
        %v503 = vld [vmem:[%s289 + $0x38] sm:$0xf]
        %v504 = vld [vmem:[%s289 + $0x3c] sm:$0xf]
        %v505 = vld [vmem:[%s289 + $0x40] sm:$0xf]
        %v506 = vld [vmem:[%s289 + $0x44] sm:$0xf]
        %v507 = vld [vmem:[%s289 + $0x48] sm:$0xf]
        %v508 = vld [vmem:[%s289 + $0x4c] sm:$0xf]
        %v509 = vld [vmem:[%s289 + $0x50] sm:$0xf]
        %v510 = vld [vmem:[%s289 + $0x54] sm:$0xf]
        %v511 = vld [vmem:[%s289 + $0x58] sm:$0xf]
        %v512 = vld [vmem:[%s289 + $0x5c] sm:$0xf]
        %v513 = vld [vmem:[%s289 + $0x60] sm:$0xf]
        %v514 = vld [vmem:[%s289 + $0x64] sm:$0xf]
        %v515 = vld [vmem:[%s289 + $0x68] sm:$0xf]
        %v516 = vld [vmem:[%s289 + $0x6c] sm:$0xf]
        %v517 = vld [vmem:[%s289 + $0x70] sm:$0xf]
        %v518 = vld [vmem:[%s289 + $0x74] sm:$0xf]
        %v519 = vld [vmem:[%s289 + $0x78] sm:$0xf]
        %v520 = vld [vmem:[%s289 + $0x7c] sm:$0xf]
        %v529 = vunpack.c.l.b16 %v457
        %v530 = vunpack.c.l.b16 %v458
        %v531 = vunpack.c.l.b16 %v459
        %v532 = vunpack.c.l.b16 %v460
        %v533 = vunpack.c.l.b16 %v461
        %v534 = vunpack.c.l.b16 %v462
        %v535 = vunpack.c.l.b16 %v463
        %v536 = vunpack.c.l.b16 %v464
        %v537 = vpack.c.b16 %v530, %v529
        %v538 = vpack.c.b16 %v532, %v531
        %v539 = vpack.c.b16 %v534, %v533
        %v540 = vpack.c.b16 %v536, %v535
        %v549 = vunpack.c.l.b16 %v489
        %v550 = vunpack.c.l.b16 %v490
        %v551 = vunpack.c.l.b16 %v491
        %v552 = vunpack.c.l.b16 %v492
        %v553 = vunpack.c.l.b16 %v493
        %v554 = vunpack.c.l.b16 %v494
        %v555 = vunpack.c.l.b16 %v495
        %v556 = vunpack.c.l.b16 %v496
        %v557 = vpack.c.b16 %v550, %v549
        %v558 = vpack.c.b16 %v552, %v551
        %v559 = vpack.c.b16 %v554, %v553
        %v560 = vpack.c.b16 %v556, %v555
        %vm561 = vcmask 261120
        %v563 = vsel %vm561, %v537, 0
        %v566 = vsel %vm561, %v538, 0
        %v569 = vsel %vm561, %v539, 0
        %v572 = vsel %vm561, %v540, 0
        %v575 = vsel %vm561, %v557, 0
        %v578 = vsel %vm561, %v558, 0
        %v581 = vsel %vm561, %v559, 0
        %v584 = vsel %vm561, %v560, 0
        %586 = vmatprep.subr.bf16.mxu0 0
        %587 = vmatpush1.bf16.xpose.msra.mxu0 %v575
        %588 = vmatprep.subr.bf16.mxu0 0
        %589 = vmatpush1.bf16.xpose.msra.mxu0 %v578
        %590 = vmatprep.subr.bf16.mxu0 0
        %591 = vmatpush1.bf16.xpose.msra.mxu0 %v581
        %592 = vmatprep.subr.bf16.mxu0 0
        %593 = vmatpush1.bf16.xpose.msra.mxu0 %v584
        %594 = vmatprep.subr.bf16.mxu0 0
        %595 = vmatpush1.bf16.xpose.msra.mxu0 0
        %596 = vmatprep.subr.bf16.mxu0 0
        %597 = vmatpush1.bf16.xpose.msra.mxu0 0
        %598 = vmatprep.subr.bf16.mxu0 0
        %599 = vmatpush1.bf16.xpose.msra.mxu0 0
        %600 = vmatprep.subr.bf16.mxu0 0
        %601 = vmatpush1.bf16.xpose.msra.mxu0 0
        %602 = vmatprep.subr.bf16.mxu0 0
        %603 = vmatpush1.bf16.xpose.msra.mxu0 0
        %604 = vmatprep.subr.bf16.mxu0 0
        %605 = vmatpush1.bf16.xpose.msra.mxu0 0
        %606 = vmatprep.subr.bf16.mxu0 0
        %607 = vmatpush1.bf16.xpose.msra.mxu0 0
        %608 = vmatprep.subr.bf16.mxu0 0
        %609 = vmatpush1.bf16.xpose.msra.mxu0 0
        %610 = vmatprep.subr.bf16.mxu0 0
        %611 = vmatpush1.bf16.xpose.msra.mxu0 0
        %612 = vmatprep.subr.bf16.mxu0 0
        %613 = vmatpush1.bf16.xpose.msra.mxu0 0
        %614 = vmatprep.subr.bf16.mxu0 0
        %615 = vmatpush1.bf16.xpose.msra.mxu0 0
        %616 = vmatprep.subr.bf16.mxu0 0
        %617 = vmatpush1.bf16.xpose.msra.mxu0 0
        %618 = vmatprep.mubr.bf16.mxu0 0
        %619 = vmatmul.mubr.bf16.gmra.mrb[0].mxu0 %v563
        %v620 = vpop.f32.mrb[0].mxu0
        %v621 = vadd.f32 0.0, %v620
        %v622 = vpop.f32.mrb[0].mxu0
        %v623 = vpop.f32.mrb[0].mxu0
        %v624 = vadd.f32 0.0, %v623
        %v625 = vpop.f32.mrb[0].mxu0
        %626 = vmatprep.mubr.bf16.mxu0 0
        %627 = vmatmul.mubr.bf16.gmra.mrb[0].mxu0 %v566
        %v628 = vpop.f32.mrb[0].mxu0
        %v629 = vadd.f32 0.0, %v628
        %v630 = vpop.f32.mrb[0].mxu0
        %v631 = vpop.f32.mrb[0].mxu0
        %v632 = vadd.f32 0.0, %v631
        %v633 = vpop.f32.mrb[0].mxu0
        %634 = vmatprep.mubr.bf16.mxu0 0
        %635 = vmatmul.mubr.bf16.gmra.mrb[0].mxu0 %v569
        %v636 = vpop.f32.mrb[0].mxu0
        %v637 = vadd.f32 0.0, %v636
        %v638 = vpop.f32.mrb[0].mxu0
        %v639 = vpop.f32.mrb[0].mxu0
        %v640 = vadd.f32 0.0, %v639
        %v641 = vpop.f32.mrb[0].mxu0
        %642 = vmatprep.mubr.bf16.mxu0 0
        %643 = vmatmul.mubr.bf16.gmra.mrb[0].mxu0 %v572
        %v644 = vpop.f32.mrb[0].mxu0
        %v645 = vadd.f32 0.0, %v644
        %v646 = vpop.f32.mrb[0].mxu0
        %v647 = vpop.f32.mrb[0].mxu0
        %v648 = vadd.f32 0.0, %v647
        %v649 = vpop.f32.mrb[0].mxu0
        %650 = vdwg.mxu0
        %v659 = vunpack.c.l.b16 %v465
        %v660 = vunpack.c.l.b16 %v466
        %v661 = vunpack.c.l.b16 %v467
        %v662 = vunpack.c.l.b16 %v468
        %v663 = vunpack.c.l.b16 %v469
        %v664 = vunpack.c.l.b16 %v470
        %v665 = vunpack.c.l.b16 %v471
        %v666 = vunpack.c.l.b16 %v472
        %v667 = vpack.c.b16 %v660, %v659
        %v668 = vpack.c.b16 %v662, %v661
        %v669 = vpack.c.b16 %v664, %v663
        %v670 = vpack.c.b16 %v666, %v665
        %v679 = vunpack.c.l.b16 %v497
        %v680 = vunpack.c.l.b16 %v498
        %v681 = vunpack.c.l.b16 %v499
        %v682 = vunpack.c.l.b16 %v500
        %v683 = vunpack.c.l.b16 %v501
        %v684 = vunpack.c.l.b16 %v502
        %v685 = vunpack.c.l.b16 %v503
        %v686 = vunpack.c.l.b16 %v504
        %v687 = vpack.c.b16 %v680, %v679
        %v688 = vpack.c.b16 %v682, %v681
        %v689 = vpack.c.b16 %v684, %v683
        %v690 = vpack.c.b16 %v686, %v685
        %v692 = vsel %vm561, %v667, 0
        %v695 = vsel %vm561, %v668, 0
        %v698 = vsel %vm561, %v669, 0
        %v701 = vsel %vm561, %v670, 0
        %v704 = vsel %vm561, %v687, 0
        %v707 = vsel %vm561, %v688, 0
        %v710 = vsel %vm561, %v689, 0
        %v713 = vsel %vm561, %v690, 0
        %715 = vmatprep.subr.bf16.mxu0 0
        %716 = vmatpush1.bf16.xpose.msra.mxu0 %v704
        %717 = vmatprep.subr.bf16.mxu0 0
        %718 = vmatpush1.bf16.xpose.msra.mxu0 %v707
        %719 = vmatprep.subr.bf16.mxu0 0
        %720 = vmatpush1.bf16.xpose.msra.mxu0 %v710
        %721 = vmatprep.subr.bf16.mxu0 0
        %722 = vmatpush1.bf16.xpose.msra.mxu0 %v713
        %723 = vmatprep.subr.bf16.mxu0 0
        %724 = vmatpush1.bf16.xpose.msra.mxu0 0
        %725 = vmatprep.subr.bf16.mxu0 0
        %726 = vmatpush1.bf16.xpose.msra.mxu0 0
        %727 = vmatprep.subr.bf16.mxu0 0
        %728 = vmatpush1.bf16.xpose.msra.mxu0 0
        %729 = vmatprep.subr.bf16.mxu0 0
        %730 = vmatpush1.bf16.xpose.msra.mxu0 0
        %731 = vmatprep.subr.bf16.mxu0 0
        %732 = vmatpush1.bf16.xpose.msra.mxu0 0
        %733 = vmatprep.subr.bf16.mxu0 0
        %734 = vmatpush1.bf16.xpose.msra.mxu0 0
        %735 = vmatprep.subr.bf16.mxu0 0
        %736 = vmatpush1.bf16.xpose.msra.mxu0 0
        %737 = vmatprep.subr.bf16.mxu0 0
        %738 = vmatpush1.bf16.xpose.msra.mxu0 0
        %739 = vmatprep.subr.bf16.mxu0 0
        %740 = vmatpush1.bf16.xpose.msra.mxu0 0
        %741 = vmatprep.subr.bf16.mxu0 0
        %742 = vmatpush1.bf16.xpose.msra.mxu0 0
        %743 = vmatprep.subr.bf16.mxu0 0
        %744 = vmatpush1.bf16.xpose.msra.mxu0 0
        %745 = vmatprep.subr.bf16.mxu0 0
        %746 = vmatpush1.bf16.xpose.msra.mxu0 0
        %747 = vmatprep.mubr.bf16.mxu0 0
        %748 = vmatmul.mubr.bf16.gmra.mrb[0].mxu0 %v692
        %v749 = vpop.f32.mrb[0].mxu0
        %v750 = vadd.f32 0.0, %v749
        %v751 = vpop.f32.mrb[0].mxu0
        %v752 = vpop.f32.mrb[0].mxu0
        %v753 = vadd.f32 0.0, %v752
        %v754 = vpop.f32.mrb[0].mxu0
        %755 = vmatprep.mubr.bf16.mxu0 0
        %756 = vmatmul.mubr.bf16.gmra.mrb[0].mxu0 %v695
        %v757 = vpop.f32.mrb[0].mxu0
        %v758 = vadd.f32 0.0, %v757
        %v759 = vpop.f32.mrb[0].mxu0
        %v760 = vpop.f32.mrb[0].mxu0
        %v761 = vadd.f32 0.0, %v760
        %v762 = vpop.f32.mrb[0].mxu0
        %763 = vmatprep.mubr.bf16.mxu0 0
        %764 = vmatmul.mubr.bf16.gmra.mrb[0].mxu0 %v698
        %v765 = vpop.f32.mrb[0].mxu0
        %v766 = vadd.f32 0.0, %v765
        %v767 = vpop.f32.mrb[0].mxu0
        %v768 = vpop.f32.mrb[0].mxu0
        %v769 = vadd.f32 0.0, %v768
        %v770 = vpop.f32.mrb[0].mxu0
        %771 = vmatprep.mubr.bf16.mxu0 0
        %772 = vmatmul.mubr.bf16.gmra.mrb[0].mxu0 %v701
        %v773 = vpop.f32.mrb[0].mxu0
        %v774 = vadd.f32 0.0, %v773
        %v775 = vpop.f32.mrb[0].mxu0
        %v776 = vpop.f32.mrb[0].mxu0
        %v777 = vadd.f32 0.0, %v776
        %v778 = vpop.f32.mrb[0].mxu0
        %779 = vdwg.mxu0
        %v788 = vunpack.c.l.b16 %v473
        %v789 = vunpack.c.l.b16 %v474
        %v790 = vunpack.c.l.b16 %v475
        %v791 = vunpack.c.l.b16 %v476
        %v792 = vunpack.c.l.b16 %v477
        %v793 = vunpack.c.l.b16 %v478
        %v794 = vunpack.c.l.b16 %v479
        %v795 = vunpack.c.l.b16 %v480
        %v796 = vpack.c.b16 %v789, %v788
        %v797 = vpack.c.b16 %v791, %v790
        %v798 = vpack.c.b16 %v793, %v792
        %v799 = vpack.c.b16 %v795, %v794
        %v808 = vunpack.c.l.b16 %v505
        %v809 = vunpack.c.l.b16 %v506
        %v810 = vunpack.c.l.b16 %v507
        %v811 = vunpack.c.l.b16 %v508
        %v812 = vunpack.c.l.b16 %v509
        %v813 = vunpack.c.l.b16 %v510
        %v814 = vunpack.c.l.b16 %v511
        %v815 = vunpack.c.l.b16 %v512
        %v816 = vpack.c.b16 %v809, %v808
        %v817 = vpack.c.b16 %v811, %v810
        %v818 = vpack.c.b16 %v813, %v812
        %v819 = vpack.c.b16 %v815, %v814
        %v821 = vsel %vm561, %v796, 0
        %v824 = vsel %vm561, %v797, 0
        %v827 = vsel %vm561, %v798, 0
        %v830 = vsel %vm561, %v799, 0
        %v833 = vsel %vm561, %v816, 0
        %v836 = vsel %vm561, %v817, 0
        %v839 = vsel %vm561, %v818, 0
        %v842 = vsel %vm561, %v819, 0
        %844 = vmatprep.subr.bf16.mxu0 0
        %845 = vmatpush1.bf16.xpose.msra.mxu0 %v833
        %846 = vmatprep.subr.bf16.mxu0 0
        %847 = vmatpush1.bf16.xpose.msra.mxu0 %v836
        %848 = vmatprep.subr.bf16.mxu0 0
        %849 = vmatpush1.bf16.xpose.msra.mxu0 %v839
        %850 = vmatprep.subr.bf16.mxu0 0
        %851 = vmatpush1.bf16.xpose.msra.mxu0 %v842
        %852 = vmatprep.subr.bf16.mxu0 0
        %853 = vmatpush1.bf16.xpose.msra.mxu0 0
        %854 = vmatprep.subr.bf16.mxu0 0
        %855 = vmatpush1.bf16.xpose.msra.mxu0 0
        %856 = vmatprep.subr.bf16.mxu0 0
        %857 = vmatpush1.bf16.xpose.msra.mxu0 0
        %858 = vmatprep.subr.bf16.mxu0 0
        %859 = vmatpush1.bf16.xpose.msra.mxu0 0
        %860 = vmatprep.subr.bf16.mxu0 0
        %861 = vmatpush1.bf16.xpose.msra.mxu0 0
        %862 = vmatprep.subr.bf16.mxu0 0
        %863 = vmatpush1.bf16.xpose.msra.mxu0 0
        %864 = vmatprep.subr.bf16.mxu0 0
        %865 = vmatpush1.bf16.xpose.msra.mxu0 0
        %866 = vmatprep.subr.bf16.mxu0 0
        %867 = vmatpush1.bf16.xpose.msra.mxu0 0
        %868 = vmatprep.subr.bf16.mxu0 0
        %869 = vmatpush1.bf16.xpose.msra.mxu0 0
        %870 = vmatprep.subr.bf16.mxu0 0
        %871 = vmatpush1.bf16.xpose.msra.mxu0 0
        %872 = vmatprep.subr.bf16.mxu0 0
        %873 = vmatpush1.bf16.xpose.msra.mxu0 0
        %874 = vmatprep.subr.bf16.mxu0 0
        %875 = vmatpush1.bf16.xpose.msra.mxu0 0
        %876 = vmatprep.mubr.bf16.mxu0 0
        %877 = vmatmul.mubr.bf16.gmra.mrb[0].mxu0 %v821
        %v878 = vpop.f32.mrb[0].mxu0
        %v879 = vadd.f32 0.0, %v878
        %v880 = vpop.f32.mrb[0].mxu0
        %v881 = vpop.f32.mrb[0].mxu0
        %v882 = vadd.f32 0.0, %v881
        %v883 = vpop.f32.mrb[0].mxu0
        %884 = vmatprep.mubr.bf16.mxu0 0
        %885 = vmatmul.mubr.bf16.gmra.mrb[0].mxu0 %v824
        %v886 = vpop.f32.mrb[0].mxu0
        %v887 = vadd.f32 0.0, %v886
        %v888 = vpop.f32.mrb[0].mxu0
        %v889 = vpop.f32.mrb[0].mxu0
        %v890 = vadd.f32 0.0, %v889
        %v891 = vpop.f32.mrb[0].mxu0
        %892 = vmatprep.mubr.bf16.mxu0 0
        %893 = vmatmul.mubr.bf16.gmra.mrb[0].mxu0 %v827
        %v894 = vpop.f32.mrb[0].mxu0
        %v895 = vadd.f32 0.0, %v894
        %v896 = vpop.f32.mrb[0].mxu0
        %v897 = vpop.f32.mrb[0].mxu0
        %v898 = vadd.f32 0.0, %v897
        %v899 = vpop.f32.mrb[0].mxu0
        %900 = vmatprep.mubr.bf16.mxu0 0
        %901 = vmatmul.mubr.bf16.gmra.mrb[0].mxu0 %v830
        %v902 = vpop.f32.mrb[0].mxu0
        %v903 = vadd.f32 0.0, %v902
        %v904 = vpop.f32.mrb[0].mxu0
        %v905 = vpop.f32.mrb[0].mxu0
        %v906 = vadd.f32 0.0, %v905
        %v907 = vpop.f32.mrb[0].mxu0
        %908 = vdwg.mxu0
        %v917 = vunpack.c.l.b16 %v481
        %v918 = vunpack.c.l.b16 %v482
        %v919 = vunpack.c.l.b16 %v483
        %v920 = vunpack.c.l.b16 %v484
        %v921 = vunpack.c.l.b16 %v485
        %v922 = vunpack.c.l.b16 %v486
        %v923 = vunpack.c.l.b16 %v487
        %v924 = vunpack.c.l.b16 %v488
        %v925 = vpack.c.b16 %v918, %v917
        %v926 = vpack.c.b16 %v920, %v919
        %v927 = vpack.c.b16 %v922, %v921
        %v928 = vpack.c.b16 %v924, %v923
        %v937 = vunpack.c.l.b16 %v513
        %v938 = vunpack.c.l.b16 %v514
        %v939 = vunpack.c.l.b16 %v515
        %v940 = vunpack.c.l.b16 %v516
        %v941 = vunpack.c.l.b16 %v517
        %v942 = vunpack.c.l.b16 %v518
        %v943 = vunpack.c.l.b16 %v519
        %v944 = vunpack.c.l.b16 %v520
        %v945 = vpack.c.b16 %v938, %v937
        %v946 = vpack.c.b16 %v940, %v939
        %v947 = vpack.c.b16 %v942, %v941
        %v948 = vpack.c.b16 %v944, %v943
        %v950 = vsel %vm561, %v925, 0
        %v953 = vsel %vm561, %v926, 0
        %v956 = vsel %vm561, %v927, 0
        %v959 = vsel %vm561, %v928, 0
        %v962 = vsel %vm561, %v945, 0
        %v965 = vsel %vm561, %v946, 0
        %v968 = vsel %vm561, %v947, 0
        %v971 = vsel %vm561, %v948, 0
        %973 = vmatprep.subr.bf16.mxu0 0
        %974 = vmatpush1.bf16.xpose.msra.mxu0 %v962
        %975 = vmatprep.subr.bf16.mxu0 0
        %976 = vmatpush1.bf16.xpose.msra.mxu0 %v965
        %977 = vmatprep.subr.bf16.mxu0 0
        %978 = vmatpush1.bf16.xpose.msra.mxu0 %v968
        %979 = vmatprep.subr.bf16.mxu0 0
        %980 = vmatpush1.bf16.xpose.msra.mxu0 %v971
        %981 = vmatprep.subr.bf16.mxu0 0
        %982 = vmatpush1.bf16.xpose.msra.mxu0 0
        %983 = vmatprep.subr.bf16.mxu0 0
        %984 = vmatpush1.bf16.xpose.msra.mxu0 0
        %985 = vmatprep.subr.bf16.mxu0 0
        %986 = vmatpush1.bf16.xpose.msra.mxu0 0
        %987 = vmatprep.subr.bf16.mxu0 0
        %988 = vmatpush1.bf16.xpose.msra.mxu0 0
        %989 = vmatprep.subr.bf16.mxu0 0
        %990 = vmatpush1.bf16.xpose.msra.mxu0 0
        %991 = vmatprep.subr.bf16.mxu0 0
        %992 = vmatpush1.bf16.xpose.msra.mxu0 0
        %993 = vmatprep.subr.bf16.mxu0 0
        %994 = vmatpush1.bf16.xpose.msra.mxu0 0
        %995 = vmatprep.subr.bf16.mxu0 0
        %996 = vmatpush1.bf16.xpose.msra.mxu0 0
        %997 = vmatprep.subr.bf16.mxu0 0
        %998 = vmatpush1.bf16.xpose.msra.mxu0 0
        %999 = vmatprep.subr.bf16.mxu0 0
        %1000 = vmatpush1.bf16.xpose.msra.mxu0 0
        %1001 = vmatprep.subr.bf16.mxu0 0
        %1002 = vmatpush1.bf16.xpose.msra.mxu0 0
        %1003 = vmatprep.subr.bf16.mxu0 0
        %1004 = vmatpush1.bf16.xpose.msra.mxu0 0
        %1005 = vmatprep.mubr.bf16.mxu0 0
        %1006 = vmatmul.mubr.bf16.gmra.mrb[0].mxu0 %v950
        %v1007 = vpop.f32.mrb[0].mxu0
        %v1008 = vadd.f32 0.0, %v1007
        %v1009 = vpop.f32.mrb[0].mxu0
        %v1010 = vpop.f32.mrb[0].mxu0
        %v1011 = vadd.f32 0.0, %v1010
        %v1012 = vpop.f32.mrb[0].mxu0
        %1013 = vmatprep.mubr.bf16.mxu0 0
        %1014 = vmatmul.mubr.bf16.gmra.mrb[0].mxu0 %v953
        %v1015 = vpop.f32.mrb[0].mxu0
        %v1016 = vadd.f32 0.0, %v1015
        %v1017 = vpop.f32.mrb[0].mxu0
        %v1018 = vpop.f32.mrb[0].mxu0
        %v1019 = vadd.f32 0.0, %v1018
        %v1020 = vpop.f32.mrb[0].mxu0
        %1021 = vmatprep.mubr.bf16.mxu0 0
        %1022 = vmatmul.mubr.bf16.gmra.mrb[0].mxu0 %v956
        %v1023 = vpop.f32.mrb[0].mxu0
        %v1024 = vadd.f32 0.0, %v1023
        %v1025 = vpop.f32.mrb[0].mxu0
        %v1026 = vpop.f32.mrb[0].mxu0
        %v1027 = vadd.f32 0.0, %v1026
        %v1028 = vpop.f32.mrb[0].mxu0
        %1029 = vmatprep.mubr.bf16.mxu0 0
        %1030 = vmatmul.mubr.bf16.gmra.mrb[0].mxu0 %v959
        %v1031 = vpop.f32.mrb[0].mxu0
        %v1032 = vadd.f32 0.0, %v1031
        %v1033 = vpop.f32.mrb[0].mxu0
        %v1034 = vpop.f32.mrb[0].mxu0
        %v1035 = vadd.f32 0.0, %v1034
        %v1036 = vpop.f32.mrb[0].mxu0
        %1037 = vdwg.mxu0
        %v1038 = vld [vmem:[#allocation2] sm:$0xff]
        %v1039 = vld [vmem:[#allocation2 + $0x8] sm:$0xff]
        %v1040 = vld [vmem:[#allocation2 + $0x10] sm:$0xff]
        %v1041 = vld [vmem:[#allocation2 + $0x18] sm:$0xff]
        %v1042 = vld [vmem:[#allocation2 + $0x20] sm:$0xff]
        %v1043 = vld [vmem:[#allocation2 + $0x28] sm:$0xff]
        %v1044 = vld [vmem:[#allocation2 + $0x30] sm:$0xff]
        %v1045 = vld [vmem:[#allocation2 + $0x38] sm:$0xff]
        %v1046 = vld [vmem:[#allocation2 + $0x40] sm:$0xff]
        %v1047 = vld [vmem:[#allocation2 + $0x48] sm:$0xff]
        %v1048 = vld [vmem:[#allocation2 + $0x50] sm:$0xff]
        %v1049 = vld [vmem:[#allocation2 + $0x58] sm:$0xff]
        %v1050 = vld [vmem:[#allocation2 + $0x60] sm:$0xff]
        %v1051 = vld [vmem:[#allocation2 + $0x68] sm:$0xff]
        %v1052 = vld [vmem:[#allocation2 + $0x70] sm:$0xff]
        %v1053 = vld [vmem:[#allocation2 + $0x78] sm:$0xff]
        %v1054 = vld [vmem:[#allocation2 + $0x80] sm:$0xff]
        %v1055 = vld [vmem:[#allocation2 + $0x88] sm:$0xff]
        %v1056 = vld [vmem:[#allocation2 + $0x90] sm:$0xff]
        %v1057 = vld [vmem:[#allocation2 + $0x98] sm:$0xff]
        %v1058 = vld [vmem:[#allocation2 + $0xa0] sm:$0xff]
        %v1059 = vld [vmem:[#allocation2 + $0xa8] sm:$0xff]
        %v1060 = vld [vmem:[#allocation2 + $0xb0] sm:$0xff]
        %v1061 = vld [vmem:[#allocation2 + $0xb8] sm:$0xff]
        %v1062 = vld [vmem:[#allocation2 + $0xc0] sm:$0xff]
        %v1063 = vld [vmem:[#allocation2 + $0xc8] sm:$0xff]
        %v1064 = vld [vmem:[#allocation2 + $0xd0] sm:$0xff]
        %v1065 = vld [vmem:[#allocation2 + $0xd8] sm:$0xff]
        %v1066 = vld [vmem:[#allocation2 + $0xe0] sm:$0xff]
        %v1067 = vld [vmem:[#allocation2 + $0xe8] sm:$0xff]
        %v1068 = vld [vmem:[#allocation2 + $0xf0] sm:$0xff]
        %v1069 = vld [vmem:[#allocation2 + $0xf8] sm:$0xff]
        %vm1070 = vcmask 523264
        %v1071 = vsel %vm1070, %v621, -inf
        %1072 = vmax.xlane.f32.xlu0 %v1071
        %v1073 = vpop.xlane.xlu0 %1072
        %v1074 = vsel %vm1070, %v624, -inf
        %1075 = vmax.xlane.f32.xlu0 %v1074
        %v1076 = vpop.xlane.xlu0 %1075
        %v1077 = vsel %vm1070, %v629, -inf
        %1078 = vmax.xlane.f32.xlu0 %v1077
        %v1079 = vpop.xlane.xlu0 %1078
        %v1080 = vsel %vm1070, %v632, -inf
        %1081 = vmax.xlane.f32.xlu0 %v1080
        %v1082 = vpop.xlane.xlu0 %1081
        %v1083 = vsel %vm1070, %v637, -inf
        %1084 = vmax.xlane.f32.xlu0 %v1083
        %v1085 = vpop.xlane.xlu0 %1084
        %v1086 = vsel %vm1070, %v640, -inf
        %1087 = vmax.xlane.f32.xlu0 %v1086
        %v1088 = vpop.xlane.xlu0 %1087
        %v1089 = vsel %vm1070, %v645, -inf
        %1090 = vmax.xlane.f32.xlu0 %v1089
        %v1091 = vpop.xlane.xlu0 %1090
        %v1092 = vsel %vm1070, %v648, -inf
        %1093 = vmax.xlane.f32.xlu0 %v1092
        %v1094 = vpop.xlane.xlu0 %1093
        %v1095 = vsel %vm1070, %v750, -inf
        %1096 = vmax.xlane.f32.xlu0 %v1095
        %v1097 = vpop.xlane.xlu0 %1096
        %v1098 = vsel %vm1070, %v753, -inf
        %1099 = vmax.xlane.f32.xlu0 %v1098
        %v1100 = vpop.xlane.xlu0 %1099
        %v1101 = vsel %vm1070, %v758, -inf
        %1102 = vmax.xlane.f32.xlu0 %v1101
        %v1103 = vpop.xlane.xlu0 %1102
        %v1104 = vsel %vm1070, %v761, -inf
        %1105 = vmax.xlane.f32.xlu0 %v1104
        %v1106 = vpop.xlane.xlu0 %1105
        %v1107 = vsel %vm1070, %v766, -inf
        %1108 = vmax.xlane.f32.xlu0 %v1107
        %v1109 = vpop.xlane.xlu0 %1108
        %v1110 = vsel %vm1070, %v769, -inf
        %1111 = vmax.xlane.f32.xlu0 %v1110
        %v1112 = vpop.xlane.xlu0 %1111
        %v1113 = vsel %vm1070, %v774, -inf
        %1114 = vmax.xlane.f32.xlu0 %v1113
        %v1115 = vpop.xlane.xlu0 %1114
        %v1116 = vsel %vm1070, %v777, -inf
        %1117 = vmax.xlane.f32.xlu0 %v1116
        %v1118 = vpop.xlane.xlu0 %1117
        %v1119 = vsel %vm1070, %v879, -inf
        %1120 = vmax.xlane.f32.xlu0 %v1119
        %v1121 = vpop.xlane.xlu0 %1120
        %v1122 = vsel %vm1070, %v882, -inf
        %1123 = vmax.xlane.f32.xlu0 %v1122
        %v1124 = vpop.xlane.xlu0 %1123
        %v1125 = vsel %vm1070, %v887, -inf
        %1126 = vmax.xlane.f32.xlu0 %v1125
        %v1127 = vpop.xlane.xlu0 %1126
        %v1128 = vsel %vm1070, %v890, -inf
        %1129 = vmax.xlane.f32.xlu0 %v1128
        %v1130 = vpop.xlane.xlu0 %1129
        %v1131 = vsel %vm1070, %v895, -inf
        %1132 = vmax.xlane.f32.xlu0 %v1131
        %v1133 = vpop.xlane.xlu0 %1132
        %v1134 = vsel %vm1070, %v898, -inf
        %1135 = vmax.xlane.f32.xlu0 %v1134
        %v1136 = vpop.xlane.xlu0 %1135
        %v1137 = vsel %vm1070, %v903, -inf
        %1138 = vmax.xlane.f32.xlu0 %v1137
        %v1139 = vpop.xlane.xlu0 %1138
        %v1140 = vsel %vm1070, %v906, -inf
        %1141 = vmax.xlane.f32.xlu0 %v1140
        %v1142 = vpop.xlane.xlu0 %1141
        %v1143 = vsel %vm1070, %v1008, -inf
        %1144 = vmax.xlane.f32.xlu0 %v1143
        %v1145 = vpop.xlane.xlu0 %1144
        %v1146 = vsel %vm1070, %v1011, -inf
        %1147 = vmax.xlane.f32.xlu0 %v1146
        %v1148 = vpop.xlane.xlu0 %1147
        %v1149 = vsel %vm1070, %v1016, -inf
        %1150 = vmax.xlane.f32.xlu0 %v1149
        %v1151 = vpop.xlane.xlu0 %1150
        %v1152 = vsel %vm1070, %v1019, -inf
        %1153 = vmax.xlane.f32.xlu0 %v1152
        %v1154 = vpop.xlane.xlu0 %1153
        %v1155 = vsel %vm1070, %v1024, -inf
        %1156 = vmax.xlane.f32.xlu0 %v1155
        %v1157 = vpop.xlane.xlu0 %1156
        %v1158 = vsel %vm1070, %v1027, -inf
        %1159 = vmax.xlane.f32.xlu0 %v1158
        %v1160 = vpop.xlane.xlu0 %1159
        %v1161 = vsel %vm1070, %v1032, -inf
        %1162 = vmax.xlane.f32.xlu0 %v1161
        %v1163 = vpop.xlane.xlu0 %1162
        %v1164 = vsel %vm1070, %v1035, -inf
        %1165 = vmax.xlane.f32.xlu0 %v1164
        %v1166 = vpop.xlane.xlu0 %1165
        %v1167 = vmax.f32 %v1038, %v1073
        %v1168 = vmax.f32 %v1039, %v1076
        %v1169 = vmax.f32 %v1040, %v1079
        %v1170 = vmax.f32 %v1041, %v1082
        %v1171 = vmax.f32 %v1042, %v1085
        %v1172 = vmax.f32 %v1043, %v1088
        %v1173 = vmax.f32 %v1044, %v1091
        %v1174 = vmax.f32 %v1045, %v1094
        %v1175 = vmax.f32 %v1046, %v1097
        %v1176 = vmax.f32 %v1047, %v1100
        %v1177 = vmax.f32 %v1048, %v1103
        %v1178 = vmax.f32 %v1049, %v1106
        %v1179 = vmax.f32 %v1050, %v1109
        %v1180 = vmax.f32 %v1051, %v1112
        %v1181 = vmax.f32 %v1052, %v1115
        %v1182 = vmax.f32 %v1053, %v1118
        %v1183 = vmax.f32 %v1054, %v1121
        %v1184 = vmax.f32 %v1055, %v1124
        %v1185 = vmax.f32 %v1056, %v1127
        %v1186 = vmax.f32 %v1057, %v1130
        %v1187 = vmax.f32 %v1058, %v1133
        %v1188 = vmax.f32 %v1059, %v1136
        %v1189 = vmax.f32 %v1060, %v1139
        %v1190 = vmax.f32 %v1061, %v1142
        %v1191 = vmax.f32 %v1062, %v1145
        %v1192 = vmax.f32 %v1063, %v1148
        %v1193 = vmax.f32 %v1064, %v1151
        %v1194 = vmax.f32 %v1065, %v1154
        %v1195 = vmax.f32 %v1066, %v1157
        %v1196 = vmax.f32 %v1067, %v1160
        %v1197 = vmax.f32 %v1068, %v1163
        %v1198 = vmax.f32 %v1069, %v1166
        %v1199 = vsub.f32 %v1038, %v1167
        %v1200 = vsub.f32 %v1039, %v1168
        %v1201 = vsub.f32 %v1040, %v1169
        %v1202 = vsub.f32 %v1041, %v1170
        %v1203 = vsub.f32 %v1042, %v1171
        %v1204 = vsub.f32 %v1043, %v1172
        %v1205 = vsub.f32 %v1044, %v1173
        %v1206 = vsub.f32 %v1045, %v1174
        %v1207 = vsub.f32 %v1046, %v1175
        %v1208 = vsub.f32 %v1047, %v1176
        %v1209 = vsub.f32 %v1048, %v1177
        %v1210 = vsub.f32 %v1049, %v1178
        %v1211 = vsub.f32 %v1050, %v1179
        %v1212 = vsub.f32 %v1051, %v1180
        %v1213 = vsub.f32 %v1052, %v1181
        %v1214 = vsub.f32 %v1053, %v1182
        %v1215 = vsub.f32 %v1054, %v1183
        %v1216 = vsub.f32 %v1055, %v1184
        %v1217 = vsub.f32 %v1056, %v1185
        %v1218 = vsub.f32 %v1057, %v1186
        %v1219 = vsub.f32 %v1058, %v1187
        %v1220 = vsub.f32 %v1059, %v1188
        %v1221 = vsub.f32 %v1060, %v1189
        %v1222 = vsub.f32 %v1061, %v1190
        %v1223 = vsub.f32 %v1062, %v1191
        %v1224 = vsub.f32 %v1063, %v1192
        %v1225 = vsub.f32 %v1064, %v1193
        %v1226 = vsub.f32 %v1065, %v1194
        %v1227 = vsub.f32 %v1066, %v1195
        %v1228 = vsub.f32 %v1067, %v1196
        %v1229 = vsub.f32 %v1068, %v1197
        %v1230 = vsub.f32 %v1069, %v1198
        %v1231 = vmul.f32 %v1199, 1.442695
        %v1232 = vpow.pop %v1231
        %v1233 = vmul.f32 %v1200, 1.442695
        %v1234 = vpow.pop %v1233
        %v1235 = vmul.f32 %v1201, 1.442695
        %v1236 = vpow.pop %v1235
        %v1237 = vmul.f32 %v1202, 1.442695
        %v1238 = vpow.pop %v1237
        %v1239 = vmul.f32 %v1203, 1.442695
        %v1240 = vpow.pop %v1239
        %v1241 = vmul.f32 %v1204, 1.442695
        %v1242 = vpow.pop %v1241
        %v1243 = vmul.f32 %v1205, 1.442695
        %v1244 = vpow.pop %v1243
        %v1245 = vmul.f32 %v1206, 1.442695
        %v1246 = vpow.pop %v1245
        %v1247 = vmul.f32 %v1207, 1.442695
        %v1248 = vpow.pop %v1247
        %v1249 = vmul.f32 %v1208, 1.442695
        %v1250 = vpow.pop %v1249
        %v1251 = vmul.f32 %v1209, 1.442695
        %v1252 = vpow.pop %v1251
        %v1253 = vmul.f32 %v1210, 1.442695
        %v1254 = vpow.pop %v1253
        %v1255 = vmul.f32 %v1211, 1.442695
        %v1256 = vpow.pop %v1255
        %v1257 = vmul.f32 %v1212, 1.442695
        %v1258 = vpow.pop %v1257
        %v1259 = vmul.f32 %v1213, 1.442695
        %v1260 = vpow.pop %v1259
        %v1261 = vmul.f32 %v1214, 1.442695
        %v1262 = vpow.pop %v1261
        %v1263 = vmul.f32 %v1215, 1.442695
        %v1264 = vpow.pop %v1263
        %v1265 = vmul.f32 %v1216, 1.442695
        %v1266 = vpow.pop %v1265
        %v1267 = vmul.f32 %v1217, 1.442695
        %v1268 = vpow.pop %v1267
        %v1269 = vmul.f32 %v1218, 1.442695
        %v1270 = vpow.pop %v1269
        %v1271 = vmul.f32 %v1219, 1.442695
        %v1272 = vpow.pop %v1271
        %v1273 = vmul.f32 %v1220, 1.442695
        %v1274 = vpow.pop %v1273
        %v1275 = vmul.f32 %v1221, 1.442695
        %v1276 = vpow.pop %v1275
        %v1277 = vmul.f32 %v1222, 1.442695
        %v1278 = vpow.pop %v1277
        %v1279 = vmul.f32 %v1223, 1.442695
        %v1280 = vpow.pop %v1279
        %v1281 = vmul.f32 %v1224, 1.442695
        %v1282 = vpow.pop %v1281
        %v1283 = vmul.f32 %v1225, 1.442695
        %v1284 = vpow.pop %v1283
        %v1285 = vmul.f32 %v1226, 1.442695
        %v1286 = vpow.pop %v1285
        %v1287 = vmul.f32 %v1227, 1.442695
        %v1288 = vpow.pop %v1287
        %v1289 = vmul.f32 %v1228, 1.442695
        %v1290 = vpow.pop %v1289
        %v1291 = vmul.f32 %v1229, 1.442695
        %v1292 = vpow.pop %v1291
        %v1293 = vmul.f32 %v1230, 1.442695
        %v1294 = vpow.pop %v1293
        %1296 = vset.pattern.permute.xlu0 0
        %1297 = vperm.xlu0 %1296, %v1167
        %v1298 = vpop.permute.xlu0 %1297
        %1301 = vset.pattern.permute.xlu0 0
        %1302 = vperm.xlu0 %1301, %v1168
        %v1303 = vpop.permute.xlu0 %1302
        %1306 = vset.pattern.permute.xlu0 0
        %1307 = vperm.xlu0 %1306, %v1169
        %v1308 = vpop.permute.xlu0 %1307
        %1311 = vset.pattern.permute.xlu0 0
        %1312 = vperm.xlu0 %1311, %v1170
        %v1313 = vpop.permute.xlu0 %1312
        %1316 = vset.pattern.permute.xlu0 0
        %1317 = vperm.xlu0 %1316, %v1171
        %v1318 = vpop.permute.xlu0 %1317
        %1321 = vset.pattern.permute.xlu0 0
        %1322 = vperm.xlu0 %1321, %v1172
        %v1323 = vpop.permute.xlu0 %1322
        %1326 = vset.pattern.permute.xlu0 0
        %1327 = vperm.xlu0 %1326, %v1173
        %v1328 = vpop.permute.xlu0 %1327
        %1331 = vset.pattern.permute.xlu0 0
        %1332 = vperm.xlu0 %1331, %v1174
        %v1333 = vpop.permute.xlu0 %1332
        %1336 = vset.pattern.permute.xlu0 0
        %1337 = vperm.xlu0 %1336, %v1175
        %v1338 = vpop.permute.xlu0 %1337
        %1341 = vset.pattern.permute.xlu0 0
        %1342 = vperm.xlu0 %1341, %v1176
        %v1343 = vpop.permute.xlu0 %1342
        %1346 = vset.pattern.permute.xlu0 0
        %1347 = vperm.xlu0 %1346, %v1177
        %v1348 = vpop.permute.xlu0 %1347
        %1351 = vset.pattern.permute.xlu0 0
        %1352 = vperm.xlu0 %1351, %v1178
        %v1353 = vpop.permute.xlu0 %1352
        %1356 = vset.pattern.permute.xlu0 0
        %1357 = vperm.xlu0 %1356, %v1179
        %v1358 = vpop.permute.xlu0 %1357
        %1361 = vset.pattern.permute.xlu0 0
        %1362 = vperm.xlu0 %1361, %v1180
        %v1363 = vpop.permute.xlu0 %1362
        %1366 = vset.pattern.permute.xlu0 0
        %1367 = vperm.xlu0 %1366, %v1181
        %v1368 = vpop.permute.xlu0 %1367
        %1371 = vset.pattern.permute.xlu0 0
        %1372 = vperm.xlu0 %1371, %v1182
        %v1373 = vpop.permute.xlu0 %1372
        %1376 = vset.pattern.permute.xlu0 0
        %1377 = vperm.xlu0 %1376, %v1183
        %v1378 = vpop.permute.xlu0 %1377
        %1381 = vset.pattern.permute.xlu0 0
        %1382 = vperm.xlu0 %1381, %v1184
        %v1383 = vpop.permute.xlu0 %1382
        %1386 = vset.pattern.permute.xlu0 0
        %1387 = vperm.xlu0 %1386, %v1185
        %v1388 = vpop.permute.xlu0 %1387
        %1391 = vset.pattern.permute.xlu0 0
        %1392 = vperm.xlu0 %1391, %v1186
        %v1393 = vpop.permute.xlu0 %1392
        %1396 = vset.pattern.permute.xlu0 0
        %1397 = vperm.xlu0 %1396, %v1187
        %v1398 = vpop.permute.xlu0 %1397
        %1401 = vset.pattern.permute.xlu0 0
        %1402 = vperm.xlu0 %1401, %v1188
        %v1403 = vpop.permute.xlu0 %1402
        %1406 = vset.pattern.permute.xlu0 0
        %1407 = vperm.xlu0 %1406, %v1189
        %v1408 = vpop.permute.xlu0 %1407
        %1411 = vset.pattern.permute.xlu0 0
        %1412 = vperm.xlu0 %1411, %v1190
        %v1413 = vpop.permute.xlu0 %1412
        %1416 = vset.pattern.permute.xlu0 0
        %1417 = vperm.xlu0 %1416, %v1191
        %v1418 = vpop.permute.xlu0 %1417
        %1421 = vset.pattern.permute.xlu0 0
        %1422 = vperm.xlu0 %1421, %v1192
        %v1423 = vpop.permute.xlu0 %1422
        %1426 = vset.pattern.permute.xlu0 0
        %1427 = vperm.xlu0 %1426, %v1193
        %v1428 = vpop.permute.xlu0 %1427
        %1431 = vset.pattern.permute.xlu0 0
        %1432 = vperm.xlu0 %1431, %v1194
        %v1433 = vpop.permute.xlu0 %1432
        %1436 = vset.pattern.permute.xlu0 0
        %1437 = vperm.xlu0 %1436, %v1195
        %v1438 = vpop.permute.xlu0 %1437
        %1441 = vset.pattern.permute.xlu0 0
        %1442 = vperm.xlu0 %1441, %v1196
        %v1443 = vpop.permute.xlu0 %1442
        %1446 = vset.pattern.permute.xlu0 0
        %1447 = vperm.xlu0 %1446, %v1197
        %v1448 = vpop.permute.xlu0 %1447
        %1451 = vset.pattern.permute.xlu0 0
        %1452 = vperm.xlu0 %1451, %v1198
        %v1453 = vpop.permute.xlu0 %1452
        %v1455 = vsub.f32 %v621, %v1298
        %v1456 = vsub.f32 %v624, %v1303
        %v1457 = vsub.f32 %v629, %v1308
        %v1458 = vsub.f32 %v632, %v1313
        %v1459 = vsub.f32 %v637, %v1318
        %v1460 = vsub.f32 %v640, %v1323
        %v1461 = vsub.f32 %v645, %v1328
        %v1462 = vsub.f32 %v648, %v1333
        %v1463 = vsub.f32 %v750, %v1338
        %v1464 = vsub.f32 %v753, %v1343
        %v1465 = vsub.f32 %v758, %v1348
        %v1466 = vsub.f32 %v761, %v1353
        %v1467 = vsub.f32 %v766, %v1358
        %v1468 = vsub.f32 %v769, %v1363
        %v1469 = vsub.f32 %v774, %v1368
        %v1470 = vsub.f32 %v777, %v1373
        %v1471 = vsub.f32 %v879, %v1378
        %v1472 = vsub.f32 %v882, %v1383
        %v1473 = vsub.f32 %v887, %v1388
        %v1474 = vsub.f32 %v890, %v1393
        %v1475 = vsub.f32 %v895, %v1398
        %v1476 = vsub.f32 %v898, %v1403
        %v1477 = vsub.f32 %v903, %v1408
        %v1478 = vsub.f32 %v906, %v1413
        %v1479 = vsub.f32 %v1008, %v1418
        %v1480 = vsub.f32 %v1011, %v1423
        %v1481 = vsub.f32 %v1016, %v1428
        %v1482 = vsub.f32 %v1019, %v1433
        %v1483 = vsub.f32 %v1024, %v1438
        %v1484 = vsub.f32 %v1027, %v1443
        %v1485 = vsub.f32 %v1032, %v1448
        %v1486 = vsub.f32 %v1035, %v1453
        %v1487 = vmul.f32 %v1455, 1.442695
        %v1488 = vpow.pop %v1487
        %v1489 = vmul.f32 %v1456, 1.442695
        %v1490 = vpow.pop %v1489
        %v1491 = vmul.f32 %v1457, 1.442695
        %v1492 = vpow.pop %v1491
        %v1493 = vmul.f32 %v1458, 1.442695
        %v1494 = vpow.pop %v1493
        %v1495 = vmul.f32 %v1459, 1.442695
        %v1496 = vpow.pop %v1495
        %v1497 = vmul.f32 %v1460, 1.442695
        %v1498 = vpow.pop %v1497
        %v1499 = vmul.f32 %v1461, 1.442695
        %v1500 = vpow.pop %v1499
        %v1501 = vmul.f32 %v1462, 1.442695
        %v1502 = vpow.pop %v1501
        %v1503 = vmul.f32 %v1463, 1.442695
        %v1504 = vpow.pop %v1503
        %v1505 = vmul.f32 %v1464, 1.442695
        %v1506 = vpow.pop %v1505
        %v1507 = vmul.f32 %v1465, 1.442695
        %v1508 = vpow.pop %v1507
        %v1509 = vmul.f32 %v1466, 1.442695
        %v1510 = vpow.pop %v1509
        %v1511 = vmul.f32 %v1467, 1.442695
        %v1512 = vpow.pop %v1511
        %v1513 = vmul.f32 %v1468, 1.442695
        %v1514 = vpow.pop %v1513
        %v1515 = vmul.f32 %v1469, 1.442695
        %v1516 = vpow.pop %v1515
        %v1517 = vmul.f32 %v1470, 1.442695
        %v1518 = vpow.pop %v1517
        %v1519 = vmul.f32 %v1471, 1.442695
        %v1520 = vpow.pop %v1519
        %v1521 = vmul.f32 %v1472, 1.442695
        %v1522 = vpow.pop %v1521
        %v1523 = vmul.f32 %v1473, 1.442695
        %v1524 = vpow.pop %v1523
        %v1525 = vmul.f32 %v1474, 1.442695
        %v1526 = vpow.pop %v1525
        %v1527 = vmul.f32 %v1475, 1.442695
        %v1528 = vpow.pop %v1527
        %v1529 = vmul.f32 %v1476, 1.442695
        %v1530 = vpow.pop %v1529
        %v1531 = vmul.f32 %v1477, 1.442695
        %v1532 = vpow.pop %v1531
        %v1533 = vmul.f32 %v1478, 1.442695
        %v1534 = vpow.pop %v1533
        %v1535 = vmul.f32 %v1479, 1.442695
        %v1536 = vpow.pop %v1535
        %v1537 = vmul.f32 %v1480, 1.442695
        %v1538 = vpow.pop %v1537
        %v1539 = vmul.f32 %v1481, 1.442695
        %v1540 = vpow.pop %v1539
        %v1541 = vmul.f32 %v1482, 1.442695
        %v1542 = vpow.pop %v1541
        %v1543 = vmul.f32 %v1483, 1.442695
        %v1544 = vpow.pop %v1543
        %v1545 = vmul.f32 %v1484, 1.442695
        %v1546 = vpow.pop %v1545
        %v1547 = vmul.f32 %v1485, 1.442695
        %v1548 = vpow.pop %v1547
        %v1549 = vmul.f32 %v1486, 1.442695
        %v1550 = vpow.pop %v1549
        %v1551 = vld [vmem:[#allocation3] sm:$0xff]
        %v1552 = vld [vmem:[#allocation3 + $0x8] sm:$0xff]
        %v1553 = vld [vmem:[#allocation3 + $0x10] sm:$0xff]
        %v1554 = vld [vmem:[#allocation3 + $0x18] sm:$0xff]
        %v1555 = vld [vmem:[#allocation3 + $0x20] sm:$0xff]
        %v1556 = vld [vmem:[#allocation3 + $0x28] sm:$0xff]
        %v1557 = vld [vmem:[#allocation3 + $0x30] sm:$0xff]
        %v1558 = vld [vmem:[#allocation3 + $0x38] sm:$0xff]
        %v1559 = vld [vmem:[#allocation3 + $0x40] sm:$0xff]
        %v1560 = vld [vmem:[#allocation3 + $0x48] sm:$0xff]
        %v1561 = vld [vmem:[#allocation3 + $0x50] sm:$0xff]
        %v1562 = vld [vmem:[#allocation3 + $0x58] sm:$0xff]
        %v1563 = vld [vmem:[#allocation3 + $0x60] sm:$0xff]
        %v1564 = vld [vmem:[#allocation3 + $0x68] sm:$0xff]
        %v1565 = vld [vmem:[#allocation3 + $0x70] sm:$0xff]
        %v1566 = vld [vmem:[#allocation3 + $0x78] sm:$0xff]
        %v1567 = vld [vmem:[#allocation3 + $0x80] sm:$0xff]
        %v1568 = vld [vmem:[#allocation3 + $0x88] sm:$0xff]
        %v1569 = vld [vmem:[#allocation3 + $0x90] sm:$0xff]
        %v1570 = vld [vmem:[#allocation3 + $0x98] sm:$0xff]
        %v1571 = vld [vmem:[#allocation3 + $0xa0] sm:$0xff]
        %v1572 = vld [vmem:[#allocation3 + $0xa8] sm:$0xff]
        %v1573 = vld [vmem:[#allocation3 + $0xb0] sm:$0xff]
        %v1574 = vld [vmem:[#allocation3 + $0xb8] sm:$0xff]
        %v1575 = vld [vmem:[#allocation3 + $0xc0] sm:$0xff]
        %v1576 = vld [vmem:[#allocation3 + $0xc8] sm:$0xff]
        %v1577 = vld [vmem:[#allocation3 + $0xd0] sm:$0xff]
        %v1578 = vld [vmem:[#allocation3 + $0xd8] sm:$0xff]
        %v1579 = vld [vmem:[#allocation3 + $0xe0] sm:$0xff]
        %v1580 = vld [vmem:[#allocation3 + $0xe8] sm:$0xff]
        %v1581 = vld [vmem:[#allocation3 + $0xf0] sm:$0xff]
        %v1582 = vld [vmem:[#allocation3 + $0xf8] sm:$0xff]
        %v1583 = vmul.f32 %v1232, %v1551
        %v1584 = vmul.f32 %v1234, %v1552
        %v1585 = vmul.f32 %v1236, %v1553
        %v1586 = vmul.f32 %v1238, %v1554
        %v1587 = vmul.f32 %v1240, %v1555
        %v1588 = vmul.f32 %v1242, %v1556
        %v1589 = vmul.f32 %v1244, %v1557
        %v1590 = vmul.f32 %v1246, %v1558
        %v1591 = vmul.f32 %v1248, %v1559
        %v1592 = vmul.f32 %v1250, %v1560
        %v1593 = vmul.f32 %v1252, %v1561
        %v1594 = vmul.f32 %v1254, %v1562
        %v1595 = vmul.f32 %v1256, %v1563
        %v1596 = vmul.f32 %v1258, %v1564
        %v1597 = vmul.f32 %v1260, %v1565
        %v1598 = vmul.f32 %v1262, %v1566
        %v1599 = vmul.f32 %v1264, %v1567
        %v1600 = vmul.f32 %v1266, %v1568
        %v1601 = vmul.f32 %v1268, %v1569
        %v1602 = vmul.f32 %v1270, %v1570
        %v1603 = vmul.f32 %v1272, %v1571
        %v1604 = vmul.f32 %v1274, %v1572
        %v1605 = vmul.f32 %v1276, %v1573
        %v1606 = vmul.f32 %v1278, %v1574
        %v1607 = vmul.f32 %v1280, %v1575
        %v1608 = vmul.f32 %v1282, %v1576
        %v1609 = vmul.f32 %v1284, %v1577
        %v1610 = vmul.f32 %v1286, %v1578
        %v1611 = vmul.f32 %v1288, %v1579
        %v1612 = vmul.f32 %v1290, %v1580
        %v1613 = vmul.f32 %v1292, %v1581
        %v1614 = vmul.f32 %v1294, %v1582
        %v1615 = vsel %vm1070, %v1488, 0.0
        %1616 = vadd.xlane.f32.xlu0 %v1615
        %v1617 = vpop.xlane.xlu0 %1616
        %v1618 = vsel %vm1070, %v1490, 0.0
        %1619 = vadd.xlane.f32.xlu0 %v1618
        %v1620 = vpop.xlane.xlu0 %1619
        %v1621 = vsel %vm1070, %v1492, 0.0
        %1622 = vadd.xlane.f32.xlu0 %v1621
        %v1623 = vpop.xlane.xlu0 %1622
        %v1624 = vsel %vm1070, %v1494, 0.0
        %1625 = vadd.xlane.f32.xlu0 %v1624
        %v1626 = vpop.xlane.xlu0 %1625
        %v1627 = vsel %vm1070, %v1496, 0.0
        %1628 = vadd.xlane.f32.xlu0 %v1627
        %v1629 = vpop.xlane.xlu0 %1628
        %v1630 = vsel %vm1070, %v1498, 0.0
        %1631 = vadd.xlane.f32.xlu0 %v1630
        %v1632 = vpop.xlane.xlu0 %1631
        %v1633 = vsel %vm1070, %v1500, 0.0
        %1634 = vadd.xlane.f32.xlu0 %v1633
        %v1635 = vpop.xlane.xlu0 %1634
        %v1636 = vsel %vm1070, %v1502, 0.0
        %1637 = vadd.xlane.f32.xlu0 %v1636
        %v1638 = vpop.xlane.xlu0 %1637
        %v1639 = vsel %vm1070, %v1504, 0.0
        %1640 = vadd.xlane.f32.xlu0 %v1639
        %v1641 = vpop.xlane.xlu0 %1640
        %v1642 = vsel %vm1070, %v1506, 0.0
        %1643 = vadd.xlane.f32.xlu0 %v1642
        %v1644 = vpop.xlane.xlu0 %1643
        %v1645 = vsel %vm1070, %v1508, 0.0
        %1646 = vadd.xlane.f32.xlu0 %v1645
        %v1647 = vpop.xlane.xlu0 %1646
        %v1648 = vsel %vm1070, %v1510, 0.0
        %1649 = vadd.xlane.f32.xlu0 %v1648
        %v1650 = vpop.xlane.xlu0 %1649
        %v1651 = vsel %vm1070, %v1512, 0.0
        %1652 = vadd.xlane.f32.xlu0 %v1651
        %v1653 = vpop.xlane.xlu0 %1652
        %v1654 = vsel %vm1070, %v1514, 0.0
        %1655 = vadd.xlane.f32.xlu0 %v1654
        %v1656 = vpop.xlane.xlu0 %1655
        %v1657 = vsel %vm1070, %v1516, 0.0
        %1658 = vadd.xlane.f32.xlu0 %v1657
        %v1659 = vpop.xlane.xlu0 %1658
        %v1660 = vsel %vm1070, %v1518, 0.0
        %1661 = vadd.xlane.f32.xlu0 %v1660
        %v1662 = vpop.xlane.xlu0 %1661
        %v1663 = vsel %vm1070, %v1520, 0.0
        %1664 = vadd.xlane.f32.xlu0 %v1663
        %v1665 = vpop.xlane.xlu0 %1664
        %v1666 = vsel %vm1070, %v1522, 0.0
        %1667 = vadd.xlane.f32.xlu0 %v1666
        %v1668 = vpop.xlane.xlu0 %1667
        %v1669 = vsel %vm1070, %v1524, 0.0
        %1670 = vadd.xlane.f32.xlu0 %v1669
        %v1671 = vpop.xlane.xlu0 %1670
        %v1672 = vsel %vm1070, %v1526, 0.0
        %1673 = vadd.xlane.f32.xlu0 %v1672
        %v1674 = vpop.xlane.xlu0 %1673
        %v1675 = vsel %vm1070, %v1528, 0.0
        %1676 = vadd.xlane.f32.xlu0 %v1675
        %v1677 = vpop.xlane.xlu0 %1676
        %v1678 = vsel %vm1070, %v1530, 0.0
        %1679 = vadd.xlane.f32.xlu0 %v1678
        %v1680 = vpop.xlane.xlu0 %1679
        %v1681 = vsel %vm1070, %v1532, 0.0
        %1682 = vadd.xlane.f32.xlu0 %v1681
        %v1683 = vpop.xlane.xlu0 %1682
        %v1684 = vsel %vm1070, %v1534, 0.0
        %1685 = vadd.xlane.f32.xlu0 %v1684
        %v1686 = vpop.xlane.xlu0 %1685
        %v1687 = vsel %vm1070, %v1536, 0.0
        %1688 = vadd.xlane.f32.xlu0 %v1687
        %v1689 = vpop.xlane.xlu0 %1688
        %v1690 = vsel %vm1070, %v1538, 0.0
        %1691 = vadd.xlane.f32.xlu0 %v1690
        %v1692 = vpop.xlane.xlu0 %1691
        %v1693 = vsel %vm1070, %v1540, 0.0
        %1694 = vadd.xlane.f32.xlu0 %v1693
        %v1695 = vpop.xlane.xlu0 %1694
        %v1696 = vsel %vm1070, %v1542, 0.0
        %1697 = vadd.xlane.f32.xlu0 %v1696
        %v1698 = vpop.xlane.xlu0 %1697
        %v1699 = vsel %vm1070, %v1544, 0.0
        %1700 = vadd.xlane.f32.xlu0 %v1699
        %v1701 = vpop.xlane.xlu0 %1700
        %v1702 = vsel %vm1070, %v1546, 0.0
        %1703 = vadd.xlane.f32.xlu0 %v1702
        %v1704 = vpop.xlane.xlu0 %1703
        %v1705 = vsel %vm1070, %v1548, 0.0
        %1706 = vadd.xlane.f32.xlu0 %v1705
        %v1707 = vpop.xlane.xlu0 %1706
        %v1708 = vsel %vm1070, %v1550, 0.0
        %1709 = vadd.xlane.f32.xlu0 %v1708
        %v1710 = vpop.xlane.xlu0 %1709
        %v1711 = vadd.f32 %v1583, %v1617
        %v1712 = vadd.f32 %v1584, %v1620
        %v1713 = vadd.f32 %v1585, %v1623
        %v1714 = vadd.f32 %v1586, %v1626
        %v1715 = vadd.f32 %v1587, %v1629
        %v1716 = vadd.f32 %v1588, %v1632
        %v1717 = vadd.f32 %v1589, %v1635
        %v1718 = vadd.f32 %v1590, %v1638
        %v1719 = vadd.f32 %v1591, %v1641
        %v1720 = vadd.f32 %v1592, %v1644
        %v1721 = vadd.f32 %v1593, %v1647
        %v1722 = vadd.f32 %v1594, %v1650
        %v1723 = vadd.f32 %v1595, %v1653
        %v1724 = vadd.f32 %v1596, %v1656
        %v1725 = vadd.f32 %v1597, %v1659
        %v1726 = vadd.f32 %v1598, %v1662
        %v1727 = vadd.f32 %v1599, %v1665
        %v1728 = vadd.f32 %v1600, %v1668
        %v1729 = vadd.f32 %v1601, %v1671
        %v1730 = vadd.f32 %v1602, %v1674
        %v1731 = vadd.f32 %v1603, %v1677
        %v1732 = vadd.f32 %v1604, %v1680
        %v1733 = vadd.f32 %v1605, %v1683
        %v1734 = vadd.f32 %v1606, %v1686
        %v1735 = vadd.f32 %v1607, %v1689
        %v1736 = vadd.f32 %v1608, %v1692
        %v1737 = vadd.f32 %v1609, %v1695
        %v1738 = vadd.f32 %v1610, %v1698
        %v1739 = vadd.f32 %v1611, %v1701
        %v1740 = vadd.f32 %v1612, %v1704
        %v1741 = vadd.f32 %v1613, %v1707
        %v1742 = vadd.f32 %v1614, %v1710
        %vm1743 = vcmask 7168
        %1744 = vst.msk [vmem:[#allocation3] sm:$0xff] %vm1743, %v1711
        %1745 = vst.msk [vmem:[#allocation3 + $0x8] sm:$0xff] %vm1743, %v1712
        %1746 = vst.msk [vmem:[#allocation3 + $0x10] sm:$0xff] %vm1743, %v1713
        %1747 = vst.msk [vmem:[#allocation3 + $0x18] sm:$0xff] %vm1743, %v1714
        %1748 = vst.msk [vmem:[#allocation3 + $0x20] sm:$0xff] %vm1743, %v1715
        %1749 = vst.msk [vmem:[#allocation3 + $0x28] sm:$0xff] %vm1743, %v1716
        %1750 = vst.msk [vmem:[#allocation3 + $0x30] sm:$0xff] %vm1743, %v1717
        %1751 = vst.msk [vmem:[#allocation3 + $0x38] sm:$0xff] %vm1743, %v1718
        %1752 = vst.msk [vmem:[#allocation3 + $0x40] sm:$0xff] %vm1743, %v1719
        %1753 = vst.msk [vmem:[#allocation3 + $0x48] sm:$0xff] %vm1743, %v1720
        %1754 = vst.msk [vmem:[#allocation3 + $0x50] sm:$0xff] %vm1743, %v1721
        %1755 = vst.msk [vmem:[#allocation3 + $0x58] sm:$0xff] %vm1743, %v1722
        %1756 = vst.msk [vmem:[#allocation3 + $0x60] sm:$0xff] %vm1743, %v1723
        %1757 = vst.msk [vmem:[#allocation3 + $0x68] sm:$0xff] %vm1743, %v1724
        %1758 = vst.msk [vmem:[#allocation3 + $0x70] sm:$0xff] %vm1743, %v1725
        %1759 = vst.msk [vmem:[#allocation3 + $0x78] sm:$0xff] %vm1743, %v1726
        %1760 = vst.msk [vmem:[#allocation3 + $0x80] sm:$0xff] %vm1743, %v1727
        %1761 = vst.msk [vmem:[#allocation3 + $0x88] sm:$0xff] %vm1743, %v1728
        %1762 = vst.msk [vmem:[#allocation3 + $0x90] sm:$0xff] %vm1743, %v1729
        %1763 = vst.msk [vmem:[#allocation3 + $0x98] sm:$0xff] %vm1743, %v1730
        %1764 = vst.msk [vmem:[#allocation3 + $0xa0] sm:$0xff] %vm1743, %v1731
        %1765 = vst.msk [vmem:[#allocation3 + $0xa8] sm:$0xff] %vm1743, %v1732
        %1766 = vst.msk [vmem:[#allocation3 + $0xb0] sm:$0xff] %vm1743, %v1733
        %1767 = vst.msk [vmem:[#allocation3 + $0xb8] sm:$0xff] %vm1743, %v1734
        %1768 = vst.msk [vmem:[#allocation3 + $0xc0] sm:$0xff] %vm1743, %v1735
        %1769 = vst.msk [vmem:[#allocation3 + $0xc8] sm:$0xff] %vm1743, %v1736
        %1770 = vst.msk [vmem:[#allocation3 + $0xd0] sm:$0xff] %vm1743, %v1737
        %1771 = vst.msk [vmem:[#allocation3 + $0xd8] sm:$0xff] %vm1743, %v1738
        %1772 = vst.msk [vmem:[#allocation3 + $0xe0] sm:$0xff] %vm1743, %v1739
        %1773 = vst.msk [vmem:[#allocation3 + $0xe8] sm:$0xff] %vm1743, %v1740
        %1774 = vst.msk [vmem:[#allocation3 + $0xf0] sm:$0xff] %vm1743, %v1741
        %1775 = vst.msk [vmem:[#allocation3 + $0xf8] sm:$0xff] %vm1743, %v1742
        %v1776 = vld [vmem:[#allocation4] sm:$0xff]
        %v1777 = vld [vmem:[#allocation4 + $0x8] sm:$0xff]
        %v1778 = vld [vmem:[#allocation4 + $0x10] sm:$0xff]
        %v1779 = vld [vmem:[#allocation4 + $0x18] sm:$0xff]
        %v1780 = vld [vmem:[#allocation4 + $0x20] sm:$0xff]
        %v1781 = vld [vmem:[#allocation4 + $0x28] sm:$0xff]
        %v1782 = vld [vmem:[#allocation4 + $0x30] sm:$0xff]
        %v1783 = vld [vmem:[#allocation4 + $0x38] sm:$0xff]
        %v1784 = vld [vmem:[#allocation4 + $0x40] sm:$0xff]
        %v1785 = vld [vmem:[#allocation4 + $0x48] sm:$0xff]
        %v1786 = vld [vmem:[#allocation4 + $0x50] sm:$0xff]
        %v1787 = vld [vmem:[#allocation4 + $0x58] sm:$0xff]
        %v1788 = vld [vmem:[#allocation4 + $0x60] sm:$0xff]
        %v1789 = vld [vmem:[#allocation4 + $0x68] sm:$0xff]
        %v1790 = vld [vmem:[#allocation4 + $0x70] sm:$0xff]
        %v1791 = vld [vmem:[#allocation4 + $0x78] sm:$0xff]
        %v1792 = vld [vmem:[#allocation4 + $0x80] sm:$0xff]
        %v1793 = vld [vmem:[#allocation4 + $0x88] sm:$0xff]
        %v1794 = vld [vmem:[#allocation4 + $0x90] sm:$0xff]
        %v1795 = vld [vmem:[#allocation4 + $0x98] sm:$0xff]
        %v1796 = vld [vmem:[#allocation4 + $0xa0] sm:$0xff]
        %v1797 = vld [vmem:[#allocation4 + $0xa8] sm:$0xff]
        %v1798 = vld [vmem:[#allocation4 + $0xb0] sm:$0xff]
        %v1799 = vld [vmem:[#allocation4 + $0xb8] sm:$0xff]
        %v1800 = vld [vmem:[#allocation4 + $0xc0] sm:$0xff]
        %v1801 = vld [vmem:[#allocation4 + $0xc8] sm:$0xff]
        %v1802 = vld [vmem:[#allocation4 + $0xd0] sm:$0xff]
        %v1803 = vld [vmem:[#allocation4 + $0xd8] sm:$0xff]
        %v1804 = vld [vmem:[#allocation4 + $0xe0] sm:$0xff]
        %v1805 = vld [vmem:[#allocation4 + $0xe8] sm:$0xff]
        %v1806 = vld [vmem:[#allocation4 + $0xf0] sm:$0xff]
        %v1807 = vld [vmem:[#allocation4 + $0xf8] sm:$0xff]
        %1809 = vset.pattern.permute.xlu0 0
        %1810 = vperm.xlu0 %1809, %v1232
        %v1811 = vpop.permute.xlu0 %1810
        %1814 = vset.pattern.permute.xlu0 0
        %1815 = vperm.xlu0 %1814, %v1234
        %v1816 = vpop.permute.xlu0 %1815
        %1819 = vset.pattern.permute.xlu0 0
        %1820 = vperm.xlu0 %1819, %v1236
        %v1821 = vpop.permute.xlu0 %1820
        %1824 = vset.pattern.permute.xlu0 0
        %1825 = vperm.xlu0 %1824, %v1238
        %v1826 = vpop.permute.xlu0 %1825
        %1829 = vset.pattern.permute.xlu0 0
        %1830 = vperm.xlu0 %1829, %v1240
        %v1831 = vpop.permute.xlu0 %1830
        %1834 = vset.pattern.permute.xlu0 0
        %1835 = vperm.xlu0 %1834, %v1242
        %v1836 = vpop.permute.xlu0 %1835
        %1839 = vset.pattern.permute.xlu0 0
        %1840 = vperm.xlu0 %1839, %v1244
        %v1841 = vpop.permute.xlu0 %1840
        %1844 = vset.pattern.permute.xlu0 0
        %1845 = vperm.xlu0 %1844, %v1246
        %v1846 = vpop.permute.xlu0 %1845
        %1849 = vset.pattern.permute.xlu0 0
        %1850 = vperm.xlu0 %1849, %v1248
        %v1851 = vpop.permute.xlu0 %1850
        %1854 = vset.pattern.permute.xlu0 0
        %1855 = vperm.xlu0 %1854, %v1250
        %v1856 = vpop.permute.xlu0 %1855
        %1859 = vset.pattern.permute.xlu0 0
        %1860 = vperm.xlu0 %1859, %v1252
        %v1861 = vpop.permute.xlu0 %1860
        %1864 = vset.pattern.permute.xlu0 0
        %1865 = vperm.xlu0 %1864, %v1254
        %v1866 = vpop.permute.xlu0 %1865
        %1869 = vset.pattern.permute.xlu0 0
        %1870 = vperm.xlu0 %1869, %v1256
        %v1871 = vpop.permute.xlu0 %1870
        %1874 = vset.pattern.permute.xlu0 0
        %1875 = vperm.xlu0 %1874, %v1258
        %v1876 = vpop.permute.xlu0 %1875
        %1879 = vset.pattern.permute.xlu0 0
        %1880 = vperm.xlu0 %1879, %v1260
        %v1881 = vpop.permute.xlu0 %1880
        %1884 = vset.pattern.permute.xlu0 0
        %1885 = vperm.xlu0 %1884, %v1262
        %v1886 = vpop.permute.xlu0 %1885
        %1889 = vset.pattern.permute.xlu0 0
        %1890 = vperm.xlu0 %1889, %v1264
        %v1891 = vpop.permute.xlu0 %1890
        %1894 = vset.pattern.permute.xlu0 0
        %1895 = vperm.xlu0 %1894, %v1266
        %v1896 = vpop.permute.xlu0 %1895
        %1899 = vset.pattern.permute.xlu0 0
        %1900 = vperm.xlu0 %1899, %v1268
        %v1901 = vpop.permute.xlu0 %1900
        %1904 = vset.pattern.permute.xlu0 0
        %1905 = vperm.xlu0 %1904, %v1270
        %v1906 = vpop.permute.xlu0 %1905
        %1909 = vset.pattern.permute.xlu0 0
        %1910 = vperm.xlu0 %1909, %v1272
        %v1911 = vpop.permute.xlu0 %1910
        %1914 = vset.pattern.permute.xlu0 0
        %1915 = vperm.xlu0 %1914, %v1274
        %v1916 = vpop.permute.xlu0 %1915
        %1919 = vset.pattern.permute.xlu0 0
        %1920 = vperm.xlu0 %1919, %v1276
        %v1921 = vpop.permute.xlu0 %1920
        %1924 = vset.pattern.permute.xlu0 0
        %1925 = vperm.xlu0 %1924, %v1278
        %v1926 = vpop.permute.xlu0 %1925
        %1929 = vset.pattern.permute.xlu0 0
        %1930 = vperm.xlu0 %1929, %v1280
        %v1931 = vpop.permute.xlu0 %1930
        %1934 = vset.pattern.permute.xlu0 0
        %1935 = vperm.xlu0 %1934, %v1282
        %v1936 = vpop.permute.xlu0 %1935
        %1939 = vset.pattern.permute.xlu0 0
        %1940 = vperm.xlu0 %1939, %v1284
        %v1941 = vpop.permute.xlu0 %1940
        %1944 = vset.pattern.permute.xlu0 0
        %1945 = vperm.xlu0 %1944, %v1286
        %v1946 = vpop.permute.xlu0 %1945
        %1949 = vset.pattern.permute.xlu0 0
        %1950 = vperm.xlu0 %1949, %v1288
        %v1951 = vpop.permute.xlu0 %1950
        %1954 = vset.pattern.permute.xlu0 0
        %1955 = vperm.xlu0 %1954, %v1290
        %v1956 = vpop.permute.xlu0 %1955
        %1959 = vset.pattern.permute.xlu0 0
        %1960 = vperm.xlu0 %1959, %v1292
        %v1961 = vpop.permute.xlu0 %1960
        %1964 = vset.pattern.permute.xlu0 0
        %1965 = vperm.xlu0 %1964, %v1294
        %v1966 = vpop.permute.xlu0 %1965
        %v1968 = vmul.f32 %v1811, %v1776
        %v1969 = vmul.f32 %v1816, %v1777
        %v1970 = vmul.f32 %v1821, %v1778
        %v1971 = vmul.f32 %v1826, %v1779
        %v1972 = vmul.f32 %v1831, %v1780
        %v1973 = vmul.f32 %v1836, %v1781
        %v1974 = vmul.f32 %v1841, %v1782
        %v1975 = vmul.f32 %v1846, %v1783
        %v1976 = vmul.f32 %v1851, %v1784
        %v1977 = vmul.f32 %v1856, %v1785
        %v1978 = vmul.f32 %v1861, %v1786
        %v1979 = vmul.f32 %v1866, %v1787
        %v1980 = vmul.f32 %v1871, %v1788
        %v1981 = vmul.f32 %v1876, %v1789
        %v1982 = vmul.f32 %v1881, %v1790
        %v1983 = vmul.f32 %v1886, %v1791
        %v1984 = vmul.f32 %v1891, %v1792
        %v1985 = vmul.f32 %v1896, %v1793
        %v1986 = vmul.f32 %v1901, %v1794
        %v1987 = vmul.f32 %v1906, %v1795
        %v1988 = vmul.f32 %v1911, %v1796
        %v1989 = vmul.f32 %v1916, %v1797
        %v1990 = vmul.f32 %v1921, %v1798
        %v1991 = vmul.f32 %v1926, %v1799
        %v1992 = vmul.f32 %v1931, %v1800
        %v1993 = vmul.f32 %v1936, %v1801
        %v1994 = vmul.f32 %v1941, %v1802
        %v1995 = vmul.f32 %v1946, %v1803
        %v1996 = vmul.f32 %v1951, %v1804
        %v1997 = vmul.f32 %v1956, %v1805
        %v1998 = vmul.f32 %v1961, %v1806
        %v1999 = vmul.f32 %v1966, %v1807
        %v2000 = vpack.c.bf16 %v1490, %v1488
        %v2001 = vpack.c.bf16 %v1494, %v1492
        %v2002 = vpack.c.bf16 %v1498, %v1496
        %v2003 = vpack.c.bf16 %v1502, %v1500
        %v2004 = vpack.c.bf16 %v1506, %v1504
        %v2005 = vpack.c.bf16 %v1510, %v1508
        %v2006 = vpack.c.bf16 %v1514, %v1512
        %v2007 = vpack.c.bf16 %v1518, %v1516
        %v2008 = vpack.c.bf16 %v1522, %v1520
        %v2009 = vpack.c.bf16 %v1526, %v1524
        %v2010 = vpack.c.bf16 %v1530, %v1528
        %v2011 = vpack.c.bf16 %v1534, %v1532
        %v2012 = vpack.c.bf16 %v1538, %v1536
        %v2013 = vpack.c.bf16 %v1542, %v1540
        %v2014 = vpack.c.bf16 %v1546, %v1544
        %v2015 = vpack.c.bf16 %v1550, %v1548
        %v2016 = vld [vmem:[%s303] sm:$0xf]
        %v2017 = vld [vmem:[%s303 + $0x4] sm:$0xf]
        %v2018 = vld [vmem:[%s303 + $0x8] sm:$0xf]
        %v2019 = vld [vmem:[%s303 + $0xc] sm:$0xf]
        %v2020 = vld [vmem:[%s303 + $0x10] sm:$0xf]
        %v2021 = vld [vmem:[%s303 + $0x14] sm:$0xf]
        %v2022 = vld [vmem:[%s303 + $0x18] sm:$0xf]
        %v2023 = vld [vmem:[%s303 + $0x1c] sm:$0xf]
        %v2024 = vld [vmem:[%s303 + $0x20] sm:$0xf]
        %v2025 = vld [vmem:[%s303 + $0x24] sm:$0xf]
        %v2026 = vld [vmem:[%s303 + $0x28] sm:$0xf]
        %v2027 = vld [vmem:[%s303 + $0x2c] sm:$0xf]
        %v2028 = vld [vmem:[%s303 + $0x30] sm:$0xf]
        %v2029 = vld [vmem:[%s303 + $0x34] sm:$0xf]
        %v2030 = vld [vmem:[%s303 + $0x38] sm:$0xf]
        %v2031 = vld [vmem:[%s303 + $0x3c] sm:$0xf]
        %v2032 = vld [vmem:[%s303 + $0x40] sm:$0xf]
        %v2033 = vld [vmem:[%s303 + $0x44] sm:$0xf]
        %v2034 = vld [vmem:[%s303 + $0x48] sm:$0xf]
        %v2035 = vld [vmem:[%s303 + $0x4c] sm:$0xf]
        %v2036 = vld [vmem:[%s303 + $0x50] sm:$0xf]
        %v2037 = vld [vmem:[%s303 + $0x54] sm:$0xf]
        %v2038 = vld [vmem:[%s303 + $0x58] sm:$0xf]
        %v2039 = vld [vmem:[%s303 + $0x5c] sm:$0xf]
        %v2040 = vld [vmem:[%s303 + $0x60] sm:$0xf]
        %v2041 = vld [vmem:[%s303 + $0x64] sm:$0xf]
        %v2042 = vld [vmem:[%s303 + $0x68] sm:$0xf]
        %v2043 = vld [vmem:[%s303 + $0x6c] sm:$0xf]
        %v2044 = vld [vmem:[%s303 + $0x70] sm:$0xf]
        %v2045 = vld [vmem:[%s303 + $0x74] sm:$0xf]
        %v2046 = vld [vmem:[%s303 + $0x78] sm:$0xf]
        %v2047 = vld [vmem:[%s303 + $0x7c] sm:$0xf]
        %v2056 = vunpack.c.l.b16 %v2016
        %v2057 = vunpack.c.l.b16 %v2017
        %v2058 = vunpack.c.l.b16 %v2018
        %v2059 = vunpack.c.l.b16 %v2019
        %v2060 = vunpack.c.l.b16 %v2020
        %v2061 = vunpack.c.l.b16 %v2021
        %v2062 = vunpack.c.l.b16 %v2022
        %v2063 = vunpack.c.l.b16 %v2023
        %v2064 = vpack.c.b16 %v2057, %v2056
        %v2065 = vpack.c.b16 %v2059, %v2058
        %v2066 = vpack.c.b16 %v2061, %v2060
        %v2067 = vpack.c.b16 %v2063, %v2062
        %v2073 = vsel %vm1070, %v2000, 0
        %v2076 = vsel %vm1070, %v2001, 0
        %v2079 = vsel %vm1070, %v2002, 0
        %v2082 = vsel %vm1070, %v2003, 0
        %2084 = vmatprep.subr.bf16.mxu0 0
        %2085 = vmatpush1.bf16.msra.mxu0 %v2064
        %2086 = vmatprep.subr.bf16.mxu0 0
        %2087 = vmatpush1.bf16.msra.mxu0 %v2065
        %2088 = vmatprep.subr.bf16.mxu0 0
        %2089 = vmatpush1.bf16.msra.mxu0 %v2066
        %2090 = vmatprep.subr.bf16.mxu0 0
        %2091 = vmatpush1.bf16.msra.mxu0 %v2067
        %2092 = vmatprep.subr.bf16.mxu0 0
        %2093 = vmatpush1.bf16.msra.mxu0 0
        %2094 = vmatprep.subr.bf16.mxu0 0
        %2095 = vmatpush1.bf16.msra.mxu0 0
        %2096 = vmatprep.subr.bf16.mxu0 0
        %2097 = vmatpush1.bf16.msra.mxu0 0
        %2098 = vmatprep.subr.bf16.mxu0 0
        %2099 = vmatpush1.bf16.msra.mxu0 0
        %2100 = vmatprep.subr.bf16.mxu0 0
        %2101 = vmatpush1.bf16.msra.mxu0 0
        %2102 = vmatprep.subr.bf16.mxu0 0
        %2103 = vmatpush1.bf16.msra.mxu0 0
        %2104 = vmatprep.subr.bf16.mxu0 0
        %2105 = vmatpush1.bf16.msra.mxu0 0
        %2106 = vmatprep.subr.bf16.mxu0 0
        %2107 = vmatpush1.bf16.msra.mxu0 0
        %2108 = vmatprep.subr.bf16.mxu0 0
        %2109 = vmatpush1.bf16.msra.mxu0 0
        %2110 = vmatprep.subr.bf16.mxu0 0
        %2111 = vmatpush1.bf16.msra.mxu0 0
        %2112 = vmatprep.subr.bf16.mxu0 0
        %2113 = vmatpush1.bf16.msra.mxu0 0
        %2114 = vmatprep.subr.bf16.mxu0 0
        %2115 = vmatpush1.bf16.msra.mxu0 0
        %2116 = vmatprep.mubr.bf16.mxu0 0
        %2117 = vmatmul.mubr.bf16.gmra.mrb[0].mxu0 %v2073
        %v2118 = vpop.f32.mrb[0].mxu0
        %v2119 = vadd.f32 0.0, %v2118
        %v2120 = vpop.f32.mrb[0].mxu0
        %v2121 = vpop.f32.mrb[0].mxu0
        %v2122 = vadd.f32 0.0, %v2121
        %v2123 = vpop.f32.mrb[0].mxu0
        %2124 = vmatprep.mubr.bf16.mxu0 0
        %2125 = vmatmul.mubr.bf16.gmra.mrb[0].mxu0 %v2076
        %v2126 = vpop.f32.mrb[0].mxu0
        %v2127 = vadd.f32 0.0, %v2126
        %v2128 = vpop.f32.mrb[0].mxu0
        %v2129 = vpop.f32.mrb[0].mxu0
        %v2130 = vadd.f32 0.0, %v2129
        %v2131 = vpop.f32.mrb[0].mxu0
        %2132 = vmatprep.mubr.bf16.mxu0 0
        %2133 = vmatmul.mubr.bf16.gmra.mrb[0].mxu0 %v2079
        %v2134 = vpop.f32.mrb[0].mxu0
        %v2135 = vadd.f32 0.0, %v2134
        %v2136 = vpop.f32.mrb[0].mxu0
        %v2137 = vpop.f32.mrb[0].mxu0
        %v2138 = vadd.f32 0.0, %v2137
        %v2139 = vpop.f32.mrb[0].mxu0
        %2140 = vmatprep.mubr.bf16.mxu0 0
        %2141 = vmatmul.mubr.bf16.gmra.mrb[0].mxu0 %v2082
        %v2142 = vpop.f32.mrb[0].mxu0
        %v2143 = vadd.f32 0.0, %v2142
        %v2144 = vpop.f32.mrb[0].mxu0
        %v2145 = vpop.f32.mrb[0].mxu0
        %v2146 = vadd.f32 0.0, %v2145
        %v2147 = vpop.f32.mrb[0].mxu0
        %2148 = vdwg.mxu0
        %v2157 = vunpack.c.l.b16 %v2024
        %v2158 = vunpack.c.l.b16 %v2025
        %v2159 = vunpack.c.l.b16 %v2026
        %v2160 = vunpack.c.l.b16 %v2027
        %v2161 = vunpack.c.l.b16 %v2028
        %v2162 = vunpack.c.l.b16 %v2029
        %v2163 = vunpack.c.l.b16 %v2030
        %v2164 = vunpack.c.l.b16 %v2031
        %v2165 = vpack.c.b16 %v2158, %v2157
        %v2166 = vpack.c.b16 %v2160, %v2159
        %v2167 = vpack.c.b16 %v2162, %v2161
        %v2168 = vpack.c.b16 %v2164, %v2163
        %v2174 = vsel %vm1070, %v2004, 0
        %v2177 = vsel %vm1070, %v2005, 0
        %v2180 = vsel %vm1070, %v2006, 0
        %v2183 = vsel %vm1070, %v2007, 0
        %2185 = vmatprep.subr.bf16.mxu0 0
        %2186 = vmatpush1.bf16.msra.mxu0 %v2165
        %2187 = vmatprep.subr.bf16.mxu0 0
        %2188 = vmatpush1.bf16.msra.mxu0 %v2166
        %2189 = vmatprep.subr.bf16.mxu0 0
        %2190 = vmatpush1.bf16.msra.mxu0 %v2167
        %2191 = vmatprep.subr.bf16.mxu0 0
        %2192 = vmatpush1.bf16.msra.mxu0 %v2168
        %2193 = vmatprep.subr.bf16.mxu0 0
        %2194 = vmatpush1.bf16.msra.mxu0 0
        %2195 = vmatprep.subr.bf16.mxu0 0
        %2196 = vmatpush1.bf16.msra.mxu0 0
        %2197 = vmatprep.subr.bf16.mxu0 0
        %2198 = vmatpush1.bf16.msra.mxu0 0
        %2199 = vmatprep.subr.bf16.mxu0 0
        %2200 = vmatpush1.bf16.msra.mxu0 0
        %2201 = vmatprep.subr.bf16.mxu0 0
        %2202 = vmatpush1.bf16.msra.mxu0 0
        %2203 = vmatprep.subr.bf16.mxu0 0
        %2204 = vmatpush1.bf16.msra.mxu0 0
        %2205 = vmatprep.subr.bf16.mxu0 0
        %2206 = vmatpush1.bf16.msra.mxu0 0
        %2207 = vmatprep.subr.bf16.mxu0 0
        %2208 = vmatpush1.bf16.msra.mxu0 0
        %2209 = vmatprep.subr.bf16.mxu0 0
        %2210 = vmatpush1.bf16.msra.mxu0 0
        %2211 = vmatprep.subr.bf16.mxu0 0
        %2212 = vmatpush1.bf16.msra.mxu0 0
        %2213 = vmatprep.subr.bf16.mxu0 0
        %2214 = vmatpush1.bf16.msra.mxu0 0
        %2215 = vmatprep.subr.bf16.mxu0 0
        %2216 = vmatpush1.bf16.msra.mxu0 0
        %2217 = vmatprep.mubr.bf16.mxu0 0
        %2218 = vmatmul.mubr.bf16.gmra.mrb[0].mxu0 %v2174
        %v2219 = vpop.f32.mrb[0].mxu0
        %v2220 = vadd.f32 0.0, %v2219
        %v2221 = vpop.f32.mrb[0].mxu0
        %v2222 = vpop.f32.mrb[0].mxu0
        %v2223 = vadd.f32 0.0, %v2222
        %v2224 = vpop.f32.mrb[0].mxu0
        %2225 = vmatprep.mubr.bf16.mxu0 0
        %2226 = vmatmul.mubr.bf16.gmra.mrb[0].mxu0 %v2177
        %v2227 = vpop.f32.mrb[0].mxu0
        %v2228 = vadd.f32 0.0, %v2227
        %v2229 = vpop.f32.mrb[0].mxu0
        %v2230 = vpop.f32.mrb[0].mxu0
        %v2231 = vadd.f32 0.0, %v2230
        %v2232 = vpop.f32.mrb[0].mxu0
        %2233 = vmatprep.mubr.bf16.mxu0 0
        %2234 = vmatmul.mubr.bf16.gmra.mrb[0].mxu0 %v2180
        %v2235 = vpop.f32.mrb[0].mxu0
        %v2236 = vadd.f32 0.0, %v2235
        %v2237 = vpop.f32.mrb[0].mxu0
        %v2238 = vpop.f32.mrb[0].mxu0
        %v2239 = vadd.f32 0.0, %v2238
        %v2240 = vpop.f32.mrb[0].mxu0
        %2241 = vmatprep.mubr.bf16.mxu0 0
        %2242 = vmatmul.mubr.bf16.gmra.mrb[0].mxu0 %v2183
        %v2243 = vpop.f32.mrb[0].mxu0
        %v2244 = vadd.f32 0.0, %v2243
        %v2245 = vpop.f32.mrb[0].mxu0
        %v2246 = vpop.f32.mrb[0].mxu0
        %v2247 = vadd.f32 0.0, %v2246
        %v2248 = vpop.f32.mrb[0].mxu0
        %2249 = vdwg.mxu0
        %v2258 = vunpack.c.l.b16 %v2032
        %v2259 = vunpack.c.l.b16 %v2033
        %v2260 = vunpack.c.l.b16 %v2034
        %v2261 = vunpack.c.l.b16 %v2035
        %v2262 = vunpack.c.l.b16 %v2036
        %v2263 = vunpack.c.l.b16 %v2037
        %v2264 = vunpack.c.l.b16 %v2038
        %v2265 = vunpack.c.l.b16 %v2039
        %v2266 = vpack.c.b16 %v2259, %v2258
        %v2267 = vpack.c.b16 %v2261, %v2260
        %v2268 = vpack.c.b16 %v2263, %v2262
        %v2269 = vpack.c.b16 %v2265, %v2264
        %v2275 = vsel %vm1070, %v2008, 0
        %v2278 = vsel %vm1070, %v2009, 0
        %v2281 = vsel %vm1070, %v2010, 0
        %v2284 = vsel %vm1070, %v2011, 0
        %2286 = vmatprep.subr.bf16.mxu0 0
        %2287 = vmatpush1.bf16.msra.mxu0 %v2266
        %2288 = vmatprep.subr.bf16.mxu0 0
        %2289 = vmatpush1.bf16.msra.mxu0 %v2267
        %2290 = vmatprep.subr.bf16.mxu0 0
        %2291 = vmatpush1.bf16.msra.mxu0 %v2268
        %2292 = vmatprep.subr.bf16.mxu0 0
        %2293 = vmatpush1.bf16.msra.mxu0 %v2269
        %2294 = vmatprep.subr.bf16.mxu0 0
        %2295 = vmatpush1.bf16.msra.mxu0 0
        %2296 = vmatprep.subr.bf16.mxu0 0
        %2297 = vmatpush1.bf16.msra.mxu0 0
        %2298 = vmatprep.subr.bf16.mxu0 0
        %2299 = vmatpush1.bf16.msra.mxu0 0
        %2300 = vmatprep.subr.bf16.mxu0 0
        %2301 = vmatpush1.bf16.msra.mxu0 0
        %2302 = vmatprep.subr.bf16.mxu0 0
        %2303 = vmatpush1.bf16.msra.mxu0 0
        %2304 = vmatprep.subr.bf16.mxu0 0
        %2305 = vmatpush1.bf16.msra.mxu0 0
        %2306 = vmatprep.subr.bf16.mxu0 0
        %2307 = vmatpush1.bf16.msra.mxu0 0
        %2308 = vmatprep.subr.bf16.mxu0 0
        %2309 = vmatpush1.bf16.msra.mxu0 0
        %2310 = vmatprep.subr.bf16.mxu0 0
        %2311 = vmatpush1.bf16.msra.mxu0 0
        %2312 = vmatprep.subr.bf16.mxu0 0
        %2313 = vmatpush1.bf16.msra.mxu0 0
        %2314 = vmatprep.subr.bf16.mxu0 0
        %2315 = vmatpush1.bf16.msra.mxu0 0
        %2316 = vmatprep.subr.bf16.mxu0 0
        %2317 = vmatpush1.bf16.msra.mxu0 0
        %2318 = vmatprep.mubr.bf16.mxu0 0
        %2319 = vmatmul.mubr.bf16.gmra.mrb[0].mxu0 %v2275
        %v2320 = vpop.f32.mrb[0].mxu0
        %v2321 = vadd.f32 0.0, %v2320
        %v2322 = vpop.f32.mrb[0].mxu0
        %v2323 = vpop.f32.mrb[0].mxu0
        %v2324 = vadd.f32 0.0, %v2323
        %v2325 = vpop.f32.mrb[0].mxu0
        %2326 = vmatprep.mubr.bf16.mxu0 0
        %2327 = vmatmul.mubr.bf16.gmra.mrb[0].mxu0 %v2278
        %v2328 = vpop.f32.mrb[0].mxu0
        %v2329 = vadd.f32 0.0, %v2328
        %v2330 = vpop.f32.mrb[0].mxu0
        %v2331 = vpop.f32.mrb[0].mxu0
        %v2332 = vadd.f32 0.0, %v2331
        %v2333 = vpop.f32.mrb[0].mxu0
        %2334 = vmatprep.mubr.bf16.mxu0 0
        %2335 = vmatmul.mubr.bf16.gmra.mrb[0].mxu0 %v2281
        %v2336 = vpop.f32.mrb[0].mxu0
        %v2337 = vadd.f32 0.0, %v2336
        %v2338 = vpop.f32.mrb[0].mxu0
        %v2339 = vpop.f32.mrb[0].mxu0
        %v2340 = vadd.f32 0.0, %v2339
        %v2341 = vpop.f32.mrb[0].mxu0
        %2342 = vmatprep.mubr.bf16.mxu0 0
        %2343 = vmatmul.mubr.bf16.gmra.mrb[0].mxu0 %v2284
        %v2344 = vpop.f32.mrb[0].mxu0
        %v2345 = vadd.f32 0.0, %v2344
        %v2346 = vpop.f32.mrb[0].mxu0
        %v2347 = vpop.f32.mrb[0].mxu0
        %v2348 = vadd.f32 0.0, %v2347
        %v2349 = vpop.f32.mrb[0].mxu0
        %2350 = vdwg.mxu0
        %v2359 = vunpack.c.l.b16 %v2040
        %v2360 = vunpack.c.l.b16 %v2041
        %v2361 = vunpack.c.l.b16 %v2042
        %v2362 = vunpack.c.l.b16 %v2043
        %v2363 = vunpack.c.l.b16 %v2044
        %v2364 = vunpack.c.l.b16 %v2045
        %v2365 = vunpack.c.l.b16 %v2046
        %v2366 = vunpack.c.l.b16 %v2047
        %v2367 = vpack.c.b16 %v2360, %v2359
        %v2368 = vpack.c.b16 %v2362, %v2361
        %v2369 = vpack.c.b16 %v2364, %v2363
        %v2370 = vpack.c.b16 %v2366, %v2365
        %v2376 = vsel %vm1070, %v2012, 0
        %v2379 = vsel %vm1070, %v2013, 0
        %v2382 = vsel %vm1070, %v2014, 0
        %v2385 = vsel %vm1070, %v2015, 0
        %2387 = vmatprep.subr.bf16.mxu0 0
        %2388 = vmatpush1.bf16.msra.mxu0 %v2367
        %2389 = vmatprep.subr.bf16.mxu0 0
        %2390 = vmatpush1.bf16.msra.mxu0 %v2368
        %2391 = vmatprep.subr.bf16.mxu0 0
        %2392 = vmatpush1.bf16.msra.mxu0 %v2369
        %2393 = vmatprep.subr.bf16.mxu0 0
        %2394 = vmatpush1.bf16.msra.mxu0 %v2370
        %2395 = vmatprep.subr.bf16.mxu0 0
        %2396 = vmatpush1.bf16.msra.mxu0 0
        %2397 = vmatprep.subr.bf16.mxu0 0
        %2398 = vmatpush1.bf16.msra.mxu0 0
        %2399 = vmatprep.subr.bf16.mxu0 0
        %2400 = vmatpush1.bf16.msra.mxu0 0
        %2401 = vmatprep.subr.bf16.mxu0 0
        %2402 = vmatpush1.bf16.msra.mxu0 0
        %2403 = vmatprep.subr.bf16.mxu0 0
        %2404 = vmatpush1.bf16.msra.mxu0 0
        %2405 = vmatprep.subr.bf16.mxu0 0
        %2406 = vmatpush1.bf16.msra.mxu0 0
        %2407 = vmatprep.subr.bf16.mxu0 0
        %2408 = vmatpush1.bf16.msra.mxu0 0
        %2409 = vmatprep.subr.bf16.mxu0 0
        %2410 = vmatpush1.bf16.msra.mxu0 0
        %2411 = vmatprep.subr.bf16.mxu0 0
        %2412 = vmatpush1.bf16.msra.mxu0 0
        %2413 = vmatprep.subr.bf16.mxu0 0
        %2414 = vmatpush1.bf16.msra.mxu0 0
        %2415 = vmatprep.subr.bf16.mxu0 0
        %2416 = vmatpush1.bf16.msra.mxu0 0
        %2417 = vmatprep.subr.bf16.mxu0 0
        %2418 = vmatpush1.bf16.msra.mxu0 0
        %2419 = vmatprep.mubr.bf16.mxu0 0
        %2420 = vmatmul.mubr.bf16.gmra.mrb[0].mxu0 %v2376
        %v2421 = vpop.f32.mrb[0].mxu0
        %v2422 = vadd.f32 0.0, %v2421
        %v2423 = vpop.f32.mrb[0].mxu0
        %v2424 = vpop.f32.mrb[0].mxu0
        %v2425 = vadd.f32 0.0, %v2424
        %v2426 = vpop.f32.mrb[0].mxu0
        %2427 = vmatprep.mubr.bf16.mxu0 0
        %2428 = vmatmul.mubr.bf16.gmra.mrb[0].mxu0 %v2379
        %v2429 = vpop.f32.mrb[0].mxu0
        %v2430 = vadd.f32 0.0, %v2429
        %v2431 = vpop.f32.mrb[0].mxu0
        %v2432 = vpop.f32.mrb[0].mxu0
        %v2433 = vadd.f32 0.0, %v2432
        %v2434 = vpop.f32.mrb[0].mxu0
        %2435 = vmatprep.mubr.bf16.mxu0 0
        %2436 = vmatmul.mubr.bf16.gmra.mrb[0].mxu0 %v2382
        %v2437 = vpop.f32.mrb[0].mxu0
        %v2438 = vadd.f32 0.0, %v2437
        %v2439 = vpop.f32.mrb[0].mxu0
        %v2440 = vpop.f32.mrb[0].mxu0
        %v2441 = vadd.f32 0.0, %v2440
        %v2442 = vpop.f32.mrb[0].mxu0
        %2443 = vmatprep.mubr.bf16.mxu0 0
        %2444 = vmatmul.mubr.bf16.gmra.mrb[0].mxu0 %v2385
        %v2445 = vpop.f32.mrb[0].mxu0
        %v2446 = vadd.f32 0.0, %v2445
        %v2447 = vpop.f32.mrb[0].mxu0
        %v2448 = vpop.f32.mrb[0].mxu0
        %v2449 = vadd.f32 0.0, %v2448
        %v2450 = vpop.f32.mrb[0].mxu0
        %2451 = vdwg.mxu0
        %v2452 = vadd.f32 %v1968, %v2119
        %v2453 = vadd.f32 %v1969, %v2122
        %v2454 = vadd.f32 %v1970, %v2127
        %v2455 = vadd.f32 %v1971, %v2130
        %v2456 = vadd.f32 %v1972, %v2135
        %v2457 = vadd.f32 %v1973, %v2138
        %v2458 = vadd.f32 %v1974, %v2143
        %v2459 = vadd.f32 %v1975, %v2146
        %v2460 = vadd.f32 %v1976, %v2220
        %v2461 = vadd.f32 %v1977, %v2223
        %v2462 = vadd.f32 %v1978, %v2228
        %v2463 = vadd.f32 %v1979, %v2231
        %v2464 = vadd.f32 %v1980, %v2236
        %v2465 = vadd.f32 %v1981, %v2239
        %v2466 = vadd.f32 %v1982, %v2244
        %v2467 = vadd.f32 %v1983, %v2247
        %v2468 = vadd.f32 %v1984, %v2321
        %v2469 = vadd.f32 %v1985, %v2324
        %v2470 = vadd.f32 %v1986, %v2329
        %v2471 = vadd.f32 %v1987, %v2332
        %v2472 = vadd.f32 %v1988, %v2337
        %v2473 = vadd.f32 %v1989, %v2340
        %v2474 = vadd.f32 %v1990, %v2345
        %v2475 = vadd.f32 %v1991, %v2348
        %v2476 = vadd.f32 %v1992, %v2422
        %v2477 = vadd.f32 %v1993, %v2425
        %v2478 = vadd.f32 %v1994, %v2430
        %v2479 = vadd.f32 %v1995, %v2433
        %v2480 = vadd.f32 %v1996, %v2438
        %v2481 = vadd.f32 %v1997, %v2441
        %v2482 = vadd.f32 %v1998, %v2446
        %v2483 = vadd.f32 %v1999, %v2449
        %2484 = vst.msk [vmem:[#allocation4] sm:$0xff] %vm561, %v2452
        %2485 = vst.msk [vmem:[#allocation4 + $0x8] sm:$0xff] %vm561, %v2453
        %2486 = vst.msk [vmem:[#allocation4 + $0x10] sm:$0xff] %vm561, %v2454
        %2487 = vst.msk [vmem:[#allocation4 + $0x18] sm:$0xff] %vm561, %v2455
        %2488 = vst.msk [vmem:[#allocation4 + $0x20] sm:$0xff] %vm561, %v2456
        %2489 = vst.msk [vmem:[#allocation4 + $0x28] sm:$0xff] %vm561, %v2457
        %2490 = vst.msk [vmem:[#allocation4 + $0x30] sm:$0xff] %vm561, %v2458
        %2491 = vst.msk [vmem:[#allocation4 + $0x38] sm:$0xff] %vm561, %v2459
        %2492 = vst.msk [vmem:[#allocation4 + $0x40] sm:$0xff] %vm561, %v2460
        %2493 = vst.msk [vmem:[#allocation4 + $0x48] sm:$0xff] %vm561, %v2461
        %2494 = vst.msk [vmem:[#allocation4 + $0x50] sm:$0xff] %vm561, %v2462
        %2495 = vst.msk [vmem:[#allocation4 + $0x58] sm:$0xff] %vm561, %v2463
        %2496 = vst.msk [vmem:[#allocation4 + $0x60] sm:$0xff] %vm561, %v2464
        %2497 = vst.msk [vmem:[#allocation4 + $0x68] sm:$0xff] %vm561, %v2465
        %2498 = vst.msk [vmem:[#allocation4 + $0x70] sm:$0xff] %vm561, %v2466
        %2499 = vst.msk [vmem:[#allocation4 + $0x78] sm:$0xff] %vm561, %v2467
        %2500 = vst.msk [vmem:[#allocation4 + $0x80] sm:$0xff] %vm561, %v2468
        %2501 = vst.msk [vmem:[#allocation4 + $0x88] sm:$0xff] %vm561, %v2469
        %2502 = vst.msk [vmem:[#allocation4 + $0x90] sm:$0xff] %vm561, %v2470
        %2503 = vst.msk [vmem:[#allocation4 + $0x98] sm:$0xff] %vm561, %v2471
        %2504 = vst.msk [vmem:[#allocation4 + $0xa0] sm:$0xff] %vm561, %v2472
        %2505 = vst.msk [vmem:[#allocation4 + $0xa8] sm:$0xff] %vm561, %v2473
        %2506 = vst.msk [vmem:[#allocation4 + $0xb0] sm:$0xff] %vm561, %v2474
        %2507 = vst.msk [vmem:[#allocation4 + $0xb8] sm:$0xff] %vm561, %v2475
        %2508 = vst.msk [vmem:[#allocation4 + $0xc0] sm:$0xff] %vm561, %v2476
        %2509 = vst.msk [vmem:[#allocation4 + $0xc8] sm:$0xff] %vm561, %v2477
        %2510 = vst.msk [vmem:[#allocation4 + $0xd0] sm:$0xff] %vm561, %v2478
        %2511 = vst.msk [vmem:[#allocation4 + $0xd8] sm:$0xff] %vm561, %v2479
        %2512 = vst.msk [vmem:[#allocation4 + $0xe0] sm:$0xff] %vm561, %v2480
        %2513 = vst.msk [vmem:[#allocation4 + $0xe8] sm:$0xff] %vm561, %v2481
        %2514 = vst.msk [vmem:[#allocation4 + $0xf0] sm:$0xff] %vm561, %v2482
        %2515 = vst.msk [vmem:[#allocation4 + $0xf8] sm:$0xff] %vm561, %v2483
        %2516 = vst.msk [vmem:[#allocation2] sm:$0xff] %vm1743, %v1167
        %2517 = vst.msk [vmem:[#allocation2 + $0x8] sm:$0xff] %vm1743, %v1168
        %2518 = vst.msk [vmem:[#allocation2 + $0x10] sm:$0xff] %vm1743, %v1169
        %2519 = vst.msk [vmem:[#allocation2 + $0x18] sm:$0xff] %vm1743, %v1170
        %2520 = vst.msk [vmem:[#allocation2 + $0x20] sm:$0xff] %vm1743, %v1171
        %2521 = vst.msk [vmem:[#allocation2 + $0x28] sm:$0xff] %vm1743, %v1172
        %2522 = vst.msk [vmem:[#allocation2 + $0x30] sm:$0xff] %vm1743, %v1173
        %2523 = vst.msk [vmem:[#allocation2 + $0x38] sm:$0xff] %vm1743, %v1174
        %2524 = vst.msk [vmem:[#allocation2 + $0x40] sm:$0xff] %vm1743, %v1175
        %2525 = vst.msk [vmem:[#allocation2 + $0x48] sm:$0xff] %vm1743, %v1176
        %2526 = vst.msk [vmem:[#allocation2 + $0x50] sm:$0xff] %vm1743, %v1177
        %2527 = vst.msk [vmem:[#allocation2 + $0x58] sm:$0xff] %vm1743, %v1178
        %2528 = vst.msk [vmem:[#allocation2 + $0x60] sm:$0xff] %vm1743, %v1179
        %2529 = vst.msk [vmem:[#allocation2 + $0x68] sm:$0xff] %vm1743, %v1180
        %2530 = vst.msk [vmem:[#allocation2 + $0x70] sm:$0xff] %vm1743, %v1181
        %2531 = vst.msk [vmem:[#allocation2 + $0x78] sm:$0xff] %vm1743, %v1182
        %2532 = vst.msk [vmem:[#allocation2 + $0x80] sm:$0xff] %vm1743, %v1183
        %2533 = vst.msk [vmem:[#allocation2 + $0x88] sm:$0xff] %vm1743, %v1184
        %2534 = vst.msk [vmem:[#allocation2 + $0x90] sm:$0xff] %vm1743, %v1185
        %2535 = vst.msk [vmem:[#allocation2 + $0x98] sm:$0xff] %vm1743, %v1186
        %2536 = vst.msk [vmem:[#allocation2 + $0xa0] sm:$0xff] %vm1743, %v1187
        %2537 = vst.msk [vmem:[#allocation2 + $0xa8] sm:$0xff] %vm1743, %v1188
        %2538 = vst.msk [vmem:[#allocation2 + $0xb0] sm:$0xff] %vm1743, %v1189
        %2539 = vst.msk [vmem:[#allocation2 + $0xb8] sm:$0xff] %vm1743, %v1190
        %2540 = vst.msk [vmem:[#allocation2 + $0xc0] sm:$0xff] %vm1743, %v1191
        %2541 = vst.msk [vmem:[#allocation2 + $0xc8] sm:$0xff] %vm1743, %v1192
        %2542 = vst.msk [vmem:[#allocation2 + $0xd0] sm:$0xff] %vm1743, %v1193
        %2543 = vst.msk [vmem:[#allocation2 + $0xd8] sm:$0xff] %vm1743, %v1194
        %2544 = vst.msk [vmem:[#allocation2 + $0xe0] sm:$0xff] %vm1743, %v1195
        %2545 = vst.msk [vmem:[#allocation2 + $0xe8] sm:$0xff] %vm1743, %v1196
        %2546 = vst.msk [vmem:[#allocation2 + $0xf0] sm:$0xff] %vm1743, %v1197
        %2547 = vst.msk [vmem:[#allocation2 + $0xf8] sm:$0xff] %vm1743, %v1198
      $region40: #{causal_self_attention.4} parent=31 // pred_fallthru
        _
      %p2548 = scmp.eq.s32.totalorder %s21, %s20
      // Predicated region
      $region41: #{causal_self_attention.4} parent=31 // pred_check
        %p2549 = pneg %p2548
      $region42: #{causal_self_attention.4} parent=31 // pred_check_branch
        %2551 = sbr.rel (%p2549) target = $region44
      $region43: #{causal_self_attention.4} parent=31 // pred_region
        %v2552 = vld [vmem:[%s277] sm:$0xf]
        %v2553 = vld [vmem:[%s277 + $0x4] sm:$0xf]
        %v2554 = vld [vmem:[%s277 + $0x8] sm:$0xf]
        %v2555 = vld [vmem:[%s277 + $0xc] sm:$0xf]
        %v2556 = vld [vmem:[%s277 + $0x10] sm:$0xf]
        %v2557 = vld [vmem:[%s277 + $0x14] sm:$0xf]
        %v2558 = vld [vmem:[%s277 + $0x18] sm:$0xf]
        %v2559 = vld [vmem:[%s277 + $0x1c] sm:$0xf]
        %v2560 = vld [vmem:[%s277 + $0x20] sm:$0xf]
        %v2561 = vld [vmem:[%s277 + $0x24] sm:$0xf]
        %v2562 = vld [vmem:[%s277 + $0x28] sm:$0xf]
        %v2563 = vld [vmem:[%s277 + $0x2c] sm:$0xf]
        %v2564 = vld [vmem:[%s277 + $0x30] sm:$0xf]
        %v2565 = vld [vmem:[%s277 + $0x34] sm:$0xf]
        %v2566 = vld [vmem:[%s277 + $0x38] sm:$0xf]
        %v2567 = vld [vmem:[%s277 + $0x3c] sm:$0xf]
        %v2568 = vld [vmem:[%s277 + $0x40] sm:$0xf]
        %v2569 = vld [vmem:[%s277 + $0x44] sm:$0xf]
        %v2570 = vld [vmem:[%s277 + $0x48] sm:$0xf]
        %v2571 = vld [vmem:[%s277 + $0x4c] sm:$0xf]
        %v2572 = vld [vmem:[%s277 + $0x50] sm:$0xf]
        %v2573 = vld [vmem:[%s277 + $0x54] sm:$0xf]
        %v2574 = vld [vmem:[%s277 + $0x58] sm:$0xf]
        %v2575 = vld [vmem:[%s277 + $0x5c] sm:$0xf]
        %v2576 = vld [vmem:[%s277 + $0x60] sm:$0xf]
        %v2577 = vld [vmem:[%s277 + $0x64] sm:$0xf]
        %v2578 = vld [vmem:[%s277 + $0x68] sm:$0xf]
        %v2579 = vld [vmem:[%s277 + $0x6c] sm:$0xf]
        %v2580 = vld [vmem:[%s277 + $0x70] sm:$0xf]
        %v2581 = vld [vmem:[%s277 + $0x74] sm:$0xf]
        %v2582 = vld [vmem:[%s277 + $0x78] sm:$0xf]
        %v2583 = vld [vmem:[%s277 + $0x7c] sm:$0xf]
        %v2584 = vmul.bf16 %v2552, 1043676725
        %v2585 = vmul.bf16 %v2553, 1043676725
        %v2586 = vmul.bf16 %v2554, 1043676725
        %v2587 = vmul.bf16 %v2555, 1043676725
        %v2588 = vmul.bf16 %v2556, 1043676725
        %v2589 = vmul.bf16 %v2557, 1043676725
        %v2590 = vmul.bf16 %v2558, 1043676725
        %v2591 = vmul.bf16 %v2559, 1043676725
        %v2592 = vmul.bf16 %v2560, 1043676725
        %v2593 = vmul.bf16 %v2561, 1043676725
        %v2594 = vmul.bf16 %v2562, 1043676725
        %v2595 = vmul.bf16 %v2563, 1043676725
        %v2596 = vmul.bf16 %v2564, 1043676725
        %v2597 = vmul.bf16 %v2565, 1043676725
        %v2598 = vmul.bf16 %v2566, 1043676725
        %v2599 = vmul.bf16 %v2567, 1043676725
        %v2600 = vmul.bf16 %v2568, 1043676725
        %v2601 = vmul.bf16 %v2569, 1043676725
        %v2602 = vmul.bf16 %v2570, 1043676725
        %v2603 = vmul.bf16 %v2571, 1043676725
        %v2604 = vmul.bf16 %v2572, 1043676725
        %v2605 = vmul.bf16 %v2573, 1043676725
        %v2606 = vmul.bf16 %v2574, 1043676725
        %v2607 = vmul.bf16 %v2575, 1043676725
        %v2608 = vmul.bf16 %v2576, 1043676725
        %v2609 = vmul.bf16 %v2577, 1043676725
        %v2610 = vmul.bf16 %v2578, 1043676725
        %v2611 = vmul.bf16 %v2579, 1043676725
        %v2612 = vmul.bf16 %v2580, 1043676725
        %v2613 = vmul.bf16 %v2581, 1043676725
        %v2614 = vmul.bf16 %v2582, 1043676725
        %v2615 = vmul.bf16 %v2583, 1043676725
        %v2616 = vld [vmem:[%s289] sm:$0xf]
        %v2617 = vld [vmem:[%s289 + $0x4] sm:$0xf]
        %v2618 = vld [vmem:[%s289 + $0x8] sm:$0xf]
        %v2619 = vld [vmem:[%s289 + $0xc] sm:$0xf]
        %v2620 = vld [vmem:[%s289 + $0x10] sm:$0xf]
        %v2621 = vld [vmem:[%s289 + $0x14] sm:$0xf]
        %v2622 = vld [vmem:[%s289 + $0x18] sm:$0xf]
        %v2623 = vld [vmem:[%s289 + $0x1c] sm:$0xf]
        %v2624 = vld [vmem:[%s289 + $0x20] sm:$0xf]
        %v2625 = vld [vmem:[%s289 + $0x24] sm:$0xf]
        %v2626 = vld [vmem:[%s289 + $0x28] sm:$0xf]
        %v2627 = vld [vmem:[%s289 + $0x2c] sm:$0xf]
        %v2628 = vld [vmem:[%s289 + $0x30] sm:$0xf]
        %v2629 = vld [vmem:[%s289 + $0x34] sm:$0xf]
        %v2630 = vld [vmem:[%s289 + $0x38] sm:$0xf]
        %v2631 = vld [vmem:[%s289 + $0x3c] sm:$0xf]
        %v2632 = vld [vmem:[%s289 + $0x40] sm:$0xf]
        %v2633 = vld [vmem:[%s289 + $0x44] sm:$0xf]
        %v2634 = vld [vmem:[%s289 + $0x48] sm:$0xf]
        %v2635 = vld [vmem:[%s289 + $0x4c] sm:$0xf]
        %v2636 = vld [vmem:[%s289 + $0x50] sm:$0xf]
        %v2637 = vld [vmem:[%s289 + $0x54] sm:$0xf]
        %v2638 = vld [vmem:[%s289 + $0x58] sm:$0xf]
        %v2639 = vld [vmem:[%s289 + $0x5c] sm:$0xf]
        %v2640 = vld [vmem:[%s289 + $0x60] sm:$0xf]
        %v2641 = vld [vmem:[%s289 + $0x64] sm:$0xf]
        %v2642 = vld [vmem:[%s289 + $0x68] sm:$0xf]
        %v2643 = vld [vmem:[%s289 + $0x6c] sm:$0xf]
        %v2644 = vld [vmem:[%s289 + $0x70] sm:$0xf]
        %v2645 = vld [vmem:[%s289 + $0x74] sm:$0xf]
        %v2646 = vld [vmem:[%s289 + $0x78] sm:$0xf]
        %v2647 = vld [vmem:[%s289 + $0x7c] sm:$0xf]
        %v2656 = vunpack.c.l.b16 %v2584
        %v2657 = vunpack.c.l.b16 %v2585
        %v2658 = vunpack.c.l.b16 %v2586
        %v2659 = vunpack.c.l.b16 %v2587
        %v2660 = vunpack.c.l.b16 %v2588
        %v2661 = vunpack.c.l.b16 %v2589
        %v2662 = vunpack.c.l.b16 %v2590
        %v2663 = vunpack.c.l.b16 %v2591
        %v2664 = vpack.c.b16 %v2657, %v2656
        %v2665 = vpack.c.b16 %v2659, %v2658
        %v2666 = vpack.c.b16 %v2661, %v2660
        %v2667 = vpack.c.b16 %v2663, %v2662
        %v2676 = vunpack.c.l.b16 %v2616
        %v2677 = vunpack.c.l.b16 %v2617
        %v2678 = vunpack.c.l.b16 %v2618
        %v2679 = vunpack.c.l.b16 %v2619
        %v2680 = vunpack.c.l.b16 %v2620
        %v2681 = vunpack.c.l.b16 %v2621
        %v2682 = vunpack.c.l.b16 %v2622
        %v2683 = vunpack.c.l.b16 %v2623
        %v2684 = vpack.c.b16 %v2677, %v2676
        %v2685 = vpack.c.b16 %v2679, %v2678
        %v2686 = vpack.c.b16 %v2681, %v2680
        %v2687 = vpack.c.b16 %v2683, %v2682
        %vm2688 = vcmask 261120
        %v2690 = vsel %vm2688, %v2664, 0
        %v2693 = vsel %vm2688, %v2665, 0
        %v2696 = vsel %vm2688, %v2666, 0
        %v2699 = vsel %vm2688, %v2667, 0
        %v2702 = vsel %vm2688, %v2684, 0
        %v2705 = vsel %vm2688, %v2685, 0
        %v2708 = vsel %vm2688, %v2686, 0
        %v2711 = vsel %vm2688, %v2687, 0
        %2713 = vmatprep.subr.bf16.mxu0 0
        %2714 = vmatpush1.bf16.xpose.msra.mxu0 %v2702
        %2715 = vmatprep.subr.bf16.mxu0 0
        %2716 = vmatpush1.bf16.xpose.msra.mxu0 %v2705
        %2717 = vmatprep.subr.bf16.mxu0 0
        %2718 = vmatpush1.bf16.xpose.msra.mxu0 %v2708
        %2719 = vmatprep.subr.bf16.mxu0 0
        %2720 = vmatpush1.bf16.xpose.msra.mxu0 %v2711
        %2721 = vmatprep.subr.bf16.mxu0 0
        %2722 = vmatpush1.bf16.xpose.msra.mxu0 0
        %2723 = vmatprep.subr.bf16.mxu0 0
        %2724 = vmatpush1.bf16.xpose.msra.mxu0 0
        %2725 = vmatprep.subr.bf16.mxu0 0
        %2726 = vmatpush1.bf16.xpose.msra.mxu0 0
        %2727 = vmatprep.subr.bf16.mxu0 0
        %2728 = vmatpush1.bf16.xpose.msra.mxu0 0
        %2729 = vmatprep.subr.bf16.mxu0 0
        %2730 = vmatpush1.bf16.xpose.msra.mxu0 0
        %2731 = vmatprep.subr.bf16.mxu0 0
        %2732 = vmatpush1.bf16.xpose.msra.mxu0 0
        %2733 = vmatprep.subr.bf16.mxu0 0
        %2734 = vmatpush1.bf16.xpose.msra.mxu0 0
        %2735 = vmatprep.subr.bf16.mxu0 0
        %2736 = vmatpush1.bf16.xpose.msra.mxu0 0
        %2737 = vmatprep.subr.bf16.mxu0 0
        %2738 = vmatpush1.bf16.xpose.msra.mxu0 0
        %2739 = vmatprep.subr.bf16.mxu0 0
        %2740 = vmatpush1.bf16.xpose.msra.mxu0 0
        %2741 = vmatprep.subr.bf16.mxu0 0
        %2742 = vmatpush1.bf16.xpose.msra.mxu0 0
        %2743 = vmatprep.subr.bf16.mxu0 0
        %2744 = vmatpush1.bf16.xpose.msra.mxu0 0
        %2745 = vmatprep.mubr.bf16.mxu0 0
        %2746 = vmatmul.mubr.bf16.gmra.mrb[0].mxu0 %v2690
        %v2747 = vpop.f32.mrb[0].mxu0
        %v2748 = vadd.f32 0.0, %v2747
        %v2749 = vpop.f32.mrb[0].mxu0
        %v2750 = vpop.f32.mrb[0].mxu0
        %v2751 = vadd.f32 0.0, %v2750
        %v2752 = vpop.f32.mrb[0].mxu0
        %2753 = vmatprep.mubr.bf16.mxu0 0
        %2754 = vmatmul.mubr.bf16.gmra.mrb[0].mxu0 %v2693
        %v2755 = vpop.f32.mrb[0].mxu0
        %v2756 = vadd.f32 0.0, %v2755
        %v2757 = vpop.f32.mrb[0].mxu0
        %v2758 = vpop.f32.mrb[0].mxu0
        %v2759 = vadd.f32 0.0, %v2758
        %v2760 = vpop.f32.mrb[0].mxu0
        %2761 = vmatprep.mubr.bf16.mxu0 0
        %2762 = vmatmul.mubr.bf16.gmra.mrb[0].mxu0 %v2696
        %v2763 = vpop.f32.mrb[0].mxu0
        %v2764 = vadd.f32 0.0, %v2763
        %v2765 = vpop.f32.mrb[0].mxu0
        %v2766 = vpop.f32.mrb[0].mxu0
        %v2767 = vadd.f32 0.0, %v2766
        %v2768 = vpop.f32.mrb[0].mxu0
        %2769 = vmatprep.mubr.bf16.mxu0 0
        %2770 = vmatmul.mubr.bf16.gmra.mrb[0].mxu0 %v2699
        %v2771 = vpop.f32.mrb[0].mxu0
        %v2772 = vadd.f32 0.0, %v2771
        %v2773 = vpop.f32.mrb[0].mxu0
        %v2774 = vpop.f32.mrb[0].mxu0
        %v2775 = vadd.f32 0.0, %v2774
        %v2776 = vpop.f32.mrb[0].mxu0
        %2777 = vdwg.mxu0
        %v2786 = vunpack.c.l.b16 %v2592
        %v2787 = vunpack.c.l.b16 %v2593
        %v2788 = vunpack.c.l.b16 %v2594
        %v2789 = vunpack.c.l.b16 %v2595
        %v2790 = vunpack.c.l.b16 %v2596
        %v2791 = vunpack.c.l.b16 %v2597
        %v2792 = vunpack.c.l.b16 %v2598
        %v2793 = vunpack.c.l.b16 %v2599
        %v2794 = vpack.c.b16 %v2787, %v2786
        %v2795 = vpack.c.b16 %v2789, %v2788
        %v2796 = vpack.c.b16 %v2791, %v2790
        %v2797 = vpack.c.b16 %v2793, %v2792
        %v2806 = vunpack.c.l.b16 %v2624
        %v2807 = vunpack.c.l.b16 %v2625
        %v2808 = vunpack.c.l.b16 %v2626
        %v2809 = vunpack.c.l.b16 %v2627
        %v2810 = vunpack.c.l.b16 %v2628
        %v2811 = vunpack.c.l.b16 %v2629
        %v2812 = vunpack.c.l.b16 %v2630
        %v2813 = vunpack.c.l.b16 %v2631
        %v2814 = vpack.c.b16 %v2807, %v2806
        %v2815 = vpack.c.b16 %v2809, %v2808
        %v2816 = vpack.c.b16 %v2811, %v2810
        %v2817 = vpack.c.b16 %v2813, %v2812
        %v2819 = vsel %vm2688, %v2794, 0
        %v2822 = vsel %vm2688, %v2795, 0
        %v2825 = vsel %vm2688, %v2796, 0
        %v2828 = vsel %vm2688, %v2797, 0
        %v2831 = vsel %vm2688, %v2814, 0
        %v2834 = vsel %vm2688, %v2815, 0
        %v2837 = vsel %vm2688, %v2816, 0
        %v2840 = vsel %vm2688, %v2817, 0
        %2842 = vmatprep.subr.bf16.mxu0 0
        %2843 = vmatpush1.bf16.xpose.msra.mxu0 %v2831
        %2844 = vmatprep.subr.bf16.mxu0 0
        %2845 = vmatpush1.bf16.xpose.msra.mxu0 %v2834
        %2846 = vmatprep.subr.bf16.mxu0 0
        %2847 = vmatpush1.bf16.xpose.msra.mxu0 %v2837
        %2848 = vmatprep.subr.bf16.mxu0 0
        %2849 = vmatpush1.bf16.xpose.msra.mxu0 %v2840
        %2850 = vmatprep.subr.bf16.mxu0 0
        %2851 = vmatpush1.bf16.xpose.msra.mxu0 0
        %2852 = vmatprep.subr.bf16.mxu0 0
        %2853 = vmatpush1.bf16.xpose.msra.mxu0 0
        %2854 = vmatprep.subr.bf16.mxu0 0
        %2855 = vmatpush1.bf16.xpose.msra.mxu0 0
        %2856 = vmatprep.subr.bf16.mxu0 0
        %2857 = vmatpush1.bf16.xpose.msra.mxu0 0
        %2858 = vmatprep.subr.bf16.mxu0 0
        %2859 = vmatpush1.bf16.xpose.msra.mxu0 0
        %2860 = vmatprep.subr.bf16.mxu0 0
        %2861 = vmatpush1.bf16.xpose.msra.mxu0 0
        %2862 = vmatprep.subr.bf16.mxu0 0
        %2863 = vmatpush1.bf16.xpose.msra.mxu0 0
        %2864 = vmatprep.subr.bf16.mxu0 0
        %2865 = vmatpush1.bf16.xpose.msra.mxu0 0
        %2866 = vmatprep.subr.bf16.mxu0 0
        %2867 = vmatpush1.bf16.xpose.msra.mxu0 0
        %2868 = vmatprep.subr.bf16.mxu0 0
        %2869 = vmatpush1.bf16.xpose.msra.mxu0 0
        %2870 = vmatprep.subr.bf16.mxu0 0
        %2871 = vmatpush1.bf16.xpose.msra.mxu0 0
        %2872 = vmatprep.subr.bf16.mxu0 0
        %2873 = vmatpush1.bf16.xpose.msra.mxu0 0
        %2874 = vmatprep.mubr.bf16.mxu0 0
        %2875 = vmatmul.mubr.bf16.gmra.mrb[0].mxu0 %v2819
        %v2876 = vpop.f32.mrb[0].mxu0
        %v2877 = vadd.f32 0.0, %v2876
        %v2878 = vpop.f32.mrb[0].mxu0
        %v2879 = vpop.f32.mrb[0].mxu0
        %v2880 = vadd.f32 0.0, %v2879
        %v2881 = vpop.f32.mrb[0].mxu0
        %2882 = vmatprep.mubr.bf16.mxu0 0
        %2883 = vmatmul.mubr.bf16.gmra.mrb[0].mxu0 %v2822
        %v2884 = vpop.f32.mrb[0].mxu0
        %v2885 = vadd.f32 0.0, %v2884
        %v2886 = vpop.f32.mrb[0].mxu0
        %v2887 = vpop.f32.mrb[0].mxu0
        %v2888 = vadd.f32 0.0, %v2887
        %v2889 = vpop.f32.mrb[0].mxu0
        %2890 = vmatprep.mubr.bf16.mxu0 0
        %2891 = vmatmul.mubr.bf16.gmra.mrb[0].mxu0 %v2825
        %v2892 = vpop.f32.mrb[0].mxu0
        %v2893 = vadd.f32 0.0, %v2892
        %v2894 = vpop.f32.mrb[0].mxu0
        %v2895 = vpop.f32.mrb[0].mxu0
        %v2896 = vadd.f32 0.0, %v2895
        %v2897 = vpop.f32.mrb[0].mxu0
        %2898 = vmatprep.mubr.bf16.mxu0 0
        %2899 = vmatmul.mubr.bf16.gmra.mrb[0].mxu0 %v2828
        %v2900 = vpop.f32.mrb[0].mxu0
        %v2901 = vadd.f32 0.0, %v2900
        %v2902 = vpop.f32.mrb[0].mxu0
        %v2903 = vpop.f32.mrb[0].mxu0
        %v2904 = vadd.f32 0.0, %v2903
        %v2905 = vpop.f32.mrb[0].mxu0
        %2906 = vdwg.mxu0
        %v2915 = vunpack.c.l.b16 %v2600
        %v2916 = vunpack.c.l.b16 %v2601
        %v2917 = vunpack.c.l.b16 %v2602
        %v2918 = vunpack.c.l.b16 %v2603
        %v2919 = vunpack.c.l.b16 %v2604
        %v2920 = vunpack.c.l.b16 %v2605
        %v2921 = vunpack.c.l.b16 %v2606
        %v2922 = vunpack.c.l.b16 %v2607
        %v2923 = vpack.c.b16 %v2916, %v2915
        %v2924 = vpack.c.b16 %v2918, %v2917
        %v2925 = vpack.c.b16 %v2920, %v2919
        %v2926 = vpack.c.b16 %v2922, %v2921
        %v2935 = vunpack.c.l.b16 %v2632
        %v2936 = vunpack.c.l.b16 %v2633
        %v2937 = vunpack.c.l.b16 %v2634
        %v2938 = vunpack.c.l.b16 %v2635
        %v2939 = vunpack.c.l.b16 %v2636
        %v2940 = vunpack.c.l.b16 %v2637
        %v2941 = vunpack.c.l.b16 %v2638
        %v2942 = vunpack.c.l.b16 %v2639
        %v2943 = vpack.c.b16 %v2936, %v2935
        %v2944 = vpack.c.b16 %v2938, %v2937
        %v2945 = vpack.c.b16 %v2940, %v2939
        %v2946 = vpack.c.b16 %v2942, %v2941
        %v2948 = vsel %vm2688, %v2923, 0
        %v2951 = vsel %vm2688, %v2924, 0
        %v2954 = vsel %vm2688, %v2925, 0
        %v2957 = vsel %vm2688, %v2926, 0
        %v2960 = vsel %vm2688, %v2943, 0
        %v2963 = vsel %vm2688, %v2944, 0
        %v2966 = vsel %vm2688, %v2945, 0
        %v2969 = vsel %vm2688, %v2946, 0
        %2971 = vmatprep.subr.bf16.mxu0 0
        %2972 = vmatpush1.bf16.xpose.msra.mxu0 %v2960
        %2973 = vmatprep.subr.bf16.mxu0 0
        %2974 = vmatpush1.bf16.xpose.msra.mxu0 %v2963
        %2975 = vmatprep.subr.bf16.mxu0 0
        %2976 = vmatpush1.bf16.xpose.msra.mxu0 %v2966
        %2977 = vmatprep.subr.bf16.mxu0 0
        %2978 = vmatpush1.bf16.xpose.msra.mxu0 %v2969
        %2979 = vmatprep.subr.bf16.mxu0 0
        %2980 = vmatpush1.bf16.xpose.msra.mxu0 0
        %2981 = vmatprep.subr.bf16.mxu0 0
        %2982 = vmatpush1.bf16.xpose.msra.mxu0 0
        %2983 = vmatprep.subr.bf16.mxu0 0
        %2984 = vmatpush1.bf16.xpose.msra.mxu0 0
        %2985 = vmatprep.subr.bf16.mxu0 0
        %2986 = vmatpush1.bf16.xpose.msra.mxu0 0
        %2987 = vmatprep.subr.bf16.mxu0 0
        %2988 = vmatpush1.bf16.xpose.msra.mxu0 0
        %2989 = vmatprep.subr.bf16.mxu0 0
        %2990 = vmatpush1.bf16.xpose.msra.mxu0 0
        %2991 = vmatprep.subr.bf16.mxu0 0
        %2992 = vmatpush1.bf16.xpose.msra.mxu0 0
        %2993 = vmatprep.subr.bf16.mxu0 0
        %2994 = vmatpush1.bf16.xpose.msra.mxu0 0
        %2995 = vmatprep.subr.bf16.mxu0 0
        %2996 = vmatpush1.bf16.xpose.msra.mxu0 0
        %2997 = vmatprep.subr.bf16.mxu0 0
        %2998 = vmatpush1.bf16.xpose.msra.mxu0 0
        %2999 = vmatprep.subr.bf16.mxu0 0
        %3000 = vmatpush1.bf16.xpose.msra.mxu0 0
        %3001 = vmatprep.subr.bf16.mxu0 0
        %3002 = vmatpush1.bf16.xpose.msra.mxu0 0
        %3003 = vmatprep.mubr.bf16.mxu0 0
        %3004 = vmatmul.mubr.bf16.gmra.mrb[0].mxu0 %v2948
        %v3005 = vpop.f32.mrb[0].mxu0
        %v3006 = vadd.f32 0.0, %v3005
        %v3007 = vpop.f32.mrb[0].mxu0
        %v3008 = vpop.f32.mrb[0].mxu0
        %v3009 = vadd.f32 0.0, %v3008
        %v3010 = vpop.f32.mrb[0].mxu0
        %3011 = vmatprep.mubr.bf16.mxu0 0
        %3012 = vmatmul.mubr.bf16.gmra.mrb[0].mxu0 %v2951
        %v3013 = vpop.f32.mrb[0].mxu0
        %v3014 = vadd.f32 0.0, %v3013
        %v3015 = vpop.f32.mrb[0].mxu0
        %v3016 = vpop.f32.mrb[0].mxu0
        %v3017 = vadd.f32 0.0, %v3016
        %v3018 = vpop.f32.mrb[0].mxu0
        %3019 = vmatprep.mubr.bf16.mxu0 0
        %3020 = vmatmul.mubr.bf16.gmra.mrb[0].mxu0 %v2954
        %v3021 = vpop.f32.mrb[0].mxu0
        %v3022 = vadd.f32 0.0, %v3021
        %v3023 = vpop.f32.mrb[0].mxu0
        %v3024 = vpop.f32.mrb[0].mxu0
        %v3025 = vadd.f32 0.0, %v3024
        %v3026 = vpop.f32.mrb[0].mxu0
        %3027 = vmatprep.mubr.bf16.mxu0 0
        %3028 = vmatmul.mubr.bf16.gmra.mrb[0].mxu0 %v2957
        %v3029 = vpop.f32.mrb[0].mxu0
        %v3030 = vadd.f32 0.0, %v3029
        %v3031 = vpop.f32.mrb[0].mxu0
        %v3032 = vpop.f32.mrb[0].mxu0
        %v3033 = vadd.f32 0.0, %v3032
        %v3034 = vpop.f32.mrb[0].mxu0
        %3035 = vdwg.mxu0
        %v3044 = vunpack.c.l.b16 %v2608
        %v3045 = vunpack.c.l.b16 %v2609
        %v3046 = vunpack.c.l.b16 %v2610
        %v3047 = vunpack.c.l.b16 %v2611
        %v3048 = vunpack.c.l.b16 %v2612
        %v3049 = vunpack.c.l.b16 %v2613
        %v3050 = vunpack.c.l.b16 %v2614
        %v3051 = vunpack.c.l.b16 %v2615
        %v3052 = vpack.c.b16 %v3045, %v3044
        %v3053 = vpack.c.b16 %v3047, %v3046
        %v3054 = vpack.c.b16 %v3049, %v3048
        %v3055 = vpack.c.b16 %v3051, %v3050
        %v3064 = vunpack.c.l.b16 %v2640
        %v3065 = vunpack.c.l.b16 %v2641
        %v3066 = vunpack.c.l.b16 %v2642
        %v3067 = vunpack.c.l.b16 %v2643
        %v3068 = vunpack.c.l.b16 %v2644
        %v3069 = vunpack.c.l.b16 %v2645
        %v3070 = vunpack.c.l.b16 %v2646
        %v3071 = vunpack.c.l.b16 %v2647
        %v3072 = vpack.c.b16 %v3065, %v3064
        %v3073 = vpack.c.b16 %v3067, %v3066
        %v3074 = vpack.c.b16 %v3069, %v3068
        %v3075 = vpack.c.b16 %v3071, %v3070
        %v3077 = vsel %vm2688, %v3052, 0
        %v3080 = vsel %vm2688, %v3053, 0
        %v3083 = vsel %vm2688, %v3054, 0
        %v3086 = vsel %vm2688, %v3055, 0
        %v3089 = vsel %vm2688, %v3072, 0
        %v3092 = vsel %vm2688, %v3073, 0
        %v3095 = vsel %vm2688, %v3074, 0
        %v3098 = vsel %vm2688, %v3075, 0
        %3100 = vmatprep.subr.bf16.mxu0 0
        %3101 = vmatpush1.bf16.xpose.msra.mxu0 %v3089
        %3102 = vmatprep.subr.bf16.mxu0 0
        %3103 = vmatpush1.bf16.xpose.msra.mxu0 %v3092
        %3104 = vmatprep.subr.bf16.mxu0 0
        %3105 = vmatpush1.bf16.xpose.msra.mxu0 %v3095
        %3106 = vmatprep.subr.bf16.mxu0 0
        %3107 = vmatpush1.bf16.xpose.msra.mxu0 %v3098
        %3108 = vmatprep.subr.bf16.mxu0 0
        %3109 = vmatpush1.bf16.xpose.msra.mxu0 0
        %3110 = vmatprep.subr.bf16.mxu0 0
        %3111 = vmatpush1.bf16.xpose.msra.mxu0 0
        %3112 = vmatprep.subr.bf16.mxu0 0
        %3113 = vmatpush1.bf16.xpose.msra.mxu0 0
        %3114 = vmatprep.subr.bf16.mxu0 0
        %3115 = vmatpush1.bf16.xpose.msra.mxu0 0
        %3116 = vmatprep.subr.bf16.mxu0 0
        %3117 = vmatpush1.bf16.xpose.msra.mxu0 0
        %3118 = vmatprep.subr.bf16.mxu0 0
        %3119 = vmatpush1.bf16.xpose.msra.mxu0 0
        %3120 = vmatprep.subr.bf16.mxu0 0
        %3121 = vmatpush1.bf16.xpose.msra.mxu0 0
        %3122 = vmatprep.subr.bf16.mxu0 0
        %3123 = vmatpush1.bf16.xpose.msra.mxu0 0
        %3124 = vmatprep.subr.bf16.mxu0 0
        %3125 = vmatpush1.bf16.xpose.msra.mxu0 0
        %3126 = vmatprep.subr.bf16.mxu0 0
        %3127 = vmatpush1.bf16.xpose.msra.mxu0 0
        %3128 = vmatprep.subr.bf16.mxu0 0
        %3129 = vmatpush1.bf16.xpose.msra.mxu0 0
        %3130 = vmatprep.subr.bf16.mxu0 0
        %3131 = vmatpush1.bf16.xpose.msra.mxu0 0
        %3132 = vmatprep.mubr.bf16.mxu0 0
        %3133 = vmatmul.mubr.bf16.gmra.mrb[0].mxu0 %v3077
        %v3134 = vpop.f32.mrb[0].mxu0
        %v3135 = vadd.f32 0.0, %v3134
        %v3136 = vpop.f32.mrb[0].mxu0
        %v3137 = vpop.f32.mrb[0].mxu0
        %v3138 = vadd.f32 0.0, %v3137
        %v3139 = vpop.f32.mrb[0].mxu0
        %3140 = vmatprep.mubr.bf16.mxu0 0
        %3141 = vmatmul.mubr.bf16.gmra.mrb[0].mxu0 %v3080
        %v3142 = vpop.f32.mrb[0].mxu0
        %v3143 = vadd.f32 0.0, %v3142
        %v3144 = vpop.f32.mrb[0].mxu0
        %v3145 = vpop.f32.mrb[0].mxu0
        %v3146 = vadd.f32 0.0, %v3145
        %v3147 = vpop.f32.mrb[0].mxu0
        %3148 = vmatprep.mubr.bf16.mxu0 0
        %3149 = vmatmul.mubr.bf16.gmra.mrb[0].mxu0 %v3083
        %v3150 = vpop.f32.mrb[0].mxu0
        %v3151 = vadd.f32 0.0, %v3150
        %v3152 = vpop.f32.mrb[0].mxu0
        %v3153 = vpop.f32.mrb[0].mxu0
        %v3154 = vadd.f32 0.0, %v3153
        %v3155 = vpop.f32.mrb[0].mxu0
        %3156 = vmatprep.mubr.bf16.mxu0 0
        %3157 = vmatmul.mubr.bf16.gmra.mrb[0].mxu0 %v3086
        %v3158 = vpop.f32.mrb[0].mxu0
        %v3159 = vadd.f32 0.0, %v3158
        %v3160 = vpop.f32.mrb[0].mxu0
        %v3161 = vpop.f32.mrb[0].mxu0
        %v3162 = vadd.f32 0.0, %v3161
        %v3163 = vpop.f32.mrb[0].mxu0
        %3164 = vdwg.mxu0
        %v3165 = vlaneseq
        %v3166 = vshrl.u32 %v3165, 7
        %v3167 = vadd.s32 %v3166, 8
        %v3168 = vadd.s32 %v3166, 16
        %v3169 = vadd.s32 %v3166, 24
        %v3170 = vadd.s32 %v3166, 32
        %v3171 = vadd.s32 %v3166, 40
        %v3172 = vadd.s32 %v3166, 48
        %v3173 = vadd.s32 %v3166, 56
        %v3174 = vlaneseq
        %v3175 = vand.u32 %v3174, 127
        %vm3176 = vcmp.le.s32.totalorder %v3175, %v3166
        %vm3177 = vcmp.le.s32.totalorder %v3175, %v3167
        %vm3178 = vcmp.le.s32.totalorder %v3175, %v3168
        %vm3179 = vcmp.le.s32.totalorder %v3175, %v3169
        %vm3180 = vcmp.le.s32.totalorder %v3175, %v3170
        %vm3181 = vcmp.le.s32.totalorder %v3175, %v3171
        %vm3182 = vcmp.le.s32.totalorder %v3175, %v3172
        %vm3183 = vcmp.le.s32.totalorder %v3175, %v3173
        %v3184 = vsel %vm3176, 1, 0
        %v3185 = vsel %vm3177, 1, 0
        %v3186 = vsel %vm3178, 1, 0
        %v3187 = vsel %vm3179, 1, 0
        %v3188 = vsel %vm3180, 1, 0
        %v3189 = vsel %vm3181, 1, 0
        %v3190 = vsel %vm3182, 1, 0
        %v3191 = vsel %vm3183, 1, 0
        %vm3192 = vcmp.eq.s32.totalorder %v3184, 1
        %vm3193 = vcmp.eq.s32.totalorder %v3185, 1
        %vm3194 = vcmp.eq.s32.totalorder %v3186, 1
        %vm3195 = vcmp.eq.s32.totalorder %v3187, 1
        %vm3196 = vcmp.eq.s32.totalorder %v3188, 1
        %vm3197 = vcmp.eq.s32.totalorder %v3189, 1
        %vm3198 = vcmp.eq.s32.totalorder %v3190, 1
        %vm3199 = vcmp.eq.s32.totalorder %v3191, 1
        %v3200 = vsel %vm3192, %v2748, -1e+30
        %v3201 = vsel %vm3193, %v2751, -1e+30
        %v3202 = vsel %vm3194, %v2756, -1e+30
        %v3203 = vsel %vm3195, %v2759, -1e+30
        %v3204 = vsel %vm3196, %v2764, -1e+30
        %v3205 = vsel %vm3197, %v2767, -1e+30
        %v3206 = vsel %vm3198, %v2772, -1e+30
        %v3207 = vsel %vm3199, %v2775, -1e+30
        %v3208 = vsel %vm3192, %v2877, -1e+30
        %v3209 = vsel %vm3193, %v2880, -1e+30
        %v3210 = vsel %vm3194, %v2885, -1e+30
        %v3211 = vsel %vm3195, %v2888, -1e+30
        %v3212 = vsel %vm3196, %v2893, -1e+30
        %v3213 = vsel %vm3197, %v2896, -1e+30
        %v3214 = vsel %vm3198, %v2901, -1e+30
        %v3215 = vsel %vm3199, %v2904, -1e+30
        %v3216 = vsel %vm3192, %v3006, -1e+30
        %v3217 = vsel %vm3193, %v3009, -1e+30
        %v3218 = vsel %vm3194, %v3014, -1e+30
        %v3219 = vsel %vm3195, %v3017, -1e+30
        %v3220 = vsel %vm3196, %v3022, -1e+30
        %v3221 = vsel %vm3197, %v3025, -1e+30
        %v3222 = vsel %vm3198, %v3030, -1e+30
        %v3223 = vsel %vm3199, %v3033, -1e+30
        %v3224 = vsel %vm3192, %v3135, -1e+30
        %v3225 = vsel %vm3193, %v3138, -1e+30
        %v3226 = vsel %vm3194, %v3143, -1e+30
        %v3227 = vsel %vm3195, %v3146, -1e+30
        %v3228 = vsel %vm3196, %v3151, -1e+30
        %v3229 = vsel %vm3197, %v3154, -1e+30
        %v3230 = vsel %vm3198, %v3159, -1e+30
        %v3231 = vsel %vm3199, %v3162, -1e+30
        %v3232 = vld [vmem:[#allocation2] sm:$0xff]
        %v3233 = vld [vmem:[#allocation2 + $0x8] sm:$0xff]
        %v3234 = vld [vmem:[#allocation2 + $0x10] sm:$0xff]
        %v3235 = vld [vmem:[#allocation2 + $0x18] sm:$0xff]
        %v3236 = vld [vmem:[#allocation2 + $0x20] sm:$0xff]
        %v3237 = vld [vmem:[#allocation2 + $0x28] sm:$0xff]
        %v3238 = vld [vmem:[#allocation2 + $0x30] sm:$0xff]
        %v3239 = vld [vmem:[#allocation2 + $0x38] sm:$0xff]
        %v3240 = vld [vmem:[#allocation2 + $0x40] sm:$0xff]
        %v3241 = vld [vmem:[#allocation2 + $0x48] sm:$0xff]
        %v3242 = vld [vmem:[#allocation2 + $0x50] sm:$0xff]
        %v3243 = vld [vmem:[#allocation2 + $0x58] sm:$0xff]
        %v3244 = vld [vmem:[#allocation2 + $0x60] sm:$0xff]
        %v3245 = vld [vmem:[#allocation2 + $0x68] sm:$0xff]
        %v3246 = vld [vmem:[#allocation2 + $0x70] sm:$0xff]
        %v3247 = vld [vmem:[#allocation2 + $0x78] sm:$0xff]
        %v3248 = vld [vmem:[#allocation2 + $0x80] sm:$0xff]
        %v3249 = vld [vmem:[#allocation2 + $0x88] sm:$0xff]
        %v3250 = vld [vmem:[#allocation2 + $0x90] sm:$0xff]
        %v3251 = vld [vmem:[#allocation2 + $0x98] sm:$0xff]
        %v3252 = vld [vmem:[#allocation2 + $0xa0] sm:$0xff]
        %v3253 = vld [vmem:[#allocation2 + $0xa8] sm:$0xff]
        %v3254 = vld [vmem:[#allocation2 + $0xb0] sm:$0xff]
        %v3255 = vld [vmem:[#allocation2 + $0xb8] sm:$0xff]
        %v3256 = vld [vmem:[#allocation2 + $0xc0] sm:$0xff]
        %v3257 = vld [vmem:[#allocation2 + $0xc8] sm:$0xff]
        %v3258 = vld [vmem:[#allocation2 + $0xd0] sm:$0xff]
        %v3259 = vld [vmem:[#allocation2 + $0xd8] sm:$0xff]
        %v3260 = vld [vmem:[#allocation2 + $0xe0] sm:$0xff]
        %v3261 = vld [vmem:[#allocation2 + $0xe8] sm:$0xff]
        %v3262 = vld [vmem:[#allocation2 + $0xf0] sm:$0xff]
        %v3263 = vld [vmem:[#allocation2 + $0xf8] sm:$0xff]
        %vm3264 = vcmask 523264
        %v3265 = vsel %vm3264, %v3200, -inf
        %3266 = vmax.xlane.f32.xlu0 %v3265
        %v3267 = vpop.xlane.xlu0 %3266
        %v3268 = vsel %vm3264, %v3201, -inf
        %3269 = vmax.xlane.f32.xlu0 %v3268
        %v3270 = vpop.xlane.xlu0 %3269
        %v3271 = vsel %vm3264, %v3202, -inf
        %3272 = vmax.xlane.f32.xlu0 %v3271
        %v3273 = vpop.xlane.xlu0 %3272
        %v3274 = vsel %vm3264, %v3203, -inf
        %3275 = vmax.xlane.f32.xlu0 %v3274
        %v3276 = vpop.xlane.xlu0 %3275
        %v3277 = vsel %vm3264, %v3204, -inf
        %3278 = vmax.xlane.f32.xlu0 %v3277
        %v3279 = vpop.xlane.xlu0 %3278
        %v3280 = vsel %vm3264, %v3205, -inf
        %3281 = vmax.xlane.f32.xlu0 %v3280
        %v3282 = vpop.xlane.xlu0 %3281
        %v3283 = vsel %vm3264, %v3206, -inf
        %3284 = vmax.xlane.f32.xlu0 %v3283
        %v3285 = vpop.xlane.xlu0 %3284
        %v3286 = vsel %vm3264, %v3207, -inf
        %3287 = vmax.xlane.f32.xlu0 %v3286
        %v3288 = vpop.xlane.xlu0 %3287
        %v3289 = vsel %vm3264, %v3208, -inf
        %3290 = vmax.xlane.f32.xlu0 %v3289
        %v3291 = vpop.xlane.xlu0 %3290
        %v3292 = vsel %vm3264, %v3209, -inf
        %3293 = vmax.xlane.f32.xlu0 %v3292
        %v3294 = vpop.xlane.xlu0 %3293
        %v3295 = vsel %vm3264, %v3210, -inf
        %3296 = vmax.xlane.f32.xlu0 %v3295
        %v3297 = vpop.xlane.xlu0 %3296
        %v3298 = vsel %vm3264, %v3211, -inf
        %3299 = vmax.xlane.f32.xlu0 %v3298
        %v3300 = vpop.xlane.xlu0 %3299
        %v3301 = vsel %vm3264, %v3212, -inf
        %3302 = vmax.xlane.f32.xlu0 %v3301
        %v3303 = vpop.xlane.xlu0 %3302
        %v3304 = vsel %vm3264, %v3213, -inf
        %3305 = vmax.xlane.f32.xlu0 %v3304
        %v3306 = vpop.xlane.xlu0 %3305
        %v3307 = vsel %vm3264, %v3214, -inf
        %3308 = vmax.xlane.f32.xlu0 %v3307
        %v3309 = vpop.xlane.xlu0 %3308
        %v3310 = vsel %vm3264, %v3215, -inf
        %3311 = vmax.xlane.f32.xlu0 %v3310
        %v3312 = vpop.xlane.xlu0 %3311
        %v3313 = vsel %vm3264, %v3216, -inf
        %3314 = vmax.xlane.f32.xlu0 %v3313
        %v3315 = vpop.xlane.xlu0 %3314
        %v3316 = vsel %vm3264, %v3217, -inf
        %3317 = vmax.xlane.f32.xlu0 %v3316
        %v3318 = vpop.xlane.xlu0 %3317
        %v3319 = vsel %vm3264, %v3218, -inf
        %3320 = vmax.xlane.f32.xlu0 %v3319
        %v3321 = vpop.xlane.xlu0 %3320
        %v3322 = vsel %vm3264, %v3219, -inf
        %3323 = vmax.xlane.f32.xlu0 %v3322
        %v3324 = vpop.xlane.xlu0 %3323
        %v3325 = vsel %vm3264, %v3220, -inf
        %3326 = vmax.xlane.f32.xlu0 %v3325
        %v3327 = vpop.xlane.xlu0 %3326
        %v3328 = vsel %vm3264, %v3221, -inf
        %3329 = vmax.xlane.f32.xlu0 %v3328
        %v3330 = vpop.xlane.xlu0 %3329
        %v3331 = vsel %vm3264, %v3222, -inf
        %3332 = vmax.xlane.f32.xlu0 %v3331
        %v3333 = vpop.xlane.xlu0 %3332
        %v3334 = vsel %vm3264, %v3223, -inf
        %3335 = vmax.xlane.f32.xlu0 %v3334
        %v3336 = vpop.xlane.xlu0 %3335
        %v3337 = vsel %vm3264, %v3224, -inf
        %3338 = vmax.xlane.f32.xlu0 %v3337
        %v3339 = vpop.xlane.xlu0 %3338
        %v3340 = vsel %vm3264, %v3225, -inf
        %3341 = vmax.xlane.f32.xlu0 %v3340
        %v3342 = vpop.xlane.xlu0 %3341
        %v3343 = vsel %vm3264, %v3226, -inf
        %3344 = vmax.xlane.f32.xlu0 %v3343
        %v3345 = vpop.xlane.xlu0 %3344
        %v3346 = vsel %vm3264, %v3227, -inf
        %3347 = vmax.xlane.f32.xlu0 %v3346
        %v3348 = vpop.xlane.xlu0 %3347
        %v3349 = vsel %vm3264, %v3228, -inf
        %3350 = vmax.xlane.f32.xlu0 %v3349
        %v3351 = vpop.xlane.xlu0 %3350
        %v3352 = vsel %vm3264, %v3229, -inf
        %3353 = vmax.xlane.f32.xlu0 %v3352
        %v3354 = vpop.xlane.xlu0 %3353
        %v3355 = vsel %vm3264, %v3230, -inf
        %3356 = vmax.xlane.f32.xlu0 %v3355
        %v3357 = vpop.xlane.xlu0 %3356
        %v3358 = vsel %vm3264, %v3231, -inf
        %3359 = vmax.xlane.f32.xlu0 %v3358
        %v3360 = vpop.xlane.xlu0 %3359
        %v3361 = vmax.f32 %v3232, %v3267
        %v3362 = vmax.f32 %v3233, %v3270
        %v3363 = vmax.f32 %v3234, %v3273
        %v3364 = vmax.f32 %v3235, %v3276
        %v3365 = vmax.f32 %v3236, %v3279
        %v3366 = vmax.f32 %v3237, %v3282
        %v3367 = vmax.f32 %v3238, %v3285
        %v3368 = vmax.f32 %v3239, %v3288
        %v3369 = vmax.f32 %v3240, %v3291
        %v3370 = vmax.f32 %v3241, %v3294
        %v3371 = vmax.f32 %v3242, %v3297
        %v3372 = vmax.f32 %v3243, %v3300
        %v3373 = vmax.f32 %v3244, %v3303
        %v3374 = vmax.f32 %v3245, %v3306
        %v3375 = vmax.f32 %v3246, %v3309
        %v3376 = vmax.f32 %v3247, %v3312
        %v3377 = vmax.f32 %v3248, %v3315
        %v3378 = vmax.f32 %v3249, %v3318
        %v3379 = vmax.f32 %v3250, %v3321
        %v3380 = vmax.f32 %v3251, %v3324
        %v3381 = vmax.f32 %v3252, %v3327
        %v3382 = vmax.f32 %v3253, %v3330
        %v3383 = vmax.f32 %v3254, %v3333
        %v3384 = vmax.f32 %v3255, %v3336
        %v3385 = vmax.f32 %v3256, %v3339
        %v3386 = vmax.f32 %v3257, %v3342
        %v3387 = vmax.f32 %v3258, %v3345
        %v3388 = vmax.f32 %v3259, %v3348
        %v3389 = vmax.f32 %v3260, %v3351
        %v3390 = vmax.f32 %v3261, %v3354
        %v3391 = vmax.f32 %v3262, %v3357
        %v3392 = vmax.f32 %v3263, %v3360
        %v3393 = vsub.f32 %v3232, %v3361
        %v3394 = vsub.f32 %v3233, %v3362
        %v3395 = vsub.f32 %v3234, %v3363
        %v3396 = vsub.f32 %v3235, %v3364
        %v3397 = vsub.f32 %v3236, %v3365
        %v3398 = vsub.f32 %v3237, %v3366
        %v3399 = vsub.f32 %v3238, %v3367
        %v3400 = vsub.f32 %v3239, %v3368
        %v3401 = vsub.f32 %v3240, %v3369
        %v3402 = vsub.f32 %v3241, %v3370
        %v3403 = vsub.f32 %v3242, %v3371
        %v3404 = vsub.f32 %v3243, %v3372
        %v3405 = vsub.f32 %v3244, %v3373
        %v3406 = vsub.f32 %v3245, %v3374
        %v3407 = vsub.f32 %v3246, %v3375
        %v3408 = vsub.f32 %v3247, %v3376
        %v3409 = vsub.f32 %v3248, %v3377
        %v3410 = vsub.f32 %v3249, %v3378
        %v3411 = vsub.f32 %v3250, %v3379
        %v3412 = vsub.f32 %v3251, %v3380
        %v3413 = vsub.f32 %v3252, %v3381
        %v3414 = vsub.f32 %v3253, %v3382
        %v3415 = vsub.f32 %v3254, %v3383
        %v3416 = vsub.f32 %v3255, %v3384
        %v3417 = vsub.f32 %v3256, %v3385
        %v3418 = vsub.f32 %v3257, %v3386
        %v3419 = vsub.f32 %v3258, %v3387
        %v3420 = vsub.f32 %v3259, %v3388
        %v3421 = vsub.f32 %v3260, %v3389
        %v3422 = vsub.f32 %v3261, %v3390
        %v3423 = vsub.f32 %v3262, %v3391
        %v3424 = vsub.f32 %v3263, %v3392
        %v3425 = vmul.f32 %v3393, 1.442695
        %v3426 = vpow.pop %v3425
        %v3427 = vmul.f32 %v3394, 1.442695
        %v3428 = vpow.pop %v3427
        %v3429 = vmul.f32 %v3395, 1.442695
        %v3430 = vpow.pop %v3429
        %v3431 = vmul.f32 %v3396, 1.442695
        %v3432 = vpow.pop %v3431
        %v3433 = vmul.f32 %v3397, 1.442695
        %v3434 = vpow.pop %v3433
        %v3435 = vmul.f32 %v3398, 1.442695
        %v3436 = vpow.pop %v3435
        %v3437 = vmul.f32 %v3399, 1.442695
        %v3438 = vpow.pop %v3437
        %v3439 = vmul.f32 %v3400, 1.442695
        %v3440 = vpow.pop %v3439
        %v3441 = vmul.f32 %v3401, 1.442695
        %v3442 = vpow.pop %v3441
        %v3443 = vmul.f32 %v3402, 1.442695
        %v3444 = vpow.pop %v3443
        %v3445 = vmul.f32 %v3403, 1.442695
        %v3446 = vpow.pop %v3445
        %v3447 = vmul.f32 %v3404, 1.442695
        %v3448 = vpow.pop %v3447
        %v3449 = vmul.f32 %v3405, 1.442695
        %v3450 = vpow.pop %v3449
        %v3451 = vmul.f32 %v3406, 1.442695
        %v3452 = vpow.pop %v3451
        %v3453 = vmul.f32 %v3407, 1.442695
        %v3454 = vpow.pop %v3453
        %v3455 = vmul.f32 %v3408, 1.442695
        %v3456 = vpow.pop %v3455
        %v3457 = vmul.f32 %v3409, 1.442695
        %v3458 = vpow.pop %v3457
        %v3459 = vmul.f32 %v3410, 1.442695
        %v3460 = vpow.pop %v3459
        %v3461 = vmul.f32 %v3411, 1.442695
        %v3462 = vpow.pop %v3461
        %v3463 = vmul.f32 %v3412, 1.442695
        %v3464 = vpow.pop %v3463
        %v3465 = vmul.f32 %v3413, 1.442695
        %v3466 = vpow.pop %v3465
        %v3467 = vmul.f32 %v3414, 1.442695
        %v3468 = vpow.pop %v3467
        %v3469 = vmul.f32 %v3415, 1.442695
        %v3470 = vpow.pop %v3469
        %v3471 = vmul.f32 %v3416, 1.442695
        %v3472 = vpow.pop %v3471
        %v3473 = vmul.f32 %v3417, 1.442695
        %v3474 = vpow.pop %v3473
        %v3475 = vmul.f32 %v3418, 1.442695
        %v3476 = vpow.pop %v3475
        %v3477 = vmul.f32 %v3419, 1.442695
        %v3478 = vpow.pop %v3477
        %v3479 = vmul.f32 %v3420, 1.442695
        %v3480 = vpow.pop %v3479
        %v3481 = vmul.f32 %v3421, 1.442695
        %v3482 = vpow.pop %v3481
        %v3483 = vmul.f32 %v3422, 1.442695
        %v3484 = vpow.pop %v3483
        %v3485 = vmul.f32 %v3423, 1.442695
        %v3486 = vpow.pop %v3485
        %v3487 = vmul.f32 %v3424, 1.442695
        %v3488 = vpow.pop %v3487
        %3490 = vset.pattern.permute.xlu0 0
        %3491 = vperm.xlu0 %3490, %v3361
        %v3492 = vpop.permute.xlu0 %3491
        %3495 = vset.pattern.permute.xlu0 0
        %3496 = vperm.xlu0 %3495, %v3362
        %v3497 = vpop.permute.xlu0 %3496
        %3500 = vset.pattern.permute.xlu0 0
        %3501 = vperm.xlu0 %3500, %v3363
        %v3502 = vpop.permute.xlu0 %3501
        %3505 = vset.pattern.permute.xlu0 0
        %3506 = vperm.xlu0 %3505, %v3364
        %v3507 = vpop.permute.xlu0 %3506
        %3510 = vset.pattern.permute.xlu0 0
        %3511 = vperm.xlu0 %3510, %v3365
        %v3512 = vpop.permute.xlu0 %3511
        %3515 = vset.pattern.permute.xlu0 0
        %3516 = vperm.xlu0 %3515, %v3366
        %v3517 = vpop.permute.xlu0 %3516
        %3520 = vset.pattern.permute.xlu0 0
        %3521 = vperm.xlu0 %3520, %v3367
        %v3522 = vpop.permute.xlu0 %3521
        %3525 = vset.pattern.permute.xlu0 0
        %3526 = vperm.xlu0 %3525, %v3368
        %v3527 = vpop.permute.xlu0 %3526
        %3530 = vset.pattern.permute.xlu0 0
        %3531 = vperm.xlu0 %3530, %v3369
        %v3532 = vpop.permute.xlu0 %3531
        %3535 = vset.pattern.permute.xlu0 0
        %3536 = vperm.xlu0 %3535, %v3370
        %v3537 = vpop.permute.xlu0 %3536
        %3540 = vset.pattern.permute.xlu0 0
        %3541 = vperm.xlu0 %3540, %v3371
        %v3542 = vpop.permute.xlu0 %3541
        %3545 = vset.pattern.permute.xlu0 0
        %3546 = vperm.xlu0 %3545, %v3372
        %v3547 = vpop.permute.xlu0 %3546
        %3550 = vset.pattern.permute.xlu0 0
        %3551 = vperm.xlu0 %3550, %v3373
        %v3552 = vpop.permute.xlu0 %3551
        %3555 = vset.pattern.permute.xlu0 0
        %3556 = vperm.xlu0 %3555, %v3374
        %v3557 = vpop.permute.xlu0 %3556
        %3560 = vset.pattern.permute.xlu0 0
        %3561 = vperm.xlu0 %3560, %v3375
        %v3562 = vpop.permute.xlu0 %3561
        %3565 = vset.pattern.permute.xlu0 0
        %3566 = vperm.xlu0 %3565, %v3376
        %v3567 = vpop.permute.xlu0 %3566
        %3570 = vset.pattern.permute.xlu0 0
        %3571 = vperm.xlu0 %3570, %v3377
        %v3572 = vpop.permute.xlu0 %3571
        %3575 = vset.pattern.permute.xlu0 0
        %3576 = vperm.xlu0 %3575, %v3378
        %v3577 = vpop.permute.xlu0 %3576
        %3580 = vset.pattern.permute.xlu0 0
        %3581 = vperm.xlu0 %3580, %v3379
        %v3582 = vpop.permute.xlu0 %3581
        %3585 = vset.pattern.permute.xlu0 0
        %3586 = vperm.xlu0 %3585, %v3380
        %v3587 = vpop.permute.xlu0 %3586
        %3590 = vset.pattern.permute.xlu0 0
        %3591 = vperm.xlu0 %3590, %v3381
        %v3592 = vpop.permute.xlu0 %3591
        %3595 = vset.pattern.permute.xlu0 0
        %3596 = vperm.xlu0 %3595, %v3382
        %v3597 = vpop.permute.xlu0 %3596
        %3600 = vset.pattern.permute.xlu0 0
        %3601 = vperm.xlu0 %3600, %v3383
        %v3602 = vpop.permute.xlu0 %3601
        %3605 = vset.pattern.permute.xlu0 0
        %3606 = vperm.xlu0 %3605, %v3384
        %v3607 = vpop.permute.xlu0 %3606
        %3610 = vset.pattern.permute.xlu0 0
        %3611 = vperm.xlu0 %3610, %v3385
        %v3612 = vpop.permute.xlu0 %3611
        %3615 = vset.pattern.permute.xlu0 0
        %3616 = vperm.xlu0 %3615, %v3386
        %v3617 = vpop.permute.xlu0 %3616
        %3620 = vset.pattern.permute.xlu0 0
        %3621 = vperm.xlu0 %3620, %v3387
        %v3622 = vpop.permute.xlu0 %3621
        %3625 = vset.pattern.permute.xlu0 0
        %3626 = vperm.xlu0 %3625, %v3388
        %v3627 = vpop.permute.xlu0 %3626
        %3630 = vset.pattern.permute.xlu0 0
        %3631 = vperm.xlu0 %3630, %v3389
        %v3632 = vpop.permute.xlu0 %3631
        %3635 = vset.pattern.permute.xlu0 0
        %3636 = vperm.xlu0 %3635, %v3390
        %v3637 = vpop.permute.xlu0 %3636
        %3640 = vset.pattern.permute.xlu0 0
        %3641 = vperm.xlu0 %3640, %v3391
        %v3642 = vpop.permute.xlu0 %3641
        %3645 = vset.pattern.permute.xlu0 0
        %3646 = vperm.xlu0 %3645, %v3392
        %v3647 = vpop.permute.xlu0 %3646
        %v3649 = vsub.f32 %v3200, %v3492
        %v3650 = vsub.f32 %v3201, %v3497
        %v3651 = vsub.f32 %v3202, %v3502
        %v3652 = vsub.f32 %v3203, %v3507
        %v3653 = vsub.f32 %v3204, %v3512
        %v3654 = vsub.f32 %v3205, %v3517
        %v3655 = vsub.f32 %v3206, %v3522
        %v3656 = vsub.f32 %v3207, %v3527
        %v3657 = vsub.f32 %v3208, %v3532
        %v3658 = vsub.f32 %v3209, %v3537
        %v3659 = vsub.f32 %v3210, %v3542
        %v3660 = vsub.f32 %v3211, %v3547
        %v3661 = vsub.f32 %v3212, %v3552
        %v3662 = vsub.f32 %v3213, %v3557
        %v3663 = vsub.f32 %v3214, %v3562
        %v3664 = vsub.f32 %v3215, %v3567
        %v3665 = vsub.f32 %v3216, %v3572
        %v3666 = vsub.f32 %v3217, %v3577
        %v3667 = vsub.f32 %v3218, %v3582
        %v3668 = vsub.f32 %v3219, %v3587
        %v3669 = vsub.f32 %v3220, %v3592
        %v3670 = vsub.f32 %v3221, %v3597
        %v3671 = vsub.f32 %v3222, %v3602
        %v3672 = vsub.f32 %v3223, %v3607
        %v3673 = vsub.f32 %v3224, %v3612
        %v3674 = vsub.f32 %v3225, %v3617
        %v3675 = vsub.f32 %v3226, %v3622
        %v3676 = vsub.f32 %v3227, %v3627
        %v3677 = vsub.f32 %v3228, %v3632
        %v3678 = vsub.f32 %v3229, %v3637
        %v3679 = vsub.f32 %v3230, %v3642
        %v3680 = vsub.f32 %v3231, %v3647
        %v3681 = vmul.f32 %v3649, 1.442695
        %v3682 = vpow.pop %v3681
        %v3683 = vmul.f32 %v3650, 1.442695
        %v3684 = vpow.pop %v3683
        %v3685 = vmul.f32 %v3651, 1.442695
        %v3686 = vpow.pop %v3685
        %v3687 = vmul.f32 %v3652, 1.442695
        %v3688 = vpow.pop %v3687
        %v3689 = vmul.f32 %v3653, 1.442695
        %v3690 = vpow.pop %v3689
        %v3691 = vmul.f32 %v3654, 1.442695
        %v3692 = vpow.pop %v3691
        %v3693 = vmul.f32 %v3655, 1.442695
        %v3694 = vpow.pop %v3693
        %v3695 = vmul.f32 %v3656, 1.442695
        %v3696 = vpow.pop %v3695
        %v3697 = vmul.f32 %v3657, 1.442695
        %v3698 = vpow.pop %v3697
        %v3699 = vmul.f32 %v3658, 1.442695
        %v3700 = vpow.pop %v3699
        %v3701 = vmul.f32 %v3659, 1.442695
        %v3702 = vpow.pop %v3701
        %v3703 = vmul.f32 %v3660, 1.442695
        %v3704 = vpow.pop %v3703
        %v3705 = vmul.f32 %v3661, 1.442695
        %v3706 = vpow.pop %v3705
        %v3707 = vmul.f32 %v3662, 1.442695
        %v3708 = vpow.pop %v3707
        %v3709 = vmul.f32 %v3663, 1.442695
        %v3710 = vpow.pop %v3709
        %v3711 = vmul.f32 %v3664, 1.442695
        %v3712 = vpow.pop %v3711
        %v3713 = vmul.f32 %v3665, 1.442695
        %v3714 = vpow.pop %v3713
        %v3715 = vmul.f32 %v3666, 1.442695
        %v3716 = vpow.pop %v3715
        %v3717 = vmul.f32 %v3667, 1.442695
        %v3718 = vpow.pop %v3717
        %v3719 = vmul.f32 %v3668, 1.442695
        %v3720 = vpow.pop %v3719
        %v3721 = vmul.f32 %v3669, 1.442695
        %v3722 = vpow.pop %v3721
        %v3723 = vmul.f32 %v3670, 1.442695
        %v3724 = vpow.pop %v3723
        %v3725 = vmul.f32 %v3671, 1.442695
        %v3726 = vpow.pop %v3725
        %v3727 = vmul.f32 %v3672, 1.442695
        %v3728 = vpow.pop %v3727
        %v3729 = vmul.f32 %v3673, 1.442695
        %v3730 = vpow.pop %v3729
        %v3731 = vmul.f32 %v3674, 1.442695
        %v3732 = vpow.pop %v3731
        %v3733 = vmul.f32 %v3675, 1.442695
        %v3734 = vpow.pop %v3733
        %v3735 = vmul.f32 %v3676, 1.442695
        %v3736 = vpow.pop %v3735
        %v3737 = vmul.f32 %v3677, 1.442695
        %v3738 = vpow.pop %v3737
        %v3739 = vmul.f32 %v3678, 1.442695
        %v3740 = vpow.pop %v3739
        %v3741 = vmul.f32 %v3679, 1.442695
        %v3742 = vpow.pop %v3741
        %v3743 = vmul.f32 %v3680, 1.442695
        %v3744 = vpow.pop %v3743
        %v3745 = vld [vmem:[#allocation3] sm:$0xff]
        %v3746 = vld [vmem:[#allocation3 + $0x8] sm:$0xff]
        %v3747 = vld [vmem:[#allocation3 + $0x10] sm:$0xff]
        %v3748 = vld [vmem:[#allocation3 + $0x18] sm:$0xff]
        %v3749 = vld [vmem:[#allocation3 + $0x20] sm:$0xff]
        %v3750 = vld [vmem:[#allocation3 + $0x28] sm:$0xff]
        %v3751 = vld [vmem:[#allocation3 + $0x30] sm:$0xff]
        %v3752 = vld [vmem:[#allocation3 + $0x38] sm:$0xff]
        %v3753 = vld [vmem:[#allocation3 + $0x40] sm:$0xff]
        %v3754 = vld [vmem:[#allocation3 + $0x48] sm:$0xff]
        %v3755 = vld [vmem:[#allocation3 + $0x50] sm:$0xff]
        %v3756 = vld [vmem:[#allocation3 + $0x58] sm:$0xff]
        %v3757 = vld [vmem:[#allocation3 + $0x60] sm:$0xff]
        %v3758 = vld [vmem:[#allocation3 + $0x68] sm:$0xff]
        %v3759 = vld [vmem:[#allocation3 + $0x70] sm:$0xff]
        %v3760 = vld [vmem:[#allocation3 + $0x78] sm:$0xff]
        %v3761 = vld [vmem:[#allocation3 + $0x80] sm:$0xff]
        %v3762 = vld [vmem:[#allocation3 + $0x88] sm:$0xff]
        %v3763 = vld [vmem:[#allocation3 + $0x90] sm:$0xff]
        %v3764 = vld [vmem:[#allocation3 + $0x98] sm:$0xff]
        %v3765 = vld [vmem:[#allocation3 + $0xa0] sm:$0xff]
        %v3766 = vld [vmem:[#allocation3 + $0xa8] sm:$0xff]
        %v3767 = vld [vmem:[#allocation3 + $0xb0] sm:$0xff]
        %v3768 = vld [vmem:[#allocation3 + $0xb8] sm:$0xff]
        %v3769 = vld [vmem:[#allocation3 + $0xc0] sm:$0xff]
        %v3770 = vld [vmem:[#allocation3 + $0xc8] sm:$0xff]
        %v3771 = vld [vmem:[#allocation3 + $0xd0] sm:$0xff]
        %v3772 = vld [vmem:[#allocation3 + $0xd8] sm:$0xff]
        %v3773 = vld [vmem:[#allocation3 + $0xe0] sm:$0xff]
        %v3774 = vld [vmem:[#allocation3 + $0xe8] sm:$0xff]
        %v3775 = vld [vmem:[#allocation3 + $0xf0] sm:$0xff]
        %v3776 = vld [vmem:[#allocation3 + $0xf8] sm:$0xff]
        %v3777 = vmul.f32 %v3426, %v3745
        %v3778 = vmul.f32 %v3428, %v3746
        %v3779 = vmul.f32 %v3430, %v3747
        %v3780 = vmul.f32 %v3432, %v3748
        %v3781 = vmul.f32 %v3434, %v3749
        %v3782 = vmul.f32 %v3436, %v3750
        %v3783 = vmul.f32 %v3438, %v3751
        %v3784 = vmul.f32 %v3440, %v3752
        %v3785 = vmul.f32 %v3442, %v3753
        %v3786 = vmul.f32 %v3444, %v3754
        %v3787 = vmul.f32 %v3446, %v3755
        %v3788 = vmul.f32 %v3448, %v3756
        %v3789 = vmul.f32 %v3450, %v3757
        %v3790 = vmul.f32 %v3452, %v3758
        %v3791 = vmul.f32 %v3454, %v3759
        %v3792 = vmul.f32 %v3456, %v3760
        %v3793 = vmul.f32 %v3458, %v3761
        %v3794 = vmul.f32 %v3460, %v3762
        %v3795 = vmul.f32 %v3462, %v3763
        %v3796 = vmul.f32 %v3464, %v3764
        %v3797 = vmul.f32 %v3466, %v3765
        %v3798 = vmul.f32 %v3468, %v3766
        %v3799 = vmul.f32 %v3470, %v3767
        %v3800 = vmul.f32 %v3472, %v3768
        %v3801 = vmul.f32 %v3474, %v3769
        %v3802 = vmul.f32 %v3476, %v3770
        %v3803 = vmul.f32 %v3478, %v3771
        %v3804 = vmul.f32 %v3480, %v3772
        %v3805 = vmul.f32 %v3482, %v3773
        %v3806 = vmul.f32 %v3484, %v3774
        %v3807 = vmul.f32 %v3486, %v3775
        %v3808 = vmul.f32 %v3488, %v3776
        %v3809 = vsel %vm3264, %v3682, 0.0
        %3810 = vadd.xlane.f32.xlu0 %v3809
        %v3811 = vpop.xlane.xlu0 %3810
        %v3812 = vsel %vm3264, %v3684, 0.0
        %3813 = vadd.xlane.f32.xlu0 %v3812
        %v3814 = vpop.xlane.xlu0 %3813
        %v3815 = vsel %vm3264, %v3686, 0.0
        %3816 = vadd.xlane.f32.xlu0 %v3815
        %v3817 = vpop.xlane.xlu0 %3816
        %v3818 = vsel %vm3264, %v3688, 0.0
        %3819 = vadd.xlane.f32.xlu0 %v3818
        %v3820 = vpop.xlane.xlu0 %3819
        %v3821 = vsel %vm3264, %v3690, 0.0
        %3822 = vadd.xlane.f32.xlu0 %v3821
        %v3823 = vpop.xlane.xlu0 %3822
        %v3824 = vsel %vm3264, %v3692, 0.0
        %3825 = vadd.xlane.f32.xlu0 %v3824
        %v3826 = vpop.xlane.xlu0 %3825
        %v3827 = vsel %vm3264, %v3694, 0.0
        %3828 = vadd.xlane.f32.xlu0 %v3827
        %v3829 = vpop.xlane.xlu0 %3828
        %v3830 = vsel %vm3264, %v3696, 0.0
        %3831 = vadd.xlane.f32.xlu0 %v3830
        %v3832 = vpop.xlane.xlu0 %3831
        %v3833 = vsel %vm3264, %v3698, 0.0
        %3834 = vadd.xlane.f32.xlu0 %v3833
        %v3835 = vpop.xlane.xlu0 %3834
        %v3836 = vsel %vm3264, %v3700, 0.0
        %3837 = vadd.xlane.f32.xlu0 %v3836
        %v3838 = vpop.xlane.xlu0 %3837
        %v3839 = vsel %vm3264, %v3702, 0.0
        %3840 = vadd.xlane.f32.xlu0 %v3839
        %v3841 = vpop.xlane.xlu0 %3840
        %v3842 = vsel %vm3264, %v3704, 0.0
        %3843 = vadd.xlane.f32.xlu0 %v3842
        %v3844 = vpop.xlane.xlu0 %3843
        %v3845 = vsel %vm3264, %v3706, 0.0
        %3846 = vadd.xlane.f32.xlu0 %v3845
        %v3847 = vpop.xlane.xlu0 %3846
        %v3848 = vsel %vm3264, %v3708, 0.0
        %3849 = vadd.xlane.f32.xlu0 %v3848
        %v3850 = vpop.xlane.xlu0 %3849
        %v3851 = vsel %vm3264, %v3710, 0.0
        %3852 = vadd.xlane.f32.xlu0 %v3851
        %v3853 = vpop.xlane.xlu0 %3852
        %v3854 = vsel %vm3264, %v3712, 0.0
        %3855 = vadd.xlane.f32.xlu0 %v3854
        %v3856 = vpop.xlane.xlu0 %3855
        %v3857 = vsel %vm3264, %v3714, 0.0
        %3858 = vadd.xlane.f32.xlu0 %v3857
        %v3859 = vpop.xlane.xlu0 %3858
        %v3860 = vsel %vm3264, %v3716, 0.0
        %3861 = vadd.xlane.f32.xlu0 %v3860
        %v3862 = vpop.xlane.xlu0 %3861
        %v3863 = vsel %vm3264, %v3718, 0.0
        %3864 = vadd.xlane.f32.xlu0 %v3863
        %v3865 = vpop.xlane.xlu0 %3864
        %v3866 = vsel %vm3264, %v3720, 0.0
        %3867 = vadd.xlane.f32.xlu0 %v3866
        %v3868 = vpop.xlane.xlu0 %3867
        %v3869 = vsel %vm3264, %v3722, 0.0
        %3870 = vadd.xlane.f32.xlu0 %v3869
        %v3871 = vpop.xlane.xlu0 %3870
        %v3872 = vsel %vm3264, %v3724, 0.0
        %3873 = vadd.xlane.f32.xlu0 %v3872
        %v3874 = vpop.xlane.xlu0 %3873
        %v3875 = vsel %vm3264, %v3726, 0.0
        %3876 = vadd.xlane.f32.xlu0 %v3875
        %v3877 = vpop.xlane.xlu0 %3876
        %v3878 = vsel %vm3264, %v3728, 0.0
        %3879 = vadd.xlane.f32.xlu0 %v3878
        %v3880 = vpop.xlane.xlu0 %3879
        %v3881 = vsel %vm3264, %v3730, 0.0
        %3882 = vadd.xlane.f32.xlu0 %v3881
        %v3883 = vpop.xlane.xlu0 %3882
        %v3884 = vsel %vm3264, %v3732, 0.0
        %3885 = vadd.xlane.f32.xlu0 %v3884
        %v3886 = vpop.xlane.xlu0 %3885
        %v3887 = vsel %vm3264, %v3734, 0.0
        %3888 = vadd.xlane.f32.xlu0 %v3887
        %v3889 = vpop.xlane.xlu0 %3888
        %v3890 = vsel %vm3264, %v3736, 0.0
        %3891 = vadd.xlane.f32.xlu0 %v3890
        %v3892 = vpop.xlane.xlu0 %3891
        %v3893 = vsel %vm3264, %v3738, 0.0
        %3894 = vadd.xlane.f32.xlu0 %v3893
        %v3895 = vpop.xlane.xlu0 %3894
        %v3896 = vsel %vm3264, %v3740, 0.0
        %3897 = vadd.xlane.f32.xlu0 %v3896
        %v3898 = vpop.xlane.xlu0 %3897
        %v3899 = vsel %vm3264, %v3742, 0.0
        %3900 = vadd.xlane.f32.xlu0 %v3899
        %v3901 = vpop.xlane.xlu0 %3900
        %v3902 = vsel %vm3264, %v3744, 0.0
        %3903 = vadd.xlane.f32.xlu0 %v3902
        %v3904 = vpop.xlane.xlu0 %3903
        %v3905 = vadd.f32 %v3777, %v3811
        %v3906 = vadd.f32 %v3778, %v3814
        %v3907 = vadd.f32 %v3779, %v3817
        %v3908 = vadd.f32 %v3780, %v3820
        %v3909 = vadd.f32 %v3781, %v3823
        %v3910 = vadd.f32 %v3782, %v3826
        %v3911 = vadd.f32 %v3783, %v3829
        %v3912 = vadd.f32 %v3784, %v3832
        %v3913 = vadd.f32 %v3785, %v3835
        %v3914 = vadd.f32 %v3786, %v3838
        %v3915 = vadd.f32 %v3787, %v3841
        %v3916 = vadd.f32 %v3788, %v3844
        %v3917 = vadd.f32 %v3789, %v3847
        %v3918 = vadd.f32 %v3790, %v3850
        %v3919 = vadd.f32 %v3791, %v3853
        %v3920 = vadd.f32 %v3792, %v3856
        %v3921 = vadd.f32 %v3793, %v3859
        %v3922 = vadd.f32 %v3794, %v3862
        %v3923 = vadd.f32 %v3795, %v3865
        %v3924 = vadd.f32 %v3796, %v3868
        %v3925 = vadd.f32 %v3797, %v3871
        %v3926 = vadd.f32 %v3798, %v3874
        %v3927 = vadd.f32 %v3799, %v3877
        %v3928 = vadd.f32 %v3800, %v3880
        %v3929 = vadd.f32 %v3801, %v3883
        %v3930 = vadd.f32 %v3802, %v3886
        %v3931 = vadd.f32 %v3803, %v3889
        %v3932 = vadd.f32 %v3804, %v3892
        %v3933 = vadd.f32 %v3805, %v3895
        %v3934 = vadd.f32 %v3806, %v3898
        %v3935 = vadd.f32 %v3807, %v3901
        %v3936 = vadd.f32 %v3808, %v3904
        %vm3937 = vcmask 7168
        %3938 = vst.msk [vmem:[#allocation3] sm:$0xff] %vm3937, %v3905
        %3939 = vst.msk [vmem:[#allocation3 + $0x8] sm:$0xff] %vm3937, %v3906
        %3940 = vst.msk [vmem:[#allocation3 + $0x10] sm:$0xff] %vm3937, %v3907
        %3941 = vst.msk [vmem:[#allocation3 + $0x18] sm:$0xff] %vm3937, %v3908
        %3942 = vst.msk [vmem:[#allocation3 + $0x20] sm:$0xff] %vm3937, %v3909
        %3943 = vst.msk [vmem:[#allocation3 + $0x28] sm:$0xff] %vm3937, %v3910
        %3944 = vst.msk [vmem:[#allocation3 + $0x30] sm:$0xff] %vm3937, %v3911
        %3945 = vst.msk [vmem:[#allocation3 + $0x38] sm:$0xff] %vm3937, %v3912
        %3946 = vst.msk [vmem:[#allocation3 + $0x40] sm:$0xff] %vm3937, %v3913
        %3947 = vst.msk [vmem:[#allocation3 + $0x48] sm:$0xff] %vm3937, %v3914
        %3948 = vst.msk [vmem:[#allocation3 + $0x50] sm:$0xff] %vm3937, %v3915
        %3949 = vst.msk [vmem:[#allocation3 + $0x58] sm:$0xff] %vm3937, %v3916
        %3950 = vst.msk [vmem:[#allocation3 + $0x60] sm:$0xff] %vm3937, %v3917
        %3951 = vst.msk [vmem:[#allocation3 + $0x68] sm:$0xff] %vm3937, %v3918
        %3952 = vst.msk [vmem:[#allocation3 + $0x70] sm:$0xff] %vm3937, %v3919
        %3953 = vst.msk [vmem:[#allocation3 + $0x78] sm:$0xff] %vm3937, %v3920
        %3954 = vst.msk [vmem:[#allocation3 + $0x80] sm:$0xff] %vm3937, %v3921
        %3955 = vst.msk [vmem:[#allocation3 + $0x88] sm:$0xff] %vm3937, %v3922
        %3956 = vst.msk [vmem:[#allocation3 + $0x90] sm:$0xff] %vm3937, %v3923
        %3957 = vst.msk [vmem:[#allocation3 + $0x98] sm:$0xff] %vm3937, %v3924
        %3958 = vst.msk [vmem:[#allocation3 + $0xa0] sm:$0xff] %vm3937, %v3925
        %3959 = vst.msk [vmem:[#allocation3 + $0xa8] sm:$0xff] %vm3937, %v3926
        %3960 = vst.msk [vmem:[#allocation3 + $0xb0] sm:$0xff] %vm3937, %v3927
        %3961 = vst.msk [vmem:[#allocation3 + $0xb8] sm:$0xff] %vm3937, %v3928
        %3962 = vst.msk [vmem:[#allocation3 + $0xc0] sm:$0xff] %vm3937, %v3929
        %3963 = vst.msk [vmem:[#allocation3 + $0xc8] sm:$0xff] %vm3937, %v3930
        %3964 = vst.msk [vmem:[#allocation3 + $0xd0] sm:$0xff] %vm3937, %v3931
        %3965 = vst.msk [vmem:[#allocation3 + $0xd8] sm:$0xff] %vm3937, %v3932
        %3966 = vst.msk [vmem:[#allocation3 + $0xe0] sm:$0xff] %vm3937, %v3933
        %3967 = vst.msk [vmem:[#allocation3 + $0xe8] sm:$0xff] %vm3937, %v3934
        %3968 = vst.msk [vmem:[#allocation3 + $0xf0] sm:$0xff] %vm3937, %v3935
        %3969 = vst.msk [vmem:[#allocation3 + $0xf8] sm:$0xff] %vm3937, %v3936
        %v3970 = vld [vmem:[#allocation4] sm:$0xff]
        %v3971 = vld [vmem:[#allocation4 + $0x8] sm:$0xff]
        %v3972 = vld [vmem:[#allocation4 + $0x10] sm:$0xff]
        %v3973 = vld [vmem:[#allocation4 + $0x18] sm:$0xff]
        %v3974 = vld [vmem:[#allocation4 + $0x20] sm:$0xff]
        %v3975 = vld [vmem:[#allocation4 + $0x28] sm:$0xff]
        %v3976 = vld [vmem:[#allocation4 + $0x30] sm:$0xff]
        %v3977 = vld [vmem:[#allocation4 + $0x38] sm:$0xff]
        %v3978 = vld [vmem:[#allocation4 + $0x40] sm:$0xff]
        %v3979 = vld [vmem:[#allocation4 + $0x48] sm:$0xff]
        %v3980 = vld [vmem:[#allocation4 + $0x50] sm:$0xff]
        %v3981 = vld [vmem:[#allocation4 + $0x58] sm:$0xff]
        %v3982 = vld [vmem:[#allocation4 + $0x60] sm:$0xff]
        %v3983 = vld [vmem:[#allocation4 + $0x68] sm:$0xff]
        %v3984 = vld [vmem:[#allocation4 + $0x70] sm:$0xff]
        %v3985 = vld [vmem:[#allocation4 + $0x78] sm:$0xff]
        %v3986 = vld [vmem:[#allocation4 + $0x80] sm:$0xff]
        %v3987 = vld [vmem:[#allocation4 + $0x88] sm:$0xff]
        %v3988 = vld [vmem:[#allocation4 + $0x90] sm:$0xff]
        %v3989 = vld [vmem:[#allocation4 + $0x98] sm:$0xff]
        %v3990 = vld [vmem:[#allocation4 + $0xa0] sm:$0xff]
        %v3991 = vld [vmem:[#allocation4 + $0xa8] sm:$0xff]
        %v3992 = vld [vmem:[#allocation4 + $0xb0] sm:$0xff]
        %v3993 = vld [vmem:[#allocation4 + $0xb8] sm:$0xff]
        %v3994 = vld [vmem:[#allocation4 + $0xc0] sm:$0xff]
        %v3995 = vld [vmem:[#allocation4 + $0xc8] sm:$0xff]
        %v3996 = vld [vmem:[#allocation4 + $0xd0] sm:$0xff]
        %v3997 = vld [vmem:[#allocation4 + $0xd8] sm:$0xff]
        %v3998 = vld [vmem:[#allocation4 + $0xe0] sm:$0xff]
        %v3999 = vld [vmem:[#allocation4 + $0xe8] sm:$0xff]
        %v4000 = vld [vmem:[#allocation4 + $0xf0] sm:$0xff]
        %v4001 = vld [vmem:[#allocation4 + $0xf8] sm:$0xff]
        %4003 = vset.pattern.permute.xlu0 0
        %4004 = vperm.xlu0 %4003, %v3426
        %v4005 = vpop.permute.xlu0 %4004
        %4008 = vset.pattern.permute.xlu0 0
        %4009 = vperm.xlu0 %4008, %v3428
        %v4010 = vpop.permute.xlu0 %4009
        %4013 = vset.pattern.permute.xlu0 0
        %4014 = vperm.xlu0 %4013, %v3430
        %v4015 = vpop.permute.xlu0 %4014
        %4018 = vset.pattern.permute.xlu0 0
        %4019 = vperm.xlu0 %4018, %v3432
        %v4020 = vpop.permute.xlu0 %4019
        %4023 = vset.pattern.permute.xlu0 0
        %4024 = vperm.xlu0 %4023, %v3434
        %v4025 = vpop.permute.xlu0 %4024
        %4028 = vset.pattern.permute.xlu0 0
        %4029 = vperm.xlu0 %4028, %v3436
        %v4030 = vpop.permute.xlu0 %4029
        %4033 = vset.pattern.permute.xlu0 0
        %4034 = vperm.xlu0 %4033, %v3438
        %v4035 = vpop.permute.xlu0 %4034
        %4038 = vset.pattern.permute.xlu0 0
        %4039 = vperm.xlu0 %4038, %v3440
        %v4040 = vpop.permute.xlu0 %4039
        %4043 = vset.pattern.permute.xlu0 0
        %4044 = vperm.xlu0 %4043, %v3442
        %v4045 = vpop.permute.xlu0 %4044
        %4048 = vset.pattern.permute.xlu0 0
        %4049 = vperm.xlu0 %4048, %v3444
        %v4050 = vpop.permute.xlu0 %4049
        %4053 = vset.pattern.permute.xlu0 0
        %4054 = vperm.xlu0 %4053, %v3446
        %v4055 = vpop.permute.xlu0 %4054
        %4058 = vset.pattern.permute.xlu0 0
        %4059 = vperm.xlu0 %4058, %v3448
        %v4060 = vpop.permute.xlu0 %4059
        %4063 = vset.pattern.permute.xlu0 0
        %4064 = vperm.xlu0 %4063, %v3450
        %v4065 = vpop.permute.xlu0 %4064
        %4068 = vset.pattern.permute.xlu0 0
        %4069 = vperm.xlu0 %4068, %v3452
        %v4070 = vpop.permute.xlu0 %4069
        %4073 = vset.pattern.permute.xlu0 0
        %4074 = vperm.xlu0 %4073, %v3454
        %v4075 = vpop.permute.xlu0 %4074
        %4078 = vset.pattern.permute.xlu0 0
        %4079 = vperm.xlu0 %4078, %v3456
        %v4080 = vpop.permute.xlu0 %4079
        %4083 = vset.pattern.permute.xlu0 0
        %4084 = vperm.xlu0 %4083, %v3458
        %v4085 = vpop.permute.xlu0 %4084
        %4088 = vset.pattern.permute.xlu0 0
        %4089 = vperm.xlu0 %4088, %v3460
        %v4090 = vpop.permute.xlu0 %4089
        %4093 = vset.pattern.permute.xlu0 0
        %4094 = vperm.xlu0 %4093, %v3462
        %v4095 = vpop.permute.xlu0 %4094
        %4098 = vset.pattern.permute.xlu0 0
        %4099 = vperm.xlu0 %4098, %v3464
        %v4100 = vpop.permute.xlu0 %4099
        %4103 = vset.pattern.permute.xlu0 0
        %4104 = vperm.xlu0 %4103, %v3466
        %v4105 = vpop.permute.xlu0 %4104
        %4108 = vset.pattern.permute.xlu0 0
        %4109 = vperm.xlu0 %4108, %v3468
        %v4110 = vpop.permute.xlu0 %4109
        %4113 = vset.pattern.permute.xlu0 0
        %4114 = vperm.xlu0 %4113, %v3470
        %v4115 = vpop.permute.xlu0 %4114
        %4118 = vset.pattern.permute.xlu0 0
        %4119 = vperm.xlu0 %4118, %v3472
        %v4120 = vpop.permute.xlu0 %4119
        %4123 = vset.pattern.permute.xlu0 0
        %4124 = vperm.xlu0 %4123, %v3474
        %v4125 = vpop.permute.xlu0 %4124
        %4128 = vset.pattern.permute.xlu0 0
        %4129 = vperm.xlu0 %4128, %v3476
        %v4130 = vpop.permute.xlu0 %4129
        %4133 = vset.pattern.permute.xlu0 0
        %4134 = vperm.xlu0 %4133, %v3478
        %v4135 = vpop.permute.xlu0 %4134
        %4138 = vset.pattern.permute.xlu0 0
        %4139 = vperm.xlu0 %4138, %v3480
        %v4140 = vpop.permute.xlu0 %4139
        %4143 = vset.pattern.permute.xlu0 0
        %4144 = vperm.xlu0 %4143, %v3482
        %v4145 = vpop.permute.xlu0 %4144
        %4148 = vset.pattern.permute.xlu0 0
        %4149 = vperm.xlu0 %4148, %v3484
        %v4150 = vpop.permute.xlu0 %4149
        %4153 = vset.pattern.permute.xlu0 0
        %4154 = vperm.xlu0 %4153, %v3486
        %v4155 = vpop.permute.xlu0 %4154
        %4158 = vset.pattern.permute.xlu0 0
        %4159 = vperm.xlu0 %4158, %v3488
        %v4160 = vpop.permute.xlu0 %4159
        %v4162 = vmul.f32 %v4005, %v3970
        %v4163 = vmul.f32 %v4010, %v3971
        %v4164 = vmul.f32 %v4015, %v3972
        %v4165 = vmul.f32 %v4020, %v3973
        %v4166 = vmul.f32 %v4025, %v3974
        %v4167 = vmul.f32 %v4030, %v3975
        %v4168 = vmul.f32 %v4035, %v3976
        %v4169 = vmul.f32 %v4040, %v3977
        %v4170 = vmul.f32 %v4045, %v3978
        %v4171 = vmul.f32 %v4050, %v3979
        %v4172 = vmul.f32 %v4055, %v3980
        %v4173 = vmul.f32 %v4060, %v3981
        %v4174 = vmul.f32 %v4065, %v3982
        %v4175 = vmul.f32 %v4070, %v3983
        %v4176 = vmul.f32 %v4075, %v3984
        %v4177 = vmul.f32 %v4080, %v3985
        %v4178 = vmul.f32 %v4085, %v3986
        %v4179 = vmul.f32 %v4090, %v3987
        %v4180 = vmul.f32 %v4095, %v3988
        %v4181 = vmul.f32 %v4100, %v3989
        %v4182 = vmul.f32 %v4105, %v3990
        %v4183 = vmul.f32 %v4110, %v3991
        %v4184 = vmul.f32 %v4115, %v3992
        %v4185 = vmul.f32 %v4120, %v3993
        %v4186 = vmul.f32 %v4125, %v3994
        %v4187 = vmul.f32 %v4130, %v3995
        %v4188 = vmul.f32 %v4135, %v3996
        %v4189 = vmul.f32 %v4140, %v3997
        %v4190 = vmul.f32 %v4145, %v3998
        %v4191 = vmul.f32 %v4150, %v3999
        %v4192 = vmul.f32 %v4155, %v4000
        %v4193 = vmul.f32 %v4160, %v4001
        %v4194 = vpack.c.bf16 %v3684, %v3682
        %v4195 = vpack.c.bf16 %v3688, %v3686
        %v4196 = vpack.c.bf16 %v3692, %v3690
        %v4197 = vpack.c.bf16 %v3696, %v3694
        %v4198 = vpack.c.bf16 %v3700, %v3698
        %v4199 = vpack.c.bf16 %v3704, %v3702
        %v4200 = vpack.c.bf16 %v3708, %v3706
        %v4201 = vpack.c.bf16 %v3712, %v3710
        %v4202 = vpack.c.bf16 %v3716, %v3714
        %v4203 = vpack.c.bf16 %v3720, %v3718
        %v4204 = vpack.c.bf16 %v3724, %v3722
        %v4205 = vpack.c.bf16 %v3728, %v3726
        %v4206 = vpack.c.bf16 %v3732, %v3730
        %v4207 = vpack.c.bf16 %v3736, %v3734
        %v4208 = vpack.c.bf16 %v3740, %v3738
        %v4209 = vpack.c.bf16 %v3744, %v3742
        %v4210 = vld [vmem:[%s303] sm:$0xf]
        %v4211 = vld [vmem:[%s303 + $0x4] sm:$0xf]
        %v4212 = vld [vmem:[%s303 + $0x8] sm:$0xf]
        %v4213 = vld [vmem:[%s303 + $0xc] sm:$0xf]
        %v4214 = vld [vmem:[%s303 + $0x10] sm:$0xf]
        %v4215 = vld [vmem:[%s303 + $0x14] sm:$0xf]
        %v4216 = vld [vmem:[%s303 + $0x18] sm:$0xf]
        %v4217 = vld [vmem:[%s303 + $0x1c] sm:$0xf]
        %v4218 = vld [vmem:[%s303 + $0x20] sm:$0xf]
        %v4219 = vld [vmem:[%s303 + $0x24] sm:$0xf]
        %v4220 = vld [vmem:[%s303 + $0x28] sm:$0xf]
        %v4221 = vld [vmem:[%s303 + $0x2c] sm:$0xf]
        %v4222 = vld [vmem:[%s303 + $0x30] sm:$0xf]
        %v4223 = vld [vmem:[%s303 + $0x34] sm:$0xf]
        %v4224 = vld [vmem:[%s303 + $0x38] sm:$0xf]
        %v4225 = vld [vmem:[%s303 + $0x3c] sm:$0xf]
        %v4226 = vld [vmem:[%s303 + $0x40] sm:$0xf]
        %v4227 = vld [vmem:[%s303 + $0x44] sm:$0xf]
        %v4228 = vld [vmem:[%s303 + $0x48] sm:$0xf]
        %v4229 = vld [vmem:[%s303 + $0x4c] sm:$0xf]
        %v4230 = vld [vmem:[%s303 + $0x50] sm:$0xf]
        %v4231 = vld [vmem:[%s303 + $0x54] sm:$0xf]
        %v4232 = vld [vmem:[%s303 + $0x58] sm:$0xf]
        %v4233 = vld [vmem:[%s303 + $0x5c] sm:$0xf]
        %v4234 = vld [vmem:[%s303 + $0x60] sm:$0xf]
        %v4235 = vld [vmem:[%s303 + $0x64] sm:$0xf]
        %v4236 = vld [vmem:[%s303 + $0x68] sm:$0xf]
        %v4237 = vld [vmem:[%s303 + $0x6c] sm:$0xf]
        %v4238 = vld [vmem:[%s303 + $0x70] sm:$0xf]
        %v4239 = vld [vmem:[%s303 + $0x74] sm:$0xf]
        %v4240 = vld [vmem:[%s303 + $0x78] sm:$0xf]
        %v4241 = vld [vmem:[%s303 + $0x7c] sm:$0xf]
        %v4250 = vunpack.c.l.b16 %v4210
        %v4251 = vunpack.c.l.b16 %v4211
        %v4252 = vunpack.c.l.b16 %v4212
        %v4253 = vunpack.c.l.b16 %v4213
        %v4254 = vunpack.c.l.b16 %v4214
        %v4255 = vunpack.c.l.b16 %v4215
        %v4256 = vunpack.c.l.b16 %v4216
        %v4257 = vunpack.c.l.b16 %v4217
        %v4258 = vpack.c.b16 %v4251, %v4250
        %v4259 = vpack.c.b16 %v4253, %v4252
        %v4260 = vpack.c.b16 %v4255, %v4254
        %v4261 = vpack.c.b16 %v4257, %v4256
        %v4267 = vsel %vm3264, %v4194, 0
        %v4270 = vsel %vm3264, %v4195, 0
        %v4273 = vsel %vm3264, %v4196, 0
        %v4276 = vsel %vm3264, %v4197, 0
        %4278 = vmatprep.subr.bf16.mxu0 0
        %4279 = vmatpush1.bf16.msra.mxu0 %v4258
        %4280 = vmatprep.subr.bf16.mxu0 0
        %4281 = vmatpush1.bf16.msra.mxu0 %v4259
        %4282 = vmatprep.subr.bf16.mxu0 0
        %4283 = vmatpush1.bf16.msra.mxu0 %v4260
        %4284 = vmatprep.subr.bf16.mxu0 0
        %4285 = vmatpush1.bf16.msra.mxu0 %v4261
        %4286 = vmatprep.subr.bf16.mxu0 0
        %4287 = vmatpush1.bf16.msra.mxu0 0
        %4288 = vmatprep.subr.bf16.mxu0 0
        %4289 = vmatpush1.bf16.msra.mxu0 0
        %4290 = vmatprep.subr.bf16.mxu0 0
        %4291 = vmatpush1.bf16.msra.mxu0 0
        %4292 = vmatprep.subr.bf16.mxu0 0
        %4293 = vmatpush1.bf16.msra.mxu0 0
        %4294 = vmatprep.subr.bf16.mxu0 0
        %4295 = vmatpush1.bf16.msra.mxu0 0
        %4296 = vmatprep.subr.bf16.mxu0 0
        %4297 = vmatpush1.bf16.msra.mxu0 0
        %4298 = vmatprep.subr.bf16.mxu0 0
        %4299 = vmatpush1.bf16.msra.mxu0 0
        %4300 = vmatprep.subr.bf16.mxu0 0
        %4301 = vmatpush1.bf16.msra.mxu0 0
        %4302 = vmatprep.subr.bf16.mxu0 0
        %4303 = vmatpush1.bf16.msra.mxu0 0
        %4304 = vmatprep.subr.bf16.mxu0 0
        %4305 = vmatpush1.bf16.msra.mxu0 0
        %4306 = vmatprep.subr.bf16.mxu0 0
        %4307 = vmatpush1.bf16.msra.mxu0 0
        %4308 = vmatprep.subr.bf16.mxu0 0
        %4309 = vmatpush1.bf16.msra.mxu0 0
        %4310 = vmatprep.mubr.bf16.mxu0 0
        %4311 = vmatmul.mubr.bf16.gmra.mrb[0].mxu0 %v4267
        %v4312 = vpop.f32.mrb[0].mxu0
        %v4313 = vadd.f32 0.0, %v4312
        %v4314 = vpop.f32.mrb[0].mxu0
        %v4315 = vpop.f32.mrb[0].mxu0
        %v4316 = vadd.f32 0.0, %v4315
        %v4317 = vpop.f32.mrb[0].mxu0
        %4318 = vmatprep.mubr.bf16.mxu0 0
        %4319 = vmatmul.mubr.bf16.gmra.mrb[0].mxu0 %v4270
        %v4320 = vpop.f32.mrb[0].mxu0
        %v4321 = vadd.f32 0.0, %v4320
        %v4322 = vpop.f32.mrb[0].mxu0
        %v4323 = vpop.f32.mrb[0].mxu0
        %v4324 = vadd.f32 0.0, %v4323
        %v4325 = vpop.f32.mrb[0].mxu0
        %4326 = vmatprep.mubr.bf16.mxu0 0
        %4327 = vmatmul.mubr.bf16.gmra.mrb[0].mxu0 %v4273
        %v4328 = vpop.f32.mrb[0].mxu0
        %v4329 = vadd.f32 0.0, %v4328
        %v4330 = vpop.f32.mrb[0].mxu0
        %v4331 = vpop.f32.mrb[0].mxu0
        %v4332 = vadd.f32 0.0, %v4331
        %v4333 = vpop.f32.mrb[0].mxu0
        %4334 = vmatprep.mubr.bf16.mxu0 0
        %4335 = vmatmul.mubr.bf16.gmra.mrb[0].mxu0 %v4276
        %v4336 = vpop.f32.mrb[0].mxu0
        %v4337 = vadd.f32 0.0, %v4336
        %v4338 = vpop.f32.mrb[0].mxu0
        %v4339 = vpop.f32.mrb[0].mxu0
        %v4340 = vadd.f32 0.0, %v4339
        %v4341 = vpop.f32.mrb[0].mxu0
        %4342 = vdwg.mxu0
        %v4351 = vunpack.c.l.b16 %v4218
        %v4352 = vunpack.c.l.b16 %v4219
        %v4353 = vunpack.c.l.b16 %v4220
        %v4354 = vunpack.c.l.b16 %v4221
        %v4355 = vunpack.c.l.b16 %v4222
        %v4356 = vunpack.c.l.b16 %v4223
        %v4357 = vunpack.c.l.b16 %v4224
        %v4358 = vunpack.c.l.b16 %v4225
        %v4359 = vpack.c.b16 %v4352, %v4351
        %v4360 = vpack.c.b16 %v4354, %v4353
        %v4361 = vpack.c.b16 %v4356, %v4355
        %v4362 = vpack.c.b16 %v4358, %v4357
        %v4368 = vsel %vm3264, %v4198, 0
        %v4371 = vsel %vm3264, %v4199, 0
        %v4374 = vsel %vm3264, %v4200, 0
        %v4377 = vsel %vm3264, %v4201, 0
        %4379 = vmatprep.subr.bf16.mxu0 0
        %4380 = vmatpush1.bf16.msra.mxu0 %v4359
        %4381 = vmatprep.subr.bf16.mxu0 0
        %4382 = vmatpush1.bf16.msra.mxu0 %v4360
        %4383 = vmatprep.subr.bf16.mxu0 0
        %4384 = vmatpush1.bf16.msra.mxu0 %v4361
        %4385 = vmatprep.subr.bf16.mxu0 0
        %4386 = vmatpush1.bf16.msra.mxu0 %v4362
        %4387 = vmatprep.subr.bf16.mxu0 0
        %4388 = vmatpush1.bf16.msra.mxu0 0
        %4389 = vmatprep.subr.bf16.mxu0 0
        %4390 = vmatpush1.bf16.msra.mxu0 0
        %4391 = vmatprep.subr.bf16.mxu0 0
        %4392 = vmatpush1.bf16.msra.mxu0 0
        %4393 = vmatprep.subr.bf16.mxu0 0
        %4394 = vmatpush1.bf16.msra.mxu0 0
        %4395 = vmatprep.subr.bf16.mxu0 0
        %4396 = vmatpush1.bf16.msra.mxu0 0
        %4397 = vmatprep.subr.bf16.mxu0 0
        %4398 = vmatpush1.bf16.msra.mxu0 0
        %4399 = vmatprep.subr.bf16.mxu0 0
        %4400 = vmatpush1.bf16.msra.mxu0 0
        %4401 = vmatprep.subr.bf16.mxu0 0
        %4402 = vmatpush1.bf16.msra.mxu0 0
        %4403 = vmatprep.subr.bf16.mxu0 0
        %4404 = vmatpush1.bf16.msra.mxu0 0
        %4405 = vmatprep.subr.bf16.mxu0 0
        %4406 = vmatpush1.bf16.msra.mxu0 0
        %4407 = vmatprep.subr.bf16.mxu0 0
        %4408 = vmatpush1.bf16.msra.mxu0 0
        %4409 = vmatprep.subr.bf16.mxu0 0
        %4410 = vmatpush1.bf16.msra.mxu0 0
        %4411 = vmatprep.mubr.bf16.mxu0 0
        %4412 = vmatmul.mubr.bf16.gmra.mrb[0].mxu0 %v4368
        %v4413 = vpop.f32.mrb[0].mxu0
        %v4414 = vadd.f32 0.0, %v4413
        %v4415 = vpop.f32.mrb[0].mxu0
        %v4416 = vpop.f32.mrb[0].mxu0
        %v4417 = vadd.f32 0.0, %v4416
        %v4418 = vpop.f32.mrb[0].mxu0
        %4419 = vmatprep.mubr.bf16.mxu0 0
        %4420 = vmatmul.mubr.bf16.gmra.mrb[0].mxu0 %v4371
        %v4421 = vpop.f32.mrb[0].mxu0
        %v4422 = vadd.f32 0.0, %v4421
        %v4423 = vpop.f32.mrb[0].mxu0
        %v4424 = vpop.f32.mrb[0].mxu0
        %v4425 = vadd.f32 0.0, %v4424
        %v4426 = vpop.f32.mrb[0].mxu0
        %4427 = vmatprep.mubr.bf16.mxu0 0
        %4428 = vmatmul.mubr.bf16.gmra.mrb[0].mxu0 %v4374
        %v4429 = vpop.f32.mrb[0].mxu0
        %v4430 = vadd.f32 0.0, %v4429
        %v4431 = vpop.f32.mrb[0].mxu0
        %v4432 = vpop.f32.mrb[0].mxu0
        %v4433 = vadd.f32 0.0, %v4432
        %v4434 = vpop.f32.mrb[0].mxu0
        %4435 = vmatprep.mubr.bf16.mxu0 0
        %4436 = vmatmul.mubr.bf16.gmra.mrb[0].mxu0 %v4377
        %v4437 = vpop.f32.mrb[0].mxu0
        %v4438 = vadd.f32 0.0, %v4437
        %v4439 = vpop.f32.mrb[0].mxu0
        %v4440 = vpop.f32.mrb[0].mxu0
        %v4441 = vadd.f32 0.0, %v4440
        %v4442 = vpop.f32.mrb[0].mxu0
        %4443 = vdwg.mxu0
        %v4452 = vunpack.c.l.b16 %v4226
        %v4453 = vunpack.c.l.b16 %v4227
        %v4454 = vunpack.c.l.b16 %v4228
        %v4455 = vunpack.c.l.b16 %v4229
        %v4456 = vunpack.c.l.b16 %v4230
        %v4457 = vunpack.c.l.b16 %v4231
        %v4458 = vunpack.c.l.b16 %v4232
        %v4459 = vunpack.c.l.b16 %v4233
        %v4460 = vpack.c.b16 %v4453, %v4452
        %v4461 = vpack.c.b16 %v4455, %v4454
        %v4462 = vpack.c.b16 %v4457, %v4456
        %v4463 = vpack.c.b16 %v4459, %v4458
        %v4469 = vsel %vm3264, %v4202, 0
        %v4472 = vsel %vm3264, %v4203, 0
        %v4475 = vsel %vm3264, %v4204, 0
        %v4478 = vsel %vm3264, %v4205, 0
        %4480 = vmatprep.subr.bf16.mxu0 0
        %4481 = vmatpush1.bf16.msra.mxu0 %v4460
        %4482 = vmatprep.subr.bf16.mxu0 0
        %4483 = vmatpush1.bf16.msra.mxu0 %v4461
        %4484 = vmatprep.subr.bf16.mxu0 0
        %4485 = vmatpush1.bf16.msra.mxu0 %v4462
        %4486 = vmatprep.subr.bf16.mxu0 0
        %4487 = vmatpush1.bf16.msra.mxu0 %v4463
        %4488 = vmatprep.subr.bf16.mxu0 0
        %4489 = vmatpush1.bf16.msra.mxu0 0
        %4490 = vmatprep.subr.bf16.mxu0 0
        %4491 = vmatpush1.bf16.msra.mxu0 0
        %4492 = vmatprep.subr.bf16.mxu0 0
        %4493 = vmatpush1.bf16.msra.mxu0 0
        %4494 = vmatprep.subr.bf16.mxu0 0
        %4495 = vmatpush1.bf16.msra.mxu0 0
        %4496 = vmatprep.subr.bf16.mxu0 0
        %4497 = vmatpush1.bf16.msra.mxu0 0
        %4498 = vmatprep.subr.bf16.mxu0 0
        %4499 = vmatpush1.bf16.msra.mxu0 0
        %4500 = vmatprep.subr.bf16.mxu0 0
        %4501 = vmatpush1.bf16.msra.mxu0 0
        %4502 = vmatprep.subr.bf16.mxu0 0
        %4503 = vmatpush1.bf16.msra.mxu0 0
        %4504 = vmatprep.subr.bf16.mxu0 0
        %4505 = vmatpush1.bf16.msra.mxu0 0
        %4506 = vmatprep.subr.bf16.mxu0 0
        %4507 = vmatpush1.bf16.msra.mxu0 0
        %4508 = vmatprep.subr.bf16.mxu0 0
        %4509 = vmatpush1.bf16.msra.mxu0 0
        %4510 = vmatprep.subr.bf16.mxu0 0
        %4511 = vmatpush1.bf16.msra.mxu0 0
        %4512 = vmatprep.mubr.bf16.mxu0 0
        %4513 = vmatmul.mubr.bf16.gmra.mrb[0].mxu0 %v4469
        %v4514 = vpop.f32.mrb[0].mxu0
        %v4515 = vadd.f32 0.0, %v4514
        %v4516 = vpop.f32.mrb[0].mxu0
        %v4517 = vpop.f32.mrb[0].mxu0
        %v4518 = vadd.f32 0.0, %v4517
        %v4519 = vpop.f32.mrb[0].mxu0
        %4520 = vmatprep.mubr.bf16.mxu0 0
        %4521 = vmatmul.mubr.bf16.gmra.mrb[0].mxu0 %v4472
        %v4522 = vpop.f32.mrb[0].mxu0
        %v4523 = vadd.f32 0.0, %v4522
        %v4524 = vpop.f32.mrb[0].mxu0
        %v4525 = vpop.f32.mrb[0].mxu0
        %v4526 = vadd.f32 0.0, %v4525
        %v4527 = vpop.f32.mrb[0].mxu0
        %4528 = vmatprep.mubr.bf16.mxu0 0
        %4529 = vmatmul.mubr.bf16.gmra.mrb[0].mxu0 %v4475
        %v4530 = vpop.f32.mrb[0].mxu0
        %v4531 = vadd.f32 0.0, %v4530
        %v4532 = vpop.f32.mrb[0].mxu0
        %v4533 = vpop.f32.mrb[0].mxu0
        %v4534 = vadd.f32 0.0, %v4533
        %v4535 = vpop.f32.mrb[0].mxu0
        %4536 = vmatprep.mubr.bf16.mxu0 0
        %4537 = vmatmul.mubr.bf16.gmra.mrb[0].mxu0 %v4478
        %v4538 = vpop.f32.mrb[0].mxu0
        %v4539 = vadd.f32 0.0, %v4538
        %v4540 = vpop.f32.mrb[0].mxu0
        %v4541 = vpop.f32.mrb[0].mxu0
        %v4542 = vadd.f32 0.0, %v4541
        %v4543 = vpop.f32.mrb[0].mxu0
        %4544 = vdwg.mxu0
        %v4553 = vunpack.c.l.b16 %v4234
        %v4554 = vunpack.c.l.b16 %v4235
        %v4555 = vunpack.c.l.b16 %v4236
        %v4556 = vunpack.c.l.b16 %v4237
        %v4557 = vunpack.c.l.b16 %v4238
        %v4558 = vunpack.c.l.b16 %v4239
        %v4559 = vunpack.c.l.b16 %v4240
        %v4560 = vunpack.c.l.b16 %v4241
        %v4561 = vpack.c.b16 %v4554, %v4553
        %v4562 = vpack.c.b16 %v4556, %v4555
        %v4563 = vpack.c.b16 %v4558, %v4557
        %v4564 = vpack.c.b16 %v4560, %v4559
        %v4570 = vsel %vm3264, %v4206, 0
        %v4573 = vsel %vm3264, %v4207, 0
        %v4576 = vsel %vm3264, %v4208, 0
        %v4579 = vsel %vm3264, %v4209, 0
        %4581 = vmatprep.subr.bf16.mxu0 0
        %4582 = vmatpush1.bf16.msra.mxu0 %v4561
        %4583 = vmatprep.subr.bf16.mxu0 0
        %4584 = vmatpush1.bf16.msra.mxu0 %v4562
        %4585 = vmatprep.subr.bf16.mxu0 0
        %4586 = vmatpush1.bf16.msra.mxu0 %v4563
        %4587 = vmatprep.subr.bf16.mxu0 0
        %4588 = vmatpush1.bf16.msra.mxu0 %v4564
        %4589 = vmatprep.subr.bf16.mxu0 0
        %4590 = vmatpush1.bf16.msra.mxu0 0
        %4591 = vmatprep.subr.bf16.mxu0 0
        %4592 = vmatpush1.bf16.msra.mxu0 0
        %4593 = vmatprep.subr.bf16.mxu0 0
        %4594 = vmatpush1.bf16.msra.mxu0 0
        %4595 = vmatprep.subr.bf16.mxu0 0
        %4596 = vmatpush1.bf16.msra.mxu0 0
        %4597 = vmatprep.subr.bf16.mxu0 0
        %4598 = vmatpush1.bf16.msra.mxu0 0
        %4599 = vmatprep.subr.bf16.mxu0 0
        %4600 = vmatpush1.bf16.msra.mxu0 0
        %4601 = vmatprep.subr.bf16.mxu0 0
        %4602 = vmatpush1.bf16.msra.mxu0 0
        %4603 = vmatprep.subr.bf16.mxu0 0
        %4604 = vmatpush1.bf16.msra.mxu0 0
        %4605 = vmatprep.subr.bf16.mxu0 0
        %4606 = vmatpush1.bf16.msra.mxu0 0
        %4607 = vmatprep.subr.bf16.mxu0 0
        %4608 = vmatpush1.bf16.msra.mxu0 0
        %4609 = vmatprep.subr.bf16.mxu0 0
        %4610 = vmatpush1.bf16.msra.mxu0 0
        %4611 = vmatprep.subr.bf16.mxu0 0
        %4612 = vmatpush1.bf16.msra.mxu0 0
        %4613 = vmatprep.mubr.bf16.mxu0 0
        %4614 = vmatmul.mubr.bf16.gmra.mrb[0].mxu0 %v4570
        %v4615 = vpop.f32.mrb[0].mxu0
        %v4616 = vadd.f32 0.0, %v4615
        %v4617 = vpop.f32.mrb[0].mxu0
        %v4618 = vpop.f32.mrb[0].mxu0
        %v4619 = vadd.f32 0.0, %v4618
        %v4620 = vpop.f32.mrb[0].mxu0
        %4621 = vmatprep.mubr.bf16.mxu0 0
        %4622 = vmatmul.mubr.bf16.gmra.mrb[0].mxu0 %v4573
        %v4623 = vpop.f32.mrb[0].mxu0
        %v4624 = vadd.f32 0.0, %v4623
        %v4625 = vpop.f32.mrb[0].mxu0
        %v4626 = vpop.f32.mrb[0].mxu0
        %v4627 = vadd.f32 0.0, %v4626
        %v4628 = vpop.f32.mrb[0].mxu0
        %4629 = vmatprep.mubr.bf16.mxu0 0
        %4630 = vmatmul.mubr.bf16.gmra.mrb[0].mxu0 %v4576
        %v4631 = vpop.f32.mrb[0].mxu0
        %v4632 = vadd.f32 0.0, %v4631
        %v4633 = vpop.f32.mrb[0].mxu0
        %v4634 = vpop.f32.mrb[0].mxu0
        %v4635 = vadd.f32 0.0, %v4634
        %v4636 = vpop.f32.mrb[0].mxu0
        %4637 = vmatprep.mubr.bf16.mxu0 0
        %4638 = vmatmul.mubr.bf16.gmra.mrb[0].mxu0 %v4579
        %v4639 = vpop.f32.mrb[0].mxu0
        %v4640 = vadd.f32 0.0, %v4639
        %v4641 = vpop.f32.mrb[0].mxu0
        %v4642 = vpop.f32.mrb[0].mxu0
        %v4643 = vadd.f32 0.0, %v4642
        %v4644 = vpop.f32.mrb[0].mxu0
        %4645 = vdwg.mxu0
        %v4646 = vadd.f32 %v4162, %v4313
        %v4647 = vadd.f32 %v4163, %v4316
        %v4648 = vadd.f32 %v4164, %v4321
        %v4649 = vadd.f32 %v4165, %v4324
        %v4650 = vadd.f32 %v4166, %v4329
        %v4651 = vadd.f32 %v4167, %v4332
        %v4652 = vadd.f32 %v4168, %v4337
        %v4653 = vadd.f32 %v4169, %v4340
        %v4654 = vadd.f32 %v4170, %v4414
        %v4655 = vadd.f32 %v4171, %v4417
        %v4656 = vadd.f32 %v4172, %v4422
        %v4657 = vadd.f32 %v4173, %v4425
        %v4658 = vadd.f32 %v4174, %v4430
        %v4659 = vadd.f32 %v4175, %v4433
        %v4660 = vadd.f32 %v4176, %v4438
        %v4661 = vadd.f32 %v4177, %v4441
        %v4662 = vadd.f32 %v4178, %v4515
        %v4663 = vadd.f32 %v4179, %v4518
        %v4664 = vadd.f32 %v4180, %v4523
        %v4665 = vadd.f32 %v4181, %v4526
        %v4666 = vadd.f32 %v4182, %v4531
        %v4667 = vadd.f32 %v4183, %v4534
        %v4668 = vadd.f32 %v4184, %v4539
        %v4669 = vadd.f32 %v4185, %v4542
        %v4670 = vadd.f32 %v4186, %v4616
        %v4671 = vadd.f32 %v4187, %v4619
        %v4672 = vadd.f32 %v4188, %v4624
        %v4673 = vadd.f32 %v4189, %v4627
        %v4674 = vadd.f32 %v4190, %v4632
        %v4675 = vadd.f32 %v4191, %v4635
        %v4676 = vadd.f32 %v4192, %v4640
        %v4677 = vadd.f32 %v4193, %v4643
        %4678 = vst.msk [vmem:[#allocation4] sm:$0xff] %vm2688, %v4646
        %4679 = vst.msk [vmem:[#allocation4 + $0x8] sm:$0xff] %vm2688, %v4647
        %4680 = vst.msk [vmem:[#allocation4 + $0x10] sm:$0xff] %vm2688, %v4648
        %4681 = vst.msk [vmem:[#allocation4 + $0x18] sm:$0xff] %vm2688, %v4649
        %4682 = vst.msk [vmem:[#allocation4 + $0x20] sm:$0xff] %vm2688, %v4650
        %4683 = vst.msk [vmem:[#allocation4 + $0x28] sm:$0xff] %vm2688, %v4651
        %4684 = vst.msk [vmem:[#allocation4 + $0x30] sm:$0xff] %vm2688, %v4652
        %4685 = vst.msk [vmem:[#allocation4 + $0x38] sm:$0xff] %vm2688, %v4653
        %4686 = vst.msk [vmem:[#allocation4 + $0x40] sm:$0xff] %vm2688, %v4654
        %4687 = vst.msk [vmem:[#allocation4 + $0x48] sm:$0xff] %vm2688, %v4655
        %4688 = vst.msk [vmem:[#allocation4 + $0x50] sm:$0xff] %vm2688, %v4656
        %4689 = vst.msk [vmem:[#allocation4 + $0x58] sm:$0xff] %vm2688, %v4657
        %4690 = vst.msk [vmem:[#allocation4 + $0x60] sm:$0xff] %vm2688, %v4658
        %4691 = vst.msk [vmem:[#allocation4 + $0x68] sm:$0xff] %vm2688, %v4659
        %4692 = vst.msk [vmem:[#allocation4 + $0x70] sm:$0xff] %vm2688, %v4660
        %4693 = vst.msk [vmem:[#allocation4 + $0x78] sm:$0xff] %vm2688, %v4661
        %4694 = vst.msk [vmem:[#allocation4 + $0x80] sm:$0xff] %vm2688, %v4662
        %4695 = vst.msk [vmem:[#allocation4 + $0x88] sm:$0xff] %vm2688, %v4663
        %4696 = vst.msk [vmem:[#allocation4 + $0x90] sm:$0xff] %vm2688, %v4664
        %4697 = vst.msk [vmem:[#allocation4 + $0x98] sm:$0xff] %vm2688, %v4665
        %4698 = vst.msk [vmem:[#allocation4 + $0xa0] sm:$0xff] %vm2688, %v4666
        %4699 = vst.msk [vmem:[#allocation4 + $0xa8] sm:$0xff] %vm2688, %v4667
        %4700 = vst.msk [vmem:[#allocation4 + $0xb0] sm:$0xff] %vm2688, %v4668
        %4701 = vst.msk [vmem:[#allocation4 + $0xb8] sm:$0xff] %vm2688, %v4669
        %4702 = vst.msk [vmem:[#allocation4 + $0xc0] sm:$0xff] %vm2688, %v4670
        %4703 = vst.msk [vmem:[#allocation4 + $0xc8] sm:$0xff] %vm2688, %v4671
        %4704 = vst.msk [vmem:[#allocation4 + $0xd0] sm:$0xff] %vm2688, %v4672
        %4705 = vst.msk [vmem:[#allocation4 + $0xd8] sm:$0xff] %vm2688, %v4673
        %4706 = vst.msk [vmem:[#allocation4 + $0xe0] sm:$0xff] %vm2688, %v4674
        %4707 = vst.msk [vmem:[#allocation4 + $0xe8] sm:$0xff] %vm2688, %v4675
        %4708 = vst.msk [vmem:[#allocation4 + $0xf0] sm:$0xff] %vm2688, %v4676
        %4709 = vst.msk [vmem:[#allocation4 + $0xf8] sm:$0xff] %vm2688, %v4677
        %4710 = vst.msk [vmem:[#allocation2] sm:$0xff] %vm3937, %v3361
        %4711 = vst.msk [vmem:[#allocation2 + $0x8] sm:$0xff] %vm3937, %v3362
        %4712 = vst.msk [vmem:[#allocation2 + $0x10] sm:$0xff] %vm3937, %v3363
        %4713 = vst.msk [vmem:[#allocation2 + $0x18] sm:$0xff] %vm3937, %v3364
        %4714 = vst.msk [vmem:[#allocation2 + $0x20] sm:$0xff] %vm3937, %v3365
        %4715 = vst.msk [vmem:[#allocation2 + $0x28] sm:$0xff] %vm3937, %v3366
        %4716 = vst.msk [vmem:[#allocation2 + $0x30] sm:$0xff] %vm3937, %v3367
        %4717 = vst.msk [vmem:[#allocation2 + $0x38] sm:$0xff] %vm3937, %v3368
        %4718 = vst.msk [vmem:[#allocation2 + $0x40] sm:$0xff] %vm3937, %v3369
        %4719 = vst.msk [vmem:[#allocation2 + $0x48] sm:$0xff] %vm3937, %v3370
        %4720 = vst.msk [vmem:[#allocation2 + $0x50] sm:$0xff] %vm3937, %v3371
        %4721 = vst.msk [vmem:[#allocation2 + $0x58] sm:$0xff] %vm3937, %v3372
        %4722 = vst.msk [vmem:[#allocation2 + $0x60] sm:$0xff] %vm3937, %v3373
        %4723 = vst.msk [vmem:[#allocation2 + $0x68] sm:$0xff] %vm3937, %v3374
        %4724 = vst.msk [vmem:[#allocation2 + $0x70] sm:$0xff] %vm3937, %v3375
        %4725 = vst.msk [vmem:[#allocation2 + $0x78] sm:$0xff] %vm3937, %v3376
        %4726 = vst.msk [vmem:[#allocation2 + $0x80] sm:$0xff] %vm3937, %v3377
        %4727 = vst.msk [vmem:[#allocation2 + $0x88] sm:$0xff] %vm3937, %v3378
        %4728 = vst.msk [vmem:[#allocation2 + $0x90] sm:$0xff] %vm3937, %v3379
        %4729 = vst.msk [vmem:[#allocation2 + $0x98] sm:$0xff] %vm3937, %v3380
        %4730 = vst.msk [vmem:[#allocation2 + $0xa0] sm:$0xff] %vm3937, %v3381
        %4731 = vst.msk [vmem:[#allocation2 + $0xa8] sm:$0xff] %vm3937, %v3382
        %4732 = vst.msk [vmem:[#allocation2 + $0xb0] sm:$0xff] %vm3937, %v3383
        %4733 = vst.msk [vmem:[#allocation2 + $0xb8] sm:$0xff] %vm3937, %v3384
        %4734 = vst.msk [vmem:[#allocation2 + $0xc0] sm:$0xff] %vm3937, %v3385
        %4735 = vst.msk [vmem:[#allocation2 + $0xc8] sm:$0xff] %vm3937, %v3386
        %4736 = vst.msk [vmem:[#allocation2 + $0xd0] sm:$0xff] %vm3937, %v3387
        %4737 = vst.msk [vmem:[#allocation2 + $0xd8] sm:$0xff] %vm3937, %v3388
        %4738 = vst.msk [vmem:[#allocation2 + $0xe0] sm:$0xff] %vm3937, %v3389
        %4739 = vst.msk [vmem:[#allocation2 + $0xe8] sm:$0xff] %vm3937, %v3390
        %4740 = vst.msk [vmem:[#allocation2 + $0xf0] sm:$0xff] %vm3937, %v3391
        %4741 = vst.msk [vmem:[#allocation2 + $0xf8] sm:$0xff] %vm3937, %v3392
        %v4742 = vld [vmem:[#allocation3] sm:$0xff]
        %v4743 = vld [vmem:[#allocation3 + $0x8] sm:$0xff]
        %v4744 = vld [vmem:[#allocation3 + $0x10] sm:$0xff]
        %v4745 = vld [vmem:[#allocation3 + $0x18] sm:$0xff]
        %v4746 = vld [vmem:[#allocation3 + $0x20] sm:$0xff]
        %v4747 = vld [vmem:[#allocation3 + $0x28] sm:$0xff]
        %v4748 = vld [vmem:[#allocation3 + $0x30] sm:$0xff]
        %v4749 = vld [vmem:[#allocation3 + $0x38] sm:$0xff]
        %v4750 = vld [vmem:[#allocation3 + $0x40] sm:$0xff]
        %v4751 = vld [vmem:[#allocation3 + $0x48] sm:$0xff]
        %v4752 = vld [vmem:[#allocation3 + $0x50] sm:$0xff]
        %v4753 = vld [vmem:[#allocation3 + $0x58] sm:$0xff]
        %v4754 = vld [vmem:[#allocation3 + $0x60] sm:$0xff]
        %v4755 = vld [vmem:[#allocation3 + $0x68] sm:$0xff]
        %v4756 = vld [vmem:[#allocation3 + $0x70] sm:$0xff]
        %v4757 = vld [vmem:[#allocation3 + $0x78] sm:$0xff]
        %v4758 = vld [vmem:[#allocation3 + $0x80] sm:$0xff]
        %v4759 = vld [vmem:[#allocation3 + $0x88] sm:$0xff]
        %v4760 = vld [vmem:[#allocation3 + $0x90] sm:$0xff]
        %v4761 = vld [vmem:[#allocation3 + $0x98] sm:$0xff]
        %v4762 = vld [vmem:[#allocation3 + $0xa0] sm:$0xff]
        %v4763 = vld [vmem:[#allocation3 + $0xa8] sm:$0xff]
        %v4764 = vld [vmem:[#allocation3 + $0xb0] sm:$0xff]
        %v4765 = vld [vmem:[#allocation3 + $0xb8] sm:$0xff]
        %v4766 = vld [vmem:[#allocation3 + $0xc0] sm:$0xff]
        %v4767 = vld [vmem:[#allocation3 + $0xc8] sm:$0xff]
        %v4768 = vld [vmem:[#allocation3 + $0xd0] sm:$0xff]
        %v4769 = vld [vmem:[#allocation3 + $0xd8] sm:$0xff]
        %v4770 = vld [vmem:[#allocation3 + $0xe0] sm:$0xff]
        %v4771 = vld [vmem:[#allocation3 + $0xe8] sm:$0xff]
        %v4772 = vld [vmem:[#allocation3 + $0xf0] sm:$0xff]
        %v4773 = vld [vmem:[#allocation3 + $0xf8] sm:$0xff]
        %v4774 = vrcp.pop %v4742
        %v4775 = vrcp.pop %v4743
        %v4776 = vrcp.pop %v4744
        %v4777 = vrcp.pop %v4745
        %v4778 = vrcp.pop %v4746
        %v4779 = vrcp.pop %v4747
        %v4780 = vrcp.pop %v4748
        %v4781 = vrcp.pop %v4749
        %v4782 = vrcp.pop %v4750
        %v4783 = vrcp.pop %v4751
        %v4784 = vrcp.pop %v4752
        %v4785 = vrcp.pop %v4753
        %v4786 = vrcp.pop %v4754
        %v4787 = vrcp.pop %v4755
        %v4788 = vrcp.pop %v4756
        %v4789 = vrcp.pop %v4757
        %v4790 = vrcp.pop %v4758
        %v4791 = vrcp.pop %v4759
        %v4792 = vrcp.pop %v4760
        %v4793 = vrcp.pop %v4761
        %v4794 = vrcp.pop %v4762
        %v4795 = vrcp.pop %v4763
        %v4796 = vrcp.pop %v4764
        %v4797 = vrcp.pop %v4765
        %v4798 = vrcp.pop %v4766
        %v4799 = vrcp.pop %v4767
        %v4800 = vrcp.pop %v4768
        %v4801 = vrcp.pop %v4769
        %v4802 = vrcp.pop %v4770
        %v4803 = vrcp.pop %v4771
        %v4804 = vrcp.pop %v4772
        %v4805 = vrcp.pop %v4773
        %v4806 = vld [vmem:[#allocation4] sm:$0xff]
        %v4807 = vld [vmem:[#allocation4 + $0x8] sm:$0xff]
        %v4808 = vld [vmem:[#allocation4 + $0x10] sm:$0xff]
        %v4809 = vld [vmem:[#allocation4 + $0x18] sm:$0xff]
        %v4810 = vld [vmem:[#allocation4 + $0x20] sm:$0xff]
        %v4811 = vld [vmem:[#allocation4 + $0x28] sm:$0xff]
        %v4812 = vld [vmem:[#allocation4 + $0x30] sm:$0xff]
        %v4813 = vld [vmem:[#allocation4 + $0x38] sm:$0xff]
        %v4814 = vld [vmem:[#allocation4 + $0x40] sm:$0xff]
        %v4815 = vld [vmem:[#allocation4 + $0x48] sm:$0xff]
        %v4816 = vld [vmem:[#allocation4 + $0x50] sm:$0xff]
        %v4817 = vld [vmem:[#allocation4 + $0x58] sm:$0xff]
        %v4818 = vld [vmem:[#allocation4 + $0x60] sm:$0xff]
        %v4819 = vld [vmem:[#allocation4 + $0x68] sm:$0xff]
        %v4820 = vld [vmem:[#allocation4 + $0x70] sm:$0xff]
        %v4821 = vld [vmem:[#allocation4 + $0x78] sm:$0xff]
        %v4822 = vld [vmem:[#allocation4 + $0x80] sm:$0xff]
        %v4823 = vld [vmem:[#allocation4 + $0x88] sm:$0xff]
        %v4824 = vld [vmem:[#allocation4 + $0x90] sm:$0xff]
        %v4825 = vld [vmem:[#allocation4 + $0x98] sm:$0xff]
        %v4826 = vld [vmem:[#allocation4 + $0xa0] sm:$0xff]
        %v4827 = vld [vmem:[#allocation4 + $0xa8] sm:$0xff]
        %v4828 = vld [vmem:[#allocation4 + $0xb0] sm:$0xff]
        %v4829 = vld [vmem:[#allocation4 + $0xb8] sm:$0xff]
        %v4830 = vld [vmem:[#allocation4 + $0xc0] sm:$0xff]
        %v4831 = vld [vmem:[#allocation4 + $0xc8] sm:$0xff]
        %v4832 = vld [vmem:[#allocation4 + $0xd0] sm:$0xff]
        %v4833 = vld [vmem:[#allocation4 + $0xd8] sm:$0xff]
        %v4834 = vld [vmem:[#allocation4 + $0xe0] sm:$0xff]
        %v4835 = vld [vmem:[#allocation4 + $0xe8] sm:$0xff]
        %v4836 = vld [vmem:[#allocation4 + $0xf0] sm:$0xff]
        %v4837 = vld [vmem:[#allocation4 + $0xf8] sm:$0xff]
        %4839 = vset.pattern.permute.xlu0 0
        %4840 = vperm.xlu0 %4839, %v4774
        %v4841 = vpop.permute.xlu0 %4840
        %4844 = vset.pattern.permute.xlu0 0
        %4845 = vperm.xlu0 %4844, %v4775
        %v4846 = vpop.permute.xlu0 %4845
        %4849 = vset.pattern.permute.xlu0 0
        %4850 = vperm.xlu0 %4849, %v4776
        %v4851 = vpop.permute.xlu0 %4850
        %4854 = vset.pattern.permute.xlu0 0
        %4855 = vperm.xlu0 %4854, %v4777
        %v4856 = vpop.permute.xlu0 %4855
        %4859 = vset.pattern.permute.xlu0 0
        %4860 = vperm.xlu0 %4859, %v4778
        %v4861 = vpop.permute.xlu0 %4860
        %4864 = vset.pattern.permute.xlu0 0
        %4865 = vperm.xlu0 %4864, %v4779
        %v4866 = vpop.permute.xlu0 %4865
        %4869 = vset.pattern.permute.xlu0 0
        %4870 = vperm.xlu0 %4869, %v4780
        %v4871 = vpop.permute.xlu0 %4870
        %4874 = vset.pattern.permute.xlu0 0
        %4875 = vperm.xlu0 %4874, %v4781
        %v4876 = vpop.permute.xlu0 %4875
        %4879 = vset.pattern.permute.xlu0 0
        %4880 = vperm.xlu0 %4879, %v4782
        %v4881 = vpop.permute.xlu0 %4880
        %4884 = vset.pattern.permute.xlu0 0
        %4885 = vperm.xlu0 %4884, %v4783
        %v4886 = vpop.permute.xlu0 %4885
        %4889 = vset.pattern.permute.xlu0 0
        %4890 = vperm.xlu0 %4889, %v4784
        %v4891 = vpop.permute.xlu0 %4890
        %4894 = vset.pattern.permute.xlu0 0
        %4895 = vperm.xlu0 %4894, %v4785
        %v4896 = vpop.permute.xlu0 %4895
        %4899 = vset.pattern.permute.xlu0 0
        %4900 = vperm.xlu0 %4899, %v4786
        %v4901 = vpop.permute.xlu0 %4900
        %4904 = vset.pattern.permute.xlu0 0
        %4905 = vperm.xlu0 %4904, %v4787
        %v4906 = vpop.permute.xlu0 %4905
        %4909 = vset.pattern.permute.xlu0 0
        %4910 = vperm.xlu0 %4909, %v4788
        %v4911 = vpop.permute.xlu0 %4910
        %4914 = vset.pattern.permute.xlu0 0
        %4915 = vperm.xlu0 %4914, %v4789
        %v4916 = vpop.permute.xlu0 %4915
        %4919 = vset.pattern.permute.xlu0 0
        %4920 = vperm.xlu0 %4919, %v4790
        %v4921 = vpop.permute.xlu0 %4920
        %4924 = vset.pattern.permute.xlu0 0
        %4925 = vperm.xlu0 %4924, %v4791
        %v4926 = vpop.permute.xlu0 %4925
        %4929 = vset.pattern.permute.xlu0 0
        %4930 = vperm.xlu0 %4929, %v4792
        %v4931 = vpop.permute.xlu0 %4930
        %4934 = vset.pattern.permute.xlu0 0
        %4935 = vperm.xlu0 %4934, %v4793
        %v4936 = vpop.permute.xlu0 %4935
        %4939 = vset.pattern.permute.xlu0 0
        %4940 = vperm.xlu0 %4939, %v4794
        %v4941 = vpop.permute.xlu0 %4940
        %4944 = vset.pattern.permute.xlu0 0
        %4945 = vperm.xlu0 %4944, %v4795
        %v4946 = vpop.permute.xlu0 %4945
        %4949 = vset.pattern.permute.xlu0 0
        %4950 = vperm.xlu0 %4949, %v4796
        %v4951 = vpop.permute.xlu0 %4950
        %4954 = vset.pattern.permute.xlu0 0
        %4955 = vperm.xlu0 %4954, %v4797
        %v4956 = vpop.permute.xlu0 %4955
        %4959 = vset.pattern.permute.xlu0 0
        %4960 = vperm.xlu0 %4959, %v4798
        %v4961 = vpop.permute.xlu0 %4960
        %4964 = vset.pattern.permute.xlu0 0
        %4965 = vperm.xlu0 %4964, %v4799
        %v4966 = vpop.permute.xlu0 %4965
        %4969 = vset.pattern.permute.xlu0 0
        %4970 = vperm.xlu0 %4969, %v4800
        %v4971 = vpop.permute.xlu0 %4970
        %4974 = vset.pattern.permute.xlu0 0
        %4975 = vperm.xlu0 %4974, %v4801
        %v4976 = vpop.permute.xlu0 %4975
        %4979 = vset.pattern.permute.xlu0 0
        %4980 = vperm.xlu0 %4979, %v4802
        %v4981 = vpop.permute.xlu0 %4980
        %4984 = vset.pattern.permute.xlu0 0
        %4985 = vperm.xlu0 %4984, %v4803
        %v4986 = vpop.permute.xlu0 %4985
        %4989 = vset.pattern.permute.xlu0 0
        %4990 = vperm.xlu0 %4989, %v4804
        %v4991 = vpop.permute.xlu0 %4990
        %4994 = vset.pattern.permute.xlu0 0
        %4995 = vperm.xlu0 %4994, %v4805
        %v4996 = vpop.permute.xlu0 %4995
        %v4998 = vmul.f32 %v4806, %v4841
        %v4999 = vmul.f32 %v4807, %v4846
        %v5000 = vmul.f32 %v4808, %v4851
        %v5001 = vmul.f32 %v4809, %v4856
        %v5002 = vmul.f32 %v4810, %v4861
        %v5003 = vmul.f32 %v4811, %v4866
        %v5004 = vmul.f32 %v4812, %v4871
        %v5005 = vmul.f32 %v4813, %v4876
        %v5006 = vmul.f32 %v4814, %v4881
        %v5007 = vmul.f32 %v4815, %v4886
        %v5008 = vmul.f32 %v4816, %v4891
        %v5009 = vmul.f32 %v4817, %v4896
        %v5010 = vmul.f32 %v4818, %v4901
        %v5011 = vmul.f32 %v4819, %v4906
        %v5012 = vmul.f32 %v4820, %v4911
        %v5013 = vmul.f32 %v4821, %v4916
        %v5014 = vmul.f32 %v4822, %v4921
        %v5015 = vmul.f32 %v4823, %v4926
        %v5016 = vmul.f32 %v4824, %v4931
        %v5017 = vmul.f32 %v4825, %v4936
        %v5018 = vmul.f32 %v4826, %v4941
        %v5019 = vmul.f32 %v4827, %v4946
        %v5020 = vmul.f32 %v4828, %v4951
        %v5021 = vmul.f32 %v4829, %v4956
        %v5022 = vmul.f32 %v4830, %v4961
        %v5023 = vmul.f32 %v4831, %v4966
        %v5024 = vmul.f32 %v4832, %v4971
        %v5025 = vmul.f32 %v4833, %v4976
        %v5026 = vmul.f32 %v4834, %v4981
        %v5027 = vmul.f32 %v4835, %v4986
        %v5028 = vmul.f32 %v4836, %v4991
        %v5029 = vmul.f32 %v4837, %v4996
        %v5030 = vpack.c.bf16 %v4999, %v4998
        %v5031 = vpack.c.bf16 %v5001, %v5000
        %v5032 = vpack.c.bf16 %v5003, %v5002
        %v5033 = vpack.c.bf16 %v5005, %v5004
        %v5034 = vpack.c.bf16 %v5007, %v5006
        %v5035 = vpack.c.bf16 %v5009, %v5008
        %v5036 = vpack.c.bf16 %v5011, %v5010
        %v5037 = vpack.c.bf16 %v5013, %v5012
        %v5038 = vpack.c.bf16 %v5015, %v5014
        %v5039 = vpack.c.bf16 %v5017, %v5016
        %v5040 = vpack.c.bf16 %v5019, %v5018
        %v5041 = vpack.c.bf16 %v5021, %v5020
        %v5042 = vpack.c.bf16 %v5023, %v5022
        %v5043 = vpack.c.bf16 %v5025, %v5024
        %v5044 = vpack.c.bf16 %v5027, %v5026
        %v5045 = vpack.c.bf16 %v5029, %v5028
        %v5062 = vunpack.c.l.b16 %v5030
        %v5063 = vunpack.c.h.b16 %v5030
        %v5064 = vunpack.c.l.b16 %v5031
        %v5065 = vunpack.c.h.b16 %v5031
        %v5066 = vunpack.c.l.b16 %v5032
        %v5067 = vunpack.c.h.b16 %v5032
        %v5068 = vunpack.c.l.b16 %v5033
        %v5069 = vunpack.c.h.b16 %v5033
        %v5070 = vunpack.c.l.b16 %v5034
        %v5071 = vunpack.c.h.b16 %v5034
        %v5072 = vunpack.c.l.b16 %v5035
        %v5073 = vunpack.c.h.b16 %v5035
        %v5074 = vunpack.c.l.b16 %v5036
        %v5075 = vunpack.c.h.b16 %v5036
        %v5076 = vunpack.c.l.b16 %v5037
        %v5077 = vunpack.c.h.b16 %v5037
        %v5078 = vunpack.c.l.b16 %v5038
        %v5079 = vunpack.c.h.b16 %v5038
        %v5080 = vunpack.c.l.b16 %v5039
        %v5081 = vunpack.c.h.b16 %v5039
        %v5082 = vunpack.c.l.b16 %v5040
        %v5083 = vunpack.c.h.b16 %v5040
        %v5084 = vunpack.c.l.b16 %v5041
        %v5085 = vunpack.c.h.b16 %v5041
        %v5086 = vunpack.c.l.b16 %v5042
        %v5087 = vunpack.c.h.b16 %v5042
        %v5088 = vunpack.c.l.b16 %v5043
        %v5089 = vunpack.c.h.b16 %v5043
        %v5090 = vunpack.c.l.b16 %v5044
        %v5091 = vunpack.c.h.b16 %v5044
        %v5092 = vunpack.c.l.b16 %v5045
        %v5093 = vunpack.c.h.b16 %v5045
        %v5094 = vpack.c.b16 %v5062, %v5062
        %v5095 = vpack.c.b16 %v5063, %v5063
        %v5096 = vpack.c.b16 %v5064, %v5064
        %v5097 = vpack.c.b16 %v5065, %v5065
        %v5098 = vpack.c.b16 %v5066, %v5066
        %v5099 = vpack.c.b16 %v5067, %v5067
        %v5100 = vpack.c.b16 %v5068, %v5068
        %v5101 = vpack.c.b16 %v5069, %v5069
        %v5102 = vpack.c.b16 %v5070, %v5070
        %v5103 = vpack.c.b16 %v5071, %v5071
        %v5104 = vpack.c.b16 %v5072, %v5072
        %v5105 = vpack.c.b16 %v5073, %v5073
        %v5106 = vpack.c.b16 %v5074, %v5074
        %v5107 = vpack.c.b16 %v5075, %v5075
        %v5108 = vpack.c.b16 %v5076, %v5076
        %v5109 = vpack.c.b16 %v5077, %v5077
        %v5110 = vpack.c.b16 %v5078, %v5078
        %v5111 = vpack.c.b16 %v5079, %v5079
        %v5112 = vpack.c.b16 %v5080, %v5080
        %v5113 = vpack.c.b16 %v5081, %v5081
        %v5114 = vpack.c.b16 %v5082, %v5082
        %v5115 = vpack.c.b16 %v5083, %v5083
        %v5116 = vpack.c.b16 %v5084, %v5084
        %v5117 = vpack.c.b16 %v5085, %v5085
        %v5118 = vpack.c.b16 %v5086, %v5086
        %v5119 = vpack.c.b16 %v5087, %v5087
        %v5120 = vpack.c.b16 %v5088, %v5088
        %v5121 = vpack.c.b16 %v5089, %v5089
        %v5122 = vpack.c.b16 %v5090, %v5090
        %v5123 = vpack.c.b16 %v5091, %v5091
        %v5124 = vpack.c.b16 %v5092, %v5092
        %v5125 = vpack.c.b16 %v5093, %v5093
        %vm5158 = vcmask 257024
        %5159 = vst.msk [vmem:[%s315] sm:$0xf] %vm5158, %v5094
        %5160 = vst.msk [vmem:[%s315 + $0x4] sm:$0xf] %vm5158, %v5095
        %5161 = vst.msk [vmem:[%s315 + $0x8] sm:$0xf] %vm5158, %v5096
        %5162 = vst.msk [vmem:[%s315 + $0xc] sm:$0xf] %vm5158, %v5097
        %5163 = vst.msk [vmem:[%s315 + $0x10] sm:$0xf] %vm5158, %v5098
        %5164 = vst.msk [vmem:[%s315 + $0x14] sm:$0xf] %vm5158, %v5099
        %5165 = vst.msk [vmem:[%s315 + $0x18] sm:$0xf] %vm5158, %v5100
        %5166 = vst.msk [vmem:[%s315 + $0x1c] sm:$0xf] %vm5158, %v5101
        %5167 = vst.msk [vmem:[%s315 + $0x20] sm:$0xf] %vm5158, %v5102
        %5168 = vst.msk [vmem:[%s315 + $0x24] sm:$0xf] %vm5158, %v5103
        %5169 = vst.msk [vmem:[%s315 + $0x28] sm:$0xf] %vm5158, %v5104
        %5170 = vst.msk [vmem:[%s315 + $0x2c] sm:$0xf] %vm5158, %v5105
        %5171 = vst.msk [vmem:[%s315 + $0x30] sm:$0xf] %vm5158, %v5106
        %5172 = vst.msk [vmem:[%s315 + $0x34] sm:$0xf] %vm5158, %v5107
        %5173 = vst.msk [vmem:[%s315 + $0x38] sm:$0xf] %vm5158, %v5108
        %5174 = vst.msk [vmem:[%s315 + $0x3c] sm:$0xf] %vm5158, %v5109
        %5175 = vst.msk [vmem:[%s315 + $0x40] sm:$0xf] %vm5158, %v5110
        %5176 = vst.msk [vmem:[%s315 + $0x44] sm:$0xf] %vm5158, %v5111
        %5177 = vst.msk [vmem:[%s315 + $0x48] sm:$0xf] %vm5158, %v5112
        %5178 = vst.msk [vmem:[%s315 + $0x4c] sm:$0xf] %vm5158, %v5113
        %5179 = vst.msk [vmem:[%s315 + $0x50] sm:$0xf] %vm5158, %v5114
        %5180 = vst.msk [vmem:[%s315 + $0x54] sm:$0xf] %vm5158, %v5115
        %5181 = vst.msk [vmem:[%s315 + $0x58] sm:$0xf] %vm5158, %v5116
        %5182 = vst.msk [vmem:[%s315 + $0x5c] sm:$0xf] %vm5158, %v5117
        %5183 = vst.msk [vmem:[%s315 + $0x60] sm:$0xf] %vm5158, %v5118
        %5184 = vst.msk [vmem:[%s315 + $0x64] sm:$0xf] %vm5158, %v5119
        %5185 = vst.msk [vmem:[%s315 + $0x68] sm:$0xf] %vm5158, %v5120
        %5186 = vst.msk [vmem:[%s315 + $0x6c] sm:$0xf] %vm5158, %v5121
        %5187 = vst.msk [vmem:[%s315 + $0x70] sm:$0xf] %vm5158, %v5122
        %5188 = vst.msk [vmem:[%s315 + $0x74] sm:$0xf] %vm5158, %v5123
        %5189 = vst.msk [vmem:[%s315 + $0x78] sm:$0xf] %vm5158, %v5124
        %5190 = vst.msk [vmem:[%s315 + $0x7c] sm:$0xf] %vm5158, %v5125
      $region44: #{causal_self_attention.4} parent=31 // pred_fallthru
        _
      %s5191 = smul.u32 8, %s20
      %p5192 = scmp.lt.s32.totalorder %s19, 1
      %s5193 = scalar_select %p5192, %s19, 1
      %p5194 = scmp.lt.s32.totalorder %s5191, 7
      %s5195 = scalar_select %p5194, %s5191, 7
      %s5196 = smul.addr %s5193, 32
      %s5197 = sadd.s32 %s5195, %s5196
      %s5198 = smul.addr %s5197, 4
      %s5199 = scalar_lea.vmem %s3, %s5198
      // Predicated region
      $region45: #{causal_self_attention.4} parent=31 // pred_check
        %p5200 = pneg %p145
      $region46: #{causal_self_attention.4} parent=31 // pred_check_branch
        %5202 = sbr.rel (%p5200) target = $region48
      $region47: #{causal_self_attention.4} parent=31 // pred_region
        %s5203 = smul.u32 8, %s20
      $region48: #{causal_self_attention.4} parent=31 // pred_fallthru
        _
    $region32: #{causal_self_attention.4} parent=5 // pred_fallthru
      _
    %p5204 = scmp.le.s32.totalorder 2, %s9
    // Predicated region
    $region49: #{causal_self_attention.4} parent=5 // pred_check
      %p5205 = pneg %p5204
    $region50: #{causal_self_attention.4} parent=5 // pred_check_branch
      %5207 = sbr.rel (%p5205) target = $region52
    $region51: #{causal_self_attention.4} parent=5 // pred_region
      %s5208 = ssub.s32 %s9, 2
      // Predicated region
      $region53: #{causal_self_attention.4} parent=51 // pred_check
        %p5209 = pneg %p151
      $region54: #{causal_self_attention.4} parent=51 // pred_check_branch
        %5211 = sbr.rel (%p5209) target = $region56
      $region55: #{causal_self_attention.4} parent=51 // pred_region
        %s5212 = smul.u32 8, %s23
        %p5213 = scmp.lt.s32.totalorder %s22, 1
        %s5214 = scalar_select %p5213, %s22, 1
        %p5215 = scmp.lt.s32.totalorder %s5212, 7
        %s5216 = scalar_select %p5215, %s5212, 7
        %s5217 = smul.addr %s5214, 32
        %s5218 = sadd.s32 %s5216, %s5217
        %s5219 = smul.addr %s5218, 4
        %s5220 = scalar_lea.vmem %s3, %s5219
      $region56: #{causal_self_attention.4} parent=51 // pred_fallthru
        _
    $region52: #{causal_self_attention.4} parent=5 // pred_fallthru
      _
  $region6: #{causal_self_attention.4} parent=0 // loop_footer
    %s13 = sadd.s32 1, %s9
  $region7: #{causal_self_attention.4} parent=0 // loop_footer_branch
    %8 = sbr.rel target = $region3
  $region8: #{causal_self_attention.4} parent=0 // loop_exit
    _

</llo_original>
